<compile_context>
chip_gen: v7x
topology: tpu7x:2x2x1
jax: 0.10.0
libtpu: 0.0.40
codegen_flags: <defaults>
</compile_context>

<pallas_src>
import functools

import jax
import jax.numpy as jnp
from jax import lax
from jax.experimental import pallas as pl
from jax.experimental.pallas import tpu as pltpu


# ----------------------------------------------------------------------------
# Fused Pallas kernel (one batch element per grid step)
# ----------------------------------------------------------------------------
def _fused_resblock_kernel(xp_ref, w1_ref, b1_ref,
                           w21_ref, b21_ref, w22_ref, b22_ref,
                           w23_ref, b23_ref, w3_ref, b3_ref,
                           o_ref, rp_ref, *, H, W, C):
    """Whole ResBlock for one batch element, intermediates kept on-chip.

    xp_ref : (1, H+2, W+2, Cin)   input, pre-padded by 1 (conv1)
    w1_ref : (9*Cin, C)           conv1 weights, taps stacked along rows
    w2*_ref: (9*C, C)             dilated-branch weights, taps stacked
    w3_ref : (3*C, Cout)          1x1 projection (rows ordered r1|r2|r3)
    b*_ref : (1, C) / (1, Cout)   biases
    o_ref  : (1, H, W, Cout)      output tile
    rp_ref : (H+10, W+10, C)      VMEM scratch: r padded once with pad=5
    """
    HW = H * W
    PAD = 5  # single shared padding = max dilation

    def lrelu(v):
        return jnp.where(v >= 0, v, 0.2 * v)

    # ---- stage 1: r = lrelu(conv3x3(x)), dil=1, via one im2col matmul -----
    xp = xp_ref[0]                                   # (H+2, W+2, Cin)
    cin = xp.shape[-1]
    taps = []
    for kh in range(3):
        for kw in range(3):
            win = xp[kh:kh + H, kw:kw + W, :]        # (H, W, Cin)
            taps.append(win.reshape(HW, cin))
    x_res = taps[4]                                  # center tap == original x
    col = jnp.concatenate(taps, axis=-1)             # (HW, 9*Cin)
    r = lrelu(jnp.dot(col, w1_ref[...],
                      preferred_element_type=jnp.float32) + b1_ref[...])

    # ---- pad r once (pad = max dilation) into VMEM scratch -----------------
    rp_ref[...] = jnp.zeros_like(rp_ref)
    rp_ref[PAD:PAD + H, PAD:PAD + W, :] = r.reshape(H, W, C)

    # ---- stage 2: three dilated branches fused with the 1x1 projection -----
    # out = x + b3 + sum_i lrelu(conv_dil_i(r)) @ w3[i*C:(i+1)*C]
    cout = o_ref.shape[-1]
    acc = x_res.astype(jnp.float32) + b3_ref[...]    # residual + proj bias
    branches = ((w21_ref, b21_ref, 1),
                (w22_ref, b22_ref, 3),
                (w23_ref, b23_ref, 5))
    for i, (w_ref, b_ref, dil) in enumerate(branches):
        taps = []
        for kh in range(3):
            for kw in range(3):
                r0 = PAD - dil + kh * dil
                c0 = PAD - dil + kw * dil
                win = rp_ref[r0:r0 + H, c0:c0 + W, :]     # (H, W, C)
                taps.append(win.reshape(HW, C))
        col = jnp.concatenate(taps, axis=-1)              # (HW, 9*C)
        br = lrelu(jnp.dot(col, w_ref[...],
                           preferred_element_type=jnp.float32) + b_ref[...])
        acc = acc + jnp.dot(br, w3_ref[i * C:(i + 1) * C, :],
                            preferred_element_type=jnp.float32)

    o_ref[...] = acc.reshape(1, H, W, cout).astype(o_ref.dtype)


# ----------------------------------------------------------------------------
# Wrapper: NCHW in/out (PyTorch convention), layout prep at trace time
# ----------------------------------------------------------------------------
def dalations_resblock(x_nchw, params):
    N, Cin, H, W = x_nchw.shape
    C = params["w1"].shape[0]                 # feature = in_channels
    Cout = params["w3"].shape[0]

    # Layout glue (outside the kernel): NCHW -> NHWC, pad input once (pad=1).
    x_nhwc = jnp.transpose(x_nchw, (0, 2, 3, 1))
    xp = jnp.pad(x_nhwc, ((0, 0), (1, 1), (1, 1), (0, 0)))

    # Pre-stack conv weights: OIHW -> rows ordered (kh*3+kw)*Cin + ci.
    def stack3x3(w_oihw):
        o, i = w_oihw.shape[0], w_oihw.shape[1]
        return jnp.transpose(w_oihw, (2, 3, 1, 0)).reshape(9 * i, o)

    w1s = stack3x3(params["w1"])
    w21s = stack3x3(params["w2_1"])
    w22s = stack3x3(params["w2_2"])
    w23s = stack3x3(params["w2_3"])
    w3s = params["w3"].reshape(Cout, 3 * C).T          # (3*C, Cout)
    row = lambda v: v.reshape(1, -1)

    kernel = functools.partial(_fused_resblock_kernel, H=H, W=W, C=C)
    full2d = lambda n: (0, 0)

    out_nhwc = pl.pallas_call(
        kernel,
        out_shape=jax.ShapeDtypeStruct((N, H, W, Cout), x_nchw.dtype),
        grid=(N,),
        in_specs=[
            pl.BlockSpec((1, H + 2, W + 2, Cin), lambda n: (n, 0, 0, 0)),
            pl.BlockSpec((9 * Cin, C), full2d), pl.BlockSpec((1, C), full2d),
            pl.BlockSpec((9 * C, C), full2d),   pl.BlockSpec((1, C), full2d),
            pl.BlockSpec((9 * C, C), full2d),   pl.BlockSpec((1, C), full2d),
            pl.BlockSpec((9 * C, C), full2d),   pl.BlockSpec((1, C), full2d),
            pl.BlockSpec((3 * C, Cout), full2d), pl.BlockSpec((1, Cout), full2d),
        ],
        out_specs=pl.BlockSpec((1, H, W, Cout), lambda n: (n, 0, 0, 0)),
        scratch_shapes=[pltpu.VMEM((H + 10, W + 10, C), jnp.float32)],
        compiler_params=pltpu.CompilerParams(
            dimension_semantics=("parallel",)),   # batch across TCs (v7x)
    )(xp, w1s, row(params["b1"]),
      w21s, row(params["b2_1"]), w22s, row(params["b2_2"]),
      w23s, row(params["b2_3"]), w3s, row(params["b3"]))

    return jnp.transpose(out_nhwc, (0, 3, 1, 2))        # back to NCHW


# ----------------------------------------------------------------------------
# Pure-JAX reference (NCHW, matches the PyTorch module)
# ----------------------------------------------------------------------------
def _ref_conv(x, w, b, dil):
    y = lax.conv_general_dilated(
        x, w, window_strides=(1, 1),
        padding=((dil, dil), (dil, dil)),
        rhs_dilation=(dil, dil),
        dimension_numbers=("NCHW", "OIHW", "NCHW"))
    return y + b.reshape(1, -1, 1, 1)


def dalations_resblock_ref(x, p):
    lrelu = lambda v: jnp.where(v >= 0, v, 0.2 * v)
    r = lrelu(_ref_conv(x, p["w1"], p["b1"], 1))
    r1 = lrelu(_ref_conv(r, p["w2_1"], p["b2_1"], 1))
    r2 = lrelu(_ref_conv(r, p["w2_2"], p["b2_2"], 3))
    r3 = lrelu(_ref_conv(r, p["w2_3"], p["b2_3"], 5))
    cat = jnp.concatenate([r1, r2, r3], axis=1)
    w3 = p["w3"].reshape(p["w3"].shape[0], -1)
    out = jnp.einsum("nchw,oc->nohw", cat, w3) + p["b3"].reshape(1, -1, 1, 1)
    return x + out


# ----------------------------------------------------------------------------
# Deterministic parameter init (PyTorch OIHW layout) + run
# ----------------------------------------------------------------------------
def init_params(key, in_channels, out_channels):
    f = in_channels
    ks = jax.random.split(key, 5)

    def w(k, shape, fan_in):
        return jax.random.normal(k, shape, jnp.float32) / jnp.sqrt(fan_in)

    return {
        "w1":   w(ks[0], (f, in_channels, 3, 3), 9 * in_channels),
        "b1":   0.01 * jnp.arange(f, dtype=jnp.float32),
        "w2_1": w(ks[1], (f, f, 3, 3), 9 * f),
        "b2_1": 0.02 * jnp.arange(f, dtype=jnp.float32),
        "w2_2": w(ks[2], (f, f, 3, 3), 9 * f),
        "b2_2": 0.03 * jnp.arange(f, dtype=jnp.float32),
        "w2_3": w(ks[3], (f, f, 3, 3), 9 * f),
        "b2_3": 0.04 * jnp.arange(f, dtype=jnp.float32),
        "w3":   w(ks[4], (out_channels, 3 * f, 1, 1), 3 * f),
        "b3":   0.05 * jnp.arange(out_channels, dtype=jnp.float32),
    }


if __name__ == "__main__":
    key = jax.random.PRNGKey(0)
    kx, kp = jax.random.split(key)

    N, C, H, W = 2, 4, 16, 16          # in_channels == out_channels (residual add)
    x = jax.random.normal(kx, (N, C, H, W), jnp.float32)
    params = init_params(kp, in_channels=C, out_channels=C)

    out = jax.block_until_ready(jax.jit(dalations_resblock)(x, params))

    ref = dalations_resblock_ref(x, params)
    assert out.shape == (N, C, H, W)
    assert jnp.allclose(out, ref, atol=1e-3, rtol=1e-3), "mismatch vs reference"

    print("KERNEL_OK")
</pallas_src>

<mosaic_0001>
module attributes {stable_mosaic.version = 11 : i64} {
  func.func @_fused_resblock_kernel(%arg0: i32, %arg1: memref<1x18x18x4xf32, #tpu.memory_space<vmem>>, %arg2: memref<36x4xf32, #tpu.memory_space<vmem>>, %arg3: memref<1x4xf32, #tpu.memory_space<vmem>>, %arg4: memref<36x4xf32, #tpu.memory_space<vmem>>, %arg5: memref<1x4xf32, #tpu.memory_space<vmem>>, %arg6: memref<36x4xf32, #tpu.memory_space<vmem>>, %arg7: memref<1x4xf32, #tpu.memory_space<vmem>>, %arg8: memref<36x4xf32, #tpu.memory_space<vmem>>, %arg9: memref<1x4xf32, #tpu.memory_space<vmem>>, %arg10: memref<12x4xf32, #tpu.memory_space<vmem>>, %arg11: memref<1x4xf32, #tpu.memory_space<vmem>>, %arg12: memref<1x16x16x4xf32, #tpu.memory_space<vmem>>, %arg13: memref<26x26x4xf32, #tpu.memory_space<vmem>>) attributes {dimension_semantics = [#tpu.dimension_semantics<parallel>], iteration_bounds = array<i64: 2>, scalar_prefetch = 0 : i64, scratch_operands = 1 : i64, tpu.core_type = #tpu.core_type<tc>, window_params = [{transform_indices = @transform_0, window_bounds = array<i64: 1, 18, 18, 4>}, {pipeline_mode = #tpu.pipeline_mode<synchronous>, transform_indices = @transform_1, window_bounds = array<i64: 36, 4>}, {pipeline_mode = #tpu.pipeline_mode<synchronous>, transform_indices = @transform_2, window_bounds = array<i64: 1, 4>}, {pipeline_mode = #tpu.pipeline_mode<synchronous>, transform_indices = @transform_3, window_bounds = array<i64: 36, 4>}, {pipeline_mode = #tpu.pipeline_mode<synchronous>, transform_indices = @transform_4, window_bounds = array<i64: 1, 4>}, {pipeline_mode = #tpu.pipeline_mode<synchronous>, transform_indices = @transform_5, window_bounds = array<i64: 36, 4>}, {pipeline_mode = #tpu.pipeline_mode<synchronous>, transform_indices = @transform_6, window_bounds = array<i64: 1, 4>}, {pipeline_mode = #tpu.pipeline_mode<synchronous>, transform_indices = @transform_7, window_bounds = array<i64: 36, 4>}, {pipeline_mode = #tpu.pipeline_mode<synchronous>, transform_indices = @transform_8, window_bounds = array<i64: 1, 4>}, {pipeline_mode = #tpu.pipeline_mode<synchronous>, transform_indices = @transform_9, window_bounds = array<i64: 12, 4>}, {pipeline_mode = #tpu.pipeline_mode<synchronous>, transform_indices = @transform_10, window_bounds = array<i64: 1, 4>}, {transform_indices = @transform_11, window_bounds = array<i64: 1, 16, 16, 4>}]} {
    %c0 = arith.constant 0 : index
    %c0_0 = arith.constant 0 : index
    %c0_1 = arith.constant 0 : index
    %c0_2 = arith.constant 0 : index
    %0 = vector.load %arg1[%c0, %c0_0, %c0_1, %c0_2] : memref<1x18x18x4xf32, #tpu.memory_space<vmem>>, vector<1x18x18x4xf32>
    %1 = vector.shape_cast %0 : vector<1x18x18x4xf32> to vector<18x18x4xf32>
    %2 = vector.extract_strided_slice %1 {offsets = [0, 0, 0], sizes = [16, 16, 4], strides = [1, 1, 1]} : vector<18x18x4xf32> to vector<16x16x4xf32>
    %3 = vector.shape_cast %2 : vector<16x16x4xf32> to vector<256x4xf32>
    %4 = vector.extract_strided_slice %1 {offsets = [0, 1, 0], sizes = [16, 16, 4], strides = [1, 1, 1]} : vector<18x18x4xf32> to vector<16x16x4xf32>
    %5 = vector.shape_cast %4 : vector<16x16x4xf32> to vector<256x4xf32>
    %6 = vector.extract_strided_slice %1 {offsets = [0, 2, 0], sizes = [16, 16, 4], strides = [1, 1, 1]} : vector<18x18x4xf32> to vector<16x16x4xf32>
    %7 = vector.shape_cast %6 : vector<16x16x4xf32> to vector<256x4xf32>
    %8 = vector.extract_strided_slice %1 {offsets = [1, 0, 0], sizes = [16, 16, 4], strides = [1, 1, 1]} : vector<18x18x4xf32> to vector<16x16x4xf32>
    %9 = vector.shape_cast %8 : vector<16x16x4xf32> to vector<256x4xf32>
    %10 = vector.extract_strided_slice %1 {offsets = [1, 1, 0], sizes = [16, 16, 4], strides = [1, 1, 1]} : vector<18x18x4xf32> to vector<16x16x4xf32>
    %11 = vector.shape_cast %10 : vector<16x16x4xf32> to vector<256x4xf32>
    %12 = vector.extract_strided_slice %1 {offsets = [1, 2, 0], sizes = [16, 16, 4], strides = [1, 1, 1]} : vector<18x18x4xf32> to vector<16x16x4xf32>
    %13 = vector.shape_cast %12 : vector<16x16x4xf32> to vector<256x4xf32>
    %14 = vector.extract_strided_slice %1 {offsets = [2, 0, 0], sizes = [16, 16, 4], strides = [1, 1, 1]} : vector<18x18x4xf32> to vector<16x16x4xf32>
    %15 = vector.shape_cast %14 : vector<16x16x4xf32> to vector<256x4xf32>
    %16 = vector.extract_strided_slice %1 {offsets = [2, 1, 0], sizes = [16, 16, 4], strides = [1, 1, 1]} : vector<18x18x4xf32> to vector<16x16x4xf32>
    %17 = vector.shape_cast %16 : vector<16x16x4xf32> to vector<256x4xf32>
    %18 = vector.extract_strided_slice %1 {offsets = [2, 2, 0], sizes = [16, 16, 4], strides = [1, 1, 1]} : vector<18x18x4xf32> to vector<16x16x4xf32>
    %19 = vector.shape_cast %18 : vector<16x16x4xf32> to vector<256x4xf32>
    %20 = tpu.concatenate %3, %5, %7, %9, %11, %13, %15, %17, %19 in 1 : vector<256x4xf32>, vector<256x4xf32>, vector<256x4xf32>, vector<256x4xf32>, vector<256x4xf32>, vector<256x4xf32>, vector<256x4xf32>, vector<256x4xf32>, vector<256x4xf32> -> vector<256x36xf32>
    %c0_3 = arith.constant 0 : index
    %c0_4 = arith.constant 0 : index
    %21 = vector.load %arg2[%c0_3, %c0_4] : memref<36x4xf32, #tpu.memory_space<vmem>>, vector<36x4xf32>
    %cst = arith.constant dense<0.000000e+00> : vector<256x4xf32>
    %22 = tpu.matmul %20, %21, %cst {dimension_numbers = #tpu.dot_dimension_numbers<[1], [0], [0], [1], [0, 0, 1, 1], [], []>} : vector<256x36xf32>, vector<36x4xf32>, vector<256x4xf32> -> vector<256x4xf32>
    %c0_5 = arith.constant 0 : index
    %c0_6 = arith.constant 0 : index
    %23 = vector.load %arg3[%c0_5, %c0_6] : memref<1x4xf32, #tpu.memory_space<vmem>>, vector<1x4xf32>
    %24 = vector.broadcast %23 : vector<1x4xf32> to vector<256x4xf32>
    %25 = arith.addf %22, %24 : vector<256x4xf32>
    %cst_7 = arith.constant 0.000000e+00 : f32
    %26 = vector.broadcast %cst_7 : f32 to vector<256x4xf32>
    %27 = arith.cmpf oge, %25, %26 : vector<256x4xf32>
    %cst_8 = arith.constant 2.000000e-01 : f32
    %28 = vector.broadcast %cst_8 : f32 to vector<256x4xf32>
    %29 = arith.mulf %28, %25 : vector<256x4xf32>
    %30 = arith.select %27, %25, %29 : vector<256x4xi1>, vector<256x4xf32>
    %cst_9 = arith.constant 0.000000e+00 : f32
    %31 = vector.broadcast %cst_9 : f32 to vector<26x26x4xf32>
    %c0_10 = arith.constant 0 : index
    %c0_11 = arith.constant 0 : index
    %c0_12 = arith.constant 0 : index
    %32 = vector.load %arg13[%c0_10, %c0_11, %c0_12] : memref<26x26x4xf32, #tpu.memory_space<vmem>>, vector<26x26x4xf32>
    tpu.vector_store %arg13[%c0_10, %c0_11, %c0_12], %31 {strides = array<i32>} : memref<26x26x4xf32, #tpu.memory_space<vmem>>, vector<26x26x4xf32>,
    %33 = vector.shape_cast %30 : vector<256x4xf32> to vector<16x16x4xf32>
    %c5 = arith.constant 5 : index
    %c5_13 = arith.constant 5 : index
    %c0_14 = arith.constant 0 : index
    %34 = vector.load %arg13[%c5, %c5_13, %c0_14] : memref<26x26x4xf32, #tpu.memory_space<vmem>>, vector<16x16x4xf32>
    tpu.vector_store %arg13[%c5, %c5_13, %c0_14], %33 {strides = array<i32>} : memref<26x26x4xf32, #tpu.memory_space<vmem>>, vector<16x16x4xf32>,
    %c0_15 = arith.constant 0 : index
    %c0_16 = arith.constant 0 : index
    %35 = vector.load %arg11[%c0_15, %c0_16] : memref<1x4xf32, #tpu.memory_space<vmem>>, vector<1x4xf32>
    %36 = vector.broadcast %35 : vector<1x4xf32> to vector<256x4xf32>
    %37 = arith.addf %11, %36 : vector<256x4xf32>
    %c4 = arith.constant 4 : index
    %c4_17 = arith.constant 4 : index
    %c0_18 = arith.constant 0 : index
    %38 = vector.load %arg13[%c4, %c4_17, %c0_18] : memref<26x26x4xf32, #tpu.memory_space<vmem>>, vector<16x16x4xf32>
    %39 = vector.shape_cast %38 : vector<16x16x4xf32> to vector<256x4xf32>
    %c4_19 = arith.constant 4 : index
    %c5_20 = arith.constant 5 : index
    %c0_21 = arith.constant 0 : index
    %40 = vector.load %arg13[%c4_19, %c5_20, %c0_21] : memref<26x26x4xf32, #tpu.memory_space<vmem>>, vector<16x16x4xf32>
    %41 = vector.shape_cast %40 : vector<16x16x4xf32> to vector<256x4xf32>
    %c4_22 = arith.constant 4 : index
    %c6 = arith.constant 6 : index
    %c0_23 = arith.constant 0 : index
    %42 = vector.load %arg13[%c4_22, %c6, %c0_23] : memref<26x26x4xf32, #tpu.memory_space<vmem>>, vector<16x16x4xf32>
    %43 = vector.shape_cast %42 : vector<16x16x4xf32> to vector<256x4xf32>
    %c5_24 = arith.constant 5 : index
    %c4_25 = arith.constant 4 : index
    %c0_26 = arith.constant 0 : index
    %44 = vector.load %arg13[%c5_24, %c4_25, %c0_26] : memref<26x26x4xf32, #tpu.memory_space<vmem>>, vector<16x16x4xf32>
    %45 = vector.shape_cast %44 : vector<16x16x4xf32> to vector<256x4xf32>
    %c5_27 = arith.constant 5 : index
    %c5_28 = arith.constant 5 : index
    %c0_29 = arith.constant 0 : index
    %46 = vector.load %arg13[%c5_27, %c5_28, %c0_29] : memref<26x26x4xf32, #tpu.memory_space<vmem>>, vector<16x16x4xf32>
    %47 = vector.shape_cast %46 : vector<16x16x4xf32> to vector<256x4xf32>
    %c5_30 = arith.constant 5 : index
    %c6_31 = arith.constant 6 : index
    %c0_32 = arith.constant 0 : index
    %48 = vector.load %arg13[%c5_30, %c6_31, %c0_32] : memref<26x26x4xf32, #tpu.memory_space<vmem>>, vector<16x16x4xf32>
    %49 = vector.shape_cast %48 : vector<16x16x4xf32> to vector<256x4xf32>
    %c6_33 = arith.constant 6 : index
    %c4_34 = arith.constant 4 : index
    %c0_35 = arith.constant 0 : index
    %50 = vector.load %arg13[%c6_33, %c4_34, %c0_35] : memref<26x26x4xf32, #tpu.memory_space<vmem>>, vector<16x16x4xf32>
    %51 = vector.shape_cast %50 : vector<16x16x4xf32> to vector<256x4xf32>
    %c6_36 = arith.constant 6 : index
    %c5_37 = arith.constant 5 : index
    %c0_38 = arith.constant 0 : index
    %52 = vector.load %arg13[%c6_36, %c5_37, %c0_38] : memref<26x26x4xf32, #tpu.memory_space<vmem>>, vector<16x16x4xf32>
    %53 = vector.shape_cast %52 : vector<16x16x4xf32> to vector<256x4xf32>
    %c6_39 = arith.constant 6 : index
    %c6_40 = arith.constant 6 : index
    %c0_41 = arith.constant 0 : index
    %54 = vector.load %arg13[%c6_39, %c6_40, %c0_41] : memref<26x26x4xf32, #tpu.memory_space<vmem>>, vector<16x16x4xf32>
    %55 = vector.shape_cast %54 : vector<16x16x4xf32> to vector<256x4xf32>
    %56 = tpu.concatenate %39, %41, %43, %45, %47, %49, %51, %53, %55 in 1 : vector<256x4xf32>, vector<256x4xf32>, vector<256x4xf32>, vector<256x4xf32>, vector<256x4xf32>, vector<256x4xf32>, vector<256x4xf32>, vector<256x4xf32>, vector<256x4xf32> -> vector<256x36xf32>
    %c0_42 = arith.constant 0 : index
    %c0_43 = arith.constant 0 : index
    %57 = vector.load %arg4[%c0_42, %c0_43] : memref<36x4xf32, #tpu.memory_space<vmem>>, vector<36x4xf32>
    %cst_44 = arith.constant dense<0.000000e+00> : vector<256x4xf32>
    %58 = tpu.matmul %56, %57, %cst_44 {dimension_numbers = #tpu.dot_dimension_numbers<[1], [0], [0], [1], [0, 0, 1, 1], [], []>} : vector<256x36xf32>, vector<36x4xf32>, vector<256x4xf32> -> vector<256x4xf32>
    %c0_45 = arith.constant 0 : index
    %c0_46 = arith.constant 0 : index
    %59 = vector.load %arg5[%c0_45, %c0_46] : memref<1x4xf32, #tpu.memory_space<vmem>>, vector<1x4xf32>
    %60 = vector.broadcast %59 : vector<1x4xf32> to vector<256x4xf32>
    %61 = arith.addf %58, %60 : vector<256x4xf32>
    %cst_47 = arith.constant 0.000000e+00 : f32
    %62 = vector.broadcast %cst_47 : f32 to vector<256x4xf32>
    %63 = arith.cmpf oge, %61, %62 : vector<256x4xf32>
    %cst_48 = arith.constant 2.000000e-01 : f32
    %64 = vector.broadcast %cst_48 : f32 to vector<256x4xf32>
    %65 = arith.mulf %64, %61 : vector<256x4xf32>
    %66 = arith.select %63, %61, %65 : vector<256x4xi1>, vector<256x4xf32>
    %c0_49 = arith.constant 0 : index
    %c0_50 = arith.constant 0 : index
    %67 = vector.load %arg10[%c0_49, %c0_50] : memref<12x4xf32, #tpu.memory_space<vmem>>, vector<4x4xf32>
    %cst_51 = arith.constant dense<0.000000e+00> : vector<256x4xf32>
    %68 = tpu.matmul %66, %67, %cst_51 {dimension_numbers = #tpu.dot_dimension_numbers<[1], [0], [0], [1], [0, 0, 1, 1], [], []>} : vector<256x4xf32>, vector<4x4xf32>, vector<256x4xf32> -> vector<256x4xf32>
    %69 = arith.addf %37, %68 : vector<256x4xf32>
    %c2 = arith.constant 2 : index
    %c2_52 = arith.constant 2 : index
    %c0_53 = arith.constant 0 : index
    %70 = vector.load %arg13[%c2, %c2_52, %c0_53] : memref<26x26x4xf32, #tpu.memory_space<vmem>>, vector<16x16x4xf32>
    %71 = vector.shape_cast %70 : vector<16x16x4xf32> to vector<256x4xf32>
    %c2_54 = arith.constant 2 : index
    %c5_55 = arith.constant 5 : index
    %c0_56 = arith.constant 0 : index
    %72 = vector.load %arg13[%c2_54, %c5_55, %c0_56] : memref<26x26x4xf32, #tpu.memory_space<vmem>>, vector<16x16x4xf32>
    %73 = vector.shape_cast %72 : vector<16x16x4xf32> to vector<256x4xf32>
    %c2_57 = arith.constant 2 : index
    %c8 = arith.constant 8 : index
    %c0_58 = arith.constant 0 : index
    %74 = vector.load %arg13[%c2_57, %c8, %c0_58] : memref<26x26x4xf32, #tpu.memory_space<vmem>>, vector<16x16x4xf32>
    %75 = vector.shape_cast %74 : vector<16x16x4xf32> to vector<256x4xf32>
    %c5_59 = arith.constant 5 : index
    %c2_60 = arith.constant 2 : index
    %c0_61 = arith.constant 0 : index
    %76 = vector.load %arg13[%c5_59, %c2_60, %c0_61] : memref<26x26x4xf32, #tpu.memory_space<vmem>>, vector<16x16x4xf32>
    %77 = vector.shape_cast %76 : vector<16x16x4xf32> to vector<256x4xf32>
    %c5_62 = arith.constant 5 : index
    %c5_63 = arith.constant 5 : index
    %c0_64 = arith.constant 0 : index
    %78 = vector.load %arg13[%c5_62, %c5_63, %c0_64] : memref<26x26x4xf32, #tpu.memory_space<vmem>>, vector<16x16x4xf32>
    %79 = vector.shape_cast %78 : vector<16x16x4xf32> to vector<256x4xf32>
    %c5_65 = arith.constant 5 : index
    %c8_66 = arith.constant 8 : index
    %c0_67 = arith.constant 0 : index
    %80 = vector.load %arg13[%c5_65, %c8_66, %c0_67] : memref<26x26x4xf32, #tpu.memory_space<vmem>>, vector<16x16x4xf32>
    %81 = vector.shape_cast %80 : vector<16x16x4xf32> to vector<256x4xf32>
    %c8_68 = arith.constant 8 : index
    %c2_69 = arith.constant 2 : index
    %c0_70 = arith.constant 0 : index
    %82 = vector.load %arg13[%c8_68, %c2_69, %c0_70] : memref<26x26x4xf32, #tpu.memory_space<vmem>>, vector<16x16x4xf32>
    %83 = vector.shape_cast %82 : vector<16x16x4xf32> to vector<256x4xf32>
    %c8_71 = arith.constant 8 : index
    %c5_72 = arith.constant 5 : index
    %c0_73 = arith.constant 0 : index
    %84 = vector.load %arg13[%c8_71, %c5_72, %c0_73] : memref<26x26x4xf32, #tpu.memory_space<vmem>>, vector<16x16x4xf32>
    %85 = vector.shape_cast %84 : vector<16x16x4xf32> to vector<256x4xf32>
    %c8_74 = arith.constant 8 : index
    %c8_75 = arith.constant 8 : index
    %c0_76 = arith.constant 0 : index
    %86 = vector.load %arg13[%c8_74, %c8_75, %c0_76] : memref<26x26x4xf32, #tpu.memory_space<vmem>>, vector<16x16x4xf32>
    %87 = vector.shape_cast %86 : vector<16x16x4xf32> to vector<256x4xf32>
    %88 = tpu.concatenate %71, %73, %75, %77, %79, %81, %83, %85, %87 in 1 : vector<256x4xf32>, vector<256x4xf32>, vector<256x4xf32>, vector<256x4xf32>, vector<256x4xf32>, vector<256x4xf32>, vector<256x4xf32>, vector<256x4xf32>, vector<256x4xf32> -> vector<256x36xf32>
    %c0_77 = arith.constant 0 : index
    %c0_78 = arith.constant 0 : index
    %89 = vector.load %arg6[%c0_77, %c0_78] : memref<36x4xf32, #tpu.memory_space<vmem>>, vector<36x4xf32>
    %cst_79 = arith.constant dense<0.000000e+00> : vector<256x4xf32>
    %90 = tpu.matmul %88, %89, %cst_79 {dimension_numbers = #tpu.dot_dimension_numbers<[1], [0], [0], [1], [0, 0, 1, 1], [], []>} : vector<256x36xf32>, vector<36x4xf32>, vector<256x4xf32> -> vector<256x4xf32>
    %c0_80 = arith.constant 0 : index
    %c0_81 = arith.constant 0 : index
    %91 = vector.load %arg7[%c0_80, %c0_81] : memref<1x4xf32, #tpu.memory_space<vmem>>, vector<1x4xf32>
    %92 = vector.broadcast %91 : vector<1x4xf32> to vector<256x4xf32>
    %93 = arith.addf %90, %92 : vector<256x4xf32>
    %cst_82 = arith.constant 0.000000e+00 : f32
    %94 = vector.broadcast %cst_82 : f32 to vector<256x4xf32>
    %95 = arith.cmpf oge, %93, %94 : vector<256x4xf32>
    %cst_83 = arith.constant 2.000000e-01 : f32
    %96 = vector.broadcast %cst_83 : f32 to vector<256x4xf32>
    %97 = arith.mulf %96, %93 : vector<256x4xf32>
    %98 = arith.select %95, %93, %97 : vector<256x4xi1>, vector<256x4xf32>
    %c4_84 = arith.constant 4 : index
    %c0_85 = arith.constant 0 : index
    %99 = vector.load %arg10[%c4_84, %c0_85] : memref<12x4xf32, #tpu.memory_space<vmem>>, vector<4x4xf32>
    %cst_86 = arith.constant dense<0.000000e+00> : vector<256x4xf32>
    %100 = tpu.matmul %98, %99, %cst_86 {dimension_numbers = #tpu.dot_dimension_numbers<[1], [0], [0], [1], [0, 0, 1, 1], [], []>} : vector<256x4xf32>, vector<4x4xf32>, vector<256x4xf32> -> vector<256x4xf32>
    %101 = arith.addf %69, %100 : vector<256x4xf32>
    %c0_87 = arith.constant 0 : index
    %c0_88 = arith.constant 0 : index
    %c0_89 = arith.constant 0 : index
    %102 = vector.load %arg13[%c0_87, %c0_88, %c0_89] : memref<26x26x4xf32, #tpu.memory_space<vmem>>, vector<16x16x4xf32>
    %103 = vector.shape_cast %102 : vector<16x16x4xf32> to vector<256x4xf32>
    %c0_90 = arith.constant 0 : index
    %c5_91 = arith.constant 5 : index
    %c0_92 = arith.constant 0 : index
    %104 = vector.load %arg13[%c0_90, %c5_91, %c0_92] : memref<26x26x4xf32, #tpu.memory_space<vmem>>, vector<16x16x4xf32>
    %105 = vector.shape_cast %104 : vector<16x16x4xf32> to vector<256x4xf32>
    %c0_93 = arith.constant 0 : index
    %c10 = arith.constant 10 : index
    %c0_94 = arith.constant 0 : index
    %106 = vector.load %arg13[%c0_93, %c10, %c0_94] : memref<26x26x4xf32, #tpu.memory_space<vmem>>, vector<16x16x4xf32>
    %107 = vector.shape_cast %106 : vector<16x16x4xf32> to vector<256x4xf32>
    %c5_95 = arith.constant 5 : index
    %c0_96 = arith.constant 0 : index
    %c0_97 = arith.constant 0 : index
    %108 = vector.load %arg13[%c5_95, %c0_96, %c0_97] : memref<26x26x4xf32, #tpu.memory_space<vmem>>, vector<16x16x4xf32>
    %109 = vector.shape_cast %108 : vector<16x16x4xf32> to vector<256x4xf32>
    %c5_98 = arith.constant 5 : index
    %c5_99 = arith.constant 5 : index
    %c0_100 = arith.constant 0 : index
    %110 = vector.load %arg13[%c5_98, %c5_99, %c0_100] : memref<26x26x4xf32, #tpu.memory_space<vmem>>, vector<16x16x4xf32>
    %111 = vector.shape_cast %110 : vector<16x16x4xf32> to vector<256x4xf32>
    %c5_101 = arith.constant 5 : index
    %c10_102 = arith.constant 10 : index
    %c0_103 = arith.constant 0 : index
    %112 = vector.load %arg13[%c5_101, %c10_102, %c0_103] : memref<26x26x4xf32, #tpu.memory_space<vmem>>, vector<16x16x4xf32>
    %113 = vector.shape_cast %112 : vector<16x16x4xf32> to vector<256x4xf32>
    %c10_104 = arith.constant 10 : index
    %c0_105 = arith.constant 0 : index
    %c0_106 = arith.constant 0 : index
    %114 = vector.load %arg13[%c10_104, %c0_105, %c0_106] : memref<26x26x4xf32, #tpu.memory_space<vmem>>, vector<16x16x4xf32>
    %115 = vector.shape_cast %114 : vector<16x16x4xf32> to vector<256x4xf32>
    %c10_107 = arith.constant 10 : index
    %c5_108 = arith.constant 5 : index
    %c0_109 = arith.constant 0 : index
    %116 = vector.load %arg13[%c10_107, %c5_108, %c0_109] : memref<26x26x4xf32, #tpu.memory_space<vmem>>, vector<16x16x4xf32>
    %117 = vector.shape_cast %116 : vector<16x16x4xf32> to vector<256x4xf32>
    %c10_110 = arith.constant 10 : index
    %c10_111 = arith.constant 10 : index
    %c0_112 = arith.constant 0 : index
    %118 = vector.load %arg13[%c10_110, %c10_111, %c0_112] : memref<26x26x4xf32, #tpu.memory_space<vmem>>, vector<16x16x4xf32>
    %119 = vector.shape_cast %118 : vector<16x16x4xf32> to vector<256x4xf32>
    %120 = tpu.concatenate %103, %105, %107, %109, %111, %113, %115, %117, %119 in 1 : vector<256x4xf32>, vector<256x4xf32>, vector<256x4xf32>, vector<256x4xf32>, vector<256x4xf32>, vector<256x4xf32>, vector<256x4xf32>, vector<256x4xf32>, vector<256x4xf32> -> vector<256x36xf32>
    %c0_113 = arith.constant 0 : index
    %c0_114 = arith.constant 0 : index
    %121 = vector.load %arg8[%c0_113, %c0_114] : memref<36x4xf32, #tpu.memory_space<vmem>>, vector<36x4xf32>
    %cst_115 = arith.constant dense<0.000000e+00> : vector<256x4xf32>
    %122 = tpu.matmul %120, %121, %cst_115 {dimension_numbers = #tpu.dot_dimension_numbers<[1], [0], [0], [1], [0, 0, 1, 1], [], []>} : vector<256x36xf32>, vector<36x4xf32>, vector<256x4xf32> -> vector<256x4xf32>
    %c0_116 = arith.constant 0 : index
    %c0_117 = arith.constant 0 : index
    %123 = vector.load %arg9[%c0_116, %c0_117] : memref<1x4xf32, #tpu.memory_space<vmem>>, vector<1x4xf32>
    %124 = vector.broadcast %123 : vector<1x4xf32> to vector<256x4xf32>
    %125 = arith.addf %122, %124 : vector<256x4xf32>
    %cst_118 = arith.constant 0.000000e+00 : f32
    %126 = vector.broadcast %cst_118 : f32 to vector<256x4xf32>
    %127 = arith.cmpf oge, %125, %126 : vector<256x4xf32>
    %cst_119 = arith.constant 2.000000e-01 : f32
    %128 = vector.broadcast %cst_119 : f32 to vector<256x4xf32>
    %129 = arith.mulf %128, %125 : vector<256x4xf32>
    %130 = arith.select %127, %125, %129 : vector<256x4xi1>, vector<256x4xf32>
    %c8_120 = arith.constant 8 : index
    %c0_121 = arith.constant 0 : index
    %131 = vector.load %arg10[%c8_120, %c0_121] : memref<12x4xf32, #tpu.memory_space<vmem>>, vector<4x4xf32>
    %cst_122 = arith.constant dense<0.000000e+00> : vector<256x4xf32>
    %132 = tpu.matmul %130, %131, %cst_122 {dimension_numbers = #tpu.dot_dimension_numbers<[1], [0], [0], [1], [0, 0, 1, 1], [], []>} : vector<256x4xf32>, vector<4x4xf32>, vector<256x4xf32> -> vector<256x4xf32>
    %133 = arith.addf %101, %132 : vector<256x4xf32>
    %134 = vector.shape_cast %133 : vector<256x4xf32> to vector<1x16x16x4xf32>
    %c0_123 = arith.constant 0 : index
    %c0_124 = arith.constant 0 : index
    %c0_125 = arith.constant 0 : index
    %c0_126 = arith.constant 0 : index
    %135 = vector.load %arg12[%c0_123, %c0_124, %c0_125, %c0_126] : memref<1x16x16x4xf32, #tpu.memory_space<vmem>>, vector<1x16x16x4xf32>
    tpu.vector_store %arg12[%c0_123, %c0_124, %c0_125, %c0_126], %134 {strides = array<i32>} : memref<1x16x16x4xf32, #tpu.memory_space<vmem>>, vector<1x16x16x4xf32>,
    return
  }
  func.func @transform_0(%arg0: i32) -> (i32, i32, i32, i32) {
    %c0_i32 = arith.constant 0 : i32
    %c0_i32_0 = arith.constant 0 : i32
    %c0_i32_1 = arith.constant 0 : i32
    %c0_i32_2 = arith.constant 0 : i32
    return %arg0, %c0_i32, %c0_i32_0, %c0_i32_1 : i32, i32, i32, i32
  }
  func.func @transform_1(%arg0: i32) -> (i32, i32) {
    %c0_i32 = arith.constant 0 : i32
    %c0_i32_0 = arith.constant 0 : i32
    %c0_i32_1 = arith.constant 0 : i32
    return %c0_i32, %c0_i32_0 : i32, i32
  }
  func.func @transform_2(%arg0: i32) -> (i32, i32) {
    %c0_i32 = arith.constant 0 : i32
    %c0_i32_0 = arith.constant 0 : i32
    %c0_i32_1 = arith.constant 0 : i32
    return %c0_i32, %c0_i32_0 : i32, i32
  }
  func.func @transform_3(%arg0: i32) -> (i32, i32) {
    %c0_i32 = arith.constant 0 : i32
    %c0_i32_0 = arith.constant 0 : i32
    %c0_i32_1 = arith.constant 0 : i32
    return %c0_i32, %c0_i32_0 : i32, i32
  }
  func.func @transform_4(%arg0: i32) -> (i32, i32) {
    %c0_i32 = arith.constant 0 : i32
    %c0_i32_0 = arith.constant 0 : i32
    %c0_i32_1 = arith.constant 0 : i32
    return %c0_i32, %c0_i32_0 : i32, i32
  }
  func.func @transform_5(%arg0: i32) -> (i32, i32) {
    %c0_i32 = arith.constant 0 : i32
    %c0_i32_0 = arith.constant 0 : i32
    %c0_i32_1 = arith.constant 0 : i32
    return %c0_i32, %c0_i32_0 : i32, i32
  }
  func.func @transform_6(%arg0: i32) -> (i32, i32) {
    %c0_i32 = arith.constant 0 : i32
    %c0_i32_0 = arith.constant 0 : i32
    %c0_i32_1 = arith.constant 0 : i32
    return %c0_i32, %c0_i32_0 : i32, i32
  }
  func.func @transform_7(%arg0: i32) -> (i32, i32) {
    %c0_i32 = arith.constant 0 : i32
    %c0_i32_0 = arith.constant 0 : i32
    %c0_i32_1 = arith.constant 0 : i32
    return %c0_i32, %c0_i32_0 : i32, i32
  }
  func.func @transform_8(%arg0: i32) -> (i32, i32) {
    %c0_i32 = arith.constant 0 : i32
    %c0_i32_0 = arith.constant 0 : i32
    %c0_i32_1 = arith.constant 0 : i32
    return %c0_i32, %c0_i32_0 : i32, i32
  }
  func.func @transform_9(%arg0: i32) -> (i32, i32) {
    %c0_i32 = arith.constant 0 : i32
    %c0_i32_0 = arith.constant 0 : i32
    %c0_i32_1 = arith.constant 0 : i32
    return %c0_i32, %c0_i32_0 : i32, i32
  }
  func.func @transform_10(%arg0: i32) -> (i32, i32) {
    %c0_i32 = arith.constant 0 : i32
    %c0_i32_0 = arith.constant 0 : i32
    %c0_i32_1 = arith.constant 0 : i32
    return %c0_i32, %c0_i32_0 : i32, i32
  }
  func.func @transform_11(%arg0: i32) -> (i32, i32, i32, i32) {
    %c0_i32 = arith.constant 0 : i32
    %c0_i32_0 = arith.constant 0 : i32
    %c0_i32_1 = arith.constant 0 : i32
    %c0_i32_2 = arith.constant 0 : i32
    return %arg0, %c0_i32, %c0_i32_0, %c0_i32_1 : i32, i32, i32, i32
  }
}

</mosaic_0001>

<llo_original>
// kernel: dalations_resblock.1
$region0: #{dalations_resblock.1}
  #allocation0 [shape = 'u32[]', space=smem, size = 0x4, offset = 0x4, fixed_abs, tag = 'smem constant byte address 0x4 - core index']
  #allocation1 [shape = 'u32[144,128]{1,0:T(1,128)}', space=vmem, size = 0x12000, scoped, tag = 'internal scratch']
  #allocation2 [shape = 'f32[26,26,4]{2,1,0:T(8,128)}', space=vmem, size = 0x68000, scoped, tag = 'scratch operand']
  %s0 = inlined_call_operand.vmem [shape: f32[2,18,18,4], index: 0, kind: input, shape index: {}]
  %s1 = inlined_call_operand.vmem [shape: f32[36,4], index: 1, kind: input, shape index: {}]
  %s2 = inlined_call_operand.vmem [shape: f32[1,4], index: 2, kind: input, shape index: {}]
  %s3 = inlined_call_operand.vmem [shape: f32[36,4], index: 3, kind: input, shape index: {}]
  %s4 = inlined_call_operand.vmem [shape: f32[1,4], index: 4, kind: input, shape index: {}]
  %s5 = inlined_call_operand.vmem [shape: f32[36,4], index: 5, kind: input, shape index: {}]
  %s6 = inlined_call_operand.vmem [shape: f32[1,4], index: 6, kind: input, shape index: {}]
  %s7 = inlined_call_operand.vmem [shape: f32[36,4], index: 7, kind: input, shape index: {}]
  %s8 = inlined_call_operand.vmem [shape: f32[1,4], index: 8, kind: input, shape index: {}]
  %s9 = inlined_call_operand.vmem [shape: f32[12,4], index: 9, kind: input, shape index: {}]
  %s10 = inlined_call_operand.vmem [shape: f32[1,4], index: 10, kind: input, shape index: {}]
  %s11 = inlined_call_operand.vmem [shape: f32[2,16,16,4], index: 11, kind: output, shape index: {}]
  %s12 = sld [smem:[#allocation0]]
  $region77: #{dalations_resblock.1} parent=0
    _
  %s14 = ssub.s32 1, %s12
  %s15 = scalar_select 0, %s14, %s12
  loop: start=0, step=1, limit=4
  $region2: #{dalations_resblock.1} parent=0 // loop_pre_header
    _
  $region3: #{dalations_resblock.1} parent=0 // loop_header
    %s17 = sphi 0, %s21
    %p18 = scmp.ge.s32.totalorder %s17, 4
    %s27 = sphi 0, %s29
    %s30 = sphi 0, %s27
    %s31 = sphi 0, %s30
    %s47 = sphi 0, %s31
    %s51 = sphi 0, %s51
    %s53 = sphi 0, %s51
    %s54 = sphi 0, %s53
    %s68 = sphi 0, %s54
    %s72 = sphi 0, %s72
    %s74 = sphi 0, %s72
    %s75 = sphi 0, %s74
    %s89 = sphi 0, %s75
    %s93 = sphi 0, %s93
    %s95 = sphi 0, %s93
    %s96 = sphi 0, %s95
    %s110 = sphi 0, %s96
    %s114 = sphi 0, %s114
    %s116 = sphi 0, %s114
    %s117 = sphi 0, %s116
    %s131 = sphi 0, %s117
    %s135 = sphi 0, %s135
    %s137 = sphi 0, %s135
    %s138 = sphi 0, %s137
    %s152 = sphi 0, %s138
    %s156 = sphi 0, %s156
    %s158 = sphi 0, %s156
    %s159 = sphi 0, %s158
    %s173 = sphi 0, %s159
    %s177 = sphi 0, %s177
    %s179 = sphi 0, %s177
    %s180 = sphi 0, %s179
    %s194 = sphi 0, %s180
    %s198 = sphi 0, %s198
    %s200 = sphi 0, %s198
    %s201 = sphi 0, %s200
    %s215 = sphi 0, %s201
    %s219 = sphi 0, %s219
    %s221 = sphi 0, %s219
    %s222 = sphi 0, %s221
    %s236 = sphi 0, %s222
    %s240 = sphi 0, %s240
    %s242 = sphi 0, %s240
    %s243 = sphi 0, %s242
    %s257 = sphi 0, %s243
    %s263 = sphi 0, %s265
    %s266 = sphi 0, %s263
    %s267 = sphi 0, %s266
    %s283 = sphi 0, %s267
  $region4: #{dalations_resblock.1} parent=0 // loop_header_branch
    %20 = sbr.rel (%p18) target = $region8
  $region5: #{dalations_resblock.1} parent=0 // loop_body
    %s22 = ssub.s32 %s17, 1
    %s23 = ssub.s32 %s17, 2
    %s24 = sadd.s32 %s17, 1
    %s25 = ssub.s32 %s17, %s24
    %p26 = scmp.eq.s32.totalorder %s25, 0
    %s28 = sadd.s32 %s27, 1
    %s29 = scalar_select %p26, %s27, %s28
    %p32 = pneg %p26
    %p33 = scmp.eq.s32.totalorder %s17, 1
    %p34 = por %p32, %p33
    %p35 = scmp.ne.s32.totalorder %s27, %s30
    %p36 = scmp.eq.s32.totalorder %s17, 0
    %p37 = por %p35, %p36
    %p38 = scmp.ne.s32.totalorder %s27, %s30
    %p39 = scmp.eq.s32.totalorder %s22, 1
    %p40 = por %p38, %p39
    %p41 = scmp.ne.s32.totalorder %s30, %s31
    %p42 = scmp.eq.s32.totalorder %s22, 0
    %p43 = por %p41, %p42
    %p44 = scmp.ne.s32.totalorder %s30, %s31
    %p45 = scmp.eq.s32.totalorder %s23, 1
    %p46 = por %p44, %p45
    %p48 = scmp.ne.s32.totalorder %s31, %s47
    %p49 = scmp.eq.s32.totalorder %s23, 0
    %p50 = por %p48, %p49
    %s52 = sadd.s32 %s51, 1
    %p55 = scmp.eq.s32.totalorder %s17, 1
    %p56 = scmp.ne.s32.totalorder %s51, %s53
    %p57 = scmp.eq.s32.totalorder %s17, 0
    %p58 = por %p56, %p57
    %p59 = scmp.ne.s32.totalorder %s51, %s53
    %p60 = scmp.eq.s32.totalorder %s22, 1
    %p61 = por %p59, %p60
    %p62 = scmp.ne.s32.totalorder %s53, %s54
    %p63 = scmp.eq.s32.totalorder %s22, 0
    %p64 = por %p62, %p63
    %p65 = scmp.ne.s32.totalorder %s53, %s54
    %p66 = scmp.eq.s32.totalorder %s23, 1
    %p67 = por %p65, %p66
    %p69 = scmp.ne.s32.totalorder %s54, %s68
    %p70 = scmp.eq.s32.totalorder %s23, 0
    %p71 = por %p69, %p70
    %s73 = sadd.s32 %s72, 1
    %p76 = scmp.eq.s32.totalorder %s17, 1
    %p77 = scmp.ne.s32.totalorder %s72, %s74
    %p78 = scmp.eq.s32.totalorder %s17, 0
    %p79 = por %p77, %p78
    %p80 = scmp.ne.s32.totalorder %s72, %s74
    %p81 = scmp.eq.s32.totalorder %s22, 1
    %p82 = por %p80, %p81
    %p83 = scmp.ne.s32.totalorder %s74, %s75
    %p84 = scmp.eq.s32.totalorder %s22, 0
    %p85 = por %p83, %p84
    %p86 = scmp.ne.s32.totalorder %s74, %s75
    %p87 = scmp.eq.s32.totalorder %s23, 1
    %p88 = por %p86, %p87
    %p90 = scmp.ne.s32.totalorder %s75, %s89
    %p91 = scmp.eq.s32.totalorder %s23, 0
    %p92 = por %p90, %p91
    %s94 = sadd.s32 %s93, 1
    %p97 = scmp.eq.s32.totalorder %s17, 1
    %p98 = scmp.ne.s32.totalorder %s93, %s95
    %p99 = scmp.eq.s32.totalorder %s17, 0
    %p100 = por %p98, %p99
    %p101 = scmp.ne.s32.totalorder %s93, %s95
    %p102 = scmp.eq.s32.totalorder %s22, 1
    %p103 = por %p101, %p102
    %p104 = scmp.ne.s32.totalorder %s95, %s96
    %p105 = scmp.eq.s32.totalorder %s22, 0
    %p106 = por %p104, %p105
    %p107 = scmp.ne.s32.totalorder %s95, %s96
    %p108 = scmp.eq.s32.totalorder %s23, 1
    %p109 = por %p107, %p108
    %p111 = scmp.ne.s32.totalorder %s96, %s110
    %p112 = scmp.eq.s32.totalorder %s23, 0
    %p113 = por %p111, %p112
    %s115 = sadd.s32 %s114, 1
    %p118 = scmp.eq.s32.totalorder %s17, 1
    %p119 = scmp.ne.s32.totalorder %s114, %s116
    %p120 = scmp.eq.s32.totalorder %s17, 0
    %p121 = por %p119, %p120
    %p122 = scmp.ne.s32.totalorder %s114, %s116
    %p123 = scmp.eq.s32.totalorder %s22, 1
    %p124 = por %p122, %p123
    %p125 = scmp.ne.s32.totalorder %s116, %s117
    %p126 = scmp.eq.s32.totalorder %s22, 0
    %p127 = por %p125, %p126
    %p128 = scmp.ne.s32.totalorder %s116, %s117
    %p129 = scmp.eq.s32.totalorder %s23, 1
    %p130 = por %p128, %p129
    %p132 = scmp.ne.s32.totalorder %s117, %s131
    %p133 = scmp.eq.s32.totalorder %s23, 0
    %p134 = por %p132, %p133
    %s136 = sadd.s32 %s135, 1
    %p139 = scmp.eq.s32.totalorder %s17, 1
    %p140 = scmp.ne.s32.totalorder %s135, %s137
    %p141 = scmp.eq.s32.totalorder %s17, 0
    %p142 = por %p140, %p141
    %p143 = scmp.ne.s32.totalorder %s135, %s137
    %p144 = scmp.eq.s32.totalorder %s22, 1
    %p145 = por %p143, %p144
    %p146 = scmp.ne.s32.totalorder %s137, %s138
    %p147 = scmp.eq.s32.totalorder %s22, 0
    %p148 = por %p146, %p147
    %p149 = scmp.ne.s32.totalorder %s137, %s138
    %p150 = scmp.eq.s32.totalorder %s23, 1
    %p151 = por %p149, %p150
    %p153 = scmp.ne.s32.totalorder %s138, %s152
    %p154 = scmp.eq.s32.totalorder %s23, 0
    %p155 = por %p153, %p154
    %s157 = sadd.s32 %s156, 1
    %p160 = scmp.eq.s32.totalorder %s17, 1
    %p161 = scmp.ne.s32.totalorder %s156, %s158
    %p162 = scmp.eq.s32.totalorder %s17, 0
    %p163 = por %p161, %p162
    %p164 = scmp.ne.s32.totalorder %s156, %s158
    %p165 = scmp.eq.s32.totalorder %s22, 1
    %p166 = por %p164, %p165
    %p167 = scmp.ne.s32.totalorder %s158, %s159
    %p168 = scmp.eq.s32.totalorder %s22, 0
    %p169 = por %p167, %p168
    %p170 = scmp.ne.s32.totalorder %s158, %s159
    %p171 = scmp.eq.s32.totalorder %s23, 1
    %p172 = por %p170, %p171
    %p174 = scmp.ne.s32.totalorder %s159, %s173
    %p175 = scmp.eq.s32.totalorder %s23, 0
    %p176 = por %p174, %p175
    %s178 = sadd.s32 %s177, 1
    %p181 = scmp.eq.s32.totalorder %s17, 1
    %p182 = scmp.ne.s32.totalorder %s177, %s179
    %p183 = scmp.eq.s32.totalorder %s17, 0
    %p184 = por %p182, %p183
    %p185 = scmp.ne.s32.totalorder %s177, %s179
    %p186 = scmp.eq.s32.totalorder %s22, 1
    %p187 = por %p185, %p186
    %p188 = scmp.ne.s32.totalorder %s179, %s180
    %p189 = scmp.eq.s32.totalorder %s22, 0
    %p190 = por %p188, %p189
    %p191 = scmp.ne.s32.totalorder %s179, %s180
    %p192 = scmp.eq.s32.totalorder %s23, 1
    %p193 = por %p191, %p192
    %p195 = scmp.ne.s32.totalorder %s180, %s194
    %p196 = scmp.eq.s32.totalorder %s23, 0
    %p197 = por %p195, %p196
    %s199 = sadd.s32 %s198, 1
    %p202 = scmp.eq.s32.totalorder %s17, 1
    %p203 = scmp.ne.s32.totalorder %s198, %s200
    %p204 = scmp.eq.s32.totalorder %s17, 0
    %p205 = por %p203, %p204
    %p206 = scmp.ne.s32.totalorder %s198, %s200
    %p207 = scmp.eq.s32.totalorder %s22, 1
    %p208 = por %p206, %p207
    %p209 = scmp.ne.s32.totalorder %s200, %s201
    %p210 = scmp.eq.s32.totalorder %s22, 0
    %p211 = por %p209, %p210
    %p212 = scmp.ne.s32.totalorder %s200, %s201
    %p213 = scmp.eq.s32.totalorder %s23, 1
    %p214 = por %p212, %p213
    %p216 = scmp.ne.s32.totalorder %s201, %s215
    %p217 = scmp.eq.s32.totalorder %s23, 0
    %p218 = por %p216, %p217
    %s220 = sadd.s32 %s219, 1
    %p223 = scmp.eq.s32.totalorder %s17, 1
    %p224 = scmp.ne.s32.totalorder %s219, %s221
    %p225 = scmp.eq.s32.totalorder %s17, 0
    %p226 = por %p224, %p225
    %p227 = scmp.ne.s32.totalorder %s219, %s221
    %p228 = scmp.eq.s32.totalorder %s22, 1
    %p229 = por %p227, %p228
    %p230 = scmp.ne.s32.totalorder %s221, %s222
    %p231 = scmp.eq.s32.totalorder %s22, 0
    %p232 = por %p230, %p231
    %p233 = scmp.ne.s32.totalorder %s221, %s222
    %p234 = scmp.eq.s32.totalorder %s23, 1
    %p235 = por %p233, %p234
    %p237 = scmp.ne.s32.totalorder %s222, %s236
    %p238 = scmp.eq.s32.totalorder %s23, 0
    %p239 = por %p237, %p238
    %s241 = sadd.s32 %s240, 1
    %p244 = scmp.eq.s32.totalorder %s17, 1
    %p245 = scmp.ne.s32.totalorder %s240, %s242
    %p246 = scmp.eq.s32.totalorder %s17, 0
    %p247 = por %p245, %p246
    %p248 = scmp.ne.s32.totalorder %s240, %s242
    %p249 = scmp.eq.s32.totalorder %s22, 1
    %p250 = por %p248, %p249
    %p251 = scmp.ne.s32.totalorder %s242, %s243
    %p252 = scmp.eq.s32.totalorder %s22, 0
    %p253 = por %p251, %p252
    %p254 = scmp.ne.s32.totalorder %s242, %s243
    %p255 = scmp.eq.s32.totalorder %s23, 1
    %p256 = por %p254, %p255
    %p258 = scmp.ne.s32.totalorder %s243, %s257
    %p259 = scmp.eq.s32.totalorder %s23, 0
    %p260 = por %p258, %p259
    %s261 = ssub.s32 %s17, %s24
    %p262 = scmp.eq.s32.totalorder %s261, 0
    %s264 = sadd.s32 %s263, 1
    %s265 = scalar_select %p262, %s263, %s264
    %p268 = pneg %p262
    %p269 = scmp.eq.s32.totalorder %s17, 1
    %p270 = por %p268, %p269
    %p271 = scmp.ne.s32.totalorder %s263, %s266
    %p272 = scmp.eq.s32.totalorder %s17, 0
    %p273 = por %p271, %p272
    %p274 = scmp.ne.s32.totalorder %s263, %s266
    %p275 = scmp.eq.s32.totalorder %s22, 1
    %p276 = por %p274, %p275
    %p277 = scmp.ne.s32.totalorder %s266, %s267
    %p278 = scmp.eq.s32.totalorder %s22, 0
    %p279 = por %p277, %p278
    %p280 = scmp.ne.s32.totalorder %s266, %s267
    %p281 = scmp.eq.s32.totalorder %s23, 1
    %p282 = por %p280, %p281
    %p284 = scmp.ne.s32.totalorder %s267, %s283
    %p285 = scmp.eq.s32.totalorder %s23, 0
    %p286 = por %p284, %p285
    %p287 = scmp.le.s32.totalorder 1, %s17
    %p288 = scmp.lt.s32.totalorder %s17, 3
    %p289 = pnand %p287, %p288
    %p290 = pneg %p289
    // Predicated region
    $region9: #{dalations_resblock.1} parent=5 // pred_check
      _
    $region10: #{dalations_resblock.1} parent=5 // pred_check_branch
      %292 = sbr.rel (%p289) target = $region12
    $region11: #{dalations_resblock.1} parent=5 // pred_region
      %s293 = ssub.s32 %s17, 1
      // Predicated region
      $region13: #{dalations_resblock.1} parent=11 // pred_check
        %p294 = pneg %p64
      $region14: #{dalations_resblock.1} parent=11 // pred_check_branch
        %296 = sbr.rel (%p294) target = $region16
      $region15: #{dalations_resblock.1} parent=11 // pred_region
        _
      $region16: #{dalations_resblock.1} parent=11 // pred_fallthru
        _
      // Predicated region
      $region17: #{dalations_resblock.1} parent=11 // pred_check
        %p297 = pneg %p85
      $region18: #{dalations_resblock.1} parent=11 // pred_check_branch
        %299 = sbr.rel (%p297) target = $region20
      $region19: #{dalations_resblock.1} parent=11 // pred_region
        _
      $region20: #{dalations_resblock.1} parent=11 // pred_fallthru
        _
      // Predicated region
      $region21: #{dalations_resblock.1} parent=11 // pred_check
        %p300 = pneg %p106
      $region22: #{dalations_resblock.1} parent=11 // pred_check_branch
        %302 = sbr.rel (%p300) target = $region24
      $region23: #{dalations_resblock.1} parent=11 // pred_region
        _
      $region24: #{dalations_resblock.1} parent=11 // pred_fallthru
        _
      // Predicated region
      $region25: #{dalations_resblock.1} parent=11 // pred_check
        %p303 = pneg %p127
      $region26: #{dalations_resblock.1} parent=11 // pred_check_branch
        %305 = sbr.rel (%p303) target = $region28
      $region27: #{dalations_resblock.1} parent=11 // pred_region
        _
      $region28: #{dalations_resblock.1} parent=11 // pred_fallthru
        _
      // Predicated region
      $region29: #{dalations_resblock.1} parent=11 // pred_check
        %p306 = pneg %p148
      $region30: #{dalations_resblock.1} parent=11 // pred_check_branch
        %308 = sbr.rel (%p306) target = $region32
      $region31: #{dalations_resblock.1} parent=11 // pred_region
        _
      $region32: #{dalations_resblock.1} parent=11 // pred_fallthru
        _
      // Predicated region
      $region33: #{dalations_resblock.1} parent=11 // pred_check
        %p309 = pneg %p169
      $region34: #{dalations_resblock.1} parent=11 // pred_check_branch
        %311 = sbr.rel (%p309) target = $region36
      $region35: #{dalations_resblock.1} parent=11 // pred_region
        _
      $region36: #{dalations_resblock.1} parent=11 // pred_fallthru
        _
      // Predicated region
      $region37: #{dalations_resblock.1} parent=11 // pred_check
        %p312 = pneg %p190
      $region38: #{dalations_resblock.1} parent=11 // pred_check_branch
        %314 = sbr.rel (%p312) target = $region40
      $region39: #{dalations_resblock.1} parent=11 // pred_region
        _
      $region40: #{dalations_resblock.1} parent=11 // pred_fallthru
        _
      // Predicated region
      $region41: #{dalations_resblock.1} parent=11 // pred_check
        %p315 = pneg %p211
      $region42: #{dalations_resblock.1} parent=11 // pred_check_branch
        %317 = sbr.rel (%p315) target = $region44
      $region43: #{dalations_resblock.1} parent=11 // pred_region
        _
      $region44: #{dalations_resblock.1} parent=11 // pred_fallthru
        _
      // Predicated region
      $region45: #{dalations_resblock.1} parent=11 // pred_check
        %p318 = pneg %p232
      $region46: #{dalations_resblock.1} parent=11 // pred_check_branch
        %320 = sbr.rel (%p318) target = $region48
      $region47: #{dalations_resblock.1} parent=11 // pred_region
        _
      $region48: #{dalations_resblock.1} parent=11 // pred_fallthru
        _
      // Predicated region
      $region49: #{dalations_resblock.1} parent=11 // pred_check
        %p321 = pneg %p253
      $region50: #{dalations_resblock.1} parent=11 // pred_check_branch
        %323 = sbr.rel (%p321) target = $region52
      $region51: #{dalations_resblock.1} parent=11 // pred_region
        _
      $region52: #{dalations_resblock.1} parent=11 // pred_fallthru
        _
    $region12: #{dalations_resblock.1} parent=5 // pred_fallthru
      _
    %p324 = scmp.lt.s32.totalorder %s17, 2
    // Predicated region
    $region53: #{dalations_resblock.1} parent=5 // pred_check
      %p325 = pneg %p324
    $region54: #{dalations_resblock.1} parent=5 // pred_check_branch
      %327 = sbr.rel (%p325) target = $region56
    $region55: #{dalations_resblock.1} parent=5 // pred_region
      // Predicated region
      $region57: #{dalations_resblock.1} parent=55 // pred_check
        %p328 = pneg %p37
      $region58: #{dalations_resblock.1} parent=55 // pred_check_branch
        %330 = sbr.rel (%p328) target = $region60
      $region59: #{dalations_resblock.1} parent=55 // pred_region
        %p331 = scmp.lt.s32.totalorder %s17, 1
        %s332 = scalar_select %p331, %s17, 1
        %s333 = smul.addr %s332, 54
        %s334 = smul.addr %s333, 8
        %s335 = scalar_lea.vmem %s0, %s334
      $region60: #{dalations_resblock.1} parent=55 // pred_fallthru
        _
    $region56: #{dalations_resblock.1} parent=5 // pred_fallthru
      _
    %p336 = scmp.le.s32.totalorder 1, %s17
    %p337 = scmp.lt.s32.totalorder %s17, 3
    %p338 = pnand %p336, %p337
    %p339 = pneg %p338
    // Predicated region
    $region61: #{dalations_resblock.1} parent=5 // pred_check
      _
    $region62: #{dalations_resblock.1} parent=5 // pred_check_branch
      %341 = sbr.rel (%p338) target = $region64
    $region63: #{dalations_resblock.1} parent=5 // pred_region
      %s342 = ssub.s32 %s17, 1
      %p343 = scmp.lt.s32.totalorder %s22, 1
      %s344 = scalar_select %p343, %s22, 1
      %s345 = smul.addr %s344, 54
      %s346 = smul.addr %s345, 8
      %s347 = scalar_lea.vmem %s0, %s346
      %p348 = pneg %p43
      %p349 = pneg %p40
      %p350 = pneg %p64
      %p351 = pneg %p61
      %p352 = pneg %p85
      %p353 = pneg %p82
      %p354 = pneg %p106
      %p355 = pneg %p103
      %p356 = pneg %p127
      %p357 = pneg %p124
      %p358 = pneg %p148
      %p359 = pneg %p145
      %p360 = pneg %p169
      %p361 = pneg %p166
      %p362 = pneg %p190
      %p363 = pneg %p187
      %p364 = pneg %p211
      %p365 = pneg %p208
      %p366 = pneg %p232
      %p367 = pneg %p229
      %p368 = pneg %p253
      %p369 = pneg %p250
      %p370 = pneg %p279
      %p371 = pneg %p276
      %p372 = scmp.lt.s32.totalorder %s22, 1
      %s373 = scalar_select %p372, %s22, 1
      %s374 = smul.addr %s373, 32
      %s375 = smul.addr %s374, 8
      %s376 = scalar_lea.vmem %s11, %s375
      %p377 = scmp.lt.s32.totalorder %s22, 1
      %s378 = scalar_select %p377, %s22, 1
      %s379 = smul.addr %s378, 54
      %s380 = smul.addr %s379, 8
      %s381 = scalar_lea.vmem %s0, %s380
      %p382 = scmp.lt.s32.totalorder %s22, 1
      %s383 = scalar_select %p382, %s22, 1
      %s384 = smul.addr %s383, 32
      %s385 = smul.addr %s384, 8
      %s386 = scalar_lea.vmem %s11, %s385
      %v387 = vld [vmem:[%s381] sm:$0xff]
      %v388 = vld [vmem:[%s381 + $0x8] sm:$0xff]
      %v389 = vld [vmem:[%s381 + $0x10] sm:$0x3]
      %v390 = vld [vmem:[%s381 + $0x18] sm:$0xff]
      %v391 = vld [vmem:[%s381 + $0x20] sm:$0xff]
      %v392 = vld [vmem:[%s381 + $0x28] sm:$0x3]
      %v393 = vld [vmem:[%s381 + $0x30] sm:$0xff]
      %v394 = vld [vmem:[%s381 + $0x38] sm:$0xff]
      %v395 = vld [vmem:[%s381 + $0x40] sm:$0x3]
      %v396 = vld [vmem:[%s381 + $0x48] sm:$0xff]
      %v397 = vld [vmem:[%s381 + $0x50] sm:$0xff]
      %v398 = vld [vmem:[%s381 + $0x58] sm:$0x3]
      %v399 = vld [vmem:[%s381 + $0x60] sm:$0xff]
      %v400 = vld [vmem:[%s381 + $0x68] sm:$0xff]
      %v401 = vld [vmem:[%s381 + $0x70] sm:$0x3]
      %v402 = vld [vmem:[%s381 + $0x78] sm:$0xff]
      %v403 = vld [vmem:[%s381 + $0x80] sm:$0xff]
      %v404 = vld [vmem:[%s381 + $0x88] sm:$0x3]
      %v405 = vld [vmem:[%s381 + $0x90] sm:$0xff]
      %v406 = vld [vmem:[%s381 + $0x98] sm:$0xff]
      %v407 = vld [vmem:[%s381 + $0xa0] sm:$0x3]
      %v408 = vld [vmem:[%s381 + $0xa8] sm:$0xff]
      %v409 = vld [vmem:[%s381 + $0xb0] sm:$0xff]
      %v410 = vld [vmem:[%s381 + $0xb8] sm:$0x3]
      %v411 = vld [vmem:[%s381 + $0xc0] sm:$0xff]
      %v412 = vld [vmem:[%s381 + $0xc8] sm:$0xff]
      %v413 = vld [vmem:[%s381 + $0xd0] sm:$0x3]
      %v414 = vld [vmem:[%s381 + $0xd8] sm:$0xff]
      %v415 = vld [vmem:[%s381 + $0xe0] sm:$0xff]
      %v416 = vld [vmem:[%s381 + $0xe8] sm:$0x3]
      %v417 = vld [vmem:[%s381 + $0xf0] sm:$0xff]
      %v418 = vld [vmem:[%s381 + $0xf8] sm:$0xff]
      %v419 = vld [vmem:[%s381 + $0x100] sm:$0x3]
      %v420 = vld [vmem:[%s381 + $0x108] sm:$0xff]
      %v421 = vld [vmem:[%s381 + $0x110] sm:$0xff]
      %v422 = vld [vmem:[%s381 + $0x118] sm:$0x3]
      %v423 = vld [vmem:[%s381 + $0x120] sm:$0xff]
      %v424 = vld [vmem:[%s381 + $0x128] sm:$0xff]
      %v425 = vld [vmem:[%s381 + $0x130] sm:$0x3]
      %v426 = vld [vmem:[%s381 + $0x138] sm:$0xff]
      %v427 = vld [vmem:[%s381 + $0x140] sm:$0xff]
      %v428 = vld [vmem:[%s381 + $0x148] sm:$0x3]
      %v429 = vld [vmem:[%s381 + $0x150] sm:$0xff]
      %v430 = vld [vmem:[%s381 + $0x158] sm:$0xff]
      %v431 = vld [vmem:[%s381 + $0x160] sm:$0x3]
      %v432 = vld [vmem:[%s381 + $0x168] sm:$0xff]
      %v433 = vld [vmem:[%s381 + $0x170] sm:$0xff]
      %v434 = vld [vmem:[%s381 + $0x178] sm:$0x3]
      %v435 = vld [vmem:[%s381 + $0x180] sm:$0xff]
      %v436 = vld [vmem:[%s381 + $0x188] sm:$0xff]
      %v437 = vld [vmem:[%s381 + $0x190] sm:$0x3]
      %v438 = vld [vmem:[%s381 + $0x198] sm:$0xff]
      %v439 = vld [vmem:[%s381 + $0x1a0] sm:$0xff]
      %v440 = vld [vmem:[%s381 + $0x1a8] sm:$0x3]
      %vm489 = vcmask 1046528
      %v490 = vrot.slane %v387, 1
      %v491 = vrot.slane %v388, 1
      %v492 = vsel %vm489, %v490, %v491
      %v493 = vrot.slane %v389, 1
      %v494 = vsel %vm489, %v491, %v493
      %v495 = vrot.slane %v390, 1
      %v496 = vrot.slane %v391, 1
      %v497 = vsel %vm489, %v495, %v496
      %v498 = vrot.slane %v392, 1
      %v499 = vsel %vm489, %v496, %v498
      %v500 = vrot.slane %v393, 1
      %v501 = vrot.slane %v394, 1
      %v502 = vsel %vm489, %v500, %v501
      %v503 = vrot.slane %v395, 1
      %v504 = vsel %vm489, %v501, %v503
      %v505 = vrot.slane %v396, 1
      %v506 = vrot.slane %v397, 1
      %v507 = vsel %vm489, %v505, %v506
      %v508 = vrot.slane %v398, 1
      %v509 = vsel %vm489, %v506, %v508
      %v510 = vrot.slane %v399, 1
      %v511 = vrot.slane %v400, 1
      %v512 = vsel %vm489, %v510, %v511
      %v513 = vrot.slane %v401, 1
      %v514 = vsel %vm489, %v511, %v513
      %v515 = vrot.slane %v402, 1
      %v516 = vrot.slane %v403, 1
      %v517 = vsel %vm489, %v515, %v516
      %v518 = vrot.slane %v404, 1
      %v519 = vsel %vm489, %v516, %v518
      %v520 = vrot.slane %v405, 1
      %v521 = vrot.slane %v406, 1
      %v522 = vsel %vm489, %v520, %v521
      %v523 = vrot.slane %v407, 1
      %v524 = vsel %vm489, %v521, %v523
      %v525 = vrot.slane %v408, 1
      %v526 = vrot.slane %v409, 1
      %v527 = vsel %vm489, %v525, %v526
      %v528 = vrot.slane %v410, 1
      %v529 = vsel %vm489, %v526, %v528
      %v530 = vrot.slane %v411, 1
      %v531 = vrot.slane %v412, 1
      %v532 = vsel %vm489, %v530, %v531
      %v533 = vrot.slane %v413, 1
      %v534 = vsel %vm489, %v531, %v533
      %v535 = vrot.slane %v414, 1
      %v536 = vrot.slane %v415, 1
      %v537 = vsel %vm489, %v535, %v536
      %v538 = vrot.slane %v416, 1
      %v539 = vsel %vm489, %v536, %v538
      %v540 = vrot.slane %v417, 1
      %v541 = vrot.slane %v418, 1
      %v542 = vsel %vm489, %v540, %v541
      %v543 = vrot.slane %v419, 1
      %v544 = vsel %vm489, %v541, %v543
      %v545 = vrot.slane %v420, 1
      %v546 = vrot.slane %v421, 1
      %v547 = vsel %vm489, %v545, %v546
      %v548 = vrot.slane %v422, 1
      %v549 = vsel %vm489, %v546, %v548
      %v550 = vrot.slane %v423, 1
      %v551 = vrot.slane %v424, 1
      %v552 = vsel %vm489, %v550, %v551
      %v553 = vrot.slane %v425, 1
      %v554 = vsel %vm489, %v551, %v553
      %v555 = vrot.slane %v426, 1
      %v556 = vrot.slane %v427, 1
      %v557 = vsel %vm489, %v555, %v556
      %v558 = vrot.slane %v428, 1
      %v559 = vsel %vm489, %v556, %v558
      %v560 = vrot.slane %v429, 1
      %v561 = vrot.slane %v430, 1
      %v562 = vsel %vm489, %v560, %v561
      %v563 = vrot.slane %v431, 1
      %v564 = vsel %vm489, %v561, %v563
      %v565 = vrot.slane %v432, 1
      %v566 = vrot.slane %v433, 1
      %v567 = vsel %vm489, %v565, %v566
      %v568 = vrot.slane %v434, 1
      %v569 = vsel %vm489, %v566, %v568
      %vm570 = vcmask 1045504
      %v571 = vrot.slane %v387, 2
      %v572 = vrot.slane %v388, 2
      %v573 = vsel %vm570, %v571, %v572
      %v574 = vrot.slane %v389, 2
      %v575 = vsel %vm570, %v572, %v574
      %v576 = vrot.slane %v390, 2
      %v577 = vrot.slane %v391, 2
      %v578 = vsel %vm570, %v576, %v577
      %v579 = vrot.slane %v392, 2
      %v580 = vsel %vm570, %v577, %v579
      %v581 = vrot.slane %v393, 2
      %v582 = vrot.slane %v394, 2
      %v583 = vsel %vm570, %v581, %v582
      %v584 = vrot.slane %v395, 2
      %v585 = vsel %vm570, %v582, %v584
      %v586 = vrot.slane %v396, 2
      %v587 = vrot.slane %v397, 2
      %v588 = vsel %vm570, %v586, %v587
      %v589 = vrot.slane %v398, 2
      %v590 = vsel %vm570, %v587, %v589
      %v591 = vrot.slane %v399, 2
      %v592 = vrot.slane %v400, 2
      %v593 = vsel %vm570, %v591, %v592
      %v594 = vrot.slane %v401, 2
      %v595 = vsel %vm570, %v592, %v594
      %v596 = vrot.slane %v402, 2
      %v597 = vrot.slane %v403, 2
      %v598 = vsel %vm570, %v596, %v597
      %v599 = vrot.slane %v404, 2
      %v600 = vsel %vm570, %v597, %v599
      %v601 = vrot.slane %v405, 2
      %v602 = vrot.slane %v406, 2
      %v603 = vsel %vm570, %v601, %v602
      %v604 = vrot.slane %v407, 2
      %v605 = vsel %vm570, %v602, %v604
      %v606 = vrot.slane %v408, 2
      %v607 = vrot.slane %v409, 2
      %v608 = vsel %vm570, %v606, %v607
      %v609 = vrot.slane %v410, 2
      %v610 = vsel %vm570, %v607, %v609
      %v611 = vrot.slane %v411, 2
      %v612 = vrot.slane %v412, 2
      %v613 = vsel %vm570, %v611, %v612
      %v614 = vrot.slane %v413, 2
      %v615 = vsel %vm570, %v612, %v614
      %v616 = vrot.slane %v414, 2
      %v617 = vrot.slane %v415, 2
      %v618 = vsel %vm570, %v616, %v617
      %v619 = vrot.slane %v416, 2
      %v620 = vsel %vm570, %v617, %v619
      %v621 = vrot.slane %v417, 2
      %v622 = vrot.slane %v418, 2
      %v623 = vsel %vm570, %v621, %v622
      %v624 = vrot.slane %v419, 2
      %v625 = vsel %vm570, %v622, %v624
      %v626 = vrot.slane %v420, 2
      %v627 = vrot.slane %v421, 2
      %v628 = vsel %vm570, %v626, %v627
      %v629 = vrot.slane %v422, 2
      %v630 = vsel %vm570, %v627, %v629
      %v631 = vrot.slane %v423, 2
      %v632 = vrot.slane %v424, 2
      %v633 = vsel %vm570, %v631, %v632
      %v634 = vrot.slane %v425, 2
      %v635 = vsel %vm570, %v632, %v634
      %v636 = vrot.slane %v426, 2
      %v637 = vrot.slane %v427, 2
      %v638 = vsel %vm570, %v636, %v637
      %v639 = vrot.slane %v428, 2
      %v640 = vsel %vm570, %v637, %v639
      %v641 = vrot.slane %v429, 2
      %v642 = vrot.slane %v430, 2
      %v643 = vsel %vm570, %v641, %v642
      %v644 = vrot.slane %v431, 2
      %v645 = vsel %vm570, %v642, %v644
      %v646 = vrot.slane %v432, 2
      %v647 = vrot.slane %v433, 2
      %v648 = vsel %vm570, %v646, %v647
      %v649 = vrot.slane %v434, 2
      %v650 = vsel %vm570, %v647, %v649
      %v654 = vrot.slane %v435, 1
      %v655 = vrot.slane %v436, 1
      %v656 = vsel %vm489, %v654, %v655
      %v657 = vrot.slane %v437, 1
      %v658 = vsel %vm489, %v655, %v657
      %v691 = vrot.slane %v435, 2
      %v692 = vrot.slane %v436, 2
      %v693 = vsel %vm570, %v691, %v692
      %v694 = vrot.slane %v437, 2
      %v695 = vsel %vm570, %v692, %v694
      %v699 = vrot.slane %v438, 1
      %v700 = vrot.slane %v439, 1
      %v701 = vsel %vm489, %v699, %v700
      %v702 = vrot.slane %v440, 1
      %v703 = vsel %vm489, %v700, %v702
      %v704 = vrot.slane %v438, 2
      %v705 = vrot.slane %v439, 2
      %v706 = vsel %vm570, %v704, %v705
      %v707 = vrot.slane %v440, 2
      %v708 = vsel %vm570, %v705, %v707
      %709 = vrot.lane.b32.xlu0 %v492, 4
      %v710 = vpop.permute.xlu0 %709
      %711 = vrot.lane.b32.xlu0 %v494, 4
      %v712 = vpop.permute.xlu0 %711
      %713 = vrot.lane.b32.xlu0 %v497, 4
      %v714 = vpop.permute.xlu0 %713
      %715 = vrot.lane.b32.xlu0 %v499, 4
      %v716 = vpop.permute.xlu0 %715
      %717 = vrot.lane.b32.xlu0 %v502, 4
      %v718 = vpop.permute.xlu0 %717
      %719 = vrot.lane.b32.xlu0 %v504, 4
      %v720 = vpop.permute.xlu0 %719
      %721 = vrot.lane.b32.xlu0 %v507, 4
      %v722 = vpop.permute.xlu0 %721
      %723 = vrot.lane.b32.xlu0 %v509, 4
      %v724 = vpop.permute.xlu0 %723
      %725 = vrot.lane.b32.xlu0 %v512, 4
      %v726 = vpop.permute.xlu0 %725
      %727 = vrot.lane.b32.xlu0 %v514, 4
      %v728 = vpop.permute.xlu0 %727
      %729 = vrot.lane.b32.xlu0 %v517, 4
      %v730 = vpop.permute.xlu0 %729
      %731 = vrot.lane.b32.xlu0 %v519, 4
      %v732 = vpop.permute.xlu0 %731
      %733 = vrot.lane.b32.xlu0 %v522, 4
      %v734 = vpop.permute.xlu0 %733
      %735 = vrot.lane.b32.xlu0 %v524, 4
      %v736 = vpop.permute.xlu0 %735
      %737 = vrot.lane.b32.xlu0 %v527, 4
      %v738 = vpop.permute.xlu0 %737
      %739 = vrot.lane.b32.xlu0 %v529, 4
      %v740 = vpop.permute.xlu0 %739
      %741 = vrot.lane.b32.xlu0 %v532, 4
      %v742 = vpop.permute.xlu0 %741
      %743 = vrot.lane.b32.xlu0 %v534, 4
      %v744 = vpop.permute.xlu0 %743
      %745 = vrot.lane.b32.xlu0 %v537, 4
      %v746 = vpop.permute.xlu0 %745
      %747 = vrot.lane.b32.xlu0 %v539, 4
      %v748 = vpop.permute.xlu0 %747
      %749 = vrot.lane.b32.xlu0 %v542, 4
      %v750 = vpop.permute.xlu0 %749
      %751 = vrot.lane.b32.xlu0 %v544, 4
      %v752 = vpop.permute.xlu0 %751
      %753 = vrot.lane.b32.xlu0 %v547, 4
      %v754 = vpop.permute.xlu0 %753
      %755 = vrot.lane.b32.xlu0 %v549, 4
      %v756 = vpop.permute.xlu0 %755
      %757 = vrot.lane.b32.xlu0 %v552, 4
      %v758 = vpop.permute.xlu0 %757
      %759 = vrot.lane.b32.xlu0 %v554, 4
      %v760 = vpop.permute.xlu0 %759
      %761 = vrot.lane.b32.xlu0 %v557, 4
      %v762 = vpop.permute.xlu0 %761
      %763 = vrot.lane.b32.xlu0 %v559, 4
      %v764 = vpop.permute.xlu0 %763
      %765 = vrot.lane.b32.xlu0 %v562, 4
      %v766 = vpop.permute.xlu0 %765
      %767 = vrot.lane.b32.xlu0 %v564, 4
      %v768 = vpop.permute.xlu0 %767
      %769 = vrot.lane.b32.xlu0 %v567, 4
      %v770 = vpop.permute.xlu0 %769
      %771 = vrot.lane.b32.xlu0 %v569, 4
      %v772 = vpop.permute.xlu0 %771
      %805 = vrot.lane.b32.xlu0 %v573, 8
      %v806 = vpop.permute.xlu0 %805
      %807 = vrot.lane.b32.xlu0 %v575, 8
      %v808 = vpop.permute.xlu0 %807
      %809 = vrot.lane.b32.xlu0 %v578, 8
      %v810 = vpop.permute.xlu0 %809
      %811 = vrot.lane.b32.xlu0 %v580, 8
      %v812 = vpop.permute.xlu0 %811
      %813 = vrot.lane.b32.xlu0 %v583, 8
      %v814 = vpop.permute.xlu0 %813
      %815 = vrot.lane.b32.xlu0 %v585, 8
      %v816 = vpop.permute.xlu0 %815
      %817 = vrot.lane.b32.xlu0 %v588, 8
      %v818 = vpop.permute.xlu0 %817
      %819 = vrot.lane.b32.xlu0 %v590, 8
      %v820 = vpop.permute.xlu0 %819
      %821 = vrot.lane.b32.xlu0 %v593, 8
      %v822 = vpop.permute.xlu0 %821
      %823 = vrot.lane.b32.xlu0 %v595, 8
      %v824 = vpop.permute.xlu0 %823
      %825 = vrot.lane.b32.xlu0 %v598, 8
      %v826 = vpop.permute.xlu0 %825
      %827 = vrot.lane.b32.xlu0 %v600, 8
      %v828 = vpop.permute.xlu0 %827
      %829 = vrot.lane.b32.xlu0 %v603, 8
      %v830 = vpop.permute.xlu0 %829
      %831 = vrot.lane.b32.xlu0 %v605, 8
      %v832 = vpop.permute.xlu0 %831
      %833 = vrot.lane.b32.xlu0 %v608, 8
      %v834 = vpop.permute.xlu0 %833
      %835 = vrot.lane.b32.xlu0 %v610, 8
      %v836 = vpop.permute.xlu0 %835
      %837 = vrot.lane.b32.xlu0 %v613, 8
      %v838 = vpop.permute.xlu0 %837
      %839 = vrot.lane.b32.xlu0 %v615, 8
      %v840 = vpop.permute.xlu0 %839
      %841 = vrot.lane.b32.xlu0 %v618, 8
      %v842 = vpop.permute.xlu0 %841
      %843 = vrot.lane.b32.xlu0 %v620, 8
      %v844 = vpop.permute.xlu0 %843
      %845 = vrot.lane.b32.xlu0 %v623, 8
      %v846 = vpop.permute.xlu0 %845
      %847 = vrot.lane.b32.xlu0 %v625, 8
      %v848 = vpop.permute.xlu0 %847
      %849 = vrot.lane.b32.xlu0 %v628, 8
      %v850 = vpop.permute.xlu0 %849
      %851 = vrot.lane.b32.xlu0 %v630, 8
      %v852 = vpop.permute.xlu0 %851
      %853 = vrot.lane.b32.xlu0 %v633, 8
      %v854 = vpop.permute.xlu0 %853
      %855 = vrot.lane.b32.xlu0 %v635, 8
      %v856 = vpop.permute.xlu0 %855
      %857 = vrot.lane.b32.xlu0 %v638, 8
      %v858 = vpop.permute.xlu0 %857
      %859 = vrot.lane.b32.xlu0 %v640, 8
      %v860 = vpop.permute.xlu0 %859
      %861 = vrot.lane.b32.xlu0 %v643, 8
      %v862 = vpop.permute.xlu0 %861
      %863 = vrot.lane.b32.xlu0 %v645, 8
      %v864 = vpop.permute.xlu0 %863
      %865 = vrot.lane.b32.xlu0 %v648, 8
      %v866 = vpop.permute.xlu0 %865
      %867 = vrot.lane.b32.xlu0 %v650, 8
      %v868 = vpop.permute.xlu0 %867
      %901 = vrot.lane.b32.xlu0 %v390, 12
      %v902 = vpop.permute.xlu0 %901
      %903 = vrot.lane.b32.xlu0 %v391, 12
      %v904 = vpop.permute.xlu0 %903
      %905 = vrot.lane.b32.xlu0 %v393, 12
      %v906 = vpop.permute.xlu0 %905
      %907 = vrot.lane.b32.xlu0 %v394, 12
      %v908 = vpop.permute.xlu0 %907
      %909 = vrot.lane.b32.xlu0 %v396, 12
      %v910 = vpop.permute.xlu0 %909
      %911 = vrot.lane.b32.xlu0 %v397, 12
      %v912 = vpop.permute.xlu0 %911
      %913 = vrot.lane.b32.xlu0 %v399, 12
      %v914 = vpop.permute.xlu0 %913
      %915 = vrot.lane.b32.xlu0 %v400, 12
      %v916 = vpop.permute.xlu0 %915
      %917 = vrot.lane.b32.xlu0 %v402, 12
      %v918 = vpop.permute.xlu0 %917
      %919 = vrot.lane.b32.xlu0 %v403, 12
      %v920 = vpop.permute.xlu0 %919
      %921 = vrot.lane.b32.xlu0 %v405, 12
      %v922 = vpop.permute.xlu0 %921
      %923 = vrot.lane.b32.xlu0 %v406, 12
      %v924 = vpop.permute.xlu0 %923
      %925 = vrot.lane.b32.xlu0 %v408, 12
      %v926 = vpop.permute.xlu0 %925
      %927 = vrot.lane.b32.xlu0 %v409, 12
      %v928 = vpop.permute.xlu0 %927
      %929 = vrot.lane.b32.xlu0 %v411, 12
      %v930 = vpop.permute.xlu0 %929
      %931 = vrot.lane.b32.xlu0 %v412, 12
      %v932 = vpop.permute.xlu0 %931
      %933 = vrot.lane.b32.xlu0 %v414, 12
      %v934 = vpop.permute.xlu0 %933
      %935 = vrot.lane.b32.xlu0 %v415, 12
      %v936 = vpop.permute.xlu0 %935
      %937 = vrot.lane.b32.xlu0 %v417, 12
      %v938 = vpop.permute.xlu0 %937
      %939 = vrot.lane.b32.xlu0 %v418, 12
      %v940 = vpop.permute.xlu0 %939
      %941 = vrot.lane.b32.xlu0 %v420, 12
      %v942 = vpop.permute.xlu0 %941
      %943 = vrot.lane.b32.xlu0 %v421, 12
      %v944 = vpop.permute.xlu0 %943
      %945 = vrot.lane.b32.xlu0 %v423, 12
      %v946 = vpop.permute.xlu0 %945
      %947 = vrot.lane.b32.xlu0 %v424, 12
      %v948 = vpop.permute.xlu0 %947
      %949 = vrot.lane.b32.xlu0 %v426, 12
      %v950 = vpop.permute.xlu0 %949
      %951 = vrot.lane.b32.xlu0 %v427, 12
      %v952 = vpop.permute.xlu0 %951
      %953 = vrot.lane.b32.xlu0 %v429, 12
      %v954 = vpop.permute.xlu0 %953
      %955 = vrot.lane.b32.xlu0 %v430, 12
      %v956 = vpop.permute.xlu0 %955
      %957 = vrot.lane.b32.xlu0 %v432, 12
      %v958 = vpop.permute.xlu0 %957
      %959 = vrot.lane.b32.xlu0 %v433, 12
      %v960 = vpop.permute.xlu0 %959
      %961 = vrot.lane.b32.xlu0 %v435, 12
      %v962 = vpop.permute.xlu0 %961
      %963 = vrot.lane.b32.xlu0 %v436, 12
      %v964 = vpop.permute.xlu0 %963
      %997 = vrot.lane.b32.xlu0 %v497, 16
      %v998 = vpop.permute.xlu0 %997
      %999 = vrot.lane.b32.xlu0 %v499, 16
      %v1000 = vpop.permute.xlu0 %999
      %1001 = vrot.lane.b32.xlu0 %v502, 16
      %v1002 = vpop.permute.xlu0 %1001
      %1003 = vrot.lane.b32.xlu0 %v504, 16
      %v1004 = vpop.permute.xlu0 %1003
      %1005 = vrot.lane.b32.xlu0 %v507, 16
      %v1006 = vpop.permute.xlu0 %1005
      %1007 = vrot.lane.b32.xlu0 %v509, 16
      %v1008 = vpop.permute.xlu0 %1007
      %1009 = vrot.lane.b32.xlu0 %v512, 16
      %v1010 = vpop.permute.xlu0 %1009
      %1011 = vrot.lane.b32.xlu0 %v514, 16
      %v1012 = vpop.permute.xlu0 %1011
      %1013 = vrot.lane.b32.xlu0 %v517, 16
      %v1014 = vpop.permute.xlu0 %1013
      %1015 = vrot.lane.b32.xlu0 %v519, 16
      %v1016 = vpop.permute.xlu0 %1015
      %1017 = vrot.lane.b32.xlu0 %v522, 16
      %v1018 = vpop.permute.xlu0 %1017
      %1019 = vrot.lane.b32.xlu0 %v524, 16
      %v1020 = vpop.permute.xlu0 %1019
      %1021 = vrot.lane.b32.xlu0 %v527, 16
      %v1022 = vpop.permute.xlu0 %1021
      %1023 = vrot.lane.b32.xlu0 %v529, 16
      %v1024 = vpop.permute.xlu0 %1023
      %1025 = vrot.lane.b32.xlu0 %v532, 16
      %v1026 = vpop.permute.xlu0 %1025
      %1027 = vrot.lane.b32.xlu0 %v534, 16
      %v1028 = vpop.permute.xlu0 %1027
      %1029 = vrot.lane.b32.xlu0 %v537, 16
      %v1030 = vpop.permute.xlu0 %1029
      %1031 = vrot.lane.b32.xlu0 %v539, 16
      %v1032 = vpop.permute.xlu0 %1031
      %1033 = vrot.lane.b32.xlu0 %v542, 16
      %v1034 = vpop.permute.xlu0 %1033
      %1035 = vrot.lane.b32.xlu0 %v544, 16
      %v1036 = vpop.permute.xlu0 %1035
      %1037 = vrot.lane.b32.xlu0 %v547, 16
      %v1038 = vpop.permute.xlu0 %1037
      %1039 = vrot.lane.b32.xlu0 %v549, 16
      %v1040 = vpop.permute.xlu0 %1039
      %1041 = vrot.lane.b32.xlu0 %v552, 16
      %v1042 = vpop.permute.xlu0 %1041
      %1043 = vrot.lane.b32.xlu0 %v554, 16
      %v1044 = vpop.permute.xlu0 %1043
      %1045 = vrot.lane.b32.xlu0 %v557, 16
      %v1046 = vpop.permute.xlu0 %1045
      %1047 = vrot.lane.b32.xlu0 %v559, 16
      %v1048 = vpop.permute.xlu0 %1047
      %1049 = vrot.lane.b32.xlu0 %v562, 16
      %v1050 = vpop.permute.xlu0 %1049
      %1051 = vrot.lane.b32.xlu0 %v564, 16
      %v1052 = vpop.permute.xlu0 %1051
      %1053 = vrot.lane.b32.xlu0 %v567, 16
      %v1054 = vpop.permute.xlu0 %1053
      %1055 = vrot.lane.b32.xlu0 %v569, 16
      %v1056 = vpop.permute.xlu0 %1055
      %1057 = vrot.lane.b32.xlu0 %v656, 16
      %v1058 = vpop.permute.xlu0 %1057
      %1059 = vrot.lane.b32.xlu0 %v658, 16
      %v1060 = vpop.permute.xlu0 %1059
      %1093 = vrot.lane.b32.xlu0 %v578, 20
      %v1094 = vpop.permute.xlu0 %1093
      %1095 = vrot.lane.b32.xlu0 %v580, 20
      %v1096 = vpop.permute.xlu0 %1095
      %1097 = vrot.lane.b32.xlu0 %v583, 20
      %v1098 = vpop.permute.xlu0 %1097
      %1099 = vrot.lane.b32.xlu0 %v585, 20
      %v1100 = vpop.permute.xlu0 %1099
      %1101 = vrot.lane.b32.xlu0 %v588, 20
      %v1102 = vpop.permute.xlu0 %1101
      %1103 = vrot.lane.b32.xlu0 %v590, 20
      %v1104 = vpop.permute.xlu0 %1103
      %1105 = vrot.lane.b32.xlu0 %v593, 20
      %v1106 = vpop.permute.xlu0 %1105
      %1107 = vrot.lane.b32.xlu0 %v595, 20
      %v1108 = vpop.permute.xlu0 %1107
      %1109 = vrot.lane.b32.xlu0 %v598, 20
      %v1110 = vpop.permute.xlu0 %1109
      %1111 = vrot.lane.b32.xlu0 %v600, 20
      %v1112 = vpop.permute.xlu0 %1111
      %1113 = vrot.lane.b32.xlu0 %v603, 20
      %v1114 = vpop.permute.xlu0 %1113
      %1115 = vrot.lane.b32.xlu0 %v605, 20
      %v1116 = vpop.permute.xlu0 %1115
      %1117 = vrot.lane.b32.xlu0 %v608, 20
      %v1118 = vpop.permute.xlu0 %1117
      %1119 = vrot.lane.b32.xlu0 %v610, 20
      %v1120 = vpop.permute.xlu0 %1119
      %1121 = vrot.lane.b32.xlu0 %v613, 20
      %v1122 = vpop.permute.xlu0 %1121
      %1123 = vrot.lane.b32.xlu0 %v615, 20
      %v1124 = vpop.permute.xlu0 %1123
      %1125 = vrot.lane.b32.xlu0 %v618, 20
      %v1126 = vpop.permute.xlu0 %1125
      %1127 = vrot.lane.b32.xlu0 %v620, 20
      %v1128 = vpop.permute.xlu0 %1127
      %1129 = vrot.lane.b32.xlu0 %v623, 20
      %v1130 = vpop.permute.xlu0 %1129
      %1131 = vrot.lane.b32.xlu0 %v625, 20
      %v1132 = vpop.permute.xlu0 %1131
      %1133 = vrot.lane.b32.xlu0 %v628, 20
      %v1134 = vpop.permute.xlu0 %1133
      %1135 = vrot.lane.b32.xlu0 %v630, 20
      %v1136 = vpop.permute.xlu0 %1135
      %1137 = vrot.lane.b32.xlu0 %v633, 20
      %v1138 = vpop.permute.xlu0 %1137
      %1139 = vrot.lane.b32.xlu0 %v635, 20
      %v1140 = vpop.permute.xlu0 %1139
      %1141 = vrot.lane.b32.xlu0 %v638, 20
      %v1142 = vpop.permute.xlu0 %1141
      %1143 = vrot.lane.b32.xlu0 %v640, 20
      %v1144 = vpop.permute.xlu0 %1143
      %1145 = vrot.lane.b32.xlu0 %v643, 20
      %v1146 = vpop.permute.xlu0 %1145
      %1147 = vrot.lane.b32.xlu0 %v645, 20
      %v1148 = vpop.permute.xlu0 %1147
      %1149 = vrot.lane.b32.xlu0 %v648, 20
      %v1150 = vpop.permute.xlu0 %1149
      %1151 = vrot.lane.b32.xlu0 %v650, 20
      %v1152 = vpop.permute.xlu0 %1151
      %1153 = vrot.lane.b32.xlu0 %v693, 20
      %v1154 = vpop.permute.xlu0 %1153
      %1155 = vrot.lane.b32.xlu0 %v695, 20
      %v1156 = vpop.permute.xlu0 %1155
      %1189 = vrot.lane.b32.xlu0 %v393, 24
      %v1190 = vpop.permute.xlu0 %1189
      %1191 = vrot.lane.b32.xlu0 %v394, 24
      %v1192 = vpop.permute.xlu0 %1191
      %1193 = vrot.lane.b32.xlu0 %v396, 24
      %v1194 = vpop.permute.xlu0 %1193
      %1195 = vrot.lane.b32.xlu0 %v397, 24
      %v1196 = vpop.permute.xlu0 %1195
      %1197 = vrot.lane.b32.xlu0 %v399, 24
      %v1198 = vpop.permute.xlu0 %1197
      %1199 = vrot.lane.b32.xlu0 %v400, 24
      %v1200 = vpop.permute.xlu0 %1199
      %1201 = vrot.lane.b32.xlu0 %v402, 24
      %v1202 = vpop.permute.xlu0 %1201
      %1203 = vrot.lane.b32.xlu0 %v403, 24
      %v1204 = vpop.permute.xlu0 %1203
      %1205 = vrot.lane.b32.xlu0 %v405, 24
      %v1206 = vpop.permute.xlu0 %1205
      %1207 = vrot.lane.b32.xlu0 %v406, 24
      %v1208 = vpop.permute.xlu0 %1207
      %1209 = vrot.lane.b32.xlu0 %v408, 24
      %v1210 = vpop.permute.xlu0 %1209
      %1211 = vrot.lane.b32.xlu0 %v409, 24
      %v1212 = vpop.permute.xlu0 %1211
      %1213 = vrot.lane.b32.xlu0 %v411, 24
      %v1214 = vpop.permute.xlu0 %1213
      %1215 = vrot.lane.b32.xlu0 %v412, 24
      %v1216 = vpop.permute.xlu0 %1215
      %1217 = vrot.lane.b32.xlu0 %v414, 24
      %v1218 = vpop.permute.xlu0 %1217
      %1219 = vrot.lane.b32.xlu0 %v415, 24
      %v1220 = vpop.permute.xlu0 %1219
      %1221 = vrot.lane.b32.xlu0 %v417, 24
      %v1222 = vpop.permute.xlu0 %1221
      %1223 = vrot.lane.b32.xlu0 %v418, 24
      %v1224 = vpop.permute.xlu0 %1223
      %1225 = vrot.lane.b32.xlu0 %v420, 24
      %v1226 = vpop.permute.xlu0 %1225
      %1227 = vrot.lane.b32.xlu0 %v421, 24
      %v1228 = vpop.permute.xlu0 %1227
      %1229 = vrot.lane.b32.xlu0 %v423, 24
      %v1230 = vpop.permute.xlu0 %1229
      %1231 = vrot.lane.b32.xlu0 %v424, 24
      %v1232 = vpop.permute.xlu0 %1231
      %1233 = vrot.lane.b32.xlu0 %v426, 24
      %v1234 = vpop.permute.xlu0 %1233
      %1235 = vrot.lane.b32.xlu0 %v427, 24
      %v1236 = vpop.permute.xlu0 %1235
      %1237 = vrot.lane.b32.xlu0 %v429, 24
      %v1238 = vpop.permute.xlu0 %1237
      %1239 = vrot.lane.b32.xlu0 %v430, 24
      %v1240 = vpop.permute.xlu0 %1239
      %1241 = vrot.lane.b32.xlu0 %v432, 24
      %v1242 = vpop.permute.xlu0 %1241
      %1243 = vrot.lane.b32.xlu0 %v433, 24
      %v1244 = vpop.permute.xlu0 %1243
      %1245 = vrot.lane.b32.xlu0 %v435, 24
      %v1246 = vpop.permute.xlu0 %1245
      %1247 = vrot.lane.b32.xlu0 %v436, 24
      %v1248 = vpop.permute.xlu0 %1247
      %1249 = vrot.lane.b32.xlu0 %v438, 24
      %v1250 = vpop.permute.xlu0 %1249
      %1251 = vrot.lane.b32.xlu0 %v439, 24
      %v1252 = vpop.permute.xlu0 %1251
      %1285 = vrot.lane.b32.xlu0 %v502, 28
      %v1286 = vpop.permute.xlu0 %1285
      %1287 = vrot.lane.b32.xlu0 %v504, 28
      %v1288 = vpop.permute.xlu0 %1287
      %1289 = vrot.lane.b32.xlu0 %v507, 28
      %v1290 = vpop.permute.xlu0 %1289
      %1291 = vrot.lane.b32.xlu0 %v509, 28
      %v1292 = vpop.permute.xlu0 %1291
      %1293 = vrot.lane.b32.xlu0 %v512, 28
      %v1294 = vpop.permute.xlu0 %1293
      %1295 = vrot.lane.b32.xlu0 %v514, 28
      %v1296 = vpop.permute.xlu0 %1295
      %1297 = vrot.lane.b32.xlu0 %v517, 28
      %v1298 = vpop.permute.xlu0 %1297
      %1299 = vrot.lane.b32.xlu0 %v519, 28
      %v1300 = vpop.permute.xlu0 %1299
      %1301 = vrot.lane.b32.xlu0 %v522, 28
      %v1302 = vpop.permute.xlu0 %1301
      %1303 = vrot.lane.b32.xlu0 %v524, 28
      %v1304 = vpop.permute.xlu0 %1303
      %1305 = vrot.lane.b32.xlu0 %v527, 28
      %v1306 = vpop.permute.xlu0 %1305
      %1307 = vrot.lane.b32.xlu0 %v529, 28
      %v1308 = vpop.permute.xlu0 %1307
      %1309 = vrot.lane.b32.xlu0 %v532, 28
      %v1310 = vpop.permute.xlu0 %1309
      %1311 = vrot.lane.b32.xlu0 %v534, 28
      %v1312 = vpop.permute.xlu0 %1311
      %1313 = vrot.lane.b32.xlu0 %v537, 28
      %v1314 = vpop.permute.xlu0 %1313
      %1315 = vrot.lane.b32.xlu0 %v539, 28
      %v1316 = vpop.permute.xlu0 %1315
      %1317 = vrot.lane.b32.xlu0 %v542, 28
      %v1318 = vpop.permute.xlu0 %1317
      %1319 = vrot.lane.b32.xlu0 %v544, 28
      %v1320 = vpop.permute.xlu0 %1319
      %1321 = vrot.lane.b32.xlu0 %v547, 28
      %v1322 = vpop.permute.xlu0 %1321
      %1323 = vrot.lane.b32.xlu0 %v549, 28
      %v1324 = vpop.permute.xlu0 %1323
      %1325 = vrot.lane.b32.xlu0 %v552, 28
      %v1326 = vpop.permute.xlu0 %1325
      %1327 = vrot.lane.b32.xlu0 %v554, 28
      %v1328 = vpop.permute.xlu0 %1327
      %1329 = vrot.lane.b32.xlu0 %v557, 28
      %v1330 = vpop.permute.xlu0 %1329
      %1331 = vrot.lane.b32.xlu0 %v559, 28
      %v1332 = vpop.permute.xlu0 %1331
      %1333 = vrot.lane.b32.xlu0 %v562, 28
      %v1334 = vpop.permute.xlu0 %1333
      %1335 = vrot.lane.b32.xlu0 %v564, 28
      %v1336 = vpop.permute.xlu0 %1335
      %1337 = vrot.lane.b32.xlu0 %v567, 28
      %v1338 = vpop.permute.xlu0 %1337
      %1339 = vrot.lane.b32.xlu0 %v569, 28
      %v1340 = vpop.permute.xlu0 %1339
      %1341 = vrot.lane.b32.xlu0 %v656, 28
      %v1342 = vpop.permute.xlu0 %1341
      %1343 = vrot.lane.b32.xlu0 %v658, 28
      %v1344 = vpop.permute.xlu0 %1343
      %1345 = vrot.lane.b32.xlu0 %v701, 28
      %v1346 = vpop.permute.xlu0 %1345
      %1347 = vrot.lane.b32.xlu0 %v703, 28
      %v1348 = vpop.permute.xlu0 %1347
      %1381 = vrot.lane.b32.xlu0 %v583, 32
      %v1382 = vpop.permute.xlu0 %1381
      %1383 = vrot.lane.b32.xlu0 %v585, 32
      %v1384 = vpop.permute.xlu0 %1383
      %1385 = vrot.lane.b32.xlu0 %v588, 32
      %v1386 = vpop.permute.xlu0 %1385
      %1387 = vrot.lane.b32.xlu0 %v590, 32
      %v1388 = vpop.permute.xlu0 %1387
      %1389 = vrot.lane.b32.xlu0 %v593, 32
      %v1390 = vpop.permute.xlu0 %1389
      %1391 = vrot.lane.b32.xlu0 %v595, 32
      %v1392 = vpop.permute.xlu0 %1391
      %1393 = vrot.lane.b32.xlu0 %v598, 32
      %v1394 = vpop.permute.xlu0 %1393
      %1395 = vrot.lane.b32.xlu0 %v600, 32
      %v1396 = vpop.permute.xlu0 %1395
      %1397 = vrot.lane.b32.xlu0 %v603, 32
      %v1398 = vpop.permute.xlu0 %1397
      %1399 = vrot.lane.b32.xlu0 %v605, 32
      %v1400 = vpop.permute.xlu0 %1399
      %1401 = vrot.lane.b32.xlu0 %v608, 32
      %v1402 = vpop.permute.xlu0 %1401
      %1403 = vrot.lane.b32.xlu0 %v610, 32
      %v1404 = vpop.permute.xlu0 %1403
      %1405 = vrot.lane.b32.xlu0 %v613, 32
      %v1406 = vpop.permute.xlu0 %1405
      %1407 = vrot.lane.b32.xlu0 %v615, 32
      %v1408 = vpop.permute.xlu0 %1407
      %1409 = vrot.lane.b32.xlu0 %v618, 32
      %v1410 = vpop.permute.xlu0 %1409
      %1411 = vrot.lane.b32.xlu0 %v620, 32
      %v1412 = vpop.permute.xlu0 %1411
      %1413 = vrot.lane.b32.xlu0 %v623, 32
      %v1414 = vpop.permute.xlu0 %1413
      %1415 = vrot.lane.b32.xlu0 %v625, 32
      %v1416 = vpop.permute.xlu0 %1415
      %1417 = vrot.lane.b32.xlu0 %v628, 32
      %v1418 = vpop.permute.xlu0 %1417
      %1419 = vrot.lane.b32.xlu0 %v630, 32
      %v1420 = vpop.permute.xlu0 %1419
      %1421 = vrot.lane.b32.xlu0 %v633, 32
      %v1422 = vpop.permute.xlu0 %1421
      %1423 = vrot.lane.b32.xlu0 %v635, 32
      %v1424 = vpop.permute.xlu0 %1423
      %1425 = vrot.lane.b32.xlu0 %v638, 32
      %v1426 = vpop.permute.xlu0 %1425
      %1427 = vrot.lane.b32.xlu0 %v640, 32
      %v1428 = vpop.permute.xlu0 %1427
      %1429 = vrot.lane.b32.xlu0 %v643, 32
      %v1430 = vpop.permute.xlu0 %1429
      %1431 = vrot.lane.b32.xlu0 %v645, 32
      %v1432 = vpop.permute.xlu0 %1431
      %1433 = vrot.lane.b32.xlu0 %v648, 32
      %v1434 = vpop.permute.xlu0 %1433
      %1435 = vrot.lane.b32.xlu0 %v650, 32
      %v1436 = vpop.permute.xlu0 %1435
      %1437 = vrot.lane.b32.xlu0 %v693, 32
      %v1438 = vpop.permute.xlu0 %1437
      %1439 = vrot.lane.b32.xlu0 %v695, 32
      %v1440 = vpop.permute.xlu0 %1439
      %1441 = vrot.lane.b32.xlu0 %v706, 32
      %v1442 = vpop.permute.xlu0 %1441
      %1443 = vrot.lane.b32.xlu0 %v708, 32
      %v1444 = vpop.permute.xlu0 %1443
      %vm1477 = vcmask 31744
      %v1478 = vsel %vm1477, %v387, %v710
      %v1479 = vsel %vm1477, %v388, %v712
      %v1480 = vsel %vm1477, %v390, %v714
      %v1481 = vsel %vm1477, %v391, %v716
      %v1482 = vsel %vm1477, %v393, %v718
      %v1483 = vsel %vm1477, %v394, %v720
      %v1484 = vsel %vm1477, %v396, %v722
      %v1485 = vsel %vm1477, %v397, %v724
      %v1486 = vsel %vm1477, %v399, %v726
      %v1487 = vsel %vm1477, %v400, %v728
      %v1488 = vsel %vm1477, %v402, %v730
      %v1489 = vsel %vm1477, %v403, %v732
      %v1490 = vsel %vm1477, %v405, %v734
      %v1491 = vsel %vm1477, %v406, %v736
      %v1492 = vsel %vm1477, %v408, %v738
      %v1493 = vsel %vm1477, %v409, %v740
      %v1494 = vsel %vm1477, %v411, %v742
      %v1495 = vsel %vm1477, %v412, %v744
      %v1496 = vsel %vm1477, %v414, %v746
      %v1497 = vsel %vm1477, %v415, %v748
      %v1498 = vsel %vm1477, %v417, %v750
      %v1499 = vsel %vm1477, %v418, %v752
      %v1500 = vsel %vm1477, %v420, %v754
      %v1501 = vsel %vm1477, %v421, %v756
      %v1502 = vsel %vm1477, %v423, %v758
      %v1503 = vsel %vm1477, %v424, %v760
      %v1504 = vsel %vm1477, %v426, %v762
      %v1505 = vsel %vm1477, %v427, %v764
      %v1506 = vsel %vm1477, %v429, %v766
      %v1507 = vsel %vm1477, %v430, %v768
      %v1508 = vsel %vm1477, %v432, %v770
      %v1509 = vsel %vm1477, %v433, %v772
      %vm1510 = vcmask 64512
      %v1511 = vsel %vm1510, %v1478, %v806
      %v1512 = vsel %vm1510, %v1479, %v808
      %v1513 = vsel %vm1510, %v1480, %v810
      %v1514 = vsel %vm1510, %v1481, %v812
      %v1515 = vsel %vm1510, %v1482, %v814
      %v1516 = vsel %vm1510, %v1483, %v816
      %v1517 = vsel %vm1510, %v1484, %v818
      %v1518 = vsel %vm1510, %v1485, %v820
      %v1519 = vsel %vm1510, %v1486, %v822
      %v1520 = vsel %vm1510, %v1487, %v824
      %v1521 = vsel %vm1510, %v1488, %v826
      %v1522 = vsel %vm1510, %v1489, %v828
      %v1523 = vsel %vm1510, %v1490, %v830
      %v1524 = vsel %vm1510, %v1491, %v832
      %v1525 = vsel %vm1510, %v1492, %v834
      %v1526 = vsel %vm1510, %v1493, %v836
      %v1527 = vsel %vm1510, %v1494, %v838
      %v1528 = vsel %vm1510, %v1495, %v840
      %v1529 = vsel %vm1510, %v1496, %v842
      %v1530 = vsel %vm1510, %v1497, %v844
      %v1531 = vsel %vm1510, %v1498, %v846
      %v1532 = vsel %vm1510, %v1499, %v848
      %v1533 = vsel %vm1510, %v1500, %v850
      %v1534 = vsel %vm1510, %v1501, %v852
      %v1535 = vsel %vm1510, %v1502, %v854
      %v1536 = vsel %vm1510, %v1503, %v856
      %v1537 = vsel %vm1510, %v1504, %v858
      %v1538 = vsel %vm1510, %v1505, %v860
      %v1539 = vsel %vm1510, %v1506, %v862
      %v1540 = vsel %vm1510, %v1507, %v864
      %v1541 = vsel %vm1510, %v1508, %v866
      %v1542 = vsel %vm1510, %v1509, %v868
      %vm1543 = vcmask 97280
      %v1544 = vsel %vm1543, %v1511, %v902
      %v1545 = vsel %vm1543, %v1512, %v904
      %v1546 = vsel %vm1543, %v1513, %v906
      %v1547 = vsel %vm1543, %v1514, %v908
      %v1548 = vsel %vm1543, %v1515, %v910
      %v1549 = vsel %vm1543, %v1516, %v912
      %v1550 = vsel %vm1543, %v1517, %v914
      %v1551 = vsel %vm1543, %v1518, %v916
      %v1552 = vsel %vm1543, %v1519, %v918
      %v1553 = vsel %vm1543, %v1520, %v920
      %v1554 = vsel %vm1543, %v1521, %v922
      %v1555 = vsel %vm1543, %v1522, %v924
      %v1556 = vsel %vm1543, %v1523, %v926
      %v1557 = vsel %vm1543, %v1524, %v928
      %v1558 = vsel %vm1543, %v1525, %v930
      %v1559 = vsel %vm1543, %v1526, %v932
      %v1560 = vsel %vm1543, %v1527, %v934
      %v1561 = vsel %vm1543, %v1528, %v936
      %v1562 = vsel %vm1543, %v1529, %v938
      %v1563 = vsel %vm1543, %v1530, %v940
      %v1564 = vsel %vm1543, %v1531, %v942
      %v1565 = vsel %vm1543, %v1532, %v944
      %v1566 = vsel %vm1543, %v1533, %v946
      %v1567 = vsel %vm1543, %v1534, %v948
      %v1568 = vsel %vm1543, %v1535, %v950
      %v1569 = vsel %vm1543, %v1536, %v952
      %v1570 = vsel %vm1543, %v1537, %v954
      %v1571 = vsel %vm1543, %v1538, %v956
      %v1572 = vsel %vm1543, %v1539, %v958
      %v1573 = vsel %vm1543, %v1540, %v960
      %v1574 = vsel %vm1543, %v1541, %v962
      %v1575 = vsel %vm1543, %v1542, %v964
      %vm1576 = vcmask 130048
      %v1577 = vsel %vm1576, %v1544, %v998
      %v1578 = vsel %vm1576, %v1545, %v1000
      %v1579 = vsel %vm1576, %v1546, %v1002
      %v1580 = vsel %vm1576, %v1547, %v1004
      %v1581 = vsel %vm1576, %v1548, %v1006
      %v1582 = vsel %vm1576, %v1549, %v1008
      %v1583 = vsel %vm1576, %v1550, %v1010
      %v1584 = vsel %vm1576, %v1551, %v1012
      %v1585 = vsel %vm1576, %v1552, %v1014
      %v1586 = vsel %vm1576, %v1553, %v1016
      %v1587 = vsel %vm1576, %v1554, %v1018
      %v1588 = vsel %vm1576, %v1555, %v1020
      %v1589 = vsel %vm1576, %v1556, %v1022
      %v1590 = vsel %vm1576, %v1557, %v1024
      %v1591 = vsel %vm1576, %v1558, %v1026
      %v1592 = vsel %vm1576, %v1559, %v1028
      %v1593 = vsel %vm1576, %v1560, %v1030
      %v1594 = vsel %vm1576, %v1561, %v1032
      %v1595 = vsel %vm1576, %v1562, %v1034
      %v1596 = vsel %vm1576, %v1563, %v1036
      %v1597 = vsel %vm1576, %v1564, %v1038
      %v1598 = vsel %vm1576, %v1565, %v1040
      %v1599 = vsel %vm1576, %v1566, %v1042
      %v1600 = vsel %vm1576, %v1567, %v1044
      %v1601 = vsel %vm1576, %v1568, %v1046
      %v1602 = vsel %vm1576, %v1569, %v1048
      %v1603 = vsel %vm1576, %v1570, %v1050
      %v1604 = vsel %vm1576, %v1571, %v1052
      %v1605 = vsel %vm1576, %v1572, %v1054
      %v1606 = vsel %vm1576, %v1573, %v1056
      %v1607 = vsel %vm1576, %v1574, %v1058
      %v1608 = vsel %vm1576, %v1575, %v1060
      %vm1609 = vcmask 162816
      %v1610 = vsel %vm1609, %v1577, %v1094
      %v1611 = vsel %vm1609, %v1578, %v1096
      %v1612 = vsel %vm1609, %v1579, %v1098
      %v1613 = vsel %vm1609, %v1580, %v1100
      %v1614 = vsel %vm1609, %v1581, %v1102
      %v1615 = vsel %vm1609, %v1582, %v1104
      %v1616 = vsel %vm1609, %v1583, %v1106
      %v1617 = vsel %vm1609, %v1584, %v1108
      %v1618 = vsel %vm1609, %v1585, %v1110
      %v1619 = vsel %vm1609, %v1586, %v1112
      %v1620 = vsel %vm1609, %v1587, %v1114
      %v1621 = vsel %vm1609, %v1588, %v1116
      %v1622 = vsel %vm1609, %v1589, %v1118
      %v1623 = vsel %vm1609, %v1590, %v1120
      %v1624 = vsel %vm1609, %v1591, %v1122
      %v1625 = vsel %vm1609, %v1592, %v1124
      %v1626 = vsel %vm1609, %v1593, %v1126
      %v1627 = vsel %vm1609, %v1594, %v1128
      %v1628 = vsel %vm1609, %v1595, %v1130
      %v1629 = vsel %vm1609, %v1596, %v1132
      %v1630 = vsel %vm1609, %v1597, %v1134
      %v1631 = vsel %vm1609, %v1598, %v1136
      %v1632 = vsel %vm1609, %v1599, %v1138
      %v1633 = vsel %vm1609, %v1600, %v1140
      %v1634 = vsel %vm1609, %v1601, %v1142
      %v1635 = vsel %vm1609, %v1602, %v1144
      %v1636 = vsel %vm1609, %v1603, %v1146
      %v1637 = vsel %vm1609, %v1604, %v1148
      %v1638 = vsel %vm1609, %v1605, %v1150
      %v1639 = vsel %vm1609, %v1606, %v1152
      %v1640 = vsel %vm1609, %v1607, %v1154
      %v1641 = vsel %vm1609, %v1608, %v1156
      %vm1642 = vcmask 195584
      %v1643 = vsel %vm1642, %v1610, %v1190
      %v1644 = vsel %vm1642, %v1611, %v1192
      %v1645 = vsel %vm1642, %v1612, %v1194
      %v1646 = vsel %vm1642, %v1613, %v1196
      %v1647 = vsel %vm1642, %v1614, %v1198
      %v1648 = vsel %vm1642, %v1615, %v1200
      %v1649 = vsel %vm1642, %v1616, %v1202
      %v1650 = vsel %vm1642, %v1617, %v1204
      %v1651 = vsel %vm1642, %v1618, %v1206
      %v1652 = vsel %vm1642, %v1619, %v1208
      %v1653 = vsel %vm1642, %v1620, %v1210
      %v1654 = vsel %vm1642, %v1621, %v1212
      %v1655 = vsel %vm1642, %v1622, %v1214
      %v1656 = vsel %vm1642, %v1623, %v1216
      %v1657 = vsel %vm1642, %v1624, %v1218
      %v1658 = vsel %vm1642, %v1625, %v1220
      %v1659 = vsel %vm1642, %v1626, %v1222
      %v1660 = vsel %vm1642, %v1627, %v1224
      %v1661 = vsel %vm1642, %v1628, %v1226
      %v1662 = vsel %vm1642, %v1629, %v1228
      %v1663 = vsel %vm1642, %v1630, %v1230
      %v1664 = vsel %vm1642, %v1631, %v1232
      %v1665 = vsel %vm1642, %v1632, %v1234
      %v1666 = vsel %vm1642, %v1633, %v1236
      %v1667 = vsel %vm1642, %v1634, %v1238
      %v1668 = vsel %vm1642, %v1635, %v1240
      %v1669 = vsel %vm1642, %v1636, %v1242
      %v1670 = vsel %vm1642, %v1637, %v1244
      %v1671 = vsel %vm1642, %v1638, %v1246
      %v1672 = vsel %vm1642, %v1639, %v1248
      %v1673 = vsel %vm1642, %v1640, %v1250
      %v1674 = vsel %vm1642, %v1641, %v1252
      %vm1675 = vcmask 228352
      %v1676 = vsel %vm1675, %v1643, %v1286
      %v1677 = vsel %vm1675, %v1644, %v1288
      %v1678 = vsel %vm1675, %v1645, %v1290
      %v1679 = vsel %vm1675, %v1646, %v1292
      %v1680 = vsel %vm1675, %v1647, %v1294
      %v1681 = vsel %vm1675, %v1648, %v1296
      %v1682 = vsel %vm1675, %v1649, %v1298
      %v1683 = vsel %vm1675, %v1650, %v1300
      %v1684 = vsel %vm1675, %v1651, %v1302
      %v1685 = vsel %vm1675, %v1652, %v1304
      %v1686 = vsel %vm1675, %v1653, %v1306
      %v1687 = vsel %vm1675, %v1654, %v1308
      %v1688 = vsel %vm1675, %v1655, %v1310
      %v1689 = vsel %vm1675, %v1656, %v1312
      %v1690 = vsel %vm1675, %v1657, %v1314
      %v1691 = vsel %vm1675, %v1658, %v1316
      %v1692 = vsel %vm1675, %v1659, %v1318
      %v1693 = vsel %vm1675, %v1660, %v1320
      %v1694 = vsel %vm1675, %v1661, %v1322
      %v1695 = vsel %vm1675, %v1662, %v1324
      %v1696 = vsel %vm1675, %v1663, %v1326
      %v1697 = vsel %vm1675, %v1664, %v1328
      %v1698 = vsel %vm1675, %v1665, %v1330
      %v1699 = vsel %vm1675, %v1666, %v1332
      %v1700 = vsel %vm1675, %v1667, %v1334
      %v1701 = vsel %vm1675, %v1668, %v1336
      %v1702 = vsel %vm1675, %v1669, %v1338
      %v1703 = vsel %vm1675, %v1670, %v1340
      %v1704 = vsel %vm1675, %v1671, %v1342
      %v1705 = vsel %vm1675, %v1672, %v1344
      %v1706 = vsel %vm1675, %v1673, %v1346
      %v1707 = vsel %vm1675, %v1674, %v1348
      %vm1708 = vcmask 261120
      %v1709 = vsel %vm1708, %v1676, %v1382
      %v1710 = vsel %vm1708, %v1677, %v1384
      %v1711 = vsel %vm1708, %v1678, %v1386
      %v1712 = vsel %vm1708, %v1679, %v1388
      %v1713 = vsel %vm1708, %v1680, %v1390
      %v1714 = vsel %vm1708, %v1681, %v1392
      %v1715 = vsel %vm1708, %v1682, %v1394
      %v1716 = vsel %vm1708, %v1683, %v1396
      %v1717 = vsel %vm1708, %v1684, %v1398
      %v1718 = vsel %vm1708, %v1685, %v1400
      %v1719 = vsel %vm1708, %v1686, %v1402
      %v1720 = vsel %vm1708, %v1687, %v1404
      %v1721 = vsel %vm1708, %v1688, %v1406
      %v1722 = vsel %vm1708, %v1689, %v1408
      %v1723 = vsel %vm1708, %v1690, %v1410
      %v1724 = vsel %vm1708, %v1691, %v1412
      %v1725 = vsel %vm1708, %v1692, %v1414
      %v1726 = vsel %vm1708, %v1693, %v1416
      %v1727 = vsel %vm1708, %v1694, %v1418
      %v1728 = vsel %vm1708, %v1695, %v1420
      %v1729 = vsel %vm1708, %v1696, %v1422
      %v1730 = vsel %vm1708, %v1697, %v1424
      %v1731 = vsel %vm1708, %v1698, %v1426
      %v1732 = vsel %vm1708, %v1699, %v1428
      %v1733 = vsel %vm1708, %v1700, %v1430
      %v1734 = vsel %vm1708, %v1701, %v1432
      %v1735 = vsel %vm1708, %v1702, %v1434
      %v1736 = vsel %vm1708, %v1703, %v1436
      %v1737 = vsel %vm1708, %v1704, %v1438
      %v1738 = vsel %vm1708, %v1705, %v1440
      %v1739 = vsel %vm1708, %v1706, %v1442
      %v1740 = vsel %vm1708, %v1707, %v1444
      %v1741 = vld [vmem:[%s1] sm:$0xff]
      %v1742 = vld [vmem:[%s1 + $0x8] sm:$0xff]
      %v1743 = vld [vmem:[%s1 + $0x10] sm:$0xff]
      %v1744 = vld [vmem:[%s1 + $0x18] sm:$0xff]
      %v1745 = vld [vmem:[%s1 + $0x20] sm:$0xf]
      %v1746 = vld [vmem:[%s2] sm:$0x1]
      %v1748 = vlaneseq
      %v1749 = vshrl.u32 %v1748, 7
      %v1750 = vsub.s32 0, %v1749
      %v1751 = vrot.slane %v1746, %v1750
      %vm1753 = vcmask 293888
      %v1755 = vsel %vm1753, %v1709, 0
      %v1758 = vsel %vm1753, %v1710, 0
      %v1761 = vsel %vm1753, %v1711, 0
      %v1764 = vsel %vm1753, %v1712, 0
      %v1767 = vsel %vm1753, %v1713, 0
      %v1770 = vsel %vm1753, %v1714, 0
      %v1773 = vsel %vm1753, %v1715, 0
      %v1776 = vsel %vm1753, %v1716, 0
      %v1779 = vsel %vm1753, %v1717, 0
      %v1782 = vsel %vm1753, %v1718, 0
      %v1785 = vsel %vm1753, %v1719, 0
      %v1788 = vsel %vm1753, %v1720, 0
      %v1791 = vsel %vm1753, %v1721, 0
      %v1794 = vsel %vm1753, %v1722, 0
      %v1797 = vsel %vm1753, %v1723, 0
      %v1800 = vsel %vm1753, %v1724, 0
      %v1803 = vsel %vm1753, %v1725, 0
      %v1806 = vsel %vm1753, %v1726, 0
      %v1809 = vsel %vm1753, %v1727, 0
      %v1812 = vsel %vm1753, %v1728, 0
      %v1815 = vsel %vm1753, %v1729, 0
      %v1818 = vsel %vm1753, %v1730, 0
      %v1821 = vsel %vm1753, %v1731, 0
      %v1824 = vsel %vm1753, %v1732, 0
      %v1827 = vsel %vm1753, %v1733, 0
      %v1830 = vsel %vm1753, %v1734, 0
      %v1833 = vsel %vm1753, %v1735, 0
      %v1836 = vsel %vm1753, %v1736, 0
      %v1839 = vsel %vm1753, %v1737, 0
      %v1842 = vsel %vm1753, %v1738, 0
      %v1845 = vsel %vm1753, %v1739, 0
      %v1848 = vsel %vm1753, %v1740, 0
      %vm1850 = vcmask 1043456
      %v1852 = vsel %vm1850, %v1745, 0
      %1854 = vmatprep.subr.mxu0 0.0
      %1855 = vmatpush1.msra.mxu0 %v1741
      %1856 = vmatprep.subr.mxu0 0.0
      %1857 = vmatpush1.msra.mxu0 %v1742
      %1858 = vmatprep.subr.mxu0 0.0
      %1859 = vmatpush1.msra.mxu0 %v1743
      %1860 = vmatprep.subr.mxu0 0.0
      %1861 = vmatpush1.msra.mxu0 %v1744
      %1862 = vmatprep.subr.mxu0 0.0
      %1863 = vmatpush1.msra.mxu0 %v1852
      %1864 = vmatprep.subr.mxu0 0.0
      %1865 = vmatpush1.msra.mxu0 0.0
      %1866 = vmatprep.subr.mxu0 0.0
      %1867 = vmatpush1.msra.mxu0 0.0
      %1868 = vmatprep.subr.mxu0 0.0
      %1869 = vmatpush1.msra.mxu0 0.0
      %1870 = vmatprep.subr.mxu0 0.0
      %1871 = vmatpush1.msra.mxu0 0.0
      %1872 = vmatprep.subr.mxu0 0.0
      %1873 = vmatpush1.msra.mxu0 0.0
      %1874 = vmatprep.subr.mxu0 0.0
      %1875 = vmatpush1.msra.mxu0 0.0
      %1876 = vmatprep.subr.mxu0 0.0
      %1877 = vmatpush1.msra.mxu0 0.0
      %1878 = vmatprep.subr.mxu0 0.0
      %1879 = vmatpush1.msra.mxu0 0.0
      %1880 = vmatprep.subr.mxu0 0.0
      %1881 = vmatpush1.msra.mxu0 0.0
      %1882 = vmatprep.subr.mxu0 0.0
      %1883 = vmatpush1.msra.mxu0 0.0
      %1884 = vmatprep.subr.mxu0 0.0
      %1885 = vmatpush1.msra.mxu0 0.0
      %1886 = vmatprep.subr.mxu0 0.0
      %1887 = vmatpush1.msra.mxu0 0.0
      %1888 = vmatprep.subr.mxu0 0.0
      %1889 = vmatpush1.msra.mxu0 0.0
      %1890 = vmatprep.subr.mxu0 0.0
      %1891 = vmatpush1.msra.mxu0 0.0
      %1892 = vmatprep.subr.mxu0 0.0
      %1893 = vmatpush1.msra.mxu0 0.0
      %1894 = vmatprep.subr.mxu0 0.0
      %1895 = vmatpush1.msra.mxu0 0.0
      %1896 = vmatprep.subr.mxu0 0.0
      %1897 = vmatpush1.msra.mxu0 0.0
      %1898 = vmatprep.subr.mxu0 0.0
      %1899 = vmatpush1.msra.mxu0 0.0
      %1900 = vmatprep.subr.mxu0 0.0
      %1901 = vmatpush1.msra.mxu0 0.0
      %1902 = vmatprep.subr.mxu0 0.0
      %1903 = vmatpush1.msra.mxu0 0.0
      %1904 = vmatprep.subr.mxu0 0.0
      %1905 = vmatpush1.msra.mxu0 0.0
      %1906 = vmatprep.subr.mxu0 0.0
      %1907 = vmatpush1.msra.mxu0 0.0
      %1908 = vmatprep.subr.mxu0 0.0
      %1909 = vmatpush1.msra.mxu0 0.0
      %1910 = vmatprep.subr.mxu0 0.0
      %1911 = vmatpush1.msra.mxu0 0.0
      %1912 = vmatprep.subr.mxu0 0.0
      %1913 = vmatpush1.msra.mxu0 0.0
      %1914 = vmatprep.subr.mxu0 0.0
      %1915 = vmatpush1.msra.mxu0 0.0
      %1916 = vmatprep.subr.mxu0 0.0
      %1917 = vmatpush1.msra.mxu0 0.0
      %1918 = vmatprep.mubr.f32.mxu0 0.0
      %1919 = vmatmul.mubr.f32.gmra.mrb[0].mxu0 %v1755
      %v1920 = vpop.f32.mrb[0].mxu0
      %v1921 = vadd.f32 %v1751, %v1920
      %v1922 = vpop.f32.mrb[0].mxu0
      %1923 = vmatprep.mubr.f32.mxu0 0.0
      %1924 = vmatmul.mubr.f32.gmra.mrb[0].mxu0 %v1758
      %v1925 = vpop.f32.mrb[0].mxu0
      %v1926 = vadd.f32 %v1751, %v1925
      %v1927 = vpop.f32.mrb[0].mxu0
      %1928 = vmatprep.mubr.f32.mxu0 0.0
      %1929 = vmatmul.mubr.f32.gmra.mrb[0].mxu0 %v1761
      %v1930 = vpop.f32.mrb[0].mxu0
      %v1931 = vadd.f32 %v1751, %v1930
      %v1932 = vpop.f32.mrb[0].mxu0
      %1933 = vmatprep.mubr.f32.mxu0 0.0
      %1934 = vmatmul.mubr.f32.gmra.mrb[0].mxu0 %v1764
      %v1935 = vpop.f32.mrb[0].mxu0
      %v1936 = vadd.f32 %v1751, %v1935
      %v1937 = vpop.f32.mrb[0].mxu0
      %1938 = vmatprep.mubr.f32.mxu0 0.0
      %1939 = vmatmul.mubr.f32.gmra.mrb[0].mxu0 %v1767
      %v1940 = vpop.f32.mrb[0].mxu0
      %v1941 = vadd.f32 %v1751, %v1940
      %v1942 = vpop.f32.mrb[0].mxu0
      %1943 = vmatprep.mubr.f32.mxu0 0.0
      %1944 = vmatmul.mubr.f32.gmra.mrb[0].mxu0 %v1770
      %v1945 = vpop.f32.mrb[0].mxu0
      %v1946 = vadd.f32 %v1751, %v1945
      %v1947 = vpop.f32.mrb[0].mxu0
      %1948 = vmatprep.mubr.f32.mxu0 0.0
      %1949 = vmatmul.mubr.f32.gmra.mrb[0].mxu0 %v1773
      %v1950 = vpop.f32.mrb[0].mxu0
      %v1951 = vadd.f32 %v1751, %v1950
      %v1952 = vpop.f32.mrb[0].mxu0
      %1953 = vmatprep.mubr.f32.mxu0 0.0
      %1954 = vmatmul.mubr.f32.gmra.mrb[0].mxu0 %v1776
      %v1955 = vpop.f32.mrb[0].mxu0
      %v1956 = vadd.f32 %v1751, %v1955
      %v1957 = vpop.f32.mrb[0].mxu0
      %1958 = vmatprep.mubr.f32.mxu0 0.0
      %1959 = vmatmul.mubr.f32.gmra.mrb[0].mxu0 %v1779
      %v1960 = vpop.f32.mrb[0].mxu0
      %v1961 = vadd.f32 %v1751, %v1960
      %v1962 = vpop.f32.mrb[0].mxu0
      %1963 = vmatprep.mubr.f32.mxu0 0.0
      %1964 = vmatmul.mubr.f32.gmra.mrb[0].mxu0 %v1782
      %v1965 = vpop.f32.mrb[0].mxu0
      %v1966 = vadd.f32 %v1751, %v1965
      %v1967 = vpop.f32.mrb[0].mxu0
      %1968 = vmatprep.mubr.f32.mxu0 0.0
      %1969 = vmatmul.mubr.f32.gmra.mrb[0].mxu0 %v1785
      %v1970 = vpop.f32.mrb[0].mxu0
      %v1971 = vadd.f32 %v1751, %v1970
      %v1972 = vpop.f32.mrb[0].mxu0
      %1973 = vmatprep.mubr.f32.mxu0 0.0
      %1974 = vmatmul.mubr.f32.gmra.mrb[0].mxu0 %v1788
      %v1975 = vpop.f32.mrb[0].mxu0
      %v1976 = vadd.f32 %v1751, %v1975
      %v1977 = vpop.f32.mrb[0].mxu0
      %1978 = vmatprep.mubr.f32.mxu0 0.0
      %1979 = vmatmul.mubr.f32.gmra.mrb[0].mxu0 %v1791
      %v1980 = vpop.f32.mrb[0].mxu0
      %v1981 = vadd.f32 %v1751, %v1980
      %v1982 = vpop.f32.mrb[0].mxu0
      %1983 = vmatprep.mubr.f32.mxu0 0.0
      %1984 = vmatmul.mubr.f32.gmra.mrb[0].mxu0 %v1794
      %v1985 = vpop.f32.mrb[0].mxu0
      %v1986 = vadd.f32 %v1751, %v1985
      %v1987 = vpop.f32.mrb[0].mxu0
      %1988 = vmatprep.mubr.f32.mxu0 0.0
      %1989 = vmatmul.mubr.f32.gmra.mrb[0].mxu0 %v1797
      %v1990 = vpop.f32.mrb[0].mxu0
      %v1991 = vadd.f32 %v1751, %v1990
      %v1992 = vpop.f32.mrb[0].mxu0
      %1993 = vmatprep.mubr.f32.mxu0 0.0
      %1994 = vmatmul.mubr.f32.gmra.mrb[0].mxu0 %v1800
      %v1995 = vpop.f32.mrb[0].mxu0
      %v1996 = vadd.f32 %v1751, %v1995
      %v1997 = vpop.f32.mrb[0].mxu0
      %1998 = vmatprep.mubr.f32.mxu0 0.0
      %1999 = vmatmul.mubr.f32.gmra.mrb[0].mxu0 %v1803
      %v2000 = vpop.f32.mrb[0].mxu0
      %v2001 = vadd.f32 %v1751, %v2000
      %v2002 = vpop.f32.mrb[0].mxu0
      %2003 = vmatprep.mubr.f32.mxu0 0.0
      %2004 = vmatmul.mubr.f32.gmra.mrb[0].mxu0 %v1806
      %v2005 = vpop.f32.mrb[0].mxu0
      %v2006 = vadd.f32 %v1751, %v2005
      %v2007 = vpop.f32.mrb[0].mxu0
      %2008 = vmatprep.mubr.f32.mxu0 0.0
      %2009 = vmatmul.mubr.f32.gmra.mrb[0].mxu0 %v1809
      %v2010 = vpop.f32.mrb[0].mxu0
      %v2011 = vadd.f32 %v1751, %v2010
      %v2012 = vpop.f32.mrb[0].mxu0
      %2013 = vmatprep.mubr.f32.mxu0 0.0
      %2014 = vmatmul.mubr.f32.gmra.mrb[0].mxu0 %v1812
      %v2015 = vpop.f32.mrb[0].mxu0
      %v2016 = vadd.f32 %v1751, %v2015
      %v2017 = vpop.f32.mrb[0].mxu0
      %2018 = vmatprep.mubr.f32.mxu0 0.0
      %2019 = vmatmul.mubr.f32.gmra.mrb[0].mxu0 %v1815
      %v2020 = vpop.f32.mrb[0].mxu0
      %v2021 = vadd.f32 %v1751, %v2020
      %v2022 = vpop.f32.mrb[0].mxu0
      %2023 = vmatprep.mubr.f32.mxu0 0.0
      %2024 = vmatmul.mubr.f32.gmra.mrb[0].mxu0 %v1818
      %v2025 = vpop.f32.mrb[0].mxu0
      %v2026 = vadd.f32 %v1751, %v2025
      %v2027 = vpop.f32.mrb[0].mxu0
      %2028 = vmatprep.mubr.f32.mxu0 0.0
      %2029 = vmatmul.mubr.f32.gmra.mrb[0].mxu0 %v1821
      %v2030 = vpop.f32.mrb[0].mxu0
      %v2031 = vadd.f32 %v1751, %v2030
      %v2032 = vpop.f32.mrb[0].mxu0
      %2033 = vmatprep.mubr.f32.mxu0 0.0
      %2034 = vmatmul.mubr.f32.gmra.mrb[0].mxu0 %v1824
      %v2035 = vpop.f32.mrb[0].mxu0
      %v2036 = vadd.f32 %v1751, %v2035
      %v2037 = vpop.f32.mrb[0].mxu0
      %2038 = vmatprep.mubr.f32.mxu0 0.0
      %2039 = vmatmul.mubr.f32.gmra.mrb[0].mxu0 %v1827
      %v2040 = vpop.f32.mrb[0].mxu0
      %v2041 = vadd.f32 %v1751, %v2040
      %v2042 = vpop.f32.mrb[0].mxu0
      %2043 = vmatprep.mubr.f32.mxu0 0.0
      %2044 = vmatmul.mubr.f32.gmra.mrb[0].mxu0 %v1830
      %v2045 = vpop.f32.mrb[0].mxu0
      %v2046 = vadd.f32 %v1751, %v2045
      %v2047 = vpop.f32.mrb[0].mxu0
      %2048 = vmatprep.mubr.f32.mxu0 0.0
      %2049 = vmatmul.mubr.f32.gmra.mrb[0].mxu0 %v1833
      %v2050 = vpop.f32.mrb[0].mxu0
      %v2051 = vadd.f32 %v1751, %v2050
      %v2052 = vpop.f32.mrb[0].mxu0
      %2053 = vmatprep.mubr.f32.mxu0 0.0
      %2054 = vmatmul.mubr.f32.gmra.mrb[0].mxu0 %v1836
      %v2055 = vpop.f32.mrb[0].mxu0
      %v2056 = vadd.f32 %v1751, %v2055
      %v2057 = vpop.f32.mrb[0].mxu0
      %2058 = vmatprep.mubr.f32.mxu0 0.0
      %2059 = vmatmul.mubr.f32.gmra.mrb[0].mxu0 %v1839
      %v2060 = vpop.f32.mrb[0].mxu0
      %v2061 = vadd.f32 %v1751, %v2060
      %v2062 = vpop.f32.mrb[0].mxu0
      %2063 = vmatprep.mubr.f32.mxu0 0.0
      %2064 = vmatmul.mubr.f32.gmra.mrb[0].mxu0 %v1842
      %v2065 = vpop.f32.mrb[0].mxu0
      %v2066 = vadd.f32 %v1751, %v2065
      %v2067 = vpop.f32.mrb[0].mxu0
      %2068 = vmatprep.mubr.f32.mxu0 0.0
      %2069 = vmatmul.mubr.f32.gmra.mrb[0].mxu0 %v1845
      %v2070 = vpop.f32.mrb[0].mxu0
      %v2071 = vadd.f32 %v1751, %v2070
      %v2072 = vpop.f32.mrb[0].mxu0
      %2073 = vmatprep.mubr.f32.mxu0 0.0
      %2074 = vmatmul.mubr.f32.gmra.mrb[0].mxu0 %v1848
      %v2075 = vpop.f32.mrb[0].mxu0
      %v2076 = vadd.f32 %v1751, %v2075
      %v2077 = vpop.f32.mrb[0].mxu0
      %2078 = vdwg.mxu0
      %vm2079 = vcmp.ge.f32.partialorder %v1921, 0.0
      %vm2080 = vcmp.ge.f32.partialorder %v1926, 0.0
      %vm2081 = vcmp.ge.f32.partialorder %v1931, 0.0
      %vm2082 = vcmp.ge.f32.partialorder %v1936, 0.0
      %vm2083 = vcmp.ge.f32.partialorder %v1941, 0.0
      %vm2084 = vcmp.ge.f32.partialorder %v1946, 0.0
      %vm2085 = vcmp.ge.f32.partialorder %v1951, 0.0
      %vm2086 = vcmp.ge.f32.partialorder %v1956, 0.0
      %vm2087 = vcmp.ge.f32.partialorder %v1961, 0.0
      %vm2088 = vcmp.ge.f32.partialorder %v1966, 0.0
      %vm2089 = vcmp.ge.f32.partialorder %v1971, 0.0
      %vm2090 = vcmp.ge.f32.partialorder %v1976, 0.0
      %vm2091 = vcmp.ge.f32.partialorder %v1981, 0.0
      %vm2092 = vcmp.ge.f32.partialorder %v1986, 0.0
      %vm2093 = vcmp.ge.f32.partialorder %v1991, 0.0
      %vm2094 = vcmp.ge.f32.partialorder %v1996, 0.0
      %vm2095 = vcmp.ge.f32.partialorder %v2001, 0.0
      %vm2096 = vcmp.ge.f32.partialorder %v2006, 0.0
      %vm2097 = vcmp.ge.f32.partialorder %v2011, 0.0
      %vm2098 = vcmp.ge.f32.partialorder %v2016, 0.0
      %vm2099 = vcmp.ge.f32.partialorder %v2021, 0.0
      %vm2100 = vcmp.ge.f32.partialorder %v2026, 0.0
      %vm2101 = vcmp.ge.f32.partialorder %v2031, 0.0
      %vm2102 = vcmp.ge.f32.partialorder %v2036, 0.0
      %vm2103 = vcmp.ge.f32.partialorder %v2041, 0.0
      %vm2104 = vcmp.ge.f32.partialorder %v2046, 0.0
      %vm2105 = vcmp.ge.f32.partialorder %v2051, 0.0
      %vm2106 = vcmp.ge.f32.partialorder %v2056, 0.0
      %vm2107 = vcmp.ge.f32.partialorder %v2061, 0.0
      %vm2108 = vcmp.ge.f32.partialorder %v2066, 0.0
      %vm2109 = vcmp.ge.f32.partialorder %v2071, 0.0
      %vm2110 = vcmp.ge.f32.partialorder %v2076, 0.0
      %v2111 = vmul.f32 %v1921, 0.2
      %v2112 = vmul.f32 %v1926, 0.2
      %v2113 = vmul.f32 %v1931, 0.2
      %v2114 = vmul.f32 %v1936, 0.2
      %v2115 = vmul.f32 %v1941, 0.2
      %v2116 = vmul.f32 %v1946, 0.2
      %v2117 = vmul.f32 %v1951, 0.2
      %v2118 = vmul.f32 %v1956, 0.2
      %v2119 = vmul.f32 %v1961, 0.2
      %v2120 = vmul.f32 %v1966, 0.2
      %v2121 = vmul.f32 %v1971, 0.2
      %v2122 = vmul.f32 %v1976, 0.2
      %v2123 = vmul.f32 %v1981, 0.2
      %v2124 = vmul.f32 %v1986, 0.2
      %v2125 = vmul.f32 %v1991, 0.2
      %v2126 = vmul.f32 %v1996, 0.2
      %v2127 = vmul.f32 %v2001, 0.2
      %v2128 = vmul.f32 %v2006, 0.2
      %v2129 = vmul.f32 %v2011, 0.2
      %v2130 = vmul.f32 %v2016, 0.2
      %v2131 = vmul.f32 %v2021, 0.2
      %v2132 = vmul.f32 %v2026, 0.2
      %v2133 = vmul.f32 %v2031, 0.2
      %v2134 = vmul.f32 %v2036, 0.2
      %v2135 = vmul.f32 %v2041, 0.2
      %v2136 = vmul.f32 %v2046, 0.2
      %v2137 = vmul.f32 %v2051, 0.2
      %v2138 = vmul.f32 %v2056, 0.2
      %v2139 = vmul.f32 %v2061, 0.2
      %v2140 = vmul.f32 %v2066, 0.2
      %v2141 = vmul.f32 %v2071, 0.2
      %v2142 = vmul.f32 %v2076, 0.2
      %v2143 = vsel %vm2079, %v1921, %v2111
      %v2144 = vsel %vm2080, %v1926, %v2112
      %v2145 = vsel %vm2081, %v1931, %v2113
      %v2146 = vsel %vm2082, %v1936, %v2114
      %v2147 = vsel %vm2083, %v1941, %v2115
      %v2148 = vsel %vm2084, %v1946, %v2116
      %v2149 = vsel %vm2085, %v1951, %v2117
      %v2150 = vsel %vm2086, %v1956, %v2118
      %v2151 = vsel %vm2087, %v1961, %v2119
      %v2152 = vsel %vm2088, %v1966, %v2120
      %v2153 = vsel %vm2089, %v1971, %v2121
      %v2154 = vsel %vm2090, %v1976, %v2122
      %v2155 = vsel %vm2091, %v1981, %v2123
      %v2156 = vsel %vm2092, %v1986, %v2124
      %v2157 = vsel %vm2093, %v1991, %v2125
      %v2158 = vsel %vm2094, %v1996, %v2126
      %v2159 = vsel %vm2095, %v2001, %v2127
      %v2160 = vsel %vm2096, %v2006, %v2128
      %v2161 = vsel %vm2097, %v2011, %v2129
      %v2162 = vsel %vm2098, %v2016, %v2130
      %v2163 = vsel %vm2099, %v2021, %v2131
      %v2164 = vsel %vm2100, %v2026, %v2132
      %v2165 = vsel %vm2101, %v2031, %v2133
      %v2166 = vsel %vm2102, %v2036, %v2134
      %v2167 = vsel %vm2103, %v2041, %v2135
      %v2168 = vsel %vm2104, %v2046, %v2136
      %v2169 = vsel %vm2105, %v2051, %v2137
      %v2170 = vsel %vm2106, %v2056, %v2138
      %v2171 = vsel %vm2107, %v2061, %v2139
      %v2172 = vsel %vm2108, %v2066, %v2140
      %v2173 = vsel %vm2109, %v2071, %v2141
      %v2174 = vsel %vm2110, %v2076, %v2142
      %2175 = vst.msk [vmem:[#allocation2] sm:$0xff] %vm1477, 0.0
      %2176 = vst.msk [vmem:[#allocation2 + $0x8] sm:$0xff] %vm1477, 0.0
      %2177 = vst.msk [vmem:[#allocation2 + $0x10] sm:$0xff] %vm1477, 0.0
      %vm2178 = vcmask 25600
      %2179 = vst.msk [vmem:[#allocation2 + $0x18] sm:$0x3] %vm2178, 0.0
      %2180 = vst.msk [vmem:[#allocation2 + $0x20] sm:$0xff] %vm1477, 0.0
      %2181 = vst.msk [vmem:[#allocation2 + $0x28] sm:$0xff] %vm1477, 0.0
      %2182 = vst.msk [vmem:[#allocation2 + $0x30] sm:$0xff] %vm1477, 0.0
      %2183 = vst.msk [vmem:[#allocation2 + $0x38] sm:$0x3] %vm2178, 0.0
      %2184 = vst.msk [vmem:[#allocation2 + $0x40] sm:$0xff] %vm1477, 0.0
      %2185 = vst.msk [vmem:[#allocation2 + $0x48] sm:$0xff] %vm1477, 0.0
      %2186 = vst.msk [vmem:[#allocation2 + $0x50] sm:$0xff] %vm1477, 0.0
      %2187 = vst.msk [vmem:[#allocation2 + $0x58] sm:$0x3] %vm2178, 0.0
      %2188 = vst.msk [vmem:[#allocation2 + $0x60] sm:$0xff] %vm1477, 0.0
      %2189 = vst.msk [vmem:[#allocation2 + $0x68] sm:$0xff] %vm1477, 0.0
      %2190 = vst.msk [vmem:[#allocation2 + $0x70] sm:$0xff] %vm1477, 0.0
      %2191 = vst.msk [vmem:[#allocation2 + $0x78] sm:$0x3] %vm2178, 0.0
      %2192 = vst.msk [vmem:[#allocation2 + $0x80] sm:$0xff] %vm1477, 0.0
      %2193 = vst.msk [vmem:[#allocation2 + $0x88] sm:$0xff] %vm1477, 0.0
      %2194 = vst.msk [vmem:[#allocation2 + $0x90] sm:$0xff] %vm1477, 0.0
      %2195 = vst.msk [vmem:[#allocation2 + $0x98] sm:$0x3] %vm2178, 0.0
      %2196 = vst.msk [vmem:[#allocation2 + $0xa0] sm:$0xff] %vm1477, 0.0
      %2197 = vst.msk [vmem:[#allocation2 + $0xa8] sm:$0xff] %vm1477, 0.0
      %2198 = vst.msk [vmem:[#allocation2 + $0xb0] sm:$0xff] %vm1477, 0.0
      %2199 = vst.msk [vmem:[#allocation2 + $0xb8] sm:$0x3] %vm2178, 0.0
      %2200 = vst.msk [vmem:[#allocation2 + $0xc0] sm:$0xff] %vm1477, 0.0
      %2201 = vst.msk [vmem:[#allocation2 + $0xc8] sm:$0xff] %vm1477, 0.0
      %2202 = vst.msk [vmem:[#allocation2 + $0xd0] sm:$0xff] %vm1477, 0.0
      %2203 = vst.msk [vmem:[#allocation2 + $0xd8] sm:$0x3] %vm2178, 0.0
      %2204 = vst.msk [vmem:[#allocation2 + $0xe0] sm:$0xff] %vm1477, 0.0
      %2205 = vst.msk [vmem:[#allocation2 + $0xe8] sm:$0xff] %vm1477, 0.0
      %2206 = vst.msk [vmem:[#allocation2 + $0xf0] sm:$0xff] %vm1477, 0.0
      %2207 = vst.msk [vmem:[#allocation2 + $0xf8] sm:$0x3] %vm2178, 0.0
      %2208 = vst.msk [vmem:[#allocation2 + $0x100] sm:$0xff] %vm1477, 0.0
      %2209 = vst.msk [vmem:[#allocation2 + $0x108] sm:$0xff] %vm1477, 0.0
      %2210 = vst.msk [vmem:[#allocation2 + $0x110] sm:$0xff] %vm1477, 0.0
      %2211 = vst.msk [vmem:[#allocation2 + $0x118] sm:$0x3] %vm2178, 0.0
      %2212 = vst.msk [vmem:[#allocation2 + $0x120] sm:$0xff] %vm1477, 0.0
      %2213 = vst.msk [vmem:[#allocation2 + $0x128] sm:$0xff] %vm1477, 0.0
      %2214 = vst.msk [vmem:[#allocation2 + $0x130] sm:$0xff] %vm1477, 0.0
      %2215 = vst.msk [vmem:[#allocation2 + $0x138] sm:$0x3] %vm2178, 0.0
      %2216 = vst.msk [vmem:[#allocation2 + $0x140] sm:$0xff] %vm1477, 0.0
      %2217 = vst.msk [vmem:[#allocation2 + $0x148] sm:$0xff] %vm1477, 0.0
      %2218 = vst.msk [vmem:[#allocation2 + $0x150] sm:$0xff] %vm1477, 0.0
      %2219 = vst.msk [vmem:[#allocation2 + $0x158] sm:$0x3] %vm2178, 0.0
      %2220 = vst.msk [vmem:[#allocation2 + $0x160] sm:$0xff] %vm1477, 0.0
      %2221 = vst.msk [vmem:[#allocation2 + $0x168] sm:$0xff] %vm1477, 0.0
      %2222 = vst.msk [vmem:[#allocation2 + $0x170] sm:$0xff] %vm1477, 0.0
      %2223 = vst.msk [vmem:[#allocation2 + $0x178] sm:$0x3] %vm2178, 0.0
      %2224 = vst.msk [vmem:[#allocation2 + $0x180] sm:$0xff] %vm1477, 0.0
      %2225 = vst.msk [vmem:[#allocation2 + $0x188] sm:$0xff] %vm1477, 0.0
      %2226 = vst.msk [vmem:[#allocation2 + $0x190] sm:$0xff] %vm1477, 0.0
      %2227 = vst.msk [vmem:[#allocation2 + $0x198] sm:$0x3] %vm2178, 0.0
      %2228 = vst.msk [vmem:[#allocation2 + $0x1a0] sm:$0xff] %vm1477, 0.0
      %2229 = vst.msk [vmem:[#allocation2 + $0x1a8] sm:$0xff] %vm1477, 0.0
      %2230 = vst.msk [vmem:[#allocation2 + $0x1b0] sm:$0xff] %vm1477, 0.0
      %2231 = vst.msk [vmem:[#allocation2 + $0x1b8] sm:$0x3] %vm2178, 0.0
      %2232 = vst.msk [vmem:[#allocation2 + $0x1c0] sm:$0xff] %vm1477, 0.0
      %2233 = vst.msk [vmem:[#allocation2 + $0x1c8] sm:$0xff] %vm1477, 0.0
      %2234 = vst.msk [vmem:[#allocation2 + $0x1d0] sm:$0xff] %vm1477, 0.0
      %2235 = vst.msk [vmem:[#allocation2 + $0x1d8] sm:$0x3] %vm2178, 0.0
      %2236 = vst.msk [vmem:[#allocation2 + $0x1e0] sm:$0xff] %vm1477, 0.0
      %2237 = vst.msk [vmem:[#allocation2 + $0x1e8] sm:$0xff] %vm1477, 0.0
      %2238 = vst.msk [vmem:[#allocation2 + $0x1f0] sm:$0xff] %vm1477, 0.0
      %2239 = vst.msk [vmem:[#allocation2 + $0x1f8] sm:$0x3] %vm2178, 0.0
      %2240 = vst.msk [vmem:[#allocation2 + $0x200] sm:$0xff] %vm1477, 0.0
      %2241 = vst.msk [vmem:[#allocation2 + $0x208] sm:$0xff] %vm1477, 0.0
      %2242 = vst.msk [vmem:[#allocation2 + $0x210] sm:$0xff] %vm1477, 0.0
      %2243 = vst.msk [vmem:[#allocation2 + $0x218] sm:$0x3] %vm2178, 0.0
      %2244 = vst.msk [vmem:[#allocation2 + $0x220] sm:$0xff] %vm1477, 0.0
      %2245 = vst.msk [vmem:[#allocation2 + $0x228] sm:$0xff] %vm1477, 0.0
      %2246 = vst.msk [vmem:[#allocation2 + $0x230] sm:$0xff] %vm1477, 0.0
      %2247 = vst.msk [vmem:[#allocation2 + $0x238] sm:$0x3] %vm2178, 0.0
      %2248 = vst.msk [vmem:[#allocation2 + $0x240] sm:$0xff] %vm1477, 0.0
      %2249 = vst.msk [vmem:[#allocation2 + $0x248] sm:$0xff] %vm1477, 0.0
      %2250 = vst.msk [vmem:[#allocation2 + $0x250] sm:$0xff] %vm1477, 0.0
      %2251 = vst.msk [vmem:[#allocation2 + $0x258] sm:$0x3] %vm2178, 0.0
      %2252 = vst.msk [vmem:[#allocation2 + $0x260] sm:$0xff] %vm1477, 0.0
      %2253 = vst.msk [vmem:[#allocation2 + $0x268] sm:$0xff] %vm1477, 0.0
      %2254 = vst.msk [vmem:[#allocation2 + $0x270] sm:$0xff] %vm1477, 0.0
      %2255 = vst.msk [vmem:[#allocation2 + $0x278] sm:$0x3] %vm2178, 0.0
      %2256 = vst.msk [vmem:[#allocation2 + $0x280] sm:$0xff] %vm1477, 0.0
      %2257 = vst.msk [vmem:[#allocation2 + $0x288] sm:$0xff] %vm1477, 0.0
      %2258 = vst.msk [vmem:[#allocation2 + $0x290] sm:$0xff] %vm1477, 0.0
      %2259 = vst.msk [vmem:[#allocation2 + $0x298] sm:$0x3] %vm2178, 0.0
      %2260 = vst.msk [vmem:[#allocation2 + $0x2a0] sm:$0xff] %vm1477, 0.0
      %2261 = vst.msk [vmem:[#allocation2 + $0x2a8] sm:$0xff] %vm1477, 0.0
      %2262 = vst.msk [vmem:[#allocation2 + $0x2b0] sm:$0xff] %vm1477, 0.0
      %2263 = vst.msk [vmem:[#allocation2 + $0x2b8] sm:$0x3] %vm2178, 0.0
      %2264 = vst.msk [vmem:[#allocation2 + $0x2c0] sm:$0xff] %vm1477, 0.0
      %2265 = vst.msk [vmem:[#allocation2 + $0x2c8] sm:$0xff] %vm1477, 0.0
      %2266 = vst.msk [vmem:[#allocation2 + $0x2d0] sm:$0xff] %vm1477, 0.0
      %2267 = vst.msk [vmem:[#allocation2 + $0x2d8] sm:$0x3] %vm2178, 0.0
      %2268 = vst.msk [vmem:[#allocation2 + $0x2e0] sm:$0xff] %vm1477, 0.0
      %2269 = vst.msk [vmem:[#allocation2 + $0x2e8] sm:$0xff] %vm1477, 0.0
      %2270 = vst.msk [vmem:[#allocation2 + $0x2f0] sm:$0xff] %vm1477, 0.0
      %2271 = vst.msk [vmem:[#allocation2 + $0x2f8] sm:$0x3] %vm2178, 0.0
      %2272 = vst.msk [vmem:[#allocation2 + $0x300] sm:$0xff] %vm1477, 0.0
      %2273 = vst.msk [vmem:[#allocation2 + $0x308] sm:$0xff] %vm1477, 0.0
      %2274 = vst.msk [vmem:[#allocation2 + $0x310] sm:$0xff] %vm1477, 0.0
      %2275 = vst.msk [vmem:[#allocation2 + $0x318] sm:$0x3] %vm2178, 0.0
      %2276 = vst.msk [vmem:[#allocation2 + $0x320] sm:$0xff] %vm1477, 0.0
      %2277 = vst.msk [vmem:[#allocation2 + $0x328] sm:$0xff] %vm1477, 0.0
      %2278 = vst.msk [vmem:[#allocation2 + $0x330] sm:$0xff] %vm1477, 0.0
      %2279 = vst.msk [vmem:[#allocation2 + $0x338] sm:$0x3] %vm2178, 0.0
      %s2280 = scalar_lea.vmem [#allocation2], 160
      %2281 = vst.msk [vmem:[%s2280 + $0x5] sm:$0xff] %vm1477, %v2143
      %2282 = vst.msk [vmem:[%s2280 + $0xd] sm:$0xff] %vm1477, %v2144
      %2283 = vst.msk [vmem:[%s2280 + $0x25] sm:$0xff] %vm1477, %v2145
      %2284 = vst.msk [vmem:[%s2280 + $0x2d] sm:$0xff] %vm1477, %v2146
      %2285 = vst.msk [vmem:[%s2280 + $0x45] sm:$0xff] %vm1477, %v2147
      %2286 = vst.msk [vmem:[%s2280 + $0x4d] sm:$0xff] %vm1477, %v2148
      %2287 = vst.msk [vmem:[%s2280 + $0x65] sm:$0xff] %vm1477, %v2149
      %2288 = vst.msk [vmem:[%s2280 + $0x6d] sm:$0xff] %vm1477, %v2150
      %2289 = vst.msk [vmem:[%s2280 + $0x85] sm:$0xff] %vm1477, %v2151
      %2290 = vst.msk [vmem:[%s2280 + $0x8d] sm:$0xff] %vm1477, %v2152
      %2291 = vst.msk [vmem:[%s2280 + $0xa5] sm:$0xff] %vm1477, %v2153
      %2292 = vst.msk [vmem:[%s2280 + $0xad] sm:$0xff] %vm1477, %v2154
      %2293 = vst.msk [vmem:[%s2280 + $0xc5] sm:$0xff] %vm1477, %v2155
      %2294 = vst.msk [vmem:[%s2280 + $0xcd] sm:$0xff] %vm1477, %v2156
      %2295 = vst.msk [vmem:[%s2280 + $0xe5] sm:$0xff] %vm1477, %v2157
      %2296 = vst.msk [vmem:[%s2280 + $0xed] sm:$0xff] %vm1477, %v2158
      %2297 = vst.msk [vmem:[%s2280 + $0x105] sm:$0xff] %vm1477, %v2159
      %2298 = vst.msk [vmem:[%s2280 + $0x10d] sm:$0xff] %vm1477, %v2160
      %2299 = vst.msk [vmem:[%s2280 + $0x125] sm:$0xff] %vm1477, %v2161
      %2300 = vst.msk [vmem:[%s2280 + $0x12d] sm:$0xff] %vm1477, %v2162
      %2301 = vst.msk [vmem:[%s2280 + $0x145] sm:$0xff] %vm1477, %v2163
      %2302 = vst.msk [vmem:[%s2280 + $0x14d] sm:$0xff] %vm1477, %v2164
      %2303 = vst.msk [vmem:[%s2280 + $0x165] sm:$0xff] %vm1477, %v2165
      %2304 = vst.msk [vmem:[%s2280 + $0x16d] sm:$0xff] %vm1477, %v2166
      %2305 = vst.msk [vmem:[%s2280 + $0x185] sm:$0xff] %vm1477, %v2167
      %2306 = vst.msk [vmem:[%s2280 + $0x18d] sm:$0xff] %vm1477, %v2168
      %2307 = vst.msk [vmem:[%s2280 + $0x1a5] sm:$0xff] %vm1477, %v2169
      %2308 = vst.msk [vmem:[%s2280 + $0x1ad] sm:$0xff] %vm1477, %v2170
      %2309 = vst.msk [vmem:[%s2280 + $0x1c5] sm:$0xff] %vm1477, %v2171
      %2310 = vst.msk [vmem:[%s2280 + $0x1cd] sm:$0xff] %vm1477, %v2172
      %2311 = vst.msk [vmem:[%s2280 + $0x1e5] sm:$0xff] %vm1477, %v2173
      %2312 = vst.msk [vmem:[%s2280 + $0x1ed] sm:$0xff] %vm1477, %v2174
      %v2313 = vld [vmem:[%s10] sm:$0x1]
      %v2315 = vlaneseq
      %v2316 = vshrl.u32 %v2315, 7
      %v2317 = vsub.s32 0, %v2316
      %v2318 = vrot.slane %v2313, %v2317
      %v2320 = vadd.f32 %v497, %v2318
      %v2321 = vadd.f32 %v499, %v2318
      %v2322 = vadd.f32 %v502, %v2318
      %v2323 = vadd.f32 %v504, %v2318
      %v2324 = vadd.f32 %v507, %v2318
      %v2325 = vadd.f32 %v509, %v2318
      %v2326 = vadd.f32 %v512, %v2318
      %v2327 = vadd.f32 %v514, %v2318
      %v2328 = vadd.f32 %v517, %v2318
      %v2329 = vadd.f32 %v519, %v2318
      %v2330 = vadd.f32 %v522, %v2318
      %v2331 = vadd.f32 %v524, %v2318
      %v2332 = vadd.f32 %v527, %v2318
      %v2333 = vadd.f32 %v529, %v2318
      %v2334 = vadd.f32 %v532, %v2318
      %v2335 = vadd.f32 %v534, %v2318
      %v2336 = vadd.f32 %v537, %v2318
      %v2337 = vadd.f32 %v539, %v2318
      %v2338 = vadd.f32 %v542, %v2318
      %v2339 = vadd.f32 %v544, %v2318
      %v2340 = vadd.f32 %v547, %v2318
      %v2341 = vadd.f32 %v549, %v2318
      %v2342 = vadd.f32 %v552, %v2318
      %v2343 = vadd.f32 %v554, %v2318
      %v2344 = vadd.f32 %v557, %v2318
      %v2345 = vadd.f32 %v559, %v2318
      %v2346 = vadd.f32 %v562, %v2318
      %v2347 = vadd.f32 %v564, %v2318
      %v2348 = vadd.f32 %v567, %v2318
      %v2349 = vadd.f32 %v569, %v2318
      %v2350 = vadd.f32 %v656, %v2318
      %v2351 = vadd.f32 %v658, %v2318
      %s2352 = scalar_lea.vmem [#allocation2], 128
      %v2353 = vld [vmem:[%s2352 + $0x4] sm:$0xff]
      %v2354 = vld [vmem:[%s2352 + $0xc] sm:$0xff]
      %v2355 = vld [vmem:[%s2352 + $0x24] sm:$0xff]
      %v2356 = vld [vmem:[%s2352 + $0x2c] sm:$0xff]
      %v2357 = vld [vmem:[%s2352 + $0x44] sm:$0xff]
      %v2358 = vld [vmem:[%s2352 + $0x4c] sm:$0xff]
      %v2359 = vld [vmem:[%s2352 + $0x64] sm:$0xff]
      %v2360 = vld [vmem:[%s2352 + $0x6c] sm:$0xff]
      %v2361 = vld [vmem:[%s2352 + $0x84] sm:$0xff]
      %v2362 = vld [vmem:[%s2352 + $0x8c] sm:$0xff]
      %v2363 = vld [vmem:[%s2352 + $0xa4] sm:$0xff]
      %v2364 = vld [vmem:[%s2352 + $0xac] sm:$0xff]
      %v2365 = vld [vmem:[%s2352 + $0xc4] sm:$0xff]
      %v2366 = vld [vmem:[%s2352 + $0xcc] sm:$0xff]
      %v2367 = vld [vmem:[%s2352 + $0xe4] sm:$0xff]
      %v2368 = vld [vmem:[%s2352 + $0xec] sm:$0xff]
      %v2369 = vld [vmem:[%s2352 + $0x104] sm:$0xff]
      %v2370 = vld [vmem:[%s2352 + $0x10c] sm:$0xff]
      %v2371 = vld [vmem:[%s2352 + $0x124] sm:$0xff]
      %v2372 = vld [vmem:[%s2352 + $0x12c] sm:$0xff]
      %v2373 = vld [vmem:[%s2352 + $0x144] sm:$0xff]
      %v2374 = vld [vmem:[%s2352 + $0x14c] sm:$0xff]
      %v2375 = vld [vmem:[%s2352 + $0x164] sm:$0xff]
      %v2376 = vld [vmem:[%s2352 + $0x16c] sm:$0xff]
      %v2377 = vld [vmem:[%s2352 + $0x184] sm:$0xff]
      %v2378 = vld [vmem:[%s2352 + $0x18c] sm:$0xff]
      %v2379 = vld [vmem:[%s2352 + $0x1a4] sm:$0xff]
      %v2380 = vld [vmem:[%s2352 + $0x1ac] sm:$0xff]
      %v2381 = vld [vmem:[%s2352 + $0x1c4] sm:$0xff]
      %v2382 = vld [vmem:[%s2352 + $0x1cc] sm:$0xff]
      %v2383 = vld [vmem:[%s2352 + $0x1e4] sm:$0xff]
      %v2384 = vld [vmem:[%s2352 + $0x1ec] sm:$0xff]
      %v2385 = vld [vmem:[%s2352 + $0x5] sm:$0xff]
      %v2386 = vld [vmem:[%s2352 + $0xd] sm:$0xff]
      %v2387 = vld [vmem:[%s2352 + $0x25] sm:$0xff]
      %v2388 = vld [vmem:[%s2352 + $0x2d] sm:$0xff]
      %v2389 = vld [vmem:[%s2352 + $0x45] sm:$0xff]
      %v2390 = vld [vmem:[%s2352 + $0x4d] sm:$0xff]
      %v2391 = vld [vmem:[%s2352 + $0x65] sm:$0xff]
      %v2392 = vld [vmem:[%s2352 + $0x6d] sm:$0xff]
      %v2393 = vld [vmem:[%s2352 + $0x85] sm:$0xff]
      %v2394 = vld [vmem:[%s2352 + $0x8d] sm:$0xff]
      %v2395 = vld [vmem:[%s2352 + $0xa5] sm:$0xff]
      %v2396 = vld [vmem:[%s2352 + $0xad] sm:$0xff]
      %v2397 = vld [vmem:[%s2352 + $0xc5] sm:$0xff]
      %v2398 = vld [vmem:[%s2352 + $0xcd] sm:$0xff]
      %v2399 = vld [vmem:[%s2352 + $0xe5] sm:$0xff]
      %v2400 = vld [vmem:[%s2352 + $0xed] sm:$0xff]
      %v2401 = vld [vmem:[%s2352 + $0x105] sm:$0xff]
      %v2402 = vld [vmem:[%s2352 + $0x10d] sm:$0xff]
      %v2403 = vld [vmem:[%s2352 + $0x125] sm:$0xff]
      %v2404 = vld [vmem:[%s2352 + $0x12d] sm:$0xff]
      %v2405 = vld [vmem:[%s2352 + $0x145] sm:$0xff]
      %v2406 = vld [vmem:[%s2352 + $0x14d] sm:$0xff]
      %v2407 = vld [vmem:[%s2352 + $0x165] sm:$0xff]
      %v2408 = vld [vmem:[%s2352 + $0x16d] sm:$0xff]
      %v2409 = vld [vmem:[%s2352 + $0x185] sm:$0xff]
      %v2410 = vld [vmem:[%s2352 + $0x18d] sm:$0xff]
      %v2411 = vld [vmem:[%s2352 + $0x1a5] sm:$0xff]
      %v2412 = vld [vmem:[%s2352 + $0x1ad] sm:$0xff]
      %v2413 = vld [vmem:[%s2352 + $0x1c5] sm:$0xff]
      %v2414 = vld [vmem:[%s2352 + $0x1cd] sm:$0xff]
      %v2415 = vld [vmem:[%s2352 + $0x1e5] sm:$0xff]
      %v2416 = vld [vmem:[%s2352 + $0x1ed] sm:$0xff]
      %v2417 = vld [vmem:[%s2352 + $0x6] sm:$0xff]
      %v2418 = vld [vmem:[%s2352 + $0xe] sm:$0xff]
      %v2419 = vld [vmem:[%s2352 + $0x26] sm:$0xff]
      %v2420 = vld [vmem:[%s2352 + $0x2e] sm:$0xff]
      %v2421 = vld [vmem:[%s2352 + $0x46] sm:$0xff]
      %v2422 = vld [vmem:[%s2352 + $0x4e] sm:$0xff]
      %v2423 = vld [vmem:[%s2352 + $0x66] sm:$0xff]
      %v2424 = vld [vmem:[%s2352 + $0x6e] sm:$0xff]
      %v2425 = vld [vmem:[%s2352 + $0x86] sm:$0xff]
      %v2426 = vld [vmem:[%s2352 + $0x8e] sm:$0xff]
      %v2427 = vld [vmem:[%s2352 + $0xa6] sm:$0xff]
      %v2428 = vld [vmem:[%s2352 + $0xae] sm:$0xff]
      %v2429 = vld [vmem:[%s2352 + $0xc6] sm:$0xff]
      %v2430 = vld [vmem:[%s2352 + $0xce] sm:$0xff]
      %v2431 = vld [vmem:[%s2352 + $0xe6] sm:$0xff]
      %v2432 = vld [vmem:[%s2352 + $0xee] sm:$0xff]
      %v2433 = vld [vmem:[%s2352 + $0x106] sm:$0xff]
      %v2434 = vld [vmem:[%s2352 + $0x10e] sm:$0xff]
      %v2435 = vld [vmem:[%s2352 + $0x126] sm:$0xff]
      %v2436 = vld [vmem:[%s2352 + $0x12e] sm:$0xff]
      %v2437 = vld [vmem:[%s2352 + $0x146] sm:$0xff]
      %v2438 = vld [vmem:[%s2352 + $0x14e] sm:$0xff]
      %v2439 = vld [vmem:[%s2352 + $0x166] sm:$0xff]
      %v2440 = vld [vmem:[%s2352 + $0x16e] sm:$0xff]
      %v2441 = vld [vmem:[%s2352 + $0x186] sm:$0xff]
      %v2442 = vld [vmem:[%s2352 + $0x18e] sm:$0xff]
      %v2443 = vld [vmem:[%s2352 + $0x1a6] sm:$0xff]
      %v2444 = vld [vmem:[%s2352 + $0x1ae] sm:$0xff]
      %v2445 = vld [vmem:[%s2352 + $0x1c6] sm:$0xff]
      %v2446 = vld [vmem:[%s2352 + $0x1ce] sm:$0xff]
      %v2447 = vld [vmem:[%s2352 + $0x1e6] sm:$0xff]
      %v2448 = vld [vmem:[%s2352 + $0x1ee] sm:$0xff]
      %v2449 = vld [vmem:[%s2280 + $0x4] sm:$0xff]
      %v2450 = vld [vmem:[%s2280 + $0xc] sm:$0xff]
      %v2451 = vld [vmem:[%s2280 + $0x24] sm:$0xff]
      %v2452 = vld [vmem:[%s2280 + $0x2c] sm:$0xff]
      %v2453 = vld [vmem:[%s2280 + $0x44] sm:$0xff]
      %v2454 = vld [vmem:[%s2280 + $0x4c] sm:$0xff]
      %v2455 = vld [vmem:[%s2280 + $0x64] sm:$0xff]
      %v2456 = vld [vmem:[%s2280 + $0x6c] sm:$0xff]
      %v2457 = vld [vmem:[%s2280 + $0x84] sm:$0xff]
      %v2458 = vld [vmem:[%s2280 + $0x8c] sm:$0xff]
      %v2459 = vld [vmem:[%s2280 + $0xa4] sm:$0xff]
      %v2460 = vld [vmem:[%s2280 + $0xac] sm:$0xff]
      %v2461 = vld [vmem:[%s2280 + $0xc4] sm:$0xff]
      %v2462 = vld [vmem:[%s2280 + $0xcc] sm:$0xff]
      %v2463 = vld [vmem:[%s2280 + $0xe4] sm:$0xff]
      %v2464 = vld [vmem:[%s2280 + $0xec] sm:$0xff]
      %v2465 = vld [vmem:[%s2280 + $0x104] sm:$0xff]
      %v2466 = vld [vmem:[%s2280 + $0x10c] sm:$0xff]
      %v2467 = vld [vmem:[%s2280 + $0x124] sm:$0xff]
      %v2468 = vld [vmem:[%s2280 + $0x12c] sm:$0xff]
      %v2469 = vld [vmem:[%s2280 + $0x144] sm:$0xff]
      %v2470 = vld [vmem:[%s2280 + $0x14c] sm:$0xff]
      %v2471 = vld [vmem:[%s2280 + $0x164] sm:$0xff]
      %v2472 = vld [vmem:[%s2280 + $0x16c] sm:$0xff]
      %v2473 = vld [vmem:[%s2280 + $0x184] sm:$0xff]
      %v2474 = vld [vmem:[%s2280 + $0x18c] sm:$0xff]
      %v2475 = vld [vmem:[%s2280 + $0x1a4] sm:$0xff]
      %v2476 = vld [vmem:[%s2280 + $0x1ac] sm:$0xff]
      %v2477 = vld [vmem:[%s2280 + $0x1c4] sm:$0xff]
      %v2478 = vld [vmem:[%s2280 + $0x1cc] sm:$0xff]
      %v2479 = vld [vmem:[%s2280 + $0x1e4] sm:$0xff]
      %v2480 = vld [vmem:[%s2280 + $0x1ec] sm:$0xff]
      %v2481 = vld [vmem:[%s2280 + $0x5] sm:$0xff]
      %v2482 = vld [vmem:[%s2280 + $0xd] sm:$0xff]
      %v2483 = vld [vmem:[%s2280 + $0x25] sm:$0xff]
      %v2484 = vld [vmem:[%s2280 + $0x2d] sm:$0xff]
      %v2485 = vld [vmem:[%s2280 + $0x45] sm:$0xff]
      %v2486 = vld [vmem:[%s2280 + $0x4d] sm:$0xff]
      %v2487 = vld [vmem:[%s2280 + $0x65] sm:$0xff]
      %v2488 = vld [vmem:[%s2280 + $0x6d] sm:$0xff]
      %v2489 = vld [vmem:[%s2280 + $0x85] sm:$0xff]
      %v2490 = vld [vmem:[%s2280 + $0x8d] sm:$0xff]
      %v2491 = vld [vmem:[%s2280 + $0xa5] sm:$0xff]
      %v2492 = vld [vmem:[%s2280 + $0xad] sm:$0xff]
      %v2493 = vld [vmem:[%s2280 + $0xc5] sm:$0xff]
      %v2494 = vld [vmem:[%s2280 + $0xcd] sm:$0xff]
      %v2495 = vld [vmem:[%s2280 + $0xe5] sm:$0xff]
      %v2496 = vld [vmem:[%s2280 + $0xed] sm:$0xff]
      %v2497 = vld [vmem:[%s2280 + $0x105] sm:$0xff]
      %v2498 = vld [vmem:[%s2280 + $0x10d] sm:$0xff]
      %v2499 = vld [vmem:[%s2280 + $0x125] sm:$0xff]
      %v2500 = vld [vmem:[%s2280 + $0x12d] sm:$0xff]
      %v2501 = vld [vmem:[%s2280 + $0x145] sm:$0xff]
      %v2502 = vld [vmem:[%s2280 + $0x14d] sm:$0xff]
      %v2503 = vld [vmem:[%s2280 + $0x165] sm:$0xff]
      %v2504 = vld [vmem:[%s2280 + $0x16d] sm:$0xff]
      %v2505 = vld [vmem:[%s2280 + $0x185] sm:$0xff]
      %v2506 = vld [vmem:[%s2280 + $0x18d] sm:$0xff]
      %v2507 = vld [vmem:[%s2280 + $0x1a5] sm:$0xff]
      %v2508 = vld [vmem:[%s2280 + $0x1ad] sm:$0xff]
      %v2509 = vld [vmem:[%s2280 + $0x1c5] sm:$0xff]
      %v2510 = vld [vmem:[%s2280 + $0x1cd] sm:$0xff]
      %v2511 = vld [vmem:[%s2280 + $0x1e5] sm:$0xff]
      %v2512 = vld [vmem:[%s2280 + $0x1ed] sm:$0xff]
      %v2513 = vld [vmem:[%s2280 + $0x6] sm:$0xff]
      %v2514 = vld [vmem:[%s2280 + $0xe] sm:$0xff]
      %v2515 = vld [vmem:[%s2280 + $0x26] sm:$0xff]
      %v2516 = vld [vmem:[%s2280 + $0x2e] sm:$0xff]
      %v2517 = vld [vmem:[%s2280 + $0x46] sm:$0xff]
      %v2518 = vld [vmem:[%s2280 + $0x4e] sm:$0xff]
      %v2519 = vld [vmem:[%s2280 + $0x66] sm:$0xff]
      %v2520 = vld [vmem:[%s2280 + $0x6e] sm:$0xff]
      %v2521 = vld [vmem:[%s2280 + $0x86] sm:$0xff]
      %v2522 = vld [vmem:[%s2280 + $0x8e] sm:$0xff]
      %v2523 = vld [vmem:[%s2280 + $0xa6] sm:$0xff]
      %v2524 = vld [vmem:[%s2280 + $0xae] sm:$0xff]
      %v2525 = vld [vmem:[%s2280 + $0xc6] sm:$0xff]
      %v2526 = vld [vmem:[%s2280 + $0xce] sm:$0xff]
      %v2527 = vld [vmem:[%s2280 + $0xe6] sm:$0xff]
      %v2528 = vld [vmem:[%s2280 + $0xee] sm:$0xff]
      %v2529 = vld [vmem:[%s2280 + $0x106] sm:$0xff]
      %v2530 = vld [vmem:[%s2280 + $0x10e] sm:$0xff]
      %v2531 = vld [vmem:[%s2280 + $0x126] sm:$0xff]
      %v2532 = vld [vmem:[%s2280 + $0x12e] sm:$0xff]
      %v2533 = vld [vmem:[%s2280 + $0x146] sm:$0xff]
      %v2534 = vld [vmem:[%s2280 + $0x14e] sm:$0xff]
      %v2535 = vld [vmem:[%s2280 + $0x166] sm:$0xff]
      %v2536 = vld [vmem:[%s2280 + $0x16e] sm:$0xff]
      %v2537 = vld [vmem:[%s2280 + $0x186] sm:$0xff]
      %v2538 = vld [vmem:[%s2280 + $0x18e] sm:$0xff]
      %v2539 = vld [vmem:[%s2280 + $0x1a6] sm:$0xff]
      %v2540 = vld [vmem:[%s2280 + $0x1ae] sm:$0xff]
      %v2541 = vld [vmem:[%s2280 + $0x1c6] sm:$0xff]
      %v2542 = vld [vmem:[%s2280 + $0x1ce] sm:$0xff]
      %v2543 = vld [vmem:[%s2280 + $0x1e6] sm:$0xff]
      %v2544 = vld [vmem:[%s2280 + $0x1ee] sm:$0xff]
      %s2545 = scalar_lea.vmem [#allocation2], 192
      %v2546 = vld [vmem:[%s2545 + $0x4] sm:$0xff]
      %v2547 = vld [vmem:[%s2545 + $0xc] sm:$0xff]
      %v2548 = vld [vmem:[%s2545 + $0x24] sm:$0xff]
      %v2549 = vld [vmem:[%s2545 + $0x2c] sm:$0xff]
      %v2550 = vld [vmem:[%s2545 + $0x44] sm:$0xff]
      %v2551 = vld [vmem:[%s2545 + $0x4c] sm:$0xff]
      %v2552 = vld [vmem:[%s2545 + $0x64] sm:$0xff]
      %v2553 = vld [vmem:[%s2545 + $0x6c] sm:$0xff]
      %v2554 = vld [vmem:[%s2545 + $0x84] sm:$0xff]
      %v2555 = vld [vmem:[%s2545 + $0x8c] sm:$0xff]
      %v2556 = vld [vmem:[%s2545 + $0xa4] sm:$0xff]
      %v2557 = vld [vmem:[%s2545 + $0xac] sm:$0xff]
      %v2558 = vld [vmem:[%s2545 + $0xc4] sm:$0xff]
      %v2559 = vld [vmem:[%s2545 + $0xcc] sm:$0xff]
      %v2560 = vld [vmem:[%s2545 + $0xe4] sm:$0xff]
      %v2561 = vld [vmem:[%s2545 + $0xec] sm:$0xff]
      %v2562 = vld [vmem:[%s2545 + $0x104] sm:$0xff]
      %v2563 = vld [vmem:[%s2545 + $0x10c] sm:$0xff]
      %v2564 = vld [vmem:[%s2545 + $0x124] sm:$0xff]
      %v2565 = vld [vmem:[%s2545 + $0x12c] sm:$0xff]
      %v2566 = vld [vmem:[%s2545 + $0x144] sm:$0xff]
      %v2567 = vld [vmem:[%s2545 + $0x14c] sm:$0xff]
      %v2568 = vld [vmem:[%s2545 + $0x164] sm:$0xff]
      %v2569 = vld [vmem:[%s2545 + $0x16c] sm:$0xff]
      %v2570 = vld [vmem:[%s2545 + $0x184] sm:$0xff]
      %v2571 = vld [vmem:[%s2545 + $0x18c] sm:$0xff]
      %v2572 = vld [vmem:[%s2545 + $0x1a4] sm:$0xff]
      %v2573 = vld [vmem:[%s2545 + $0x1ac] sm:$0xff]
      %v2574 = vld [vmem:[%s2545 + $0x1c4] sm:$0xff]
      %v2575 = vld [vmem:[%s2545 + $0x1cc] sm:$0xff]
      %v2576 = vld [vmem:[%s2545 + $0x1e4] sm:$0xff]
      %v2577 = vld [vmem:[%s2545 + $0x1ec] sm:$0xff]
      %v2578 = vld [vmem:[%s2545 + $0x5] sm:$0xff]
      %v2579 = vld [vmem:[%s2545 + $0xd] sm:$0xff]
      %v2580 = vld [vmem:[%s2545 + $0x25] sm:$0xff]
      %v2581 = vld [vmem:[%s2545 + $0x2d] sm:$0xff]
      %v2582 = vld [vmem:[%s2545 + $0x45] sm:$0xff]
      %v2583 = vld [vmem:[%s2545 + $0x4d] sm:$0xff]
      %v2584 = vld [vmem:[%s2545 + $0x65] sm:$0xff]
      %v2585 = vld [vmem:[%s2545 + $0x6d] sm:$0xff]
      %v2586 = vld [vmem:[%s2545 + $0x85] sm:$0xff]
      %v2587 = vld [vmem:[%s2545 + $0x8d] sm:$0xff]
      %v2588 = vld [vmem:[%s2545 + $0xa5] sm:$0xff]
      %v2589 = vld [vmem:[%s2545 + $0xad] sm:$0xff]
      %v2590 = vld [vmem:[%s2545 + $0xc5] sm:$0xff]
      %v2591 = vld [vmem:[%s2545 + $0xcd] sm:$0xff]
      %v2592 = vld [vmem:[%s2545 + $0xe5] sm:$0xff]
      %v2593 = vld [vmem:[%s2545 + $0xed] sm:$0xff]
      %v2594 = vld [vmem:[%s2545 + $0x105] sm:$0xff]
      %v2595 = vld [vmem:[%s2545 + $0x10d] sm:$0xff]
      %v2596 = vld [vmem:[%s2545 + $0x125] sm:$0xff]
      %v2597 = vld [vmem:[%s2545 + $0x12d] sm:$0xff]
      %v2598 = vld [vmem:[%s2545 + $0x145] sm:$0xff]
      %v2599 = vld [vmem:[%s2545 + $0x14d] sm:$0xff]
      %v2600 = vld [vmem:[%s2545 + $0x165] sm:$0xff]
      %v2601 = vld [vmem:[%s2545 + $0x16d] sm:$0xff]
      %v2602 = vld [vmem:[%s2545 + $0x185] sm:$0xff]
      %v2603 = vld [vmem:[%s2545 + $0x18d] sm:$0xff]
      %v2604 = vld [vmem:[%s2545 + $0x1a5] sm:$0xff]
      %v2605 = vld [vmem:[%s2545 + $0x1ad] sm:$0xff]
      %v2606 = vld [vmem:[%s2545 + $0x1c5] sm:$0xff]
      %v2607 = vld [vmem:[%s2545 + $0x1cd] sm:$0xff]
      %v2608 = vld [vmem:[%s2545 + $0x1e5] sm:$0xff]
      %v2609 = vld [vmem:[%s2545 + $0x1ed] sm:$0xff]
      %v2610 = vld [vmem:[%s2545 + $0x6] sm:$0xff]
      %v2611 = vld [vmem:[%s2545 + $0xe] sm:$0xff]
      %v2612 = vld [vmem:[%s2545 + $0x26] sm:$0xff]
      %v2613 = vld [vmem:[%s2545 + $0x2e] sm:$0xff]
      %v2614 = vld [vmem:[%s2545 + $0x46] sm:$0xff]
      %v2615 = vld [vmem:[%s2545 + $0x4e] sm:$0xff]
      %v2616 = vld [vmem:[%s2545 + $0x66] sm:$0xff]
      %v2617 = vld [vmem:[%s2545 + $0x6e] sm:$0xff]
      %v2618 = vld [vmem:[%s2545 + $0x86] sm:$0xff]
      %v2619 = vld [vmem:[%s2545 + $0x8e] sm:$0xff]
      %v2620 = vld [vmem:[%s2545 + $0xa6] sm:$0xff]
      %v2621 = vld [vmem:[%s2545 + $0xae] sm:$0xff]
      %v2622 = vld [vmem:[%s2545 + $0xc6] sm:$0xff]
      %v2623 = vld [vmem:[%s2545 + $0xce] sm:$0xff]
      %v2624 = vld [vmem:[%s2545 + $0xe6] sm:$0xff]
      %v2625 = vld [vmem:[%s2545 + $0xee] sm:$0xff]
      %v2626 = vld [vmem:[%s2545 + $0x106] sm:$0xff]
      %v2627 = vld [vmem:[%s2545 + $0x10e] sm:$0xff]
      %v2628 = vld [vmem:[%s2545 + $0x126] sm:$0xff]
      %v2629 = vld [vmem:[%s2545 + $0x12e] sm:$0xff]
      %v2630 = vld [vmem:[%s2545 + $0x146] sm:$0xff]
      %v2631 = vld [vmem:[%s2545 + $0x14e] sm:$0xff]
      %v2632 = vld [vmem:[%s2545 + $0x166] sm:$0xff]
      %v2633 = vld [vmem:[%s2545 + $0x16e] sm:$0xff]
      %v2634 = vld [vmem:[%s2545 + $0x186] sm:$0xff]
      %v2635 = vld [vmem:[%s2545 + $0x18e] sm:$0xff]
      %v2636 = vld [vmem:[%s2545 + $0x1a6] sm:$0xff]
      %v2637 = vld [vmem:[%s2545 + $0x1ae] sm:$0xff]
      %v2638 = vld [vmem:[%s2545 + $0x1c6] sm:$0xff]
      %v2639 = vld [vmem:[%s2545 + $0x1ce] sm:$0xff]
      %v2640 = vld [vmem:[%s2545 + $0x1e6] sm:$0xff]
      %v2641 = vld [vmem:[%s2545 + $0x1ee] sm:$0xff]
      %2674 = vrot.lane.b32.xlu0 %v2385, 4
      %v2675 = vpop.permute.xlu0 %2674
      %2676 = vrot.lane.b32.xlu0 %v2386, 4
      %v2677 = vpop.permute.xlu0 %2676
      %2678 = vrot.lane.b32.xlu0 %v2387, 4
      %v2679 = vpop.permute.xlu0 %2678
      %2680 = vrot.lane.b32.xlu0 %v2388, 4
      %v2681 = vpop.permute.xlu0 %2680
      %2682 = vrot.lane.b32.xlu0 %v2389, 4
      %v2683 = vpop.permute.xlu0 %2682
      %2684 = vrot.lane.b32.xlu0 %v2390, 4
      %v2685 = vpop.permute.xlu0 %2684
      %2686 = vrot.lane.b32.xlu0 %v2391, 4
      %v2687 = vpop.permute.xlu0 %2686
      %2688 = vrot.lane.b32.xlu0 %v2392, 4
      %v2689 = vpop.permute.xlu0 %2688
      %2690 = vrot.lane.b32.xlu0 %v2393, 4
      %v2691 = vpop.permute.xlu0 %2690
      %2692 = vrot.lane.b32.xlu0 %v2394, 4
      %v2693 = vpop.permute.xlu0 %2692
      %2694 = vrot.lane.b32.xlu0 %v2395, 4
      %v2695 = vpop.permute.xlu0 %2694
      %2696 = vrot.lane.b32.xlu0 %v2396, 4
      %v2697 = vpop.permute.xlu0 %2696
      %2698 = vrot.lane.b32.xlu0 %v2397, 4
      %v2699 = vpop.permute.xlu0 %2698
      %2700 = vrot.lane.b32.xlu0 %v2398, 4
      %v2701 = vpop.permute.xlu0 %2700
      %2702 = vrot.lane.b32.xlu0 %v2399, 4
      %v2703 = vpop.permute.xlu0 %2702
      %2704 = vrot.lane.b32.xlu0 %v2400, 4
      %v2705 = vpop.permute.xlu0 %2704
      %2706 = vrot.lane.b32.xlu0 %v2401, 4
      %v2707 = vpop.permute.xlu0 %2706
      %2708 = vrot.lane.b32.xlu0 %v2402, 4
      %v2709 = vpop.permute.xlu0 %2708
      %2710 = vrot.lane.b32.xlu0 %v2403, 4
      %v2711 = vpop.permute.xlu0 %2710
      %2712 = vrot.lane.b32.xlu0 %v2404, 4
      %v2713 = vpop.permute.xlu0 %2712
      %2714 = vrot.lane.b32.xlu0 %v2405, 4
      %v2715 = vpop.permute.xlu0 %2714
      %2716 = vrot.lane.b32.xlu0 %v2406, 4
      %v2717 = vpop.permute.xlu0 %2716
      %2718 = vrot.lane.b32.xlu0 %v2407, 4
      %v2719 = vpop.permute.xlu0 %2718
      %2720 = vrot.lane.b32.xlu0 %v2408, 4
      %v2721 = vpop.permute.xlu0 %2720
      %2722 = vrot.lane.b32.xlu0 %v2409, 4
      %v2723 = vpop.permute.xlu0 %2722
      %2724 = vrot.lane.b32.xlu0 %v2410, 4
      %v2725 = vpop.permute.xlu0 %2724
      %2726 = vrot.lane.b32.xlu0 %v2411, 4
      %v2727 = vpop.permute.xlu0 %2726
      %2728 = vrot.lane.b32.xlu0 %v2412, 4
      %v2729 = vpop.permute.xlu0 %2728
      %2730 = vrot.lane.b32.xlu0 %v2413, 4
      %v2731 = vpop.permute.xlu0 %2730
      %2732 = vrot.lane.b32.xlu0 %v2414, 4
      %v2733 = vpop.permute.xlu0 %2732
      %2734 = vrot.lane.b32.xlu0 %v2415, 4
      %v2735 = vpop.permute.xlu0 %2734
      %2736 = vrot.lane.b32.xlu0 %v2416, 4
      %v2737 = vpop.permute.xlu0 %2736
      %2802 = vrot.lane.b32.xlu0 %v2417, 8
      %v2803 = vpop.permute.xlu0 %2802
      %2804 = vrot.lane.b32.xlu0 %v2418, 8
      %v2805 = vpop.permute.xlu0 %2804
      %2806 = vrot.lane.b32.xlu0 %v2419, 8
      %v2807 = vpop.permute.xlu0 %2806
      %2808 = vrot.lane.b32.xlu0 %v2420, 8
      %v2809 = vpop.permute.xlu0 %2808
      %2810 = vrot.lane.b32.xlu0 %v2421, 8
      %v2811 = vpop.permute.xlu0 %2810
      %2812 = vrot.lane.b32.xlu0 %v2422, 8
      %v2813 = vpop.permute.xlu0 %2812
      %2814 = vrot.lane.b32.xlu0 %v2423, 8
      %v2815 = vpop.permute.xlu0 %2814
      %2816 = vrot.lane.b32.xlu0 %v2424, 8
      %v2817 = vpop.permute.xlu0 %2816
      %2818 = vrot.lane.b32.xlu0 %v2425, 8
      %v2819 = vpop.permute.xlu0 %2818
      %2820 = vrot.lane.b32.xlu0 %v2426, 8
      %v2821 = vpop.permute.xlu0 %2820
      %2822 = vrot.lane.b32.xlu0 %v2427, 8
      %v2823 = vpop.permute.xlu0 %2822
      %2824 = vrot.lane.b32.xlu0 %v2428, 8
      %v2825 = vpop.permute.xlu0 %2824
      %2826 = vrot.lane.b32.xlu0 %v2429, 8
      %v2827 = vpop.permute.xlu0 %2826
      %2828 = vrot.lane.b32.xlu0 %v2430, 8
      %v2829 = vpop.permute.xlu0 %2828
      %2830 = vrot.lane.b32.xlu0 %v2431, 8
      %v2831 = vpop.permute.xlu0 %2830
      %2832 = vrot.lane.b32.xlu0 %v2432, 8
      %v2833 = vpop.permute.xlu0 %2832
      %2834 = vrot.lane.b32.xlu0 %v2433, 8
      %v2835 = vpop.permute.xlu0 %2834
      %2836 = vrot.lane.b32.xlu0 %v2434, 8
      %v2837 = vpop.permute.xlu0 %2836
      %2838 = vrot.lane.b32.xlu0 %v2435, 8
      %v2839 = vpop.permute.xlu0 %2838
      %2840 = vrot.lane.b32.xlu0 %v2436, 8
      %v2841 = vpop.permute.xlu0 %2840
      %2842 = vrot.lane.b32.xlu0 %v2437, 8
      %v2843 = vpop.permute.xlu0 %2842
      %2844 = vrot.lane.b32.xlu0 %v2438, 8
      %v2845 = vpop.permute.xlu0 %2844
      %2846 = vrot.lane.b32.xlu0 %v2439, 8
      %v2847 = vpop.permute.xlu0 %2846
      %2848 = vrot.lane.b32.xlu0 %v2440, 8
      %v2849 = vpop.permute.xlu0 %2848
      %2850 = vrot.lane.b32.xlu0 %v2441, 8
      %v2851 = vpop.permute.xlu0 %2850
      %2852 = vrot.lane.b32.xlu0 %v2442, 8
      %v2853 = vpop.permute.xlu0 %2852
      %2854 = vrot.lane.b32.xlu0 %v2443, 8
      %v2855 = vpop.permute.xlu0 %2854
      %2856 = vrot.lane.b32.xlu0 %v2444, 8
      %v2857 = vpop.permute.xlu0 %2856
      %2858 = vrot.lane.b32.xlu0 %v2445, 8
      %v2859 = vpop.permute.xlu0 %2858
      %2860 = vrot.lane.b32.xlu0 %v2446, 8
      %v2861 = vpop.permute.xlu0 %2860
      %2862 = vrot.lane.b32.xlu0 %v2447, 8
      %v2863 = vpop.permute.xlu0 %2862
      %2864 = vrot.lane.b32.xlu0 %v2448, 8
      %v2865 = vpop.permute.xlu0 %2864
      %2930 = vrot.lane.b32.xlu0 %v2449, 12
      %v2931 = vpop.permute.xlu0 %2930
      %2932 = vrot.lane.b32.xlu0 %v2450, 12
      %v2933 = vpop.permute.xlu0 %2932
      %2934 = vrot.lane.b32.xlu0 %v2451, 12
      %v2935 = vpop.permute.xlu0 %2934
      %2936 = vrot.lane.b32.xlu0 %v2452, 12
      %v2937 = vpop.permute.xlu0 %2936
      %2938 = vrot.lane.b32.xlu0 %v2453, 12
      %v2939 = vpop.permute.xlu0 %2938
      %2940 = vrot.lane.b32.xlu0 %v2454, 12
      %v2941 = vpop.permute.xlu0 %2940
      %2942 = vrot.lane.b32.xlu0 %v2455, 12
      %v2943 = vpop.permute.xlu0 %2942
      %2944 = vrot.lane.b32.xlu0 %v2456, 12
      %v2945 = vpop.permute.xlu0 %2944
      %2946 = vrot.lane.b32.xlu0 %v2457, 12
      %v2947 = vpop.permute.xlu0 %2946
      %2948 = vrot.lane.b32.xlu0 %v2458, 12
      %v2949 = vpop.permute.xlu0 %2948
      %2950 = vrot.lane.b32.xlu0 %v2459, 12
      %v2951 = vpop.permute.xlu0 %2950
      %2952 = vrot.lane.b32.xlu0 %v2460, 12
      %v2953 = vpop.permute.xlu0 %2952
      %2954 = vrot.lane.b32.xlu0 %v2461, 12
      %v2955 = vpop.permute.xlu0 %2954
      %2956 = vrot.lane.b32.xlu0 %v2462, 12
      %v2957 = vpop.permute.xlu0 %2956
      %2958 = vrot.lane.b32.xlu0 %v2463, 12
      %v2959 = vpop.permute.xlu0 %2958
      %2960 = vrot.lane.b32.xlu0 %v2464, 12
      %v2961 = vpop.permute.xlu0 %2960
      %2962 = vrot.lane.b32.xlu0 %v2465, 12
      %v2963 = vpop.permute.xlu0 %2962
      %2964 = vrot.lane.b32.xlu0 %v2466, 12
      %v2965 = vpop.permute.xlu0 %2964
      %2966 = vrot.lane.b32.xlu0 %v2467, 12
      %v2967 = vpop.permute.xlu0 %2966
      %2968 = vrot.lane.b32.xlu0 %v2468, 12
      %v2969 = vpop.permute.xlu0 %2968
      %2970 = vrot.lane.b32.xlu0 %v2469, 12
      %v2971 = vpop.permute.xlu0 %2970
      %2972 = vrot.lane.b32.xlu0 %v2470, 12
      %v2973 = vpop.permute.xlu0 %2972
      %2974 = vrot.lane.b32.xlu0 %v2471, 12
      %v2975 = vpop.permute.xlu0 %2974
      %2976 = vrot.lane.b32.xlu0 %v2472, 12
      %v2977 = vpop.permute.xlu0 %2976
      %2978 = vrot.lane.b32.xlu0 %v2473, 12
      %v2979 = vpop.permute.xlu0 %2978
      %2980 = vrot.lane.b32.xlu0 %v2474, 12
      %v2981 = vpop.permute.xlu0 %2980
      %2982 = vrot.lane.b32.xlu0 %v2475, 12
      %v2983 = vpop.permute.xlu0 %2982
      %2984 = vrot.lane.b32.xlu0 %v2476, 12
      %v2985 = vpop.permute.xlu0 %2984
      %2986 = vrot.lane.b32.xlu0 %v2477, 12
      %v2987 = vpop.permute.xlu0 %2986
      %2988 = vrot.lane.b32.xlu0 %v2478, 12
      %v2989 = vpop.permute.xlu0 %2988
      %2990 = vrot.lane.b32.xlu0 %v2479, 12
      %v2991 = vpop.permute.xlu0 %2990
      %2992 = vrot.lane.b32.xlu0 %v2480, 12
      %v2993 = vpop.permute.xlu0 %2992
      %3058 = vrot.lane.b32.xlu0 %v2481, 16
      %v3059 = vpop.permute.xlu0 %3058
      %3060 = vrot.lane.b32.xlu0 %v2482, 16
      %v3061 = vpop.permute.xlu0 %3060
      %3062 = vrot.lane.b32.xlu0 %v2483, 16
      %v3063 = vpop.permute.xlu0 %3062
      %3064 = vrot.lane.b32.xlu0 %v2484, 16
      %v3065 = vpop.permute.xlu0 %3064
      %3066 = vrot.lane.b32.xlu0 %v2485, 16
      %v3067 = vpop.permute.xlu0 %3066
      %3068 = vrot.lane.b32.xlu0 %v2486, 16
      %v3069 = vpop.permute.xlu0 %3068
      %3070 = vrot.lane.b32.xlu0 %v2487, 16
      %v3071 = vpop.permute.xlu0 %3070
      %3072 = vrot.lane.b32.xlu0 %v2488, 16
      %v3073 = vpop.permute.xlu0 %3072
      %3074 = vrot.lane.b32.xlu0 %v2489, 16
      %v3075 = vpop.permute.xlu0 %3074
      %3076 = vrot.lane.b32.xlu0 %v2490, 16
      %v3077 = vpop.permute.xlu0 %3076
      %3078 = vrot.lane.b32.xlu0 %v2491, 16
      %v3079 = vpop.permute.xlu0 %3078
      %3080 = vrot.lane.b32.xlu0 %v2492, 16
      %v3081 = vpop.permute.xlu0 %3080
      %3082 = vrot.lane.b32.xlu0 %v2493, 16
      %v3083 = vpop.permute.xlu0 %3082
      %3084 = vrot.lane.b32.xlu0 %v2494, 16
      %v3085 = vpop.permute.xlu0 %3084
      %3086 = vrot.lane.b32.xlu0 %v2495, 16
      %v3087 = vpop.permute.xlu0 %3086
      %3088 = vrot.lane.b32.xlu0 %v2496, 16
      %v3089 = vpop.permute.xlu0 %3088
      %3090 = vrot.lane.b32.xlu0 %v2497, 16
      %v3091 = vpop.permute.xlu0 %3090
      %3092 = vrot.lane.b32.xlu0 %v2498, 16
      %v3093 = vpop.permute.xlu0 %3092
      %3094 = vrot.lane.b32.xlu0 %v2499, 16
      %v3095 = vpop.permute.xlu0 %3094
      %3096 = vrot.lane.b32.xlu0 %v2500, 16
      %v3097 = vpop.permute.xlu0 %3096
      %3098 = vrot.lane.b32.xlu0 %v2501, 16
      %v3099 = vpop.permute.xlu0 %3098
      %3100 = vrot.lane.b32.xlu0 %v2502, 16
      %v3101 = vpop.permute.xlu0 %3100
      %3102 = vrot.lane.b32.xlu0 %v2503, 16
      %v3103 = vpop.permute.xlu0 %3102
      %3104 = vrot.lane.b32.xlu0 %v2504, 16
      %v3105 = vpop.permute.xlu0 %3104
      %3106 = vrot.lane.b32.xlu0 %v2505, 16
      %v3107 = vpop.permute.xlu0 %3106
      %3108 = vrot.lane.b32.xlu0 %v2506, 16
      %v3109 = vpop.permute.xlu0 %3108
      %3110 = vrot.lane.b32.xlu0 %v2507, 16
      %v3111 = vpop.permute.xlu0 %3110
      %3112 = vrot.lane.b32.xlu0 %v2508, 16
      %v3113 = vpop.permute.xlu0 %3112
      %3114 = vrot.lane.b32.xlu0 %v2509, 16
      %v3115 = vpop.permute.xlu0 %3114
      %3116 = vrot.lane.b32.xlu0 %v2510, 16
      %v3117 = vpop.permute.xlu0 %3116
      %3118 = vrot.lane.b32.xlu0 %v2511, 16
      %v3119 = vpop.permute.xlu0 %3118
      %3120 = vrot.lane.b32.xlu0 %v2512, 16
      %v3121 = vpop.permute.xlu0 %3120
      %3186 = vrot.lane.b32.xlu0 %v2513, 20
      %v3187 = vpop.permute.xlu0 %3186
      %3188 = vrot.lane.b32.xlu0 %v2514, 20
      %v3189 = vpop.permute.xlu0 %3188
      %3190 = vrot.lane.b32.xlu0 %v2515, 20
      %v3191 = vpop.permute.xlu0 %3190
      %3192 = vrot.lane.b32.xlu0 %v2516, 20
      %v3193 = vpop.permute.xlu0 %3192
      %3194 = vrot.lane.b32.xlu0 %v2517, 20
      %v3195 = vpop.permute.xlu0 %3194
      %3196 = vrot.lane.b32.xlu0 %v2518, 20
      %v3197 = vpop.permute.xlu0 %3196
      %3198 = vrot.lane.b32.xlu0 %v2519, 20
      %v3199 = vpop.permute.xlu0 %3198
      %3200 = vrot.lane.b32.xlu0 %v2520, 20
      %v3201 = vpop.permute.xlu0 %3200
      %3202 = vrot.lane.b32.xlu0 %v2521, 20
      %v3203 = vpop.permute.xlu0 %3202
      %3204 = vrot.lane.b32.xlu0 %v2522, 20
      %v3205 = vpop.permute.xlu0 %3204
      %3206 = vrot.lane.b32.xlu0 %v2523, 20
      %v3207 = vpop.permute.xlu0 %3206
      %3208 = vrot.lane.b32.xlu0 %v2524, 20
      %v3209 = vpop.permute.xlu0 %3208
      %3210 = vrot.lane.b32.xlu0 %v2525, 20
      %v3211 = vpop.permute.xlu0 %3210
      %3212 = vrot.lane.b32.xlu0 %v2526, 20
      %v3213 = vpop.permute.xlu0 %3212
      %3214 = vrot.lane.b32.xlu0 %v2527, 20
      %v3215 = vpop.permute.xlu0 %3214
      %3216 = vrot.lane.b32.xlu0 %v2528, 20
      %v3217 = vpop.permute.xlu0 %3216
      %3218 = vrot.lane.b32.xlu0 %v2529, 20
      %v3219 = vpop.permute.xlu0 %3218
      %3220 = vrot.lane.b32.xlu0 %v2530, 20
      %v3221 = vpop.permute.xlu0 %3220
      %3222 = vrot.lane.b32.xlu0 %v2531, 20
      %v3223 = vpop.permute.xlu0 %3222
      %3224 = vrot.lane.b32.xlu0 %v2532, 20
      %v3225 = vpop.permute.xlu0 %3224
      %3226 = vrot.lane.b32.xlu0 %v2533, 20
      %v3227 = vpop.permute.xlu0 %3226
      %3228 = vrot.lane.b32.xlu0 %v2534, 20
      %v3229 = vpop.permute.xlu0 %3228
      %3230 = vrot.lane.b32.xlu0 %v2535, 20
      %v3231 = vpop.permute.xlu0 %3230
      %3232 = vrot.lane.b32.xlu0 %v2536, 20
      %v3233 = vpop.permute.xlu0 %3232
      %3234 = vrot.lane.b32.xlu0 %v2537, 20
      %v3235 = vpop.permute.xlu0 %3234
      %3236 = vrot.lane.b32.xlu0 %v2538, 20
      %v3237 = vpop.permute.xlu0 %3236
      %3238 = vrot.lane.b32.xlu0 %v2539, 20
      %v3239 = vpop.permute.xlu0 %3238
      %3240 = vrot.lane.b32.xlu0 %v2540, 20
      %v3241 = vpop.permute.xlu0 %3240
      %3242 = vrot.lane.b32.xlu0 %v2541, 20
      %v3243 = vpop.permute.xlu0 %3242
      %3244 = vrot.lane.b32.xlu0 %v2542, 20
      %v3245 = vpop.permute.xlu0 %3244
      %3246 = vrot.lane.b32.xlu0 %v2543, 20
      %v3247 = vpop.permute.xlu0 %3246
      %3248 = vrot.lane.b32.xlu0 %v2544, 20
      %v3249 = vpop.permute.xlu0 %3248
      %3314 = vrot.lane.b32.xlu0 %v2546, 24
      %v3315 = vpop.permute.xlu0 %3314
      %3316 = vrot.lane.b32.xlu0 %v2547, 24
      %v3317 = vpop.permute.xlu0 %3316
      %3318 = vrot.lane.b32.xlu0 %v2548, 24
      %v3319 = vpop.permute.xlu0 %3318
      %3320 = vrot.lane.b32.xlu0 %v2549, 24
      %v3321 = vpop.permute.xlu0 %3320
      %3322 = vrot.lane.b32.xlu0 %v2550, 24
      %v3323 = vpop.permute.xlu0 %3322
      %3324 = vrot.lane.b32.xlu0 %v2551, 24
      %v3325 = vpop.permute.xlu0 %3324
      %3326 = vrot.lane.b32.xlu0 %v2552, 24
      %v3327 = vpop.permute.xlu0 %3326
      %3328 = vrot.lane.b32.xlu0 %v2553, 24
      %v3329 = vpop.permute.xlu0 %3328
      %3330 = vrot.lane.b32.xlu0 %v2554, 24
      %v3331 = vpop.permute.xlu0 %3330
      %3332 = vrot.lane.b32.xlu0 %v2555, 24
      %v3333 = vpop.permute.xlu0 %3332
      %3334 = vrot.lane.b32.xlu0 %v2556, 24
      %v3335 = vpop.permute.xlu0 %3334
      %3336 = vrot.lane.b32.xlu0 %v2557, 24
      %v3337 = vpop.permute.xlu0 %3336
      %3338 = vrot.lane.b32.xlu0 %v2558, 24
      %v3339 = vpop.permute.xlu0 %3338
      %3340 = vrot.lane.b32.xlu0 %v2559, 24
      %v3341 = vpop.permute.xlu0 %3340
      %3342 = vrot.lane.b32.xlu0 %v2560, 24
      %v3343 = vpop.permute.xlu0 %3342
      %3344 = vrot.lane.b32.xlu0 %v2561, 24
      %v3345 = vpop.permute.xlu0 %3344
      %3346 = vrot.lane.b32.xlu0 %v2562, 24
      %v3347 = vpop.permute.xlu0 %3346
      %3348 = vrot.lane.b32.xlu0 %v2563, 24
      %v3349 = vpop.permute.xlu0 %3348
      %3350 = vrot.lane.b32.xlu0 %v2564, 24
      %v3351 = vpop.permute.xlu0 %3350
      %3352 = vrot.lane.b32.xlu0 %v2565, 24
      %v3353 = vpop.permute.xlu0 %3352
      %3354 = vrot.lane.b32.xlu0 %v2566, 24
      %v3355 = vpop.permute.xlu0 %3354
      %3356 = vrot.lane.b32.xlu0 %v2567, 24
      %v3357 = vpop.permute.xlu0 %3356
      %3358 = vrot.lane.b32.xlu0 %v2568, 24
      %v3359 = vpop.permute.xlu0 %3358
      %3360 = vrot.lane.b32.xlu0 %v2569, 24
      %v3361 = vpop.permute.xlu0 %3360
      %3362 = vrot.lane.b32.xlu0 %v2570, 24
      %v3363 = vpop.permute.xlu0 %3362
      %3364 = vrot.lane.b32.xlu0 %v2571, 24
      %v3365 = vpop.permute.xlu0 %3364
      %3366 = vrot.lane.b32.xlu0 %v2572, 24
      %v3367 = vpop.permute.xlu0 %3366
      %3368 = vrot.lane.b32.xlu0 %v2573, 24
      %v3369 = vpop.permute.xlu0 %3368
      %3370 = vrot.lane.b32.xlu0 %v2574, 24
      %v3371 = vpop.permute.xlu0 %3370
      %3372 = vrot.lane.b32.xlu0 %v2575, 24
      %v3373 = vpop.permute.xlu0 %3372
      %3374 = vrot.lane.b32.xlu0 %v2576, 24
      %v3375 = vpop.permute.xlu0 %3374
      %3376 = vrot.lane.b32.xlu0 %v2577, 24
      %v3377 = vpop.permute.xlu0 %3376
      %3442 = vrot.lane.b32.xlu0 %v2578, 28
      %v3443 = vpop.permute.xlu0 %3442
      %3444 = vrot.lane.b32.xlu0 %v2579, 28
      %v3445 = vpop.permute.xlu0 %3444
      %3446 = vrot.lane.b32.xlu0 %v2580, 28
      %v3447 = vpop.permute.xlu0 %3446
      %3448 = vrot.lane.b32.xlu0 %v2581, 28
      %v3449 = vpop.permute.xlu0 %3448
      %3450 = vrot.lane.b32.xlu0 %v2582, 28
      %v3451 = vpop.permute.xlu0 %3450
      %3452 = vrot.lane.b32.xlu0 %v2583, 28
      %v3453 = vpop.permute.xlu0 %3452
      %3454 = vrot.lane.b32.xlu0 %v2584, 28
      %v3455 = vpop.permute.xlu0 %3454
      %3456 = vrot.lane.b32.xlu0 %v2585, 28
      %v3457 = vpop.permute.xlu0 %3456
      %3458 = vrot.lane.b32.xlu0 %v2586, 28
      %v3459 = vpop.permute.xlu0 %3458
      %3460 = vrot.lane.b32.xlu0 %v2587, 28
      %v3461 = vpop.permute.xlu0 %3460
      %3462 = vrot.lane.b32.xlu0 %v2588, 28
      %v3463 = vpop.permute.xlu0 %3462
      %3464 = vrot.lane.b32.xlu0 %v2589, 28
      %v3465 = vpop.permute.xlu0 %3464
      %3466 = vrot.lane.b32.xlu0 %v2590, 28
      %v3467 = vpop.permute.xlu0 %3466
      %3468 = vrot.lane.b32.xlu0 %v2591, 28
      %v3469 = vpop.permute.xlu0 %3468
      %3470 = vrot.lane.b32.xlu0 %v2592, 28
      %v3471 = vpop.permute.xlu0 %3470
      %3472 = vrot.lane.b32.xlu0 %v2593, 28
      %v3473 = vpop.permute.xlu0 %3472
      %3474 = vrot.lane.b32.xlu0 %v2594, 28
      %v3475 = vpop.permute.xlu0 %3474
      %3476 = vrot.lane.b32.xlu0 %v2595, 28
      %v3477 = vpop.permute.xlu0 %3476
      %3478 = vrot.lane.b32.xlu0 %v2596, 28
      %v3479 = vpop.permute.xlu0 %3478
      %3480 = vrot.lane.b32.xlu0 %v2597, 28
      %v3481 = vpop.permute.xlu0 %3480
      %3482 = vrot.lane.b32.xlu0 %v2598, 28
      %v3483 = vpop.permute.xlu0 %3482
      %3484 = vrot.lane.b32.xlu0 %v2599, 28
      %v3485 = vpop.permute.xlu0 %3484
      %3486 = vrot.lane.b32.xlu0 %v2600, 28
      %v3487 = vpop.permute.xlu0 %3486
      %3488 = vrot.lane.b32.xlu0 %v2601, 28
      %v3489 = vpop.permute.xlu0 %3488
      %3490 = vrot.lane.b32.xlu0 %v2602, 28
      %v3491 = vpop.permute.xlu0 %3490
      %3492 = vrot.lane.b32.xlu0 %v2603, 28
      %v3493 = vpop.permute.xlu0 %3492
      %3494 = vrot.lane.b32.xlu0 %v2604, 28
      %v3495 = vpop.permute.xlu0 %3494
      %3496 = vrot.lane.b32.xlu0 %v2605, 28
      %v3497 = vpop.permute.xlu0 %3496
      %3498 = vrot.lane.b32.xlu0 %v2606, 28
      %v3499 = vpop.permute.xlu0 %3498
      %3500 = vrot.lane.b32.xlu0 %v2607, 28
      %v3501 = vpop.permute.xlu0 %3500
      %3502 = vrot.lane.b32.xlu0 %v2608, 28
      %v3503 = vpop.permute.xlu0 %3502
      %3504 = vrot.lane.b32.xlu0 %v2609, 28
      %v3505 = vpop.permute.xlu0 %3504
      %3570 = vrot.lane.b32.xlu0 %v2610, 32
      %v3571 = vpop.permute.xlu0 %3570
      %3572 = vrot.lane.b32.xlu0 %v2611, 32
      %v3573 = vpop.permute.xlu0 %3572
      %3574 = vrot.lane.b32.xlu0 %v2612, 32
      %v3575 = vpop.permute.xlu0 %3574
      %3576 = vrot.lane.b32.xlu0 %v2613, 32
      %v3577 = vpop.permute.xlu0 %3576
      %3578 = vrot.lane.b32.xlu0 %v2614, 32
      %v3579 = vpop.permute.xlu0 %3578
      %3580 = vrot.lane.b32.xlu0 %v2615, 32
      %v3581 = vpop.permute.xlu0 %3580
      %3582 = vrot.lane.b32.xlu0 %v2616, 32
      %v3583 = vpop.permute.xlu0 %3582
      %3584 = vrot.lane.b32.xlu0 %v2617, 32
      %v3585 = vpop.permute.xlu0 %3584
      %3586 = vrot.lane.b32.xlu0 %v2618, 32
      %v3587 = vpop.permute.xlu0 %3586
      %3588 = vrot.lane.b32.xlu0 %v2619, 32
      %v3589 = vpop.permute.xlu0 %3588
      %3590 = vrot.lane.b32.xlu0 %v2620, 32
      %v3591 = vpop.permute.xlu0 %3590
      %3592 = vrot.lane.b32.xlu0 %v2621, 32
      %v3593 = vpop.permute.xlu0 %3592
      %3594 = vrot.lane.b32.xlu0 %v2622, 32
      %v3595 = vpop.permute.xlu0 %3594
      %3596 = vrot.lane.b32.xlu0 %v2623, 32
      %v3597 = vpop.permute.xlu0 %3596
      %3598 = vrot.lane.b32.xlu0 %v2624, 32
      %v3599 = vpop.permute.xlu0 %3598
      %3600 = vrot.lane.b32.xlu0 %v2625, 32
      %v3601 = vpop.permute.xlu0 %3600
      %3602 = vrot.lane.b32.xlu0 %v2626, 32
      %v3603 = vpop.permute.xlu0 %3602
      %3604 = vrot.lane.b32.xlu0 %v2627, 32
      %v3605 = vpop.permute.xlu0 %3604
      %3606 = vrot.lane.b32.xlu0 %v2628, 32
      %v3607 = vpop.permute.xlu0 %3606
      %3608 = vrot.lane.b32.xlu0 %v2629, 32
      %v3609 = vpop.permute.xlu0 %3608
      %3610 = vrot.lane.b32.xlu0 %v2630, 32
      %v3611 = vpop.permute.xlu0 %3610
      %3612 = vrot.lane.b32.xlu0 %v2631, 32
      %v3613 = vpop.permute.xlu0 %3612
      %3614 = vrot.lane.b32.xlu0 %v2632, 32
      %v3615 = vpop.permute.xlu0 %3614
      %3616 = vrot.lane.b32.xlu0 %v2633, 32
      %v3617 = vpop.permute.xlu0 %3616
      %3618 = vrot.lane.b32.xlu0 %v2634, 32
      %v3619 = vpop.permute.xlu0 %3618
      %3620 = vrot.lane.b32.xlu0 %v2635, 32
      %v3621 = vpop.permute.xlu0 %3620
      %3622 = vrot.lane.b32.xlu0 %v2636, 32
      %v3623 = vpop.permute.xlu0 %3622
      %3624 = vrot.lane.b32.xlu0 %v2637, 32
      %v3625 = vpop.permute.xlu0 %3624
      %3626 = vrot.lane.b32.xlu0 %v2638, 32
      %v3627 = vpop.permute.xlu0 %3626
      %3628 = vrot.lane.b32.xlu0 %v2639, 32
      %v3629 = vpop.permute.xlu0 %3628
      %3630 = vrot.lane.b32.xlu0 %v2640, 32
      %v3631 = vpop.permute.xlu0 %3630
      %3632 = vrot.lane.b32.xlu0 %v2641, 32
      %v3633 = vpop.permute.xlu0 %3632
      %v3666 = vsel %vm1477, %v2353, %v2675
      %v3667 = vsel %vm1477, %v2354, %v2677
      %v3668 = vsel %vm1477, %v2355, %v2679
      %v3669 = vsel %vm1477, %v2356, %v2681
      %v3670 = vsel %vm1477, %v2357, %v2683
      %v3671 = vsel %vm1477, %v2358, %v2685
      %v3672 = vsel %vm1477, %v2359, %v2687
      %v3673 = vsel %vm1477, %v2360, %v2689
      %v3674 = vsel %vm1477, %v2361, %v2691
      %v3675 = vsel %vm1477, %v2362, %v2693
      %v3676 = vsel %vm1477, %v2363, %v2695
      %v3677 = vsel %vm1477, %v2364, %v2697
      %v3678 = vsel %vm1477, %v2365, %v2699
      %v3679 = vsel %vm1477, %v2366, %v2701
      %v3680 = vsel %vm1477, %v2367, %v2703
      %v3681 = vsel %vm1477, %v2368, %v2705
      %v3682 = vsel %vm1477, %v2369, %v2707
      %v3683 = vsel %vm1477, %v2370, %v2709
      %v3684 = vsel %vm1477, %v2371, %v2711
      %v3685 = vsel %vm1477, %v2372, %v2713
      %v3686 = vsel %vm1477, %v2373, %v2715
      %v3687 = vsel %vm1477, %v2374, %v2717
      %v3688 = vsel %vm1477, %v2375, %v2719
      %v3689 = vsel %vm1477, %v2376, %v2721
      %v3690 = vsel %vm1477, %v2377, %v2723
      %v3691 = vsel %vm1477, %v2378, %v2725
      %v3692 = vsel %vm1477, %v2379, %v2727
      %v3693 = vsel %vm1477, %v2380, %v2729
      %v3694 = vsel %vm1477, %v2381, %v2731
      %v3695 = vsel %vm1477, %v2382, %v2733
      %v3696 = vsel %vm1477, %v2383, %v2735
      %v3697 = vsel %vm1477, %v2384, %v2737
      %v3698 = vsel %vm1510, %v3666, %v2803
      %v3699 = vsel %vm1510, %v3667, %v2805
      %v3700 = vsel %vm1510, %v3668, %v2807
      %v3701 = vsel %vm1510, %v3669, %v2809
      %v3702 = vsel %vm1510, %v3670, %v2811
      %v3703 = vsel %vm1510, %v3671, %v2813
      %v3704 = vsel %vm1510, %v3672, %v2815
      %v3705 = vsel %vm1510, %v3673, %v2817
      %v3706 = vsel %vm1510, %v3674, %v2819
      %v3707 = vsel %vm1510, %v3675, %v2821
      %v3708 = vsel %vm1510, %v3676, %v2823
      %v3709 = vsel %vm1510, %v3677, %v2825
      %v3710 = vsel %vm1510, %v3678, %v2827
      %v3711 = vsel %vm1510, %v3679, %v2829
      %v3712 = vsel %vm1510, %v3680, %v2831
      %v3713 = vsel %vm1510, %v3681, %v2833
      %v3714 = vsel %vm1510, %v3682, %v2835
      %v3715 = vsel %vm1510, %v3683, %v2837
      %v3716 = vsel %vm1510, %v3684, %v2839
      %v3717 = vsel %vm1510, %v3685, %v2841
      %v3718 = vsel %vm1510, %v3686, %v2843
      %v3719 = vsel %vm1510, %v3687, %v2845
      %v3720 = vsel %vm1510, %v3688, %v2847
      %v3721 = vsel %vm1510, %v3689, %v2849
      %v3722 = vsel %vm1510, %v3690, %v2851
      %v3723 = vsel %vm1510, %v3691, %v2853
      %v3724 = vsel %vm1510, %v3692, %v2855
      %v3725 = vsel %vm1510, %v3693, %v2857
      %v3726 = vsel %vm1510, %v3694, %v2859
      %v3727 = vsel %vm1510, %v3695, %v2861
      %v3728 = vsel %vm1510, %v3696, %v2863
      %v3729 = vsel %vm1510, %v3697, %v2865
      %v3730 = vsel %vm1543, %v3698, %v2931
      %v3731 = vsel %vm1543, %v3699, %v2933
      %v3732 = vsel %vm1543, %v3700, %v2935
      %v3733 = vsel %vm1543, %v3701, %v2937
      %v3734 = vsel %vm1543, %v3702, %v2939
      %v3735 = vsel %vm1543, %v3703, %v2941
      %v3736 = vsel %vm1543, %v3704, %v2943
      %v3737 = vsel %vm1543, %v3705, %v2945
      %v3738 = vsel %vm1543, %v3706, %v2947
      %v3739 = vsel %vm1543, %v3707, %v2949
      %v3740 = vsel %vm1543, %v3708, %v2951
      %v3741 = vsel %vm1543, %v3709, %v2953
      %v3742 = vsel %vm1543, %v3710, %v2955
      %v3743 = vsel %vm1543, %v3711, %v2957
      %v3744 = vsel %vm1543, %v3712, %v2959
      %v3745 = vsel %vm1543, %v3713, %v2961
      %v3746 = vsel %vm1543, %v3714, %v2963
      %v3747 = vsel %vm1543, %v3715, %v2965
      %v3748 = vsel %vm1543, %v3716, %v2967
      %v3749 = vsel %vm1543, %v3717, %v2969
      %v3750 = vsel %vm1543, %v3718, %v2971
      %v3751 = vsel %vm1543, %v3719, %v2973
      %v3752 = vsel %vm1543, %v3720, %v2975
      %v3753 = vsel %vm1543, %v3721, %v2977
      %v3754 = vsel %vm1543, %v3722, %v2979
      %v3755 = vsel %vm1543, %v3723, %v2981
      %v3756 = vsel %vm1543, %v3724, %v2983
      %v3757 = vsel %vm1543, %v3725, %v2985
      %v3758 = vsel %vm1543, %v3726, %v2987
      %v3759 = vsel %vm1543, %v3727, %v2989
      %v3760 = vsel %vm1543, %v3728, %v2991
      %v3761 = vsel %vm1543, %v3729, %v2993
      %v3762 = vsel %vm1576, %v3730, %v3059
      %v3763 = vsel %vm1576, %v3731, %v3061
      %v3764 = vsel %vm1576, %v3732, %v3063
      %v3765 = vsel %vm1576, %v3733, %v3065
      %v3766 = vsel %vm1576, %v3734, %v3067
      %v3767 = vsel %vm1576, %v3735, %v3069
      %v3768 = vsel %vm1576, %v3736, %v3071
      %v3769 = vsel %vm1576, %v3737, %v3073
      %v3770 = vsel %vm1576, %v3738, %v3075
      %v3771 = vsel %vm1576, %v3739, %v3077
      %v3772 = vsel %vm1576, %v3740, %v3079
      %v3773 = vsel %vm1576, %v3741, %v3081
      %v3774 = vsel %vm1576, %v3742, %v3083
      %v3775 = vsel %vm1576, %v3743, %v3085
      %v3776 = vsel %vm1576, %v3744, %v3087
      %v3777 = vsel %vm1576, %v3745, %v3089
      %v3778 = vsel %vm1576, %v3746, %v3091
      %v3779 = vsel %vm1576, %v3747, %v3093
      %v3780 = vsel %vm1576, %v3748, %v3095
      %v3781 = vsel %vm1576, %v3749, %v3097
      %v3782 = vsel %vm1576, %v3750, %v3099
      %v3783 = vsel %vm1576, %v3751, %v3101
      %v3784 = vsel %vm1576, %v3752, %v3103
      %v3785 = vsel %vm1576, %v3753, %v3105
      %v3786 = vsel %vm1576, %v3754, %v3107
      %v3787 = vsel %vm1576, %v3755, %v3109
      %v3788 = vsel %vm1576, %v3756, %v3111
      %v3789 = vsel %vm1576, %v3757, %v3113
      %v3790 = vsel %vm1576, %v3758, %v3115
      %v3791 = vsel %vm1576, %v3759, %v3117
      %v3792 = vsel %vm1576, %v3760, %v3119
      %v3793 = vsel %vm1576, %v3761, %v3121
      %v3794 = vsel %vm1609, %v3762, %v3187
      %v3795 = vsel %vm1609, %v3763, %v3189
      %v3796 = vsel %vm1609, %v3764, %v3191
      %v3797 = vsel %vm1609, %v3765, %v3193
      %v3798 = vsel %vm1609, %v3766, %v3195
      %v3799 = vsel %vm1609, %v3767, %v3197
      %v3800 = vsel %vm1609, %v3768, %v3199
      %v3801 = vsel %vm1609, %v3769, %v3201
      %v3802 = vsel %vm1609, %v3770, %v3203
      %v3803 = vsel %vm1609, %v3771, %v3205
      %v3804 = vsel %vm1609, %v3772, %v3207
      %v3805 = vsel %vm1609, %v3773, %v3209
      %v3806 = vsel %vm1609, %v3774, %v3211
      %v3807 = vsel %vm1609, %v3775, %v3213
      %v3808 = vsel %vm1609, %v3776, %v3215
      %v3809 = vsel %vm1609, %v3777, %v3217
      %v3810 = vsel %vm1609, %v3778, %v3219
      %v3811 = vsel %vm1609, %v3779, %v3221
      %v3812 = vsel %vm1609, %v3780, %v3223
      %v3813 = vsel %vm1609, %v3781, %v3225
      %v3814 = vsel %vm1609, %v3782, %v3227
      %v3815 = vsel %vm1609, %v3783, %v3229
      %v3816 = vsel %vm1609, %v3784, %v3231
      %v3817 = vsel %vm1609, %v3785, %v3233
      %v3818 = vsel %vm1609, %v3786, %v3235
      %v3819 = vsel %vm1609, %v3787, %v3237
      %v3820 = vsel %vm1609, %v3788, %v3239
      %v3821 = vsel %vm1609, %v3789, %v3241
      %v3822 = vsel %vm1609, %v3790, %v3243
      %v3823 = vsel %vm1609, %v3791, %v3245
      %v3824 = vsel %vm1609, %v3792, %v3247
      %v3825 = vsel %vm1609, %v3793, %v3249
      %v3826 = vsel %vm1642, %v3794, %v3315
      %v3827 = vsel %vm1642, %v3795, %v3317
      %v3828 = vsel %vm1642, %v3796, %v3319
      %v3829 = vsel %vm1642, %v3797, %v3321
      %v3830 = vsel %vm1642, %v3798, %v3323
      %v3831 = vsel %vm1642, %v3799, %v3325
      %v3832 = vsel %vm1642, %v3800, %v3327
      %v3833 = vsel %vm1642, %v3801, %v3329
      %v3834 = vsel %vm1642, %v3802, %v3331
      %v3835 = vsel %vm1642, %v3803, %v3333
      %v3836 = vsel %vm1642, %v3804, %v3335
      %v3837 = vsel %vm1642, %v3805, %v3337
      %v3838 = vsel %vm1642, %v3806, %v3339
      %v3839 = vsel %vm1642, %v3807, %v3341
      %v3840 = vsel %vm1642, %v3808, %v3343
      %v3841 = vsel %vm1642, %v3809, %v3345
      %v3842 = vsel %vm1642, %v3810, %v3347
      %v3843 = vsel %vm1642, %v3811, %v3349
      %v3844 = vsel %vm1642, %v3812, %v3351
      %v3845 = vsel %vm1642, %v3813, %v3353
      %v3846 = vsel %vm1642, %v3814, %v3355
      %v3847 = vsel %vm1642, %v3815, %v3357
      %v3848 = vsel %vm1642, %v3816, %v3359
      %v3849 = vsel %vm1642, %v3817, %v3361
      %v3850 = vsel %vm1642, %v3818, %v3363
      %v3851 = vsel %vm1642, %v3819, %v3365
      %v3852 = vsel %vm1642, %v3820, %v3367
      %v3853 = vsel %vm1642, %v3821, %v3369
      %v3854 = vsel %vm1642, %v3822, %v3371
      %v3855 = vsel %vm1642, %v3823, %v3373
      %v3856 = vsel %vm1642, %v3824, %v3375
      %v3857 = vsel %vm1642, %v3825, %v3377
      %v3858 = vsel %vm1675, %v3826, %v3443
      %v3859 = vsel %vm1675, %v3827, %v3445
      %v3860 = vsel %vm1675, %v3828, %v3447
      %v3861 = vsel %vm1675, %v3829, %v3449
      %v3862 = vsel %vm1675, %v3830, %v3451
      %v3863 = vsel %vm1675, %v3831, %v3453
      %v3864 = vsel %vm1675, %v3832, %v3455
      %v3865 = vsel %vm1675, %v3833, %v3457
      %v3866 = vsel %vm1675, %v3834, %v3459
      %v3867 = vsel %vm1675, %v3835, %v3461
      %v3868 = vsel %vm1675, %v3836, %v3463
      %v3869 = vsel %vm1675, %v3837, %v3465
      %v3870 = vsel %vm1675, %v3838, %v3467
      %v3871 = vsel %vm1675, %v3839, %v3469
      %v3872 = vsel %vm1675, %v3840, %v3471
      %v3873 = vsel %vm1675, %v3841, %v3473
      %v3874 = vsel %vm1675, %v3842, %v3475
      %v3875 = vsel %vm1675, %v3843, %v3477
      %v3876 = vsel %vm1675, %v3844, %v3479
      %v3877 = vsel %vm1675, %v3845, %v3481
      %v3878 = vsel %vm1675, %v3846, %v3483
      %v3879 = vsel %vm1675, %v3847, %v3485
      %v3880 = vsel %vm1675, %v3848, %v3487
      %v3881 = vsel %vm1675, %v3849, %v3489
      %v3882 = vsel %vm1675, %v3850, %v3491
      %v3883 = vsel %vm1675, %v3851, %v3493
      %v3884 = vsel %vm1675, %v3852, %v3495
      %v3885 = vsel %vm1675, %v3853, %v3497
      %v3886 = vsel %vm1675, %v3854, %v3499
      %v3887 = vsel %vm1675, %v3855, %v3501
      %v3888 = vsel %vm1675, %v3856, %v3503
      %v3889 = vsel %vm1675, %v3857, %v3505
      %v3890 = vsel %vm1708, %v3858, %v3571
      %v3891 = vsel %vm1708, %v3859, %v3573
      %v3892 = vsel %vm1708, %v3860, %v3575
      %v3893 = vsel %vm1708, %v3861, %v3577
      %v3894 = vsel %vm1708, %v3862, %v3579
      %v3895 = vsel %vm1708, %v3863, %v3581
      %v3896 = vsel %vm1708, %v3864, %v3583
      %v3897 = vsel %vm1708, %v3865, %v3585
      %v3898 = vsel %vm1708, %v3866, %v3587
      %v3899 = vsel %vm1708, %v3867, %v3589
      %v3900 = vsel %vm1708, %v3868, %v3591
      %v3901 = vsel %vm1708, %v3869, %v3593
      %v3902 = vsel %vm1708, %v3870, %v3595
      %v3903 = vsel %vm1708, %v3871, %v3597
      %v3904 = vsel %vm1708, %v3872, %v3599
      %v3905 = vsel %vm1708, %v3873, %v3601
      %v3906 = vsel %vm1708, %v3874, %v3603
      %v3907 = vsel %vm1708, %v3875, %v3605
      %v3908 = vsel %vm1708, %v3876, %v3607
      %v3909 = vsel %vm1708, %v3877, %v3609
      %v3910 = vsel %vm1708, %v3878, %v3611
      %v3911 = vsel %vm1708, %v3879, %v3613
      %v3912 = vsel %vm1708, %v3880, %v3615
      %v3913 = vsel %vm1708, %v3881, %v3617
      %v3914 = vsel %vm1708, %v3882, %v3619
      %v3915 = vsel %vm1708, %v3883, %v3621
      %v3916 = vsel %vm1708, %v3884, %v3623
      %v3917 = vsel %vm1708, %v3885, %v3625
      %v3918 = vsel %vm1708, %v3886, %v3627
      %v3919 = vsel %vm1708, %v3887, %v3629
      %v3920 = vsel %vm1708, %v3888, %v3631
      %v3921 = vsel %vm1708, %v3889, %v3633
      %v3922 = vld [vmem:[%s3] sm:$0xff]
      %v3923 = vld [vmem:[%s3 + $0x8] sm:$0xff]
      %v3924 = vld [vmem:[%s3 + $0x10] sm:$0xff]
      %v3925 = vld [vmem:[%s3 + $0x18] sm:$0xff]
      %v3926 = vld [vmem:[%s3 + $0x20] sm:$0xf]
      %v3927 = vld [vmem:[%s4] sm:$0x1]
      %v3929 = vlaneseq
      %v3930 = vshrl.u32 %v3929, 7
      %v3931 = vsub.s32 0, %v3930
      %v3932 = vrot.slane %v3927, %v3931
      %v3935 = vsel %vm1753, %v3890, 0
      %v3938 = vsel %vm1753, %v3891, 0
      %v3941 = vsel %vm1753, %v3892, 0
      %v3944 = vsel %vm1753, %v3893, 0
      %v3947 = vsel %vm1753, %v3894, 0
      %v3950 = vsel %vm1753, %v3895, 0
      %v3953 = vsel %vm1753, %v3896, 0
      %v3956 = vsel %vm1753, %v3897, 0
      %v3959 = vsel %vm1753, %v3898, 0
      %v3962 = vsel %vm1753, %v3899, 0
      %v3965 = vsel %vm1753, %v3900, 0
      %v3968 = vsel %vm1753, %v3901, 0
      %v3971 = vsel %vm1753, %v3902, 0
      %v3974 = vsel %vm1753, %v3903, 0
      %v3977 = vsel %vm1753, %v3904, 0
      %v3980 = vsel %vm1753, %v3905, 0
      %v3983 = vsel %vm1753, %v3906, 0
      %v3986 = vsel %vm1753, %v3907, 0
      %v3989 = vsel %vm1753, %v3908, 0
      %v3992 = vsel %vm1753, %v3909, 0
      %v3995 = vsel %vm1753, %v3910, 0
      %v3998 = vsel %vm1753, %v3911, 0
      %v4001 = vsel %vm1753, %v3912, 0
      %v4004 = vsel %vm1753, %v3913, 0
      %v4007 = vsel %vm1753, %v3914, 0
      %v4010 = vsel %vm1753, %v3915, 0
      %v4013 = vsel %vm1753, %v3916, 0
      %v4016 = vsel %vm1753, %v3917, 0
      %v4019 = vsel %vm1753, %v3918, 0
      %v4022 = vsel %vm1753, %v3919, 0
      %v4025 = vsel %vm1753, %v3920, 0
      %v4028 = vsel %vm1753, %v3921, 0
      %v4031 = vsel %vm1850, %v3926, 0
      %4033 = vmatprep.subr.mxu0 0.0
      %4034 = vmatpush1.msra.mxu0 %v3922
      %4035 = vmatprep.subr.mxu0 0.0
      %4036 = vmatpush1.msra.mxu0 %v3923
      %4037 = vmatprep.subr.mxu0 0.0
      %4038 = vmatpush1.msra.mxu0 %v3924
      %4039 = vmatprep.subr.mxu0 0.0
      %4040 = vmatpush1.msra.mxu0 %v3925
      %4041 = vmatprep.subr.mxu0 0.0
      %4042 = vmatpush1.msra.mxu0 %v4031
      %4043 = vmatprep.subr.mxu0 0.0
      %4044 = vmatpush1.msra.mxu0 0.0
      %4045 = vmatprep.subr.mxu0 0.0
      %4046 = vmatpush1.msra.mxu0 0.0
      %4047 = vmatprep.subr.mxu0 0.0
      %4048 = vmatpush1.msra.mxu0 0.0
      %4049 = vmatprep.subr.mxu0 0.0
      %4050 = vmatpush1.msra.mxu0 0.0
      %4051 = vmatprep.subr.mxu0 0.0
      %4052 = vmatpush1.msra.mxu0 0.0
      %4053 = vmatprep.subr.mxu0 0.0
      %4054 = vmatpush1.msra.mxu0 0.0
      %4055 = vmatprep.subr.mxu0 0.0
      %4056 = vmatpush1.msra.mxu0 0.0
      %4057 = vmatprep.subr.mxu0 0.0
      %4058 = vmatpush1.msra.mxu0 0.0
      %4059 = vmatprep.subr.mxu0 0.0
      %4060 = vmatpush1.msra.mxu0 0.0
      %4061 = vmatprep.subr.mxu0 0.0
      %4062 = vmatpush1.msra.mxu0 0.0
      %4063 = vmatprep.subr.mxu0 0.0
      %4064 = vmatpush1.msra.mxu0 0.0
      %4065 = vmatprep.subr.mxu0 0.0
      %4066 = vmatpush1.msra.mxu0 0.0
      %4067 = vmatprep.subr.mxu0 0.0
      %4068 = vmatpush1.msra.mxu0 0.0
      %4069 = vmatprep.subr.mxu0 0.0
      %4070 = vmatpush1.msra.mxu0 0.0
      %4071 = vmatprep.subr.mxu0 0.0
      %4072 = vmatpush1.msra.mxu0 0.0
      %4073 = vmatprep.subr.mxu0 0.0
      %4074 = vmatpush1.msra.mxu0 0.0
      %4075 = vmatprep.subr.mxu0 0.0
      %4076 = vmatpush1.msra.mxu0 0.0
      %4077 = vmatprep.subr.mxu0 0.0
      %4078 = vmatpush1.msra.mxu0 0.0
      %4079 = vmatprep.subr.mxu0 0.0
      %4080 = vmatpush1.msra.mxu0 0.0
      %4081 = vmatprep.subr.mxu0 0.0
      %4082 = vmatpush1.msra.mxu0 0.0
      %4083 = vmatprep.subr.mxu0 0.0
      %4084 = vmatpush1.msra.mxu0 0.0
      %4085 = vmatprep.subr.mxu0 0.0
      %4086 = vmatpush1.msra.mxu0 0.0
      %4087 = vmatprep.subr.mxu0 0.0
      %4088 = vmatpush1.msra.mxu0 0.0
      %4089 = vmatprep.subr.mxu0 0.0
      %4090 = vmatpush1.msra.mxu0 0.0
      %4091 = vmatprep.subr.mxu0 0.0
      %4092 = vmatpush1.msra.mxu0 0.0
      %4093 = vmatprep.subr.mxu0 0.0
      %4094 = vmatpush1.msra.mxu0 0.0
      %4095 = vmatprep.subr.mxu0 0.0
      %4096 = vmatpush1.msra.mxu0 0.0
      %4097 = vmatprep.mubr.f32.mxu0 0.0
      %4098 = vmatmul.mubr.f32.gmra.mrb[0].mxu0 %v3935
      %v4099 = vpop.f32.mrb[0].mxu0
      %v4100 = vadd.f32 %v3932, %v4099
      %v4101 = vpop.f32.mrb[0].mxu0
      %4102 = vmatprep.mubr.f32.mxu0 0.0
      %4103 = vmatmul.mubr.f32.gmra.mrb[0].mxu0 %v3938
      %v4104 = vpop.f32.mrb[0].mxu0
      %v4105 = vadd.f32 %v3932, %v4104
      %v4106 = vpop.f32.mrb[0].mxu0
      %4107 = vmatprep.mubr.f32.mxu0 0.0
      %4108 = vmatmul.mubr.f32.gmra.mrb[0].mxu0 %v3941
      %v4109 = vpop.f32.mrb[0].mxu0
      %v4110 = vadd.f32 %v3932, %v4109
      %v4111 = vpop.f32.mrb[0].mxu0
      %4112 = vmatprep.mubr.f32.mxu0 0.0
      %4113 = vmatmul.mubr.f32.gmra.mrb[0].mxu0 %v3944
      %v4114 = vpop.f32.mrb[0].mxu0
      %v4115 = vadd.f32 %v3932, %v4114
      %v4116 = vpop.f32.mrb[0].mxu0
      %4117 = vmatprep.mubr.f32.mxu0 0.0
      %4118 = vmatmul.mubr.f32.gmra.mrb[0].mxu0 %v3947
      %v4119 = vpop.f32.mrb[0].mxu0
      %v4120 = vadd.f32 %v3932, %v4119
      %v4121 = vpop.f32.mrb[0].mxu0
      %4122 = vmatprep.mubr.f32.mxu0 0.0
      %4123 = vmatmul.mubr.f32.gmra.mrb[0].mxu0 %v3950
      %v4124 = vpop.f32.mrb[0].mxu0
      %v4125 = vadd.f32 %v3932, %v4124
      %v4126 = vpop.f32.mrb[0].mxu0
      %4127 = vmatprep.mubr.f32.mxu0 0.0
      %4128 = vmatmul.mubr.f32.gmra.mrb[0].mxu0 %v3953
      %v4129 = vpop.f32.mrb[0].mxu0
      %v4130 = vadd.f32 %v3932, %v4129
      %v4131 = vpop.f32.mrb[0].mxu0
      %4132 = vmatprep.mubr.f32.mxu0 0.0
      %4133 = vmatmul.mubr.f32.gmra.mrb[0].mxu0 %v3956
      %v4134 = vpop.f32.mrb[0].mxu0
      %v4135 = vadd.f32 %v3932, %v4134
      %v4136 = vpop.f32.mrb[0].mxu0
      %4137 = vmatprep.mubr.f32.mxu0 0.0
      %4138 = vmatmul.mubr.f32.gmra.mrb[0].mxu0 %v3959
      %v4139 = vpop.f32.mrb[0].mxu0
      %v4140 = vadd.f32 %v3932, %v4139
      %v4141 = vpop.f32.mrb[0].mxu0
      %4142 = vmatprep.mubr.f32.mxu0 0.0
      %4143 = vmatmul.mubr.f32.gmra.mrb[0].mxu0 %v3962
      %v4144 = vpop.f32.mrb[0].mxu0
      %v4145 = vadd.f32 %v3932, %v4144
      %v4146 = vpop.f32.mrb[0].mxu0
      %4147 = vmatprep.mubr.f32.mxu0 0.0
      %4148 = vmatmul.mubr.f32.gmra.mrb[0].mxu0 %v3965
      %v4149 = vpop.f32.mrb[0].mxu0
      %v4150 = vadd.f32 %v3932, %v4149
      %v4151 = vpop.f32.mrb[0].mxu0
      %4152 = vmatprep.mubr.f32.mxu0 0.0
      %4153 = vmatmul.mubr.f32.gmra.mrb[0].mxu0 %v3968
      %v4154 = vpop.f32.mrb[0].mxu0
      %v4155 = vadd.f32 %v3932, %v4154
      %v4156 = vpop.f32.mrb[0].mxu0
      %4157 = vmatprep.mubr.f32.mxu0 0.0
      %4158 = vmatmul.mubr.f32.gmra.mrb[0].mxu0 %v3971
      %v4159 = vpop.f32.mrb[0].mxu0
      %v4160 = vadd.f32 %v3932, %v4159
      %v4161 = vpop.f32.mrb[0].mxu0
      %4162 = vmatprep.mubr.f32.mxu0 0.0
      %4163 = vmatmul.mubr.f32.gmra.mrb[0].mxu0 %v3974
      %v4164 = vpop.f32.mrb[0].mxu0
      %v4165 = vadd.f32 %v3932, %v4164
      %v4166 = vpop.f32.mrb[0].mxu0
      %4167 = vmatprep.mubr.f32.mxu0 0.0
      %4168 = vmatmul.mubr.f32.gmra.mrb[0].mxu0 %v3977
      %v4169 = vpop.f32.mrb[0].mxu0
      %v4170 = vadd.f32 %v3932, %v4169
      %v4171 = vpop.f32.mrb[0].mxu0
      %4172 = vmatprep.mubr.f32.mxu0 0.0
      %4173 = vmatmul.mubr.f32.gmra.mrb[0].mxu0 %v3980
      %v4174 = vpop.f32.mrb[0].mxu0
      %v4175 = vadd.f32 %v3932, %v4174
      %v4176 = vpop.f32.mrb[0].mxu0
      %4177 = vmatprep.mubr.f32.mxu0 0.0
      %4178 = vmatmul.mubr.f32.gmra.mrb[0].mxu0 %v3983
      %v4179 = vpop.f32.mrb[0].mxu0
      %v4180 = vadd.f32 %v3932, %v4179
      %v4181 = vpop.f32.mrb[0].mxu0
      %4182 = vmatprep.mubr.f32.mxu0 0.0
      %4183 = vmatmul.mubr.f32.gmra.mrb[0].mxu0 %v3986
      %v4184 = vpop.f32.mrb[0].mxu0
      %v4185 = vadd.f32 %v3932, %v4184
      %v4186 = vpop.f32.mrb[0].mxu0
      %4187 = vmatprep.mubr.f32.mxu0 0.0
      %4188 = vmatmul.mubr.f32.gmra.mrb[0].mxu0 %v3989
      %v4189 = vpop.f32.mrb[0].mxu0
      %v4190 = vadd.f32 %v3932, %v4189
      %v4191 = vpop.f32.mrb[0].mxu0
      %4192 = vmatprep.mubr.f32.mxu0 0.0
      %4193 = vmatmul.mubr.f32.gmra.mrb[0].mxu0 %v3992
      %v4194 = vpop.f32.mrb[0].mxu0
      %v4195 = vadd.f32 %v3932, %v4194
      %v4196 = vpop.f32.mrb[0].mxu0
      %4197 = vmatprep.mubr.f32.mxu0 0.0
      %4198 = vmatmul.mubr.f32.gmra.mrb[0].mxu0 %v3995
      %v4199 = vpop.f32.mrb[0].mxu0
      %v4200 = vadd.f32 %v3932, %v4199
      %v4201 = vpop.f32.mrb[0].mxu0
      %4202 = vmatprep.mubr.f32.mxu0 0.0
      %4203 = vmatmul.mubr.f32.gmra.mrb[0].mxu0 %v3998
      %v4204 = vpop.f32.mrb[0].mxu0
      %v4205 = vadd.f32 %v3932, %v4204
      %v4206 = vpop.f32.mrb[0].mxu0
      %4207 = vmatprep.mubr.f32.mxu0 0.0
      %4208 = vmatmul.mubr.f32.gmra.mrb[0].mxu0 %v4001
      %v4209 = vpop.f32.mrb[0].mxu0
      %v4210 = vadd.f32 %v3932, %v4209
      %v4211 = vpop.f32.mrb[0].mxu0
      %4212 = vmatprep.mubr.f32.mxu0 0.0
      %4213 = vmatmul.mubr.f32.gmra.mrb[0].mxu0 %v4004
      %v4214 = vpop.f32.mrb[0].mxu0
      %v4215 = vadd.f32 %v3932, %v4214
      %v4216 = vpop.f32.mrb[0].mxu0
      %4217 = vmatprep.mubr.f32.mxu0 0.0
      %4218 = vmatmul.mubr.f32.gmra.mrb[0].mxu0 %v4007
      %v4219 = vpop.f32.mrb[0].mxu0
      %v4220 = vadd.f32 %v3932, %v4219
      %v4221 = vpop.f32.mrb[0].mxu0
      %4222 = vmatprep.mubr.f32.mxu0 0.0
      %4223 = vmatmul.mubr.f32.gmra.mrb[0].mxu0 %v4010
      %v4224 = vpop.f32.mrb[0].mxu0
      %v4225 = vadd.f32 %v3932, %v4224
      %v4226 = vpop.f32.mrb[0].mxu0
      %4227 = vmatprep.mubr.f32.mxu0 0.0
      %4228 = vmatmul.mubr.f32.gmra.mrb[0].mxu0 %v4013
      %v4229 = vpop.f32.mrb[0].mxu0
      %v4230 = vadd.f32 %v3932, %v4229
      %v4231 = vpop.f32.mrb[0].mxu0
      %4232 = vmatprep.mubr.f32.mxu0 0.0
      %4233 = vmatmul.mubr.f32.gmra.mrb[0].mxu0 %v4016
      %v4234 = vpop.f32.mrb[0].mxu0
      %v4235 = vadd.f32 %v3932, %v4234
      %v4236 = vpop.f32.mrb[0].mxu0
      %4237 = vmatprep.mubr.f32.mxu0 0.0
      %4238 = vmatmul.mubr.f32.gmra.mrb[0].mxu0 %v4019
      %v4239 = vpop.f32.mrb[0].mxu0
      %v4240 = vadd.f32 %v3932, %v4239
      %v4241 = vpop.f32.mrb[0].mxu0
      %4242 = vmatprep.mubr.f32.mxu0 0.0
      %4243 = vmatmul.mubr.f32.gmra.mrb[0].mxu0 %v4022
      %v4244 = vpop.f32.mrb[0].mxu0
      %v4245 = vadd.f32 %v3932, %v4244
      %v4246 = vpop.f32.mrb[0].mxu0
      %4247 = vmatprep.mubr.f32.mxu0 0.0
      %4248 = vmatmul.mubr.f32.gmra.mrb[0].mxu0 %v4025
      %v4249 = vpop.f32.mrb[0].mxu0
      %v4250 = vadd.f32 %v3932, %v4249
      %v4251 = vpop.f32.mrb[0].mxu0
      %4252 = vmatprep.mubr.f32.mxu0 0.0
      %4253 = vmatmul.mubr.f32.gmra.mrb[0].mxu0 %v4028
      %v4254 = vpop.f32.mrb[0].mxu0
      %v4255 = vadd.f32 %v3932, %v4254
      %v4256 = vpop.f32.mrb[0].mxu0
      %4257 = vdwg.mxu0
      %vm4258 = vcmp.ge.f32.partialorder %v4100, 0.0
      %vm4259 = vcmp.ge.f32.partialorder %v4105, 0.0
      %vm4260 = vcmp.ge.f32.partialorder %v4110, 0.0
      %vm4261 = vcmp.ge.f32.partialorder %v4115, 0.0
      %vm4262 = vcmp.ge.f32.partialorder %v4120, 0.0
      %vm4263 = vcmp.ge.f32.partialorder %v4125, 0.0
      %vm4264 = vcmp.ge.f32.partialorder %v4130, 0.0
      %vm4265 = vcmp.ge.f32.partialorder %v4135, 0.0
      %vm4266 = vcmp.ge.f32.partialorder %v4140, 0.0
      %vm4267 = vcmp.ge.f32.partialorder %v4145, 0.0
      %vm4268 = vcmp.ge.f32.partialorder %v4150, 0.0
      %vm4269 = vcmp.ge.f32.partialorder %v4155, 0.0
      %vm4270 = vcmp.ge.f32.partialorder %v4160, 0.0
      %vm4271 = vcmp.ge.f32.partialorder %v4165, 0.0
      %vm4272 = vcmp.ge.f32.partialorder %v4170, 0.0
      %vm4273 = vcmp.ge.f32.partialorder %v4175, 0.0
      %vm4274 = vcmp.ge.f32.partialorder %v4180, 0.0
      %vm4275 = vcmp.ge.f32.partialorder %v4185, 0.0
      %vm4276 = vcmp.ge.f32.partialorder %v4190, 0.0
      %vm4277 = vcmp.ge.f32.partialorder %v4195, 0.0
      %vm4278 = vcmp.ge.f32.partialorder %v4200, 0.0
      %vm4279 = vcmp.ge.f32.partialorder %v4205, 0.0
      %vm4280 = vcmp.ge.f32.partialorder %v4210, 0.0
      %vm4281 = vcmp.ge.f32.partialorder %v4215, 0.0
      %vm4282 = vcmp.ge.f32.partialorder %v4220, 0.0
      %vm4283 = vcmp.ge.f32.partialorder %v4225, 0.0
      %vm4284 = vcmp.ge.f32.partialorder %v4230, 0.0
      %vm4285 = vcmp.ge.f32.partialorder %v4235, 0.0
      %vm4286 = vcmp.ge.f32.partialorder %v4240, 0.0
      %vm4287 = vcmp.ge.f32.partialorder %v4245, 0.0
      %vm4288 = vcmp.ge.f32.partialorder %v4250, 0.0
      %vm4289 = vcmp.ge.f32.partialorder %v4255, 0.0
      %v4290 = vmul.f32 %v4100, 0.2
      %v4291 = vmul.f32 %v4105, 0.2
      %v4292 = vmul.f32 %v4110, 0.2
      %v4293 = vmul.f32 %v4115, 0.2
      %v4294 = vmul.f32 %v4120, 0.2
      %v4295 = vmul.f32 %v4125, 0.2
      %v4296 = vmul.f32 %v4130, 0.2
      %v4297 = vmul.f32 %v4135, 0.2
      %v4298 = vmul.f32 %v4140, 0.2
      %v4299 = vmul.f32 %v4145, 0.2
      %v4300 = vmul.f32 %v4150, 0.2
      %v4301 = vmul.f32 %v4155, 0.2
      %v4302 = vmul.f32 %v4160, 0.2
      %v4303 = vmul.f32 %v4165, 0.2
      %v4304 = vmul.f32 %v4170, 0.2
      %v4305 = vmul.f32 %v4175, 0.2
      %v4306 = vmul.f32 %v4180, 0.2
      %v4307 = vmul.f32 %v4185, 0.2
      %v4308 = vmul.f32 %v4190, 0.2
      %v4309 = vmul.f32 %v4195, 0.2
      %v4310 = vmul.f32 %v4200, 0.2
      %v4311 = vmul.f32 %v4205, 0.2
      %v4312 = vmul.f32 %v4210, 0.2
      %v4313 = vmul.f32 %v4215, 0.2
      %v4314 = vmul.f32 %v4220, 0.2
      %v4315 = vmul.f32 %v4225, 0.2
      %v4316 = vmul.f32 %v4230, 0.2
      %v4317 = vmul.f32 %v4235, 0.2
      %v4318 = vmul.f32 %v4240, 0.2
      %v4319 = vmul.f32 %v4245, 0.2
      %v4320 = vmul.f32 %v4250, 0.2
      %v4321 = vmul.f32 %v4255, 0.2
      %v4322 = vsel %vm4258, %v4100, %v4290
      %v4323 = vsel %vm4259, %v4105, %v4291
      %v4324 = vsel %vm4260, %v4110, %v4292
      %v4325 = vsel %vm4261, %v4115, %v4293
      %v4326 = vsel %vm4262, %v4120, %v4294
      %v4327 = vsel %vm4263, %v4125, %v4295
      %v4328 = vsel %vm4264, %v4130, %v4296
      %v4329 = vsel %vm4265, %v4135, %v4297
      %v4330 = vsel %vm4266, %v4140, %v4298
      %v4331 = vsel %vm4267, %v4145, %v4299
      %v4332 = vsel %vm4268, %v4150, %v4300
      %v4333 = vsel %vm4269, %v4155, %v4301
      %v4334 = vsel %vm4270, %v4160, %v4302
      %v4335 = vsel %vm4271, %v4165, %v4303
      %v4336 = vsel %vm4272, %v4170, %v4304
      %v4337 = vsel %vm4273, %v4175, %v4305
      %v4338 = vsel %vm4274, %v4180, %v4306
      %v4339 = vsel %vm4275, %v4185, %v4307
      %v4340 = vsel %vm4276, %v4190, %v4308
      %v4341 = vsel %vm4277, %v4195, %v4309
      %v4342 = vsel %vm4278, %v4200, %v4310
      %v4343 = vsel %vm4279, %v4205, %v4311
      %v4344 = vsel %vm4280, %v4210, %v4312
      %v4345 = vsel %vm4281, %v4215, %v4313
      %v4346 = vsel %vm4282, %v4220, %v4314
      %v4347 = vsel %vm4283, %v4225, %v4315
      %v4348 = vsel %vm4284, %v4230, %v4316
      %v4349 = vsel %vm4285, %v4235, %v4317
      %v4350 = vsel %vm4286, %v4240, %v4318
      %v4351 = vsel %vm4287, %v4245, %v4319
      %v4352 = vsel %vm4288, %v4250, %v4320
      %v4353 = vsel %vm4289, %v4255, %v4321
      %v4354 = vld [vmem:[%s9] sm:$0xf]
      %v4356 = vsel %vm1477, %v4322, 0
      %v4359 = vsel %vm1477, %v4323, 0
      %v4362 = vsel %vm1477, %v4324, 0
      %v4365 = vsel %vm1477, %v4325, 0
      %v4368 = vsel %vm1477, %v4326, 0
      %v4371 = vsel %vm1477, %v4327, 0
      %v4374 = vsel %vm1477, %v4328, 0
      %v4377 = vsel %vm1477, %v4329, 0
      %v4380 = vsel %vm1477, %v4330, 0
      %v4383 = vsel %vm1477, %v4331, 0
      %v4386 = vsel %vm1477, %v4332, 0
      %v4389 = vsel %vm1477, %v4333, 0
      %v4392 = vsel %vm1477, %v4334, 0
      %v4395 = vsel %vm1477, %v4335, 0
      %v4398 = vsel %vm1477, %v4336, 0
      %v4401 = vsel %vm1477, %v4337, 0
      %v4404 = vsel %vm1477, %v4338, 0
      %v4407 = vsel %vm1477, %v4339, 0
      %v4410 = vsel %vm1477, %v4340, 0
      %v4413 = vsel %vm1477, %v4341, 0
      %v4416 = vsel %vm1477, %v4342, 0
      %v4419 = vsel %vm1477, %v4343, 0
      %v4422 = vsel %vm1477, %v4344, 0
      %v4425 = vsel %vm1477, %v4345, 0
      %v4428 = vsel %vm1477, %v4346, 0
      %v4431 = vsel %vm1477, %v4347, 0
      %v4434 = vsel %vm1477, %v4348, 0
      %v4437 = vsel %vm1477, %v4349, 0
      %v4440 = vsel %vm1477, %v4350, 0
      %v4443 = vsel %vm1477, %v4351, 0
      %v4446 = vsel %vm1477, %v4352, 0
      %v4449 = vsel %vm1477, %v4353, 0
      %v4452 = vsel %vm1850, %v4354, 0
      %4454 = vmatprep.subr.mxu0 0.0
      %4455 = vmatpush1.msra.mxu0 %v4452
      %4456 = vmatprep.subr.mxu0 0.0
      %4457 = vmatpush1.msra.mxu0 0.0
      %4458 = vmatprep.subr.mxu0 0.0
      %4459 = vmatpush1.msra.mxu0 0.0
      %4460 = vmatprep.subr.mxu0 0.0
      %4461 = vmatpush1.msra.mxu0 0.0
      %4462 = vmatprep.subr.mxu0 0.0
      %4463 = vmatpush1.msra.mxu0 0.0
      %4464 = vmatprep.subr.mxu0 0.0
      %4465 = vmatpush1.msra.mxu0 0.0
      %4466 = vmatprep.subr.mxu0 0.0
      %4467 = vmatpush1.msra.mxu0 0.0
      %4468 = vmatprep.subr.mxu0 0.0
      %4469 = vmatpush1.msra.mxu0 0.0
      %4470 = vmatprep.subr.mxu0 0.0
      %4471 = vmatpush1.msra.mxu0 0.0
      %4472 = vmatprep.subr.mxu0 0.0
      %4473 = vmatpush1.msra.mxu0 0.0
      %4474 = vmatprep.subr.mxu0 0.0
      %4475 = vmatpush1.msra.mxu0 0.0
      %4476 = vmatprep.subr.mxu0 0.0
      %4477 = vmatpush1.msra.mxu0 0.0
      %4478 = vmatprep.subr.mxu0 0.0
      %4479 = vmatpush1.msra.mxu0 0.0
      %4480 = vmatprep.subr.mxu0 0.0
      %4481 = vmatpush1.msra.mxu0 0.0
      %4482 = vmatprep.subr.mxu0 0.0
      %4483 = vmatpush1.msra.mxu0 0.0
      %4484 = vmatprep.subr.mxu0 0.0
      %4485 = vmatpush1.msra.mxu0 0.0
      %4486 = vmatprep.subr.mxu0 0.0
      %4487 = vmatpush1.msra.mxu0 0.0
      %4488 = vmatprep.subr.mxu0 0.0
      %4489 = vmatpush1.msra.mxu0 0.0
      %4490 = vmatprep.subr.mxu0 0.0
      %4491 = vmatpush1.msra.mxu0 0.0
      %4492 = vmatprep.subr.mxu0 0.0
      %4493 = vmatpush1.msra.mxu0 0.0
      %4494 = vmatprep.subr.mxu0 0.0
      %4495 = vmatpush1.msra.mxu0 0.0
      %4496 = vmatprep.subr.mxu0 0.0
      %4497 = vmatpush1.msra.mxu0 0.0
      %4498 = vmatprep.subr.mxu0 0.0
      %4499 = vmatpush1.msra.mxu0 0.0
      %4500 = vmatprep.subr.mxu0 0.0
      %4501 = vmatpush1.msra.mxu0 0.0
      %4502 = vmatprep.subr.mxu0 0.0
      %4503 = vmatpush1.msra.mxu0 0.0
      %4504 = vmatprep.subr.mxu0 0.0
      %4505 = vmatpush1.msra.mxu0 0.0
      %4506 = vmatprep.subr.mxu0 0.0
      %4507 = vmatpush1.msra.mxu0 0.0
      %4508 = vmatprep.subr.mxu0 0.0
      %4509 = vmatpush1.msra.mxu0 0.0
      %4510 = vmatprep.subr.mxu0 0.0
      %4511 = vmatpush1.msra.mxu0 0.0
      %4512 = vmatprep.subr.mxu0 0.0
      %4513 = vmatpush1.msra.mxu0 0.0
      %4514 = vmatprep.subr.mxu0 0.0
      %4515 = vmatpush1.msra.mxu0 0.0
      %4516 = vmatprep.subr.mxu0 0.0
      %4517 = vmatpush1.msra.mxu0 0.0
      %4518 = vmatprep.mubr.f32.mxu0 0.0
      %4519 = vmatmul.mubr.f32.gmra.mrb[0].mxu0 %v4356
      %v4520 = vpop.f32.mrb[0].mxu0
      %v4521 = vadd.f32 0.0, %v4520
      %v4522 = vpop.f32.mrb[0].mxu0
      %4523 = vmatprep.mubr.f32.mxu0 0.0
      %4524 = vmatmul.mubr.f32.gmra.mrb[0].mxu0 %v4359
      %v4525 = vpop.f32.mrb[0].mxu0
      %v4526 = vadd.f32 0.0, %v4525
      %v4527 = vpop.f32.mrb[0].mxu0
      %4528 = vmatprep.mubr.f32.mxu0 0.0
      %4529 = vmatmul.mubr.f32.gmra.mrb[0].mxu0 %v4362
      %v4530 = vpop.f32.mrb[0].mxu0
      %v4531 = vadd.f32 0.0, %v4530
      %v4532 = vpop.f32.mrb[0].mxu0
      %4533 = vmatprep.mubr.f32.mxu0 0.0
      %4534 = vmatmul.mubr.f32.gmra.mrb[0].mxu0 %v4365
      %v4535 = vpop.f32.mrb[0].mxu0
      %v4536 = vadd.f32 0.0, %v4535
      %v4537 = vpop.f32.mrb[0].mxu0
      %4538 = vmatprep.mubr.f32.mxu0 0.0
      %4539 = vmatmul.mubr.f32.gmra.mrb[0].mxu0 %v4368
      %v4540 = vpop.f32.mrb[0].mxu0
      %v4541 = vadd.f32 0.0, %v4540
      %v4542 = vpop.f32.mrb[0].mxu0
      %4543 = vmatprep.mubr.f32.mxu0 0.0
      %4544 = vmatmul.mubr.f32.gmra.mrb[0].mxu0 %v4371
      %v4545 = vpop.f32.mrb[0].mxu0
      %v4546 = vadd.f32 0.0, %v4545
      %v4547 = vpop.f32.mrb[0].mxu0
      %4548 = vmatprep.mubr.f32.mxu0 0.0
      %4549 = vmatmul.mubr.f32.gmra.mrb[0].mxu0 %v4374
      %v4550 = vpop.f32.mrb[0].mxu0
      %v4551 = vadd.f32 0.0, %v4550
      %v4552 = vpop.f32.mrb[0].mxu0
      %4553 = vmatprep.mubr.f32.mxu0 0.0
      %4554 = vmatmul.mubr.f32.gmra.mrb[0].mxu0 %v4377
      %v4555 = vpop.f32.mrb[0].mxu0
      %v4556 = vadd.f32 0.0, %v4555
      %v4557 = vpop.f32.mrb[0].mxu0
      %4558 = vmatprep.mubr.f32.mxu0 0.0
      %4559 = vmatmul.mubr.f32.gmra.mrb[0].mxu0 %v4380
      %v4560 = vpop.f32.mrb[0].mxu0
      %v4561 = vadd.f32 0.0, %v4560
      %v4562 = vpop.f32.mrb[0].mxu0
      %4563 = vmatprep.mubr.f32.mxu0 0.0
      %4564 = vmatmul.mubr.f32.gmra.mrb[0].mxu0 %v4383
      %v4565 = vpop.f32.mrb[0].mxu0
      %v4566 = vadd.f32 0.0, %v4565
      %v4567 = vpop.f32.mrb[0].mxu0
      %4568 = vmatprep.mubr.f32.mxu0 0.0
      %4569 = vmatmul.mubr.f32.gmra.mrb[0].mxu0 %v4386
      %v4570 = vpop.f32.mrb[0].mxu0
      %v4571 = vadd.f32 0.0, %v4570
      %v4572 = vpop.f32.mrb[0].mxu0
      %4573 = vmatprep.mubr.f32.mxu0 0.0
      %4574 = vmatmul.mubr.f32.gmra.mrb[0].mxu0 %v4389
      %v4575 = vpop.f32.mrb[0].mxu0
      %v4576 = vadd.f32 0.0, %v4575
      %v4577 = vpop.f32.mrb[0].mxu0
      %4578 = vmatprep.mubr.f32.mxu0 0.0
      %4579 = vmatmul.mubr.f32.gmra.mrb[0].mxu0 %v4392
      %v4580 = vpop.f32.mrb[0].mxu0
      %v4581 = vadd.f32 0.0, %v4580
      %v4582 = vpop.f32.mrb[0].mxu0
      %4583 = vmatprep.mubr.f32.mxu0 0.0
      %4584 = vmatmul.mubr.f32.gmra.mrb[0].mxu0 %v4395
      %v4585 = vpop.f32.mrb[0].mxu0
      %v4586 = vadd.f32 0.0, %v4585
      %v4587 = vpop.f32.mrb[0].mxu0
      %4588 = vmatprep.mubr.f32.mxu0 0.0
      %4589 = vmatmul.mubr.f32.gmra.mrb[0].mxu0 %v4398
      %v4590 = vpop.f32.mrb[0].mxu0
      %v4591 = vadd.f32 0.0, %v4590
      %v4592 = vpop.f32.mrb[0].mxu0
      %4593 = vmatprep.mubr.f32.mxu0 0.0
      %4594 = vmatmul.mubr.f32.gmra.mrb[0].mxu0 %v4401
      %v4595 = vpop.f32.mrb[0].mxu0
      %v4596 = vadd.f32 0.0, %v4595
      %v4597 = vpop.f32.mrb[0].mxu0
      %4598 = vmatprep.mubr.f32.mxu0 0.0
      %4599 = vmatmul.mubr.f32.gmra.mrb[0].mxu0 %v4404
      %v4600 = vpop.f32.mrb[0].mxu0
      %v4601 = vadd.f32 0.0, %v4600
      %v4602 = vpop.f32.mrb[0].mxu0
      %4603 = vmatprep.mubr.f32.mxu0 0.0
      %4604 = vmatmul.mubr.f32.gmra.mrb[0].mxu0 %v4407
      %v4605 = vpop.f32.mrb[0].mxu0
      %v4606 = vadd.f32 0.0, %v4605
      %v4607 = vpop.f32.mrb[0].mxu0
      %4608 = vmatprep.mubr.f32.mxu0 0.0
      %4609 = vmatmul.mubr.f32.gmra.mrb[0].mxu0 %v4410
      %v4610 = vpop.f32.mrb[0].mxu0
      %v4611 = vadd.f32 0.0, %v4610
      %v4612 = vpop.f32.mrb[0].mxu0
      %4613 = vmatprep.mubr.f32.mxu0 0.0
      %4614 = vmatmul.mubr.f32.gmra.mrb[0].mxu0 %v4413
      %v4615 = vpop.f32.mrb[0].mxu0
      %v4616 = vadd.f32 0.0, %v4615
      %v4617 = vpop.f32.mrb[0].mxu0
      %4618 = vmatprep.mubr.f32.mxu0 0.0
      %4619 = vmatmul.mubr.f32.gmra.mrb[0].mxu0 %v4416
      %v4620 = vpop.f32.mrb[0].mxu0
      %v4621 = vadd.f32 0.0, %v4620
      %v4622 = vpop.f32.mrb[0].mxu0
      %4623 = vmatprep.mubr.f32.mxu0 0.0
      %4624 = vmatmul.mubr.f32.gmra.mrb[0].mxu0 %v4419
      %v4625 = vpop.f32.mrb[0].mxu0
      %v4626 = vadd.f32 0.0, %v4625
      %v4627 = vpop.f32.mrb[0].mxu0
      %4628 = vmatprep.mubr.f32.mxu0 0.0
      %4629 = vmatmul.mubr.f32.gmra.mrb[0].mxu0 %v4422
      %v4630 = vpop.f32.mrb[0].mxu0
      %v4631 = vadd.f32 0.0, %v4630
      %v4632 = vpop.f32.mrb[0].mxu0
      %4633 = vmatprep.mubr.f32.mxu0 0.0
      %4634 = vmatmul.mubr.f32.gmra.mrb[0].mxu0 %v4425
      %v4635 = vpop.f32.mrb[0].mxu0
      %v4636 = vadd.f32 0.0, %v4635
      %v4637 = vpop.f32.mrb[0].mxu0
      %4638 = vmatprep.mubr.f32.mxu0 0.0
      %4639 = vmatmul.mubr.f32.gmra.mrb[0].mxu0 %v4428
      %v4640 = vpop.f32.mrb[0].mxu0
      %v4641 = vadd.f32 0.0, %v4640
      %v4642 = vpop.f32.mrb[0].mxu0
      %4643 = vmatprep.mubr.f32.mxu0 0.0
      %4644 = vmatmul.mubr.f32.gmra.mrb[0].mxu0 %v4431
      %v4645 = vpop.f32.mrb[0].mxu0
      %v4646 = vadd.f32 0.0, %v4645
      %v4647 = vpop.f32.mrb[0].mxu0
      %4648 = vmatprep.mubr.f32.mxu0 0.0
      %4649 = vmatmul.mubr.f32.gmra.mrb[0].mxu0 %v4434
      %v4650 = vpop.f32.mrb[0].mxu0
      %v4651 = vadd.f32 0.0, %v4650
      %v4652 = vpop.f32.mrb[0].mxu0
      %4653 = vmatprep.mubr.f32.mxu0 0.0
      %4654 = vmatmul.mubr.f32.gmra.mrb[0].mxu0 %v4437
      %v4655 = vpop.f32.mrb[0].mxu0
      %v4656 = vadd.f32 0.0, %v4655
      %v4657 = vpop.f32.mrb[0].mxu0
      %4658 = vmatprep.mubr.f32.mxu0 0.0
      %4659 = vmatmul.mubr.f32.gmra.mrb[0].mxu0 %v4440
      %v4660 = vpop.f32.mrb[0].mxu0
      %v4661 = vadd.f32 0.0, %v4660
      %v4662 = vpop.f32.mrb[0].mxu0
      %4663 = vmatprep.mubr.f32.mxu0 0.0
      %4664 = vmatmul.mubr.f32.gmra.mrb[0].mxu0 %v4443
      %v4665 = vpop.f32.mrb[0].mxu0
      %v4666 = vadd.f32 0.0, %v4665
      %v4667 = vpop.f32.mrb[0].mxu0
      %4668 = vmatprep.mubr.f32.mxu0 0.0
      %4669 = vmatmul.mubr.f32.gmra.mrb[0].mxu0 %v4446
      %v4670 = vpop.f32.mrb[0].mxu0
      %v4671 = vadd.f32 0.0, %v4670
      %v4672 = vpop.f32.mrb[0].mxu0
      %4673 = vmatprep.mubr.f32.mxu0 0.0
      %4674 = vmatmul.mubr.f32.gmra.mrb[0].mxu0 %v4449
      %v4675 = vpop.f32.mrb[0].mxu0
      %v4676 = vadd.f32 0.0, %v4675
      %v4677 = vpop.f32.mrb[0].mxu0
      %4678 = vdwg.mxu0
      %v4679 = vadd.f32 %v2320, %v4521
      %v4680 = vadd.f32 %v2321, %v4526
      %v4681 = vadd.f32 %v2322, %v4531
      %v4682 = vadd.f32 %v2323, %v4536
      %v4683 = vadd.f32 %v2324, %v4541
      %v4684 = vadd.f32 %v2325, %v4546
      %v4685 = vadd.f32 %v2326, %v4551
      %v4686 = vadd.f32 %v2327, %v4556
      %v4687 = vadd.f32 %v2328, %v4561
      %v4688 = vadd.f32 %v2329, %v4566
      %v4689 = vadd.f32 %v2330, %v4571
      %v4690 = vadd.f32 %v2331, %v4576
      %v4691 = vadd.f32 %v2332, %v4581
      %v4692 = vadd.f32 %v2333, %v4586
      %v4693 = vadd.f32 %v2334, %v4591
      %v4694 = vadd.f32 %v2335, %v4596
      %v4695 = vadd.f32 %v2336, %v4601
      %v4696 = vadd.f32 %v2337, %v4606
      %v4697 = vadd.f32 %v2338, %v4611
      %v4698 = vadd.f32 %v2339, %v4616
      %v4699 = vadd.f32 %v2340, %v4621
      %v4700 = vadd.f32 %v2341, %v4626
      %v4701 = vadd.f32 %v2342, %v4631
      %v4702 = vadd.f32 %v2343, %v4636
      %v4703 = vadd.f32 %v2344, %v4641
      %v4704 = vadd.f32 %v2345, %v4646
      %v4705 = vadd.f32 %v2346, %v4651
      %v4706 = vadd.f32 %v2347, %v4656
      %v4707 = vadd.f32 %v2348, %v4661
      %v4708 = vadd.f32 %v2349, %v4666
      %v4709 = vadd.f32 %v2350, %v4671
      %v4710 = vadd.f32 %v2351, %v4676
      %s4711 = scalar_lea.vmem [#allocation2], 64
      %v4712 = vld [vmem:[%s4711 + $0x2] sm:$0xff]
      %v4713 = vld [vmem:[%s4711 + $0xa] sm:$0xff]
      %v4714 = vld [vmem:[%s4711 + $0x22] sm:$0xff]
      %v4715 = vld [vmem:[%s4711 + $0x2a] sm:$0xff]
      %v4716 = vld [vmem:[%s4711 + $0x42] sm:$0xff]
      %v4717 = vld [vmem:[%s4711 + $0x4a] sm:$0xff]
      %v4718 = vld [vmem:[%s4711 + $0x62] sm:$0xff]
      %v4719 = vld [vmem:[%s4711 + $0x6a] sm:$0xff]
      %v4720 = vld [vmem:[%s4711 + $0x82] sm:$0xff]
      %v4721 = vld [vmem:[%s4711 + $0x8a] sm:$0xff]
      %v4722 = vld [vmem:[%s4711 + $0xa2] sm:$0xff]
      %v4723 = vld [vmem:[%s4711 + $0xaa] sm:$0xff]
      %v4724 = vld [vmem:[%s4711 + $0xc2] sm:$0xff]
      %v4725 = vld [vmem:[%s4711 + $0xca] sm:$0xff]
      %v4726 = vld [vmem:[%s4711 + $0xe2] sm:$0xff]
      %v4727 = vld [vmem:[%s4711 + $0xea] sm:$0xff]
      %v4728 = vld [vmem:[%s4711 + $0x102] sm:$0xff]
      %v4729 = vld [vmem:[%s4711 + $0x10a] sm:$0xff]
      %v4730 = vld [vmem:[%s4711 + $0x122] sm:$0xff]
      %v4731 = vld [vmem:[%s4711 + $0x12a] sm:$0xff]
      %v4732 = vld [vmem:[%s4711 + $0x142] sm:$0xff]
      %v4733 = vld [vmem:[%s4711 + $0x14a] sm:$0xff]
      %v4734 = vld [vmem:[%s4711 + $0x162] sm:$0xff]
      %v4735 = vld [vmem:[%s4711 + $0x16a] sm:$0xff]
      %v4736 = vld [vmem:[%s4711 + $0x182] sm:$0xff]
      %v4737 = vld [vmem:[%s4711 + $0x18a] sm:$0xff]
      %v4738 = vld [vmem:[%s4711 + $0x1a2] sm:$0xff]
      %v4739 = vld [vmem:[%s4711 + $0x1aa] sm:$0xff]
      %v4740 = vld [vmem:[%s4711 + $0x1c2] sm:$0xff]
      %v4741 = vld [vmem:[%s4711 + $0x1ca] sm:$0xff]
      %v4742 = vld [vmem:[%s4711 + $0x1e2] sm:$0xff]
      %v4743 = vld [vmem:[%s4711 + $0x1ea] sm:$0xff]
      %v4744 = vld [vmem:[%s4711 + $0x5] sm:$0xff]
      %v4745 = vld [vmem:[%s4711 + $0xd] sm:$0xff]
      %v4746 = vld [vmem:[%s4711 + $0x25] sm:$0xff]
      %v4747 = vld [vmem:[%s4711 + $0x2d] sm:$0xff]
      %v4748 = vld [vmem:[%s4711 + $0x45] sm:$0xff]
      %v4749 = vld [vmem:[%s4711 + $0x4d] sm:$0xff]
      %v4750 = vld [vmem:[%s4711 + $0x65] sm:$0xff]
      %v4751 = vld [vmem:[%s4711 + $0x6d] sm:$0xff]
      %v4752 = vld [vmem:[%s4711 + $0x85] sm:$0xff]
      %v4753 = vld [vmem:[%s4711 + $0x8d] sm:$0xff]
      %v4754 = vld [vmem:[%s4711 + $0xa5] sm:$0xff]
      %v4755 = vld [vmem:[%s4711 + $0xad] sm:$0xff]
      %v4756 = vld [vmem:[%s4711 + $0xc5] sm:$0xff]
      %v4757 = vld [vmem:[%s4711 + $0xcd] sm:$0xff]
      %v4758 = vld [vmem:[%s4711 + $0xe5] sm:$0xff]
      %v4759 = vld [vmem:[%s4711 + $0xed] sm:$0xff]
      %v4760 = vld [vmem:[%s4711 + $0x105] sm:$0xff]
      %v4761 = vld [vmem:[%s4711 + $0x10d] sm:$0xff]
      %v4762 = vld [vmem:[%s4711 + $0x125] sm:$0xff]
      %v4763 = vld [vmem:[%s4711 + $0x12d] sm:$0xff]
      %v4764 = vld [vmem:[%s4711 + $0x145] sm:$0xff]
      %v4765 = vld [vmem:[%s4711 + $0x14d] sm:$0xff]
      %v4766 = vld [vmem:[%s4711 + $0x165] sm:$0xff]
      %v4767 = vld [vmem:[%s4711 + $0x16d] sm:$0xff]
      %v4768 = vld [vmem:[%s4711 + $0x185] sm:$0xff]
      %v4769 = vld [vmem:[%s4711 + $0x18d] sm:$0xff]
      %v4770 = vld [vmem:[%s4711 + $0x1a5] sm:$0xff]
      %v4771 = vld [vmem:[%s4711 + $0x1ad] sm:$0xff]
      %v4772 = vld [vmem:[%s4711 + $0x1c5] sm:$0xff]
      %v4773 = vld [vmem:[%s4711 + $0x1cd] sm:$0xff]
      %v4774 = vld [vmem:[%s4711 + $0x1e5] sm:$0xff]
      %v4775 = vld [vmem:[%s4711 + $0x1ed] sm:$0xff]
      %v4776 = vld [vmem:[%s4711 + $0x8] sm:$0xff]
      %v4777 = vld [vmem:[%s4711 + $0x10] sm:$0xff]
      %v4778 = vld [vmem:[%s4711 + $0x28] sm:$0xff]
      %v4779 = vld [vmem:[%s4711 + $0x30] sm:$0xff]
      %v4780 = vld [vmem:[%s4711 + $0x48] sm:$0xff]
      %v4781 = vld [vmem:[%s4711 + $0x50] sm:$0xff]
      %v4782 = vld [vmem:[%s4711 + $0x68] sm:$0xff]
      %v4783 = vld [vmem:[%s4711 + $0x70] sm:$0xff]
      %v4784 = vld [vmem:[%s4711 + $0x88] sm:$0xff]
      %v4785 = vld [vmem:[%s4711 + $0x90] sm:$0xff]
      %v4786 = vld [vmem:[%s4711 + $0xa8] sm:$0xff]
      %v4787 = vld [vmem:[%s4711 + $0xb0] sm:$0xff]
      %v4788 = vld [vmem:[%s4711 + $0xc8] sm:$0xff]
      %v4789 = vld [vmem:[%s4711 + $0xd0] sm:$0xff]
      %v4790 = vld [vmem:[%s4711 + $0xe8] sm:$0xff]
      %v4791 = vld [vmem:[%s4711 + $0xf0] sm:$0xff]
      %v4792 = vld [vmem:[%s4711 + $0x108] sm:$0xff]
      %v4793 = vld [vmem:[%s4711 + $0x110] sm:$0xff]
      %v4794 = vld [vmem:[%s4711 + $0x128] sm:$0xff]
      %v4795 = vld [vmem:[%s4711 + $0x130] sm:$0xff]
      %v4796 = vld [vmem:[%s4711 + $0x148] sm:$0xff]
      %v4797 = vld [vmem:[%s4711 + $0x150] sm:$0xff]
      %v4798 = vld [vmem:[%s4711 + $0x168] sm:$0xff]
      %v4799 = vld [vmem:[%s4711 + $0x170] sm:$0xff]
      %v4800 = vld [vmem:[%s4711 + $0x188] sm:$0xff]
      %v4801 = vld [vmem:[%s4711 + $0x190] sm:$0xff]
      %v4802 = vld [vmem:[%s4711 + $0x1a8] sm:$0xff]
      %v4803 = vld [vmem:[%s4711 + $0x1b0] sm:$0xff]
      %v4804 = vld [vmem:[%s4711 + $0x1c8] sm:$0xff]
      %v4805 = vld [vmem:[%s4711 + $0x1d0] sm:$0xff]
      %v4806 = vld [vmem:[%s4711 + $0x1e8] sm:$0xff]
      %v4807 = vld [vmem:[%s4711 + $0x1f0] sm:$0xff]
      %v4808 = vld [vmem:[%s2280 + $0x2] sm:$0xff]
      %v4809 = vld [vmem:[%s2280 + $0xa] sm:$0xff]
      %v4810 = vld [vmem:[%s2280 + $0x22] sm:$0xff]
      %v4811 = vld [vmem:[%s2280 + $0x2a] sm:$0xff]
      %v4812 = vld [vmem:[%s2280 + $0x42] sm:$0xff]
      %v4813 = vld [vmem:[%s2280 + $0x4a] sm:$0xff]
      %v4814 = vld [vmem:[%s2280 + $0x62] sm:$0xff]
      %v4815 = vld [vmem:[%s2280 + $0x6a] sm:$0xff]
      %v4816 = vld [vmem:[%s2280 + $0x82] sm:$0xff]
      %v4817 = vld [vmem:[%s2280 + $0x8a] sm:$0xff]
      %v4818 = vld [vmem:[%s2280 + $0xa2] sm:$0xff]
      %v4819 = vld [vmem:[%s2280 + $0xaa] sm:$0xff]
      %v4820 = vld [vmem:[%s2280 + $0xc2] sm:$0xff]
      %v4821 = vld [vmem:[%s2280 + $0xca] sm:$0xff]
      %v4822 = vld [vmem:[%s2280 + $0xe2] sm:$0xff]
      %v4823 = vld [vmem:[%s2280 + $0xea] sm:$0xff]
      %v4824 = vld [vmem:[%s2280 + $0x102] sm:$0xff]
      %v4825 = vld [vmem:[%s2280 + $0x10a] sm:$0xff]
      %v4826 = vld [vmem:[%s2280 + $0x122] sm:$0xff]
      %v4827 = vld [vmem:[%s2280 + $0x12a] sm:$0xff]
      %v4828 = vld [vmem:[%s2280 + $0x142] sm:$0xff]
      %v4829 = vld [vmem:[%s2280 + $0x14a] sm:$0xff]
      %v4830 = vld [vmem:[%s2280 + $0x162] sm:$0xff]
      %v4831 = vld [vmem:[%s2280 + $0x16a] sm:$0xff]
      %v4832 = vld [vmem:[%s2280 + $0x182] sm:$0xff]
      %v4833 = vld [vmem:[%s2280 + $0x18a] sm:$0xff]
      %v4834 = vld [vmem:[%s2280 + $0x1a2] sm:$0xff]
      %v4835 = vld [vmem:[%s2280 + $0x1aa] sm:$0xff]
      %v4836 = vld [vmem:[%s2280 + $0x1c2] sm:$0xff]
      %v4837 = vld [vmem:[%s2280 + $0x1ca] sm:$0xff]
      %v4838 = vld [vmem:[%s2280 + $0x1e2] sm:$0xff]
      %v4839 = vld [vmem:[%s2280 + $0x1ea] sm:$0xff]
      %v4840 = vld [vmem:[%s2280 + $0x8] sm:$0xff]
      %v4841 = vld [vmem:[%s2280 + $0x10] sm:$0xff]
      %v4842 = vld [vmem:[%s2280 + $0x28] sm:$0xff]
      %v4843 = vld [vmem:[%s2280 + $0x30] sm:$0xff]
      %v4844 = vld [vmem:[%s2280 + $0x48] sm:$0xff]
      %v4845 = vld [vmem:[%s2280 + $0x50] sm:$0xff]
      %v4846 = vld [vmem:[%s2280 + $0x68] sm:$0xff]
      %v4847 = vld [vmem:[%s2280 + $0x70] sm:$0xff]
      %v4848 = vld [vmem:[%s2280 + $0x88] sm:$0xff]
      %v4849 = vld [vmem:[%s2280 + $0x90] sm:$0xff]
      %v4850 = vld [vmem:[%s2280 + $0xa8] sm:$0xff]
      %v4851 = vld [vmem:[%s2280 + $0xb0] sm:$0xff]
      %v4852 = vld [vmem:[%s2280 + $0xc8] sm:$0xff]
      %v4853 = vld [vmem:[%s2280 + $0xd0] sm:$0xff]
      %v4854 = vld [vmem:[%s2280 + $0xe8] sm:$0xff]
      %v4855 = vld [vmem:[%s2280 + $0xf0] sm:$0xff]
      %v4856 = vld [vmem:[%s2280 + $0x108] sm:$0xff]
      %v4857 = vld [vmem:[%s2280 + $0x110] sm:$0xff]
      %v4858 = vld [vmem:[%s2280 + $0x128] sm:$0xff]
      %v4859 = vld [vmem:[%s2280 + $0x130] sm:$0xff]
      %v4860 = vld [vmem:[%s2280 + $0x148] sm:$0xff]
      %v4861 = vld [vmem:[%s2280 + $0x150] sm:$0xff]
      %v4862 = vld [vmem:[%s2280 + $0x168] sm:$0xff]
      %v4863 = vld [vmem:[%s2280 + $0x170] sm:$0xff]
      %v4864 = vld [vmem:[%s2280 + $0x188] sm:$0xff]
      %v4865 = vld [vmem:[%s2280 + $0x190] sm:$0xff]
      %v4866 = vld [vmem:[%s2280 + $0x1a8] sm:$0xff]
      %v4867 = vld [vmem:[%s2280 + $0x1b0] sm:$0xff]
      %v4868 = vld [vmem:[%s2280 + $0x1c8] sm:$0xff]
      %v4869 = vld [vmem:[%s2280 + $0x1d0] sm:$0xff]
      %v4870 = vld [vmem:[%s2280 + $0x1e8] sm:$0xff]
      %v4871 = vld [vmem:[%s2280 + $0x1f0] sm:$0xff]
      %s4872 = scalar_lea.vmem [#allocation2], 256
      %v4873 = vld [vmem:[%s4872 + $0x2] sm:$0xff]
      %v4874 = vld [vmem:[%s4872 + $0xa] sm:$0xff]
      %v4875 = vld [vmem:[%s4872 + $0x22] sm:$0xff]
      %v4876 = vld [vmem:[%s4872 + $0x2a] sm:$0xff]
      %v4877 = vld [vmem:[%s4872 + $0x42] sm:$0xff]
      %v4878 = vld [vmem:[%s4872 + $0x4a] sm:$0xff]
      %v4879 = vld [vmem:[%s4872 + $0x62] sm:$0xff]
      %v4880 = vld [vmem:[%s4872 + $0x6a] sm:$0xff]
      %v4881 = vld [vmem:[%s4872 + $0x82] sm:$0xff]
      %v4882 = vld [vmem:[%s4872 + $0x8a] sm:$0xff]
      %v4883 = vld [vmem:[%s4872 + $0xa2] sm:$0xff]
      %v4884 = vld [vmem:[%s4872 + $0xaa] sm:$0xff]
      %v4885 = vld [vmem:[%s4872 + $0xc2] sm:$0xff]
      %v4886 = vld [vmem:[%s4872 + $0xca] sm:$0xff]
      %v4887 = vld [vmem:[%s4872 + $0xe2] sm:$0xff]
      %v4888 = vld [vmem:[%s4872 + $0xea] sm:$0xff]
      %v4889 = vld [vmem:[%s4872 + $0x102] sm:$0xff]
      %v4890 = vld [vmem:[%s4872 + $0x10a] sm:$0xff]
      %v4891 = vld [vmem:[%s4872 + $0x122] sm:$0xff]
      %v4892 = vld [vmem:[%s4872 + $0x12a] sm:$0xff]
      %v4893 = vld [vmem:[%s4872 + $0x142] sm:$0xff]
      %v4894 = vld [vmem:[%s4872 + $0x14a] sm:$0xff]
      %v4895 = vld [vmem:[%s4872 + $0x162] sm:$0xff]
      %v4896 = vld [vmem:[%s4872 + $0x16a] sm:$0xff]
      %v4897 = vld [vmem:[%s4872 + $0x182] sm:$0xff]
      %v4898 = vld [vmem:[%s4872 + $0x18a] sm:$0xff]
      %v4899 = vld [vmem:[%s4872 + $0x1a2] sm:$0xff]
      %v4900 = vld [vmem:[%s4872 + $0x1aa] sm:$0xff]
      %v4901 = vld [vmem:[%s4872 + $0x1c2] sm:$0xff]
      %v4902 = vld [vmem:[%s4872 + $0x1ca] sm:$0xff]
      %v4903 = vld [vmem:[%s4872 + $0x1e2] sm:$0xff]
      %v4904 = vld [vmem:[%s4872 + $0x1ea] sm:$0xff]
      %v4905 = vld [vmem:[%s4872 + $0x5] sm:$0xff]
      %v4906 = vld [vmem:[%s4872 + $0xd] sm:$0xff]
      %v4907 = vld [vmem:[%s4872 + $0x25] sm:$0xff]
      %v4908 = vld [vmem:[%s4872 + $0x2d] sm:$0xff]
      %v4909 = vld [vmem:[%s4872 + $0x45] sm:$0xff]
      %v4910 = vld [vmem:[%s4872 + $0x4d] sm:$0xff]
      %v4911 = vld [vmem:[%s4872 + $0x65] sm:$0xff]
      %v4912 = vld [vmem:[%s4872 + $0x6d] sm:$0xff]
      %v4913 = vld [vmem:[%s4872 + $0x85] sm:$0xff]
      %v4914 = vld [vmem:[%s4872 + $0x8d] sm:$0xff]
      %v4915 = vld [vmem:[%s4872 + $0xa5] sm:$0xff]
      %v4916 = vld [vmem:[%s4872 + $0xad] sm:$0xff]
      %v4917 = vld [vmem:[%s4872 + $0xc5] sm:$0xff]
      %v4918 = vld [vmem:[%s4872 + $0xcd] sm:$0xff]
      %v4919 = vld [vmem:[%s4872 + $0xe5] sm:$0xff]
      %v4920 = vld [vmem:[%s4872 + $0xed] sm:$0xff]
      %v4921 = vld [vmem:[%s4872 + $0x105] sm:$0xff]
      %v4922 = vld [vmem:[%s4872 + $0x10d] sm:$0xff]
      %v4923 = vld [vmem:[%s4872 + $0x125] sm:$0xff]
      %v4924 = vld [vmem:[%s4872 + $0x12d] sm:$0xff]
      %v4925 = vld [vmem:[%s4872 + $0x145] sm:$0xff]
      %v4926 = vld [vmem:[%s4872 + $0x14d] sm:$0xff]
      %v4927 = vld [vmem:[%s4872 + $0x165] sm:$0xff]
      %v4928 = vld [vmem:[%s4872 + $0x16d] sm:$0xff]
      %v4929 = vld [vmem:[%s4872 + $0x185] sm:$0xff]
      %v4930 = vld [vmem:[%s4872 + $0x18d] sm:$0xff]
      %v4931 = vld [vmem:[%s4872 + $0x1a5] sm:$0xff]
      %v4932 = vld [vmem:[%s4872 + $0x1ad] sm:$0xff]
      %v4933 = vld [vmem:[%s4872 + $0x1c5] sm:$0xff]
      %v4934 = vld [vmem:[%s4872 + $0x1cd] sm:$0xff]
      %v4935 = vld [vmem:[%s4872 + $0x1e5] sm:$0xff]
      %v4936 = vld [vmem:[%s4872 + $0x1ed] sm:$0xff]
      %v4937 = vld [vmem:[%s4872 + $0x8] sm:$0xff]
      %v4938 = vld [vmem:[%s4872 + $0x10] sm:$0xff]
      %v4939 = vld [vmem:[%s4872 + $0x28] sm:$0xff]
      %v4940 = vld [vmem:[%s4872 + $0x30] sm:$0xff]
      %v4941 = vld [vmem:[%s4872 + $0x48] sm:$0xff]
      %v4942 = vld [vmem:[%s4872 + $0x50] sm:$0xff]
      %v4943 = vld [vmem:[%s4872 + $0x68] sm:$0xff]
      %v4944 = vld [vmem:[%s4872 + $0x70] sm:$0xff]
      %v4945 = vld [vmem:[%s4872 + $0x88] sm:$0xff]
      %v4946 = vld [vmem:[%s4872 + $0x90] sm:$0xff]
      %v4947 = vld [vmem:[%s4872 + $0xa8] sm:$0xff]
      %v4948 = vld [vmem:[%s4872 + $0xb0] sm:$0xff]
      %v4949 = vld [vmem:[%s4872 + $0xc8] sm:$0xff]
      %v4950 = vld [vmem:[%s4872 + $0xd0] sm:$0xff]
      %v4951 = vld [vmem:[%s4872 + $0xe8] sm:$0xff]
      %v4952 = vld [vmem:[%s4872 + $0xf0] sm:$0xff]
      %v4953 = vld [vmem:[%s4872 + $0x108] sm:$0xff]
      %v4954 = vld [vmem:[%s4872 + $0x110] sm:$0xff]
      %v4955 = vld [vmem:[%s4872 + $0x128] sm:$0xff]
      %v4956 = vld [vmem:[%s4872 + $0x130] sm:$0xff]
      %v4957 = vld [vmem:[%s4872 + $0x148] sm:$0xff]
      %v4958 = vld [vmem:[%s4872 + $0x150] sm:$0xff]
      %v4959 = vld [vmem:[%s4872 + $0x168] sm:$0xff]
      %v4960 = vld [vmem:[%s4872 + $0x170] sm:$0xff]
      %v4961 = vld [vmem:[%s4872 + $0x188] sm:$0xff]
      %v4962 = vld [vmem:[%s4872 + $0x190] sm:$0xff]
      %v4963 = vld [vmem:[%s4872 + $0x1a8] sm:$0xff]
      %v4964 = vld [vmem:[%s4872 + $0x1b0] sm:$0xff]
      %v4965 = vld [vmem:[%s4872 + $0x1c8] sm:$0xff]
      %v4966 = vld [vmem:[%s4872 + $0x1d0] sm:$0xff]
      %v4967 = vld [vmem:[%s4872 + $0x1e8] sm:$0xff]
      %v4968 = vld [vmem:[%s4872 + $0x1f0] sm:$0xff]
      %5001 = vrot.lane.b32.xlu0 %v4744, 4
      %v5002 = vpop.permute.xlu0 %5001
      %5003 = vrot.lane.b32.xlu0 %v4745, 4
      %v5004 = vpop.permute.xlu0 %5003
      %5005 = vrot.lane.b32.xlu0 %v4746, 4
      %v5006 = vpop.permute.xlu0 %5005
      %5007 = vrot.lane.b32.xlu0 %v4747, 4
      %v5008 = vpop.permute.xlu0 %5007
      %5009 = vrot.lane.b32.xlu0 %v4748, 4
      %v5010 = vpop.permute.xlu0 %5009
      %5011 = vrot.lane.b32.xlu0 %v4749, 4
      %v5012 = vpop.permute.xlu0 %5011
      %5013 = vrot.lane.b32.xlu0 %v4750, 4
      %v5014 = vpop.permute.xlu0 %5013
      %5015 = vrot.lane.b32.xlu0 %v4751, 4
      %v5016 = vpop.permute.xlu0 %5015
      %5017 = vrot.lane.b32.xlu0 %v4752, 4
      %v5018 = vpop.permute.xlu0 %5017
      %5019 = vrot.lane.b32.xlu0 %v4753, 4
      %v5020 = vpop.permute.xlu0 %5019
      %5021 = vrot.lane.b32.xlu0 %v4754, 4
      %v5022 = vpop.permute.xlu0 %5021
      %5023 = vrot.lane.b32.xlu0 %v4755, 4
      %v5024 = vpop.permute.xlu0 %5023
      %5025 = vrot.lane.b32.xlu0 %v4756, 4
      %v5026 = vpop.permute.xlu0 %5025
      %5027 = vrot.lane.b32.xlu0 %v4757, 4
      %v5028 = vpop.permute.xlu0 %5027
      %5029 = vrot.lane.b32.xlu0 %v4758, 4
      %v5030 = vpop.permute.xlu0 %5029
      %5031 = vrot.lane.b32.xlu0 %v4759, 4
      %v5032 = vpop.permute.xlu0 %5031
      %5033 = vrot.lane.b32.xlu0 %v4760, 4
      %v5034 = vpop.permute.xlu0 %5033
      %5035 = vrot.lane.b32.xlu0 %v4761, 4
      %v5036 = vpop.permute.xlu0 %5035
      %5037 = vrot.lane.b32.xlu0 %v4762, 4
      %v5038 = vpop.permute.xlu0 %5037
      %5039 = vrot.lane.b32.xlu0 %v4763, 4
      %v5040 = vpop.permute.xlu0 %5039
      %5041 = vrot.lane.b32.xlu0 %v4764, 4
      %v5042 = vpop.permute.xlu0 %5041
      %5043 = vrot.lane.b32.xlu0 %v4765, 4
      %v5044 = vpop.permute.xlu0 %5043
      %5045 = vrot.lane.b32.xlu0 %v4766, 4
      %v5046 = vpop.permute.xlu0 %5045
      %5047 = vrot.lane.b32.xlu0 %v4767, 4
      %v5048 = vpop.permute.xlu0 %5047
      %5049 = vrot.lane.b32.xlu0 %v4768, 4
      %v5050 = vpop.permute.xlu0 %5049
      %5051 = vrot.lane.b32.xlu0 %v4769, 4
      %v5052 = vpop.permute.xlu0 %5051
      %5053 = vrot.lane.b32.xlu0 %v4770, 4
      %v5054 = vpop.permute.xlu0 %5053
      %5055 = vrot.lane.b32.xlu0 %v4771, 4
      %v5056 = vpop.permute.xlu0 %5055
      %5057 = vrot.lane.b32.xlu0 %v4772, 4
      %v5058 = vpop.permute.xlu0 %5057
      %5059 = vrot.lane.b32.xlu0 %v4773, 4
      %v5060 = vpop.permute.xlu0 %5059
      %5061 = vrot.lane.b32.xlu0 %v4774, 4
      %v5062 = vpop.permute.xlu0 %5061
      %5063 = vrot.lane.b32.xlu0 %v4775, 4
      %v5064 = vpop.permute.xlu0 %5063
      %5129 = vrot.lane.b32.xlu0 %v4776, 8
      %v5130 = vpop.permute.xlu0 %5129
      %5131 = vrot.lane.b32.xlu0 %v4777, 8
      %v5132 = vpop.permute.xlu0 %5131
      %5133 = vrot.lane.b32.xlu0 %v4778, 8
      %v5134 = vpop.permute.xlu0 %5133
      %5135 = vrot.lane.b32.xlu0 %v4779, 8
      %v5136 = vpop.permute.xlu0 %5135
      %5137 = vrot.lane.b32.xlu0 %v4780, 8
      %v5138 = vpop.permute.xlu0 %5137
      %5139 = vrot.lane.b32.xlu0 %v4781, 8
      %v5140 = vpop.permute.xlu0 %5139
      %5141 = vrot.lane.b32.xlu0 %v4782, 8
      %v5142 = vpop.permute.xlu0 %5141
      %5143 = vrot.lane.b32.xlu0 %v4783, 8
      %v5144 = vpop.permute.xlu0 %5143
      %5145 = vrot.lane.b32.xlu0 %v4784, 8
      %v5146 = vpop.permute.xlu0 %5145
      %5147 = vrot.lane.b32.xlu0 %v4785, 8
      %v5148 = vpop.permute.xlu0 %5147
      %5149 = vrot.lane.b32.xlu0 %v4786, 8
      %v5150 = vpop.permute.xlu0 %5149
      %5151 = vrot.lane.b32.xlu0 %v4787, 8
      %v5152 = vpop.permute.xlu0 %5151
      %5153 = vrot.lane.b32.xlu0 %v4788, 8
      %v5154 = vpop.permute.xlu0 %5153
      %5155 = vrot.lane.b32.xlu0 %v4789, 8
      %v5156 = vpop.permute.xlu0 %5155
      %5157 = vrot.lane.b32.xlu0 %v4790, 8
      %v5158 = vpop.permute.xlu0 %5157
      %5159 = vrot.lane.b32.xlu0 %v4791, 8
      %v5160 = vpop.permute.xlu0 %5159
      %5161 = vrot.lane.b32.xlu0 %v4792, 8
      %v5162 = vpop.permute.xlu0 %5161
      %5163 = vrot.lane.b32.xlu0 %v4793, 8
      %v5164 = vpop.permute.xlu0 %5163
      %5165 = vrot.lane.b32.xlu0 %v4794, 8
      %v5166 = vpop.permute.xlu0 %5165
      %5167 = vrot.lane.b32.xlu0 %v4795, 8
      %v5168 = vpop.permute.xlu0 %5167
      %5169 = vrot.lane.b32.xlu0 %v4796, 8
      %v5170 = vpop.permute.xlu0 %5169
      %5171 = vrot.lane.b32.xlu0 %v4797, 8
      %v5172 = vpop.permute.xlu0 %5171
      %5173 = vrot.lane.b32.xlu0 %v4798, 8
      %v5174 = vpop.permute.xlu0 %5173
      %5175 = vrot.lane.b32.xlu0 %v4799, 8
      %v5176 = vpop.permute.xlu0 %5175
      %5177 = vrot.lane.b32.xlu0 %v4800, 8
      %v5178 = vpop.permute.xlu0 %5177
      %5179 = vrot.lane.b32.xlu0 %v4801, 8
      %v5180 = vpop.permute.xlu0 %5179
      %5181 = vrot.lane.b32.xlu0 %v4802, 8
      %v5182 = vpop.permute.xlu0 %5181
      %5183 = vrot.lane.b32.xlu0 %v4803, 8
      %v5184 = vpop.permute.xlu0 %5183
      %5185 = vrot.lane.b32.xlu0 %v4804, 8
      %v5186 = vpop.permute.xlu0 %5185
      %5187 = vrot.lane.b32.xlu0 %v4805, 8
      %v5188 = vpop.permute.xlu0 %5187
      %5189 = vrot.lane.b32.xlu0 %v4806, 8
      %v5190 = vpop.permute.xlu0 %5189
      %5191 = vrot.lane.b32.xlu0 %v4807, 8
      %v5192 = vpop.permute.xlu0 %5191
      %5257 = vrot.lane.b32.xlu0 %v4808, 12
      %v5258 = vpop.permute.xlu0 %5257
      %5259 = vrot.lane.b32.xlu0 %v4809, 12
      %v5260 = vpop.permute.xlu0 %5259
      %5261 = vrot.lane.b32.xlu0 %v4810, 12
      %v5262 = vpop.permute.xlu0 %5261
      %5263 = vrot.lane.b32.xlu0 %v4811, 12
      %v5264 = vpop.permute.xlu0 %5263
      %5265 = vrot.lane.b32.xlu0 %v4812, 12
      %v5266 = vpop.permute.xlu0 %5265
      %5267 = vrot.lane.b32.xlu0 %v4813, 12
      %v5268 = vpop.permute.xlu0 %5267
      %5269 = vrot.lane.b32.xlu0 %v4814, 12
      %v5270 = vpop.permute.xlu0 %5269
      %5271 = vrot.lane.b32.xlu0 %v4815, 12
      %v5272 = vpop.permute.xlu0 %5271
      %5273 = vrot.lane.b32.xlu0 %v4816, 12
      %v5274 = vpop.permute.xlu0 %5273
      %5275 = vrot.lane.b32.xlu0 %v4817, 12
      %v5276 = vpop.permute.xlu0 %5275
      %5277 = vrot.lane.b32.xlu0 %v4818, 12
      %v5278 = vpop.permute.xlu0 %5277
      %5279 = vrot.lane.b32.xlu0 %v4819, 12
      %v5280 = vpop.permute.xlu0 %5279
      %5281 = vrot.lane.b32.xlu0 %v4820, 12
      %v5282 = vpop.permute.xlu0 %5281
      %5283 = vrot.lane.b32.xlu0 %v4821, 12
      %v5284 = vpop.permute.xlu0 %5283
      %5285 = vrot.lane.b32.xlu0 %v4822, 12
      %v5286 = vpop.permute.xlu0 %5285
      %5287 = vrot.lane.b32.xlu0 %v4823, 12
      %v5288 = vpop.permute.xlu0 %5287
      %5289 = vrot.lane.b32.xlu0 %v4824, 12
      %v5290 = vpop.permute.xlu0 %5289
      %5291 = vrot.lane.b32.xlu0 %v4825, 12
      %v5292 = vpop.permute.xlu0 %5291
      %5293 = vrot.lane.b32.xlu0 %v4826, 12
      %v5294 = vpop.permute.xlu0 %5293
      %5295 = vrot.lane.b32.xlu0 %v4827, 12
      %v5296 = vpop.permute.xlu0 %5295
      %5297 = vrot.lane.b32.xlu0 %v4828, 12
      %v5298 = vpop.permute.xlu0 %5297
      %5299 = vrot.lane.b32.xlu0 %v4829, 12
      %v5300 = vpop.permute.xlu0 %5299
      %5301 = vrot.lane.b32.xlu0 %v4830, 12
      %v5302 = vpop.permute.xlu0 %5301
      %5303 = vrot.lane.b32.xlu0 %v4831, 12
      %v5304 = vpop.permute.xlu0 %5303
      %5305 = vrot.lane.b32.xlu0 %v4832, 12
      %v5306 = vpop.permute.xlu0 %5305
      %5307 = vrot.lane.b32.xlu0 %v4833, 12
      %v5308 = vpop.permute.xlu0 %5307
      %5309 = vrot.lane.b32.xlu0 %v4834, 12
      %v5310 = vpop.permute.xlu0 %5309
      %5311 = vrot.lane.b32.xlu0 %v4835, 12
      %v5312 = vpop.permute.xlu0 %5311
      %5313 = vrot.lane.b32.xlu0 %v4836, 12
      %v5314 = vpop.permute.xlu0 %5313
      %5315 = vrot.lane.b32.xlu0 %v4837, 12
      %v5316 = vpop.permute.xlu0 %5315
      %5317 = vrot.lane.b32.xlu0 %v4838, 12
      %v5318 = vpop.permute.xlu0 %5317
      %5319 = vrot.lane.b32.xlu0 %v4839, 12
      %v5320 = vpop.permute.xlu0 %5319
      %5385 = vrot.lane.b32.xlu0 %v4840, 20
      %v5386 = vpop.permute.xlu0 %5385
      %5387 = vrot.lane.b32.xlu0 %v4841, 20
      %v5388 = vpop.permute.xlu0 %5387
      %5389 = vrot.lane.b32.xlu0 %v4842, 20
      %v5390 = vpop.permute.xlu0 %5389
      %5391 = vrot.lane.b32.xlu0 %v4843, 20
      %v5392 = vpop.permute.xlu0 %5391
      %5393 = vrot.lane.b32.xlu0 %v4844, 20
      %v5394 = vpop.permute.xlu0 %5393
      %5395 = vrot.lane.b32.xlu0 %v4845, 20
      %v5396 = vpop.permute.xlu0 %5395
      %5397 = vrot.lane.b32.xlu0 %v4846, 20
      %v5398 = vpop.permute.xlu0 %5397
      %5399 = vrot.lane.b32.xlu0 %v4847, 20
      %v5400 = vpop.permute.xlu0 %5399
      %5401 = vrot.lane.b32.xlu0 %v4848, 20
      %v5402 = vpop.permute.xlu0 %5401
      %5403 = vrot.lane.b32.xlu0 %v4849, 20
      %v5404 = vpop.permute.xlu0 %5403
      %5405 = vrot.lane.b32.xlu0 %v4850, 20
      %v5406 = vpop.permute.xlu0 %5405
      %5407 = vrot.lane.b32.xlu0 %v4851, 20
      %v5408 = vpop.permute.xlu0 %5407
      %5409 = vrot.lane.b32.xlu0 %v4852, 20
      %v5410 = vpop.permute.xlu0 %5409
      %5411 = vrot.lane.b32.xlu0 %v4853, 20
      %v5412 = vpop.permute.xlu0 %5411
      %5413 = vrot.lane.b32.xlu0 %v4854, 20
      %v5414 = vpop.permute.xlu0 %5413
      %5415 = vrot.lane.b32.xlu0 %v4855, 20
      %v5416 = vpop.permute.xlu0 %5415
      %5417 = vrot.lane.b32.xlu0 %v4856, 20
      %v5418 = vpop.permute.xlu0 %5417
      %5419 = vrot.lane.b32.xlu0 %v4857, 20
      %v5420 = vpop.permute.xlu0 %5419
      %5421 = vrot.lane.b32.xlu0 %v4858, 20
      %v5422 = vpop.permute.xlu0 %5421
      %5423 = vrot.lane.b32.xlu0 %v4859, 20
      %v5424 = vpop.permute.xlu0 %5423
      %5425 = vrot.lane.b32.xlu0 %v4860, 20
      %v5426 = vpop.permute.xlu0 %5425
      %5427 = vrot.lane.b32.xlu0 %v4861, 20
      %v5428 = vpop.permute.xlu0 %5427
      %5429 = vrot.lane.b32.xlu0 %v4862, 20
      %v5430 = vpop.permute.xlu0 %5429
      %5431 = vrot.lane.b32.xlu0 %v4863, 20
      %v5432 = vpop.permute.xlu0 %5431
      %5433 = vrot.lane.b32.xlu0 %v4864, 20
      %v5434 = vpop.permute.xlu0 %5433
      %5435 = vrot.lane.b32.xlu0 %v4865, 20
      %v5436 = vpop.permute.xlu0 %5435
      %5437 = vrot.lane.b32.xlu0 %v4866, 20
      %v5438 = vpop.permute.xlu0 %5437
      %5439 = vrot.lane.b32.xlu0 %v4867, 20
      %v5440 = vpop.permute.xlu0 %5439
      %5441 = vrot.lane.b32.xlu0 %v4868, 20
      %v5442 = vpop.permute.xlu0 %5441
      %5443 = vrot.lane.b32.xlu0 %v4869, 20
      %v5444 = vpop.permute.xlu0 %5443
      %5445 = vrot.lane.b32.xlu0 %v4870, 20
      %v5446 = vpop.permute.xlu0 %5445
      %5447 = vrot.lane.b32.xlu0 %v4871, 20
      %v5448 = vpop.permute.xlu0 %5447
      %5513 = vrot.lane.b32.xlu0 %v4873, 24
      %v5514 = vpop.permute.xlu0 %5513
      %5515 = vrot.lane.b32.xlu0 %v4874, 24
      %v5516 = vpop.permute.xlu0 %5515
      %5517 = vrot.lane.b32.xlu0 %v4875, 24
      %v5518 = vpop.permute.xlu0 %5517
      %5519 = vrot.lane.b32.xlu0 %v4876, 24
      %v5520 = vpop.permute.xlu0 %5519
      %5521 = vrot.lane.b32.xlu0 %v4877, 24
      %v5522 = vpop.permute.xlu0 %5521
      %5523 = vrot.lane.b32.xlu0 %v4878, 24
      %v5524 = vpop.permute.xlu0 %5523
      %5525 = vrot.lane.b32.xlu0 %v4879, 24
      %v5526 = vpop.permute.xlu0 %5525
      %5527 = vrot.lane.b32.xlu0 %v4880, 24
      %v5528 = vpop.permute.xlu0 %5527
      %5529 = vrot.lane.b32.xlu0 %v4881, 24
      %v5530 = vpop.permute.xlu0 %5529
      %5531 = vrot.lane.b32.xlu0 %v4882, 24
      %v5532 = vpop.permute.xlu0 %5531
      %5533 = vrot.lane.b32.xlu0 %v4883, 24
      %v5534 = vpop.permute.xlu0 %5533
      %5535 = vrot.lane.b32.xlu0 %v4884, 24
      %v5536 = vpop.permute.xlu0 %5535
      %5537 = vrot.lane.b32.xlu0 %v4885, 24
      %v5538 = vpop.permute.xlu0 %5537
      %5539 = vrot.lane.b32.xlu0 %v4886, 24
      %v5540 = vpop.permute.xlu0 %5539
      %5541 = vrot.lane.b32.xlu0 %v4887, 24
      %v5542 = vpop.permute.xlu0 %5541
      %5543 = vrot.lane.b32.xlu0 %v4888, 24
      %v5544 = vpop.permute.xlu0 %5543
      %5545 = vrot.lane.b32.xlu0 %v4889, 24
      %v5546 = vpop.permute.xlu0 %5545
      %5547 = vrot.lane.b32.xlu0 %v4890, 24
      %v5548 = vpop.permute.xlu0 %5547
      %5549 = vrot.lane.b32.xlu0 %v4891, 24
      %v5550 = vpop.permute.xlu0 %5549
      %5551 = vrot.lane.b32.xlu0 %v4892, 24
      %v5552 = vpop.permute.xlu0 %5551
      %5553 = vrot.lane.b32.xlu0 %v4893, 24
      %v5554 = vpop.permute.xlu0 %5553
      %5555 = vrot.lane.b32.xlu0 %v4894, 24
      %v5556 = vpop.permute.xlu0 %5555
      %5557 = vrot.lane.b32.xlu0 %v4895, 24
      %v5558 = vpop.permute.xlu0 %5557
      %5559 = vrot.lane.b32.xlu0 %v4896, 24
      %v5560 = vpop.permute.xlu0 %5559
      %5561 = vrot.lane.b32.xlu0 %v4897, 24
      %v5562 = vpop.permute.xlu0 %5561
      %5563 = vrot.lane.b32.xlu0 %v4898, 24
      %v5564 = vpop.permute.xlu0 %5563
      %5565 = vrot.lane.b32.xlu0 %v4899, 24
      %v5566 = vpop.permute.xlu0 %5565
      %5567 = vrot.lane.b32.xlu0 %v4900, 24
      %v5568 = vpop.permute.xlu0 %5567
      %5569 = vrot.lane.b32.xlu0 %v4901, 24
      %v5570 = vpop.permute.xlu0 %5569
      %5571 = vrot.lane.b32.xlu0 %v4902, 24
      %v5572 = vpop.permute.xlu0 %5571
      %5573 = vrot.lane.b32.xlu0 %v4903, 24
      %v5574 = vpop.permute.xlu0 %5573
      %5575 = vrot.lane.b32.xlu0 %v4904, 24
      %v5576 = vpop.permute.xlu0 %5575
      %5641 = vrot.lane.b32.xlu0 %v4905, 28
      %v5642 = vpop.permute.xlu0 %5641
      %5643 = vrot.lane.b32.xlu0 %v4906, 28
      %v5644 = vpop.permute.xlu0 %5643
      %5645 = vrot.lane.b32.xlu0 %v4907, 28
      %v5646 = vpop.permute.xlu0 %5645
      %5647 = vrot.lane.b32.xlu0 %v4908, 28
      %v5648 = vpop.permute.xlu0 %5647
      %5649 = vrot.lane.b32.xlu0 %v4909, 28
      %v5650 = vpop.permute.xlu0 %5649
      %5651 = vrot.lane.b32.xlu0 %v4910, 28
      %v5652 = vpop.permute.xlu0 %5651
      %5653 = vrot.lane.b32.xlu0 %v4911, 28
      %v5654 = vpop.permute.xlu0 %5653
      %5655 = vrot.lane.b32.xlu0 %v4912, 28
      %v5656 = vpop.permute.xlu0 %5655
      %5657 = vrot.lane.b32.xlu0 %v4913, 28
      %v5658 = vpop.permute.xlu0 %5657
      %5659 = vrot.lane.b32.xlu0 %v4914, 28
      %v5660 = vpop.permute.xlu0 %5659
      %5661 = vrot.lane.b32.xlu0 %v4915, 28
      %v5662 = vpop.permute.xlu0 %5661
      %5663 = vrot.lane.b32.xlu0 %v4916, 28
      %v5664 = vpop.permute.xlu0 %5663
      %5665 = vrot.lane.b32.xlu0 %v4917, 28
      %v5666 = vpop.permute.xlu0 %5665
      %5667 = vrot.lane.b32.xlu0 %v4918, 28
      %v5668 = vpop.permute.xlu0 %5667
      %5669 = vrot.lane.b32.xlu0 %v4919, 28
      %v5670 = vpop.permute.xlu0 %5669
      %5671 = vrot.lane.b32.xlu0 %v4920, 28
      %v5672 = vpop.permute.xlu0 %5671
      %5673 = vrot.lane.b32.xlu0 %v4921, 28
      %v5674 = vpop.permute.xlu0 %5673
      %5675 = vrot.lane.b32.xlu0 %v4922, 28
      %v5676 = vpop.permute.xlu0 %5675
      %5677 = vrot.lane.b32.xlu0 %v4923, 28
      %v5678 = vpop.permute.xlu0 %5677
      %5679 = vrot.lane.b32.xlu0 %v4924, 28
      %v5680 = vpop.permute.xlu0 %5679
      %5681 = vrot.lane.b32.xlu0 %v4925, 28
      %v5682 = vpop.permute.xlu0 %5681
      %5683 = vrot.lane.b32.xlu0 %v4926, 28
      %v5684 = vpop.permute.xlu0 %5683
      %5685 = vrot.lane.b32.xlu0 %v4927, 28
      %v5686 = vpop.permute.xlu0 %5685
      %5687 = vrot.lane.b32.xlu0 %v4928, 28
      %v5688 = vpop.permute.xlu0 %5687
      %5689 = vrot.lane.b32.xlu0 %v4929, 28
      %v5690 = vpop.permute.xlu0 %5689
      %5691 = vrot.lane.b32.xlu0 %v4930, 28
      %v5692 = vpop.permute.xlu0 %5691
      %5693 = vrot.lane.b32.xlu0 %v4931, 28
      %v5694 = vpop.permute.xlu0 %5693
      %5695 = vrot.lane.b32.xlu0 %v4932, 28
      %v5696 = vpop.permute.xlu0 %5695
      %5697 = vrot.lane.b32.xlu0 %v4933, 28
      %v5698 = vpop.permute.xlu0 %5697
      %5699 = vrot.lane.b32.xlu0 %v4934, 28
      %v5700 = vpop.permute.xlu0 %5699
      %5701 = vrot.lane.b32.xlu0 %v4935, 28
      %v5702 = vpop.permute.xlu0 %5701
      %5703 = vrot.lane.b32.xlu0 %v4936, 28
      %v5704 = vpop.permute.xlu0 %5703
      %5769 = vrot.lane.b32.xlu0 %v4937, 32
      %v5770 = vpop.permute.xlu0 %5769
      %5771 = vrot.lane.b32.xlu0 %v4938, 32
      %v5772 = vpop.permute.xlu0 %5771
      %5773 = vrot.lane.b32.xlu0 %v4939, 32
      %v5774 = vpop.permute.xlu0 %5773
      %5775 = vrot.lane.b32.xlu0 %v4940, 32
      %v5776 = vpop.permute.xlu0 %5775
      %5777 = vrot.lane.b32.xlu0 %v4941, 32
      %v5778 = vpop.permute.xlu0 %5777
      %5779 = vrot.lane.b32.xlu0 %v4942, 32
      %v5780 = vpop.permute.xlu0 %5779
      %5781 = vrot.lane.b32.xlu0 %v4943, 32
      %v5782 = vpop.permute.xlu0 %5781
      %5783 = vrot.lane.b32.xlu0 %v4944, 32
      %v5784 = vpop.permute.xlu0 %5783
      %5785 = vrot.lane.b32.xlu0 %v4945, 32
      %v5786 = vpop.permute.xlu0 %5785
      %5787 = vrot.lane.b32.xlu0 %v4946, 32
      %v5788 = vpop.permute.xlu0 %5787
      %5789 = vrot.lane.b32.xlu0 %v4947, 32
      %v5790 = vpop.permute.xlu0 %5789
      %5791 = vrot.lane.b32.xlu0 %v4948, 32
      %v5792 = vpop.permute.xlu0 %5791
      %5793 = vrot.lane.b32.xlu0 %v4949, 32
      %v5794 = vpop.permute.xlu0 %5793
      %5795 = vrot.lane.b32.xlu0 %v4950, 32
      %v5796 = vpop.permute.xlu0 %5795
      %5797 = vrot.lane.b32.xlu0 %v4951, 32
      %v5798 = vpop.permute.xlu0 %5797
      %5799 = vrot.lane.b32.xlu0 %v4952, 32
      %v5800 = vpop.permute.xlu0 %5799
      %5801 = vrot.lane.b32.xlu0 %v4953, 32
      %v5802 = vpop.permute.xlu0 %5801
      %5803 = vrot.lane.b32.xlu0 %v4954, 32
      %v5804 = vpop.permute.xlu0 %5803
      %5805 = vrot.lane.b32.xlu0 %v4955, 32
      %v5806 = vpop.permute.xlu0 %5805
      %5807 = vrot.lane.b32.xlu0 %v4956, 32
      %v5808 = vpop.permute.xlu0 %5807
      %5809 = vrot.lane.b32.xlu0 %v4957, 32
      %v5810 = vpop.permute.xlu0 %5809
      %5811 = vrot.lane.b32.xlu0 %v4958, 32
      %v5812 = vpop.permute.xlu0 %5811
      %5813 = vrot.lane.b32.xlu0 %v4959, 32
      %v5814 = vpop.permute.xlu0 %5813
      %5815 = vrot.lane.b32.xlu0 %v4960, 32
      %v5816 = vpop.permute.xlu0 %5815
      %5817 = vrot.lane.b32.xlu0 %v4961, 32
      %v5818 = vpop.permute.xlu0 %5817
      %5819 = vrot.lane.b32.xlu0 %v4962, 32
      %v5820 = vpop.permute.xlu0 %5819
      %5821 = vrot.lane.b32.xlu0 %v4963, 32
      %v5822 = vpop.permute.xlu0 %5821
      %5823 = vrot.lane.b32.xlu0 %v4964, 32
      %v5824 = vpop.permute.xlu0 %5823
      %5825 = vrot.lane.b32.xlu0 %v4965, 32
      %v5826 = vpop.permute.xlu0 %5825
      %5827 = vrot.lane.b32.xlu0 %v4966, 32
      %v5828 = vpop.permute.xlu0 %5827
      %5829 = vrot.lane.b32.xlu0 %v4967, 32
      %v5830 = vpop.permute.xlu0 %5829
      %5831 = vrot.lane.b32.xlu0 %v4968, 32
      %v5832 = vpop.permute.xlu0 %5831
      %v5865 = vsel %vm1477, %v4712, %v5002
      %v5866 = vsel %vm1477, %v4713, %v5004
      %v5867 = vsel %vm1477, %v4714, %v5006
      %v5868 = vsel %vm1477, %v4715, %v5008
      %v5869 = vsel %vm1477, %v4716, %v5010
      %v5870 = vsel %vm1477, %v4717, %v5012
      %v5871 = vsel %vm1477, %v4718, %v5014
      %v5872 = vsel %vm1477, %v4719, %v5016
      %v5873 = vsel %vm1477, %v4720, %v5018
      %v5874 = vsel %vm1477, %v4721, %v5020
      %v5875 = vsel %vm1477, %v4722, %v5022
      %v5876 = vsel %vm1477, %v4723, %v5024
      %v5877 = vsel %vm1477, %v4724, %v5026
      %v5878 = vsel %vm1477, %v4725, %v5028
      %v5879 = vsel %vm1477, %v4726, %v5030
      %v5880 = vsel %vm1477, %v4727, %v5032
      %v5881 = vsel %vm1477, %v4728, %v5034
      %v5882 = vsel %vm1477, %v4729, %v5036
      %v5883 = vsel %vm1477, %v4730, %v5038
      %v5884 = vsel %vm1477, %v4731, %v5040
      %v5885 = vsel %vm1477, %v4732, %v5042
      %v5886 = vsel %vm1477, %v4733, %v5044
      %v5887 = vsel %vm1477, %v4734, %v5046
      %v5888 = vsel %vm1477, %v4735, %v5048
      %v5889 = vsel %vm1477, %v4736, %v5050
      %v5890 = vsel %vm1477, %v4737, %v5052
      %v5891 = vsel %vm1477, %v4738, %v5054
      %v5892 = vsel %vm1477, %v4739, %v5056
      %v5893 = vsel %vm1477, %v4740, %v5058
      %v5894 = vsel %vm1477, %v4741, %v5060
      %v5895 = vsel %vm1477, %v4742, %v5062
      %v5896 = vsel %vm1477, %v4743, %v5064
      %v5897 = vsel %vm1510, %v5865, %v5130
      %v5898 = vsel %vm1510, %v5866, %v5132
      %v5899 = vsel %vm1510, %v5867, %v5134
      %v5900 = vsel %vm1510, %v5868, %v5136
      %v5901 = vsel %vm1510, %v5869, %v5138
      %v5902 = vsel %vm1510, %v5870, %v5140
      %v5903 = vsel %vm1510, %v5871, %v5142
      %v5904 = vsel %vm1510, %v5872, %v5144
      %v5905 = vsel %vm1510, %v5873, %v5146
      %v5906 = vsel %vm1510, %v5874, %v5148
      %v5907 = vsel %vm1510, %v5875, %v5150
      %v5908 = vsel %vm1510, %v5876, %v5152
      %v5909 = vsel %vm1510, %v5877, %v5154
      %v5910 = vsel %vm1510, %v5878, %v5156
      %v5911 = vsel %vm1510, %v5879, %v5158
      %v5912 = vsel %vm1510, %v5880, %v5160
      %v5913 = vsel %vm1510, %v5881, %v5162
      %v5914 = vsel %vm1510, %v5882, %v5164
      %v5915 = vsel %vm1510, %v5883, %v5166
      %v5916 = vsel %vm1510, %v5884, %v5168
      %v5917 = vsel %vm1510, %v5885, %v5170
      %v5918 = vsel %vm1510, %v5886, %v5172
      %v5919 = vsel %vm1510, %v5887, %v5174
      %v5920 = vsel %vm1510, %v5888, %v5176
      %v5921 = vsel %vm1510, %v5889, %v5178
      %v5922 = vsel %vm1510, %v5890, %v5180
      %v5923 = vsel %vm1510, %v5891, %v5182
      %v5924 = vsel %vm1510, %v5892, %v5184
      %v5925 = vsel %vm1510, %v5893, %v5186
      %v5926 = vsel %vm1510, %v5894, %v5188
      %v5927 = vsel %vm1510, %v5895, %v5190
      %v5928 = vsel %vm1510, %v5896, %v5192
      %v5929 = vsel %vm1543, %v5897, %v5258
      %v5930 = vsel %vm1543, %v5898, %v5260
      %v5931 = vsel %vm1543, %v5899, %v5262
      %v5932 = vsel %vm1543, %v5900, %v5264
      %v5933 = vsel %vm1543, %v5901, %v5266
      %v5934 = vsel %vm1543, %v5902, %v5268
      %v5935 = vsel %vm1543, %v5903, %v5270
      %v5936 = vsel %vm1543, %v5904, %v5272
      %v5937 = vsel %vm1543, %v5905, %v5274
      %v5938 = vsel %vm1543, %v5906, %v5276
      %v5939 = vsel %vm1543, %v5907, %v5278
      %v5940 = vsel %vm1543, %v5908, %v5280
      %v5941 = vsel %vm1543, %v5909, %v5282
      %v5942 = vsel %vm1543, %v5910, %v5284
      %v5943 = vsel %vm1543, %v5911, %v5286
      %v5944 = vsel %vm1543, %v5912, %v5288
      %v5945 = vsel %vm1543, %v5913, %v5290
      %v5946 = vsel %vm1543, %v5914, %v5292
      %v5947 = vsel %vm1543, %v5915, %v5294
      %v5948 = vsel %vm1543, %v5916, %v5296
      %v5949 = vsel %vm1543, %v5917, %v5298
      %v5950 = vsel %vm1543, %v5918, %v5300
      %v5951 = vsel %vm1543, %v5919, %v5302
      %v5952 = vsel %vm1543, %v5920, %v5304
      %v5953 = vsel %vm1543, %v5921, %v5306
      %v5954 = vsel %vm1543, %v5922, %v5308
      %v5955 = vsel %vm1543, %v5923, %v5310
      %v5956 = vsel %vm1543, %v5924, %v5312
      %v5957 = vsel %vm1543, %v5925, %v5314
      %v5958 = vsel %vm1543, %v5926, %v5316
      %v5959 = vsel %vm1543, %v5927, %v5318
      %v5960 = vsel %vm1543, %v5928, %v5320
      %v5961 = vsel %vm1576, %v5929, %v3059
      %v5962 = vsel %vm1576, %v5930, %v3061
      %v5963 = vsel %vm1576, %v5931, %v3063
      %v5964 = vsel %vm1576, %v5932, %v3065
      %v5965 = vsel %vm1576, %v5933, %v3067
      %v5966 = vsel %vm1576, %v5934, %v3069
      %v5967 = vsel %vm1576, %v5935, %v3071
      %v5968 = vsel %vm1576, %v5936, %v3073
      %v5969 = vsel %vm1576, %v5937, %v3075
      %v5970 = vsel %vm1576, %v5938, %v3077
      %v5971 = vsel %vm1576, %v5939, %v3079
      %v5972 = vsel %vm1576, %v5940, %v3081
      %v5973 = vsel %vm1576, %v5941, %v3083
      %v5974 = vsel %vm1576, %v5942, %v3085
      %v5975 = vsel %vm1576, %v5943, %v3087
      %v5976 = vsel %vm1576, %v5944, %v3089
      %v5977 = vsel %vm1576, %v5945, %v3091
      %v5978 = vsel %vm1576, %v5946, %v3093
      %v5979 = vsel %vm1576, %v5947, %v3095
      %v5980 = vsel %vm1576, %v5948, %v3097
      %v5981 = vsel %vm1576, %v5949, %v3099
      %v5982 = vsel %vm1576, %v5950, %v3101
      %v5983 = vsel %vm1576, %v5951, %v3103
      %v5984 = vsel %vm1576, %v5952, %v3105
      %v5985 = vsel %vm1576, %v5953, %v3107
      %v5986 = vsel %vm1576, %v5954, %v3109
      %v5987 = vsel %vm1576, %v5955, %v3111
      %v5988 = vsel %vm1576, %v5956, %v3113
      %v5989 = vsel %vm1576, %v5957, %v3115
      %v5990 = vsel %vm1576, %v5958, %v3117
      %v5991 = vsel %vm1576, %v5959, %v3119
      %v5992 = vsel %vm1576, %v5960, %v3121
      %v5993 = vsel %vm1609, %v5961, %v5386
      %v5994 = vsel %vm1609, %v5962, %v5388
      %v5995 = vsel %vm1609, %v5963, %v5390
      %v5996 = vsel %vm1609, %v5964, %v5392
      %v5997 = vsel %vm1609, %v5965, %v5394
      %v5998 = vsel %vm1609, %v5966, %v5396
      %v5999 = vsel %vm1609, %v5967, %v5398
      %v6000 = vsel %vm1609, %v5968, %v5400
      %v6001 = vsel %vm1609, %v5969, %v5402
      %v6002 = vsel %vm1609, %v5970, %v5404
      %v6003 = vsel %vm1609, %v5971, %v5406
      %v6004 = vsel %vm1609, %v5972, %v5408
      %v6005 = vsel %vm1609, %v5973, %v5410
      %v6006 = vsel %vm1609, %v5974, %v5412
      %v6007 = vsel %vm1609, %v5975, %v5414
      %v6008 = vsel %vm1609, %v5976, %v5416
      %v6009 = vsel %vm1609, %v5977, %v5418
      %v6010 = vsel %vm1609, %v5978, %v5420
      %v6011 = vsel %vm1609, %v5979, %v5422
      %v6012 = vsel %vm1609, %v5980, %v5424
      %v6013 = vsel %vm1609, %v5981, %v5426
      %v6014 = vsel %vm1609, %v5982, %v5428
      %v6015 = vsel %vm1609, %v5983, %v5430
      %v6016 = vsel %vm1609, %v5984, %v5432
      %v6017 = vsel %vm1609, %v5985, %v5434
      %v6018 = vsel %vm1609, %v5986, %v5436
      %v6019 = vsel %vm1609, %v5987, %v5438
      %v6020 = vsel %vm1609, %v5988, %v5440
      %v6021 = vsel %vm1609, %v5989, %v5442
      %v6022 = vsel %vm1609, %v5990, %v5444
      %v6023 = vsel %vm1609, %v5991, %v5446
      %v6024 = vsel %vm1609, %v5992, %v5448
      %v6025 = vsel %vm1642, %v5993, %v5514
      %v6026 = vsel %vm1642, %v5994, %v5516
      %v6027 = vsel %vm1642, %v5995, %v5518
      %v6028 = vsel %vm1642, %v5996, %v5520
      %v6029 = vsel %vm1642, %v5997, %v5522
      %v6030 = vsel %vm1642, %v5998, %v5524
      %v6031 = vsel %vm1642, %v5999, %v5526
      %v6032 = vsel %vm1642, %v6000, %v5528
      %v6033 = vsel %vm1642, %v6001, %v5530
      %v6034 = vsel %vm1642, %v6002, %v5532
      %v6035 = vsel %vm1642, %v6003, %v5534
      %v6036 = vsel %vm1642, %v6004, %v5536
      %v6037 = vsel %vm1642, %v6005, %v5538
      %v6038 = vsel %vm1642, %v6006, %v5540
      %v6039 = vsel %vm1642, %v6007, %v5542
      %v6040 = vsel %vm1642, %v6008, %v5544
      %v6041 = vsel %vm1642, %v6009, %v5546
      %v6042 = vsel %vm1642, %v6010, %v5548
      %v6043 = vsel %vm1642, %v6011, %v5550
      %v6044 = vsel %vm1642, %v6012, %v5552
      %v6045 = vsel %vm1642, %v6013, %v5554
      %v6046 = vsel %vm1642, %v6014, %v5556
      %v6047 = vsel %vm1642, %v6015, %v5558
      %v6048 = vsel %vm1642, %v6016, %v5560
      %v6049 = vsel %vm1642, %v6017, %v5562
      %v6050 = vsel %vm1642, %v6018, %v5564
      %v6051 = vsel %vm1642, %v6019, %v5566
      %v6052 = vsel %vm1642, %v6020, %v5568
      %v6053 = vsel %vm1642, %v6021, %v5570
      %v6054 = vsel %vm1642, %v6022, %v5572
      %v6055 = vsel %vm1642, %v6023, %v5574
      %v6056 = vsel %vm1642, %v6024, %v5576
      %v6057 = vsel %vm1675, %v6025, %v5642
      %v6058 = vsel %vm1675, %v6026, %v5644
      %v6059 = vsel %vm1675, %v6027, %v5646
      %v6060 = vsel %vm1675, %v6028, %v5648
      %v6061 = vsel %vm1675, %v6029, %v5650
      %v6062 = vsel %vm1675, %v6030, %v5652
      %v6063 = vsel %vm1675, %v6031, %v5654
      %v6064 = vsel %vm1675, %v6032, %v5656
      %v6065 = vsel %vm1675, %v6033, %v5658
      %v6066 = vsel %vm1675, %v6034, %v5660
      %v6067 = vsel %vm1675, %v6035, %v5662
      %v6068 = vsel %vm1675, %v6036, %v5664
      %v6069 = vsel %vm1675, %v6037, %v5666
      %v6070 = vsel %vm1675, %v6038, %v5668
      %v6071 = vsel %vm1675, %v6039, %v5670
      %v6072 = vsel %vm1675, %v6040, %v5672
      %v6073 = vsel %vm1675, %v6041, %v5674
      %v6074 = vsel %vm1675, %v6042, %v5676
      %v6075 = vsel %vm1675, %v6043, %v5678
      %v6076 = vsel %vm1675, %v6044, %v5680
      %v6077 = vsel %vm1675, %v6045, %v5682
      %v6078 = vsel %vm1675, %v6046, %v5684
      %v6079 = vsel %vm1675, %v6047, %v5686
      %v6080 = vsel %vm1675, %v6048, %v5688
      %v6081 = vsel %vm1675, %v6049, %v5690
      %v6082 = vsel %vm1675, %v6050, %v5692
      %v6083 = vsel %vm1675, %v6051, %v5694
      %v6084 = vsel %vm1675, %v6052, %v5696
      %v6085 = vsel %vm1675, %v6053, %v5698
      %v6086 = vsel %vm1675, %v6054, %v5700
      %v6087 = vsel %vm1675, %v6055, %v5702
      %v6088 = vsel %vm1675, %v6056, %v5704
      %v6089 = vsel %vm1708, %v6057, %v5770
      %v6090 = vsel %vm1708, %v6058, %v5772
      %v6091 = vsel %vm1708, %v6059, %v5774
      %v6092 = vsel %vm1708, %v6060, %v5776
      %v6093 = vsel %vm1708, %v6061, %v5778
      %v6094 = vsel %vm1708, %v6062, %v5780
      %v6095 = vsel %vm1708, %v6063, %v5782
      %v6096 = vsel %vm1708, %v6064, %v5784
      %v6097 = vsel %vm1708, %v6065, %v5786
      %v6098 = vsel %vm1708, %v6066, %v5788
      %v6099 = vsel %vm1708, %v6067, %v5790
      %v6100 = vsel %vm1708, %v6068, %v5792
      %v6101 = vsel %vm1708, %v6069, %v5794
      %v6102 = vsel %vm1708, %v6070, %v5796
      %v6103 = vsel %vm1708, %v6071, %v5798
      %v6104 = vsel %vm1708, %v6072, %v5800
      %v6105 = vsel %vm1708, %v6073, %v5802
      %v6106 = vsel %vm1708, %v6074, %v5804
      %v6107 = vsel %vm1708, %v6075, %v5806
      %v6108 = vsel %vm1708, %v6076, %v5808
      %v6109 = vsel %vm1708, %v6077, %v5810
      %v6110 = vsel %vm1708, %v6078, %v5812
      %v6111 = vsel %vm1708, %v6079, %v5814
      %v6112 = vsel %vm1708, %v6080, %v5816
      %v6113 = vsel %vm1708, %v6081, %v5818
      %v6114 = vsel %vm1708, %v6082, %v5820
      %v6115 = vsel %vm1708, %v6083, %v5822
      %v6116 = vsel %vm1708, %v6084, %v5824
      %v6117 = vsel %vm1708, %v6085, %v5826
      %v6118 = vsel %vm1708, %v6086, %v5828
      %v6119 = vsel %vm1708, %v6087, %v5830
      %v6120 = vsel %vm1708, %v6088, %v5832
      %v6121 = vld [vmem:[%s5] sm:$0xff]
      %v6122 = vld [vmem:[%s5 + $0x8] sm:$0xff]
      %v6123 = vld [vmem:[%s5 + $0x10] sm:$0xff]
      %v6124 = vld [vmem:[%s5 + $0x18] sm:$0xff]
      %v6125 = vld [vmem:[%s5 + $0x20] sm:$0xf]
      %v6126 = vld [vmem:[%s6] sm:$0x1]
      %v6128 = vlaneseq
      %v6129 = vshrl.u32 %v6128, 7
      %v6130 = vsub.s32 0, %v6129
      %v6131 = vrot.slane %v6126, %v6130
      %v6134 = vsel %vm1753, %v6089, 0
      %v6137 = vsel %vm1753, %v6090, 0
      %v6140 = vsel %vm1753, %v6091, 0
      %v6143 = vsel %vm1753, %v6092, 0
      %v6146 = vsel %vm1753, %v6093, 0
      %v6149 = vsel %vm1753, %v6094, 0
      %v6152 = vsel %vm1753, %v6095, 0
      %v6155 = vsel %vm1753, %v6096, 0
      %v6158 = vsel %vm1753, %v6097, 0
      %v6161 = vsel %vm1753, %v6098, 0
      %v6164 = vsel %vm1753, %v6099, 0
      %v6167 = vsel %vm1753, %v6100, 0
      %v6170 = vsel %vm1753, %v6101, 0
      %v6173 = vsel %vm1753, %v6102, 0
      %v6176 = vsel %vm1753, %v6103, 0
      %v6179 = vsel %vm1753, %v6104, 0
      %v6182 = vsel %vm1753, %v6105, 0
      %v6185 = vsel %vm1753, %v6106, 0
      %v6188 = vsel %vm1753, %v6107, 0
      %v6191 = vsel %vm1753, %v6108, 0
      %v6194 = vsel %vm1753, %v6109, 0
      %v6197 = vsel %vm1753, %v6110, 0
      %v6200 = vsel %vm1753, %v6111, 0
      %v6203 = vsel %vm1753, %v6112, 0
      %v6206 = vsel %vm1753, %v6113, 0
      %v6209 = vsel %vm1753, %v6114, 0
      %v6212 = vsel %vm1753, %v6115, 0
      %v6215 = vsel %vm1753, %v6116, 0
      %v6218 = vsel %vm1753, %v6117, 0
      %v6221 = vsel %vm1753, %v6118, 0
      %v6224 = vsel %vm1753, %v6119, 0
      %v6227 = vsel %vm1753, %v6120, 0
      %v6230 = vsel %vm1850, %v6125, 0
      %6232 = vmatprep.subr.mxu0 0.0
      %6233 = vmatpush1.msra.mxu0 %v6121
      %6234 = vmatprep.subr.mxu0 0.0
      %6235 = vmatpush1.msra.mxu0 %v6122
      %6236 = vmatprep.subr.mxu0 0.0
      %6237 = vmatpush1.msra.mxu0 %v6123
      %6238 = vmatprep.subr.mxu0 0.0
      %6239 = vmatpush1.msra.mxu0 %v6124
      %6240 = vmatprep.subr.mxu0 0.0
      %6241 = vmatpush1.msra.mxu0 %v6230
      %6242 = vmatprep.subr.mxu0 0.0
      %6243 = vmatpush1.msra.mxu0 0.0
      %6244 = vmatprep.subr.mxu0 0.0
      %6245 = vmatpush1.msra.mxu0 0.0
      %6246 = vmatprep.subr.mxu0 0.0
      %6247 = vmatpush1.msra.mxu0 0.0
      %6248 = vmatprep.subr.mxu0 0.0
      %6249 = vmatpush1.msra.mxu0 0.0
      %6250 = vmatprep.subr.mxu0 0.0
      %6251 = vmatpush1.msra.mxu0 0.0
      %6252 = vmatprep.subr.mxu0 0.0
      %6253 = vmatpush1.msra.mxu0 0.0
      %6254 = vmatprep.subr.mxu0 0.0
      %6255 = vmatpush1.msra.mxu0 0.0
      %6256 = vmatprep.subr.mxu0 0.0
      %6257 = vmatpush1.msra.mxu0 0.0
      %6258 = vmatprep.subr.mxu0 0.0
      %6259 = vmatpush1.msra.mxu0 0.0
      %6260 = vmatprep.subr.mxu0 0.0
      %6261 = vmatpush1.msra.mxu0 0.0
      %6262 = vmatprep.subr.mxu0 0.0
      %6263 = vmatpush1.msra.mxu0 0.0
      %6264 = vmatprep.subr.mxu0 0.0
      %6265 = vmatpush1.msra.mxu0 0.0
      %6266 = vmatprep.subr.mxu0 0.0
      %6267 = vmatpush1.msra.mxu0 0.0
      %6268 = vmatprep.subr.mxu0 0.0
      %6269 = vmatpush1.msra.mxu0 0.0
      %6270 = vmatprep.subr.mxu0 0.0
      %6271 = vmatpush1.msra.mxu0 0.0
      %6272 = vmatprep.subr.mxu0 0.0
      %6273 = vmatpush1.msra.mxu0 0.0
      %6274 = vmatprep.subr.mxu0 0.0
      %6275 = vmatpush1.msra.mxu0 0.0
      %6276 = vmatprep.subr.mxu0 0.0
      %6277 = vmatpush1.msra.mxu0 0.0
      %6278 = vmatprep.subr.mxu0 0.0
      %6279 = vmatpush1.msra.mxu0 0.0
      %6280 = vmatprep.subr.mxu0 0.0
      %6281 = vmatpush1.msra.mxu0 0.0
      %6282 = vmatprep.subr.mxu0 0.0
      %6283 = vmatpush1.msra.mxu0 0.0
      %6284 = vmatprep.subr.mxu0 0.0
      %6285 = vmatpush1.msra.mxu0 0.0
      %6286 = vmatprep.subr.mxu0 0.0
      %6287 = vmatpush1.msra.mxu0 0.0
      %6288 = vmatprep.subr.mxu0 0.0
      %6289 = vmatpush1.msra.mxu0 0.0
      %6290 = vmatprep.subr.mxu0 0.0
      %6291 = vmatpush1.msra.mxu0 0.0
      %6292 = vmatprep.subr.mxu0 0.0
      %6293 = vmatpush1.msra.mxu0 0.0
      %6294 = vmatprep.subr.mxu0 0.0
      %6295 = vmatpush1.msra.mxu0 0.0
      %6296 = vmatprep.mubr.f32.mxu0 0.0
      %6297 = vmatmul.mubr.f32.gmra.mrb[0].mxu0 %v6134
      %v6298 = vpop.f32.mrb[0].mxu0
      %v6299 = vadd.f32 %v6131, %v6298
      %v6300 = vpop.f32.mrb[0].mxu0
      %6301 = vmatprep.mubr.f32.mxu0 0.0
      %6302 = vmatmul.mubr.f32.gmra.mrb[0].mxu0 %v6137
      %v6303 = vpop.f32.mrb[0].mxu0
      %v6304 = vadd.f32 %v6131, %v6303
      %v6305 = vpop.f32.mrb[0].mxu0
      %6306 = vmatprep.mubr.f32.mxu0 0.0
      %6307 = vmatmul.mubr.f32.gmra.mrb[0].mxu0 %v6140
      %v6308 = vpop.f32.mrb[0].mxu0
      %v6309 = vadd.f32 %v6131, %v6308
      %v6310 = vpop.f32.mrb[0].mxu0
      %6311 = vmatprep.mubr.f32.mxu0 0.0
      %6312 = vmatmul.mubr.f32.gmra.mrb[0].mxu0 %v6143
      %v6313 = vpop.f32.mrb[0].mxu0
      %v6314 = vadd.f32 %v6131, %v6313
      %v6315 = vpop.f32.mrb[0].mxu0
      %6316 = vmatprep.mubr.f32.mxu0 0.0
      %6317 = vmatmul.mubr.f32.gmra.mrb[0].mxu0 %v6146
      %v6318 = vpop.f32.mrb[0].mxu0
      %v6319 = vadd.f32 %v6131, %v6318
      %v6320 = vpop.f32.mrb[0].mxu0
      %6321 = vmatprep.mubr.f32.mxu0 0.0
      %6322 = vmatmul.mubr.f32.gmra.mrb[0].mxu0 %v6149
      %v6323 = vpop.f32.mrb[0].mxu0
      %v6324 = vadd.f32 %v6131, %v6323
      %v6325 = vpop.f32.mrb[0].mxu0
      %6326 = vmatprep.mubr.f32.mxu0 0.0
      %6327 = vmatmul.mubr.f32.gmra.mrb[0].mxu0 %v6152
      %v6328 = vpop.f32.mrb[0].mxu0
      %v6329 = vadd.f32 %v6131, %v6328
      %v6330 = vpop.f32.mrb[0].mxu0
      %6331 = vmatprep.mubr.f32.mxu0 0.0
      %6332 = vmatmul.mubr.f32.gmra.mrb[0].mxu0 %v6155
      %v6333 = vpop.f32.mrb[0].mxu0
      %v6334 = vadd.f32 %v6131, %v6333
      %v6335 = vpop.f32.mrb[0].mxu0
      %6336 = vmatprep.mubr.f32.mxu0 0.0
      %6337 = vmatmul.mubr.f32.gmra.mrb[0].mxu0 %v6158
      %v6338 = vpop.f32.mrb[0].mxu0
      %v6339 = vadd.f32 %v6131, %v6338
      %v6340 = vpop.f32.mrb[0].mxu0
      %6341 = vmatprep.mubr.f32.mxu0 0.0
      %6342 = vmatmul.mubr.f32.gmra.mrb[0].mxu0 %v6161
      %v6343 = vpop.f32.mrb[0].mxu0
      %v6344 = vadd.f32 %v6131, %v6343
      %v6345 = vpop.f32.mrb[0].mxu0
      %6346 = vmatprep.mubr.f32.mxu0 0.0
      %6347 = vmatmul.mubr.f32.gmra.mrb[0].mxu0 %v6164
      %v6348 = vpop.f32.mrb[0].mxu0
      %v6349 = vadd.f32 %v6131, %v6348
      %v6350 = vpop.f32.mrb[0].mxu0
      %6351 = vmatprep.mubr.f32.mxu0 0.0
      %6352 = vmatmul.mubr.f32.gmra.mrb[0].mxu0 %v6167
      %v6353 = vpop.f32.mrb[0].mxu0
      %v6354 = vadd.f32 %v6131, %v6353
      %v6355 = vpop.f32.mrb[0].mxu0
      %6356 = vmatprep.mubr.f32.mxu0 0.0
      %6357 = vmatmul.mubr.f32.gmra.mrb[0].mxu0 %v6170
      %v6358 = vpop.f32.mrb[0].mxu0
      %v6359 = vadd.f32 %v6131, %v6358
      %v6360 = vpop.f32.mrb[0].mxu0
      %6361 = vmatprep.mubr.f32.mxu0 0.0
      %6362 = vmatmul.mubr.f32.gmra.mrb[0].mxu0 %v6173
      %v6363 = vpop.f32.mrb[0].mxu0
      %v6364 = vadd.f32 %v6131, %v6363
      %v6365 = vpop.f32.mrb[0].mxu0
      %6366 = vmatprep.mubr.f32.mxu0 0.0
      %6367 = vmatmul.mubr.f32.gmra.mrb[0].mxu0 %v6176
      %v6368 = vpop.f32.mrb[0].mxu0
      %v6369 = vadd.f32 %v6131, %v6368
      %v6370 = vpop.f32.mrb[0].mxu0
      %6371 = vmatprep.mubr.f32.mxu0 0.0
      %6372 = vmatmul.mubr.f32.gmra.mrb[0].mxu0 %v6179
      %v6373 = vpop.f32.mrb[0].mxu0
      %v6374 = vadd.f32 %v6131, %v6373
      %v6375 = vpop.f32.mrb[0].mxu0
      %6376 = vmatprep.mubr.f32.mxu0 0.0
      %6377 = vmatmul.mubr.f32.gmra.mrb[0].mxu0 %v6182
      %v6378 = vpop.f32.mrb[0].mxu0
      %v6379 = vadd.f32 %v6131, %v6378
      %v6380 = vpop.f32.mrb[0].mxu0
      %6381 = vmatprep.mubr.f32.mxu0 0.0
      %6382 = vmatmul.mubr.f32.gmra.mrb[0].mxu0 %v6185
      %v6383 = vpop.f32.mrb[0].mxu0
      %v6384 = vadd.f32 %v6131, %v6383
      %v6385 = vpop.f32.mrb[0].mxu0
      %6386 = vmatprep.mubr.f32.mxu0 0.0
      %6387 = vmatmul.mubr.f32.gmra.mrb[0].mxu0 %v6188
      %v6388 = vpop.f32.mrb[0].mxu0
      %v6389 = vadd.f32 %v6131, %v6388
      %v6390 = vpop.f32.mrb[0].mxu0
      %6391 = vmatprep.mubr.f32.mxu0 0.0
      %6392 = vmatmul.mubr.f32.gmra.mrb[0].mxu0 %v6191
      %v6393 = vpop.f32.mrb[0].mxu0
      %v6394 = vadd.f32 %v6131, %v6393
      %v6395 = vpop.f32.mrb[0].mxu0
      %6396 = vmatprep.mubr.f32.mxu0 0.0
      %6397 = vmatmul.mubr.f32.gmra.mrb[0].mxu0 %v6194
      %v6398 = vpop.f32.mrb[0].mxu0
      %v6399 = vadd.f32 %v6131, %v6398
      %v6400 = vpop.f32.mrb[0].mxu0
      %6401 = vmatprep.mubr.f32.mxu0 0.0
      %6402 = vmatmul.mubr.f32.gmra.mrb[0].mxu0 %v6197
      %v6403 = vpop.f32.mrb[0].mxu0
      %v6404 = vadd.f32 %v6131, %v6403
      %v6405 = vpop.f32.mrb[0].mxu0
      %6406 = vmatprep.mubr.f32.mxu0 0.0
      %6407 = vmatmul.mubr.f32.gmra.mrb[0].mxu0 %v6200
      %v6408 = vpop.f32.mrb[0].mxu0
      %v6409 = vadd.f32 %v6131, %v6408
      %v6410 = vpop.f32.mrb[0].mxu0
      %6411 = vmatprep.mubr.f32.mxu0 0.0
      %6412 = vmatmul.mubr.f32.gmra.mrb[0].mxu0 %v6203
      %v6413 = vpop.f32.mrb[0].mxu0
      %v6414 = vadd.f32 %v6131, %v6413
      %v6415 = vpop.f32.mrb[0].mxu0
      %6416 = vmatprep.mubr.f32.mxu0 0.0
      %6417 = vmatmul.mubr.f32.gmra.mrb[0].mxu0 %v6206
      %v6418 = vpop.f32.mrb[0].mxu0
      %v6419 = vadd.f32 %v6131, %v6418
      %v6420 = vpop.f32.mrb[0].mxu0
      %6421 = vmatprep.mubr.f32.mxu0 0.0
      %6422 = vmatmul.mubr.f32.gmra.mrb[0].mxu0 %v6209
      %v6423 = vpop.f32.mrb[0].mxu0
      %v6424 = vadd.f32 %v6131, %v6423
      %v6425 = vpop.f32.mrb[0].mxu0
      %6426 = vmatprep.mubr.f32.mxu0 0.0
      %6427 = vmatmul.mubr.f32.gmra.mrb[0].mxu0 %v6212
      %v6428 = vpop.f32.mrb[0].mxu0
      %v6429 = vadd.f32 %v6131, %v6428
      %v6430 = vpop.f32.mrb[0].mxu0
      %6431 = vmatprep.mubr.f32.mxu0 0.0
      %6432 = vmatmul.mubr.f32.gmra.mrb[0].mxu0 %v6215
      %v6433 = vpop.f32.mrb[0].mxu0
      %v6434 = vadd.f32 %v6131, %v6433
      %v6435 = vpop.f32.mrb[0].mxu0
      %6436 = vmatprep.mubr.f32.mxu0 0.0
      %6437 = vmatmul.mubr.f32.gmra.mrb[0].mxu0 %v6218
      %v6438 = vpop.f32.mrb[0].mxu0
      %v6439 = vadd.f32 %v6131, %v6438
      %v6440 = vpop.f32.mrb[0].mxu0
      %6441 = vmatprep.mubr.f32.mxu0 0.0
      %6442 = vmatmul.mubr.f32.gmra.mrb[0].mxu0 %v6221
      %v6443 = vpop.f32.mrb[0].mxu0
      %v6444 = vadd.f32 %v6131, %v6443
      %v6445 = vpop.f32.mrb[0].mxu0
      %6446 = vmatprep.mubr.f32.mxu0 0.0
      %6447 = vmatmul.mubr.f32.gmra.mrb[0].mxu0 %v6224
      %v6448 = vpop.f32.mrb[0].mxu0
      %v6449 = vadd.f32 %v6131, %v6448
      %v6450 = vpop.f32.mrb[0].mxu0
      %6451 = vmatprep.mubr.f32.mxu0 0.0
      %6452 = vmatmul.mubr.f32.gmra.mrb[0].mxu0 %v6227
      %v6453 = vpop.f32.mrb[0].mxu0
      %v6454 = vadd.f32 %v6131, %v6453
      %v6455 = vpop.f32.mrb[0].mxu0
      %6456 = vdwg.mxu0
      %vm6457 = vcmp.ge.f32.partialorder %v6299, 0.0
      %vm6458 = vcmp.ge.f32.partialorder %v6304, 0.0
      %vm6459 = vcmp.ge.f32.partialorder %v6309, 0.0
      %vm6460 = vcmp.ge.f32.partialorder %v6314, 0.0
      %vm6461 = vcmp.ge.f32.partialorder %v6319, 0.0
      %vm6462 = vcmp.ge.f32.partialorder %v6324, 0.0
      %vm6463 = vcmp.ge.f32.partialorder %v6329, 0.0
      %vm6464 = vcmp.ge.f32.partialorder %v6334, 0.0
      %vm6465 = vcmp.ge.f32.partialorder %v6339, 0.0
      %vm6466 = vcmp.ge.f32.partialorder %v6344, 0.0
      %vm6467 = vcmp.ge.f32.partialorder %v6349, 0.0
      %vm6468 = vcmp.ge.f32.partialorder %v6354, 0.0
      %vm6469 = vcmp.ge.f32.partialorder %v6359, 0.0
      %vm6470 = vcmp.ge.f32.partialorder %v6364, 0.0
      %vm6471 = vcmp.ge.f32.partialorder %v6369, 0.0
      %vm6472 = vcmp.ge.f32.partialorder %v6374, 0.0
      %vm6473 = vcmp.ge.f32.partialorder %v6379, 0.0
      %vm6474 = vcmp.ge.f32.partialorder %v6384, 0.0
      %vm6475 = vcmp.ge.f32.partialorder %v6389, 0.0
      %vm6476 = vcmp.ge.f32.partialorder %v6394, 0.0
      %vm6477 = vcmp.ge.f32.partialorder %v6399, 0.0
      %vm6478 = vcmp.ge.f32.partialorder %v6404, 0.0
      %vm6479 = vcmp.ge.f32.partialorder %v6409, 0.0
      %vm6480 = vcmp.ge.f32.partialorder %v6414, 0.0
      %vm6481 = vcmp.ge.f32.partialorder %v6419, 0.0
      %vm6482 = vcmp.ge.f32.partialorder %v6424, 0.0
      %vm6483 = vcmp.ge.f32.partialorder %v6429, 0.0
      %vm6484 = vcmp.ge.f32.partialorder %v6434, 0.0
      %vm6485 = vcmp.ge.f32.partialorder %v6439, 0.0
      %vm6486 = vcmp.ge.f32.partialorder %v6444, 0.0
      %vm6487 = vcmp.ge.f32.partialorder %v6449, 0.0
      %vm6488 = vcmp.ge.f32.partialorder %v6454, 0.0
      %v6489 = vmul.f32 %v6299, 0.2
      %v6490 = vmul.f32 %v6304, 0.2
      %v6491 = vmul.f32 %v6309, 0.2
      %v6492 = vmul.f32 %v6314, 0.2
      %v6493 = vmul.f32 %v6319, 0.2
      %v6494 = vmul.f32 %v6324, 0.2
      %v6495 = vmul.f32 %v6329, 0.2
      %v6496 = vmul.f32 %v6334, 0.2
      %v6497 = vmul.f32 %v6339, 0.2
      %v6498 = vmul.f32 %v6344, 0.2
      %v6499 = vmul.f32 %v6349, 0.2
      %v6500 = vmul.f32 %v6354, 0.2
      %v6501 = vmul.f32 %v6359, 0.2
      %v6502 = vmul.f32 %v6364, 0.2
      %v6503 = vmul.f32 %v6369, 0.2
      %v6504 = vmul.f32 %v6374, 0.2
      %v6505 = vmul.f32 %v6379, 0.2
      %v6506 = vmul.f32 %v6384, 0.2
      %v6507 = vmul.f32 %v6389, 0.2
      %v6508 = vmul.f32 %v6394, 0.2
      %v6509 = vmul.f32 %v6399, 0.2
      %v6510 = vmul.f32 %v6404, 0.2
      %v6511 = vmul.f32 %v6409, 0.2
      %v6512 = vmul.f32 %v6414, 0.2
      %v6513 = vmul.f32 %v6419, 0.2
      %v6514 = vmul.f32 %v6424, 0.2
      %v6515 = vmul.f32 %v6429, 0.2
      %v6516 = vmul.f32 %v6434, 0.2
      %v6517 = vmul.f32 %v6439, 0.2
      %v6518 = vmul.f32 %v6444, 0.2
      %v6519 = vmul.f32 %v6449, 0.2
      %v6520 = vmul.f32 %v6454, 0.2
      %v6521 = vsel %vm6457, %v6299, %v6489
      %v6522 = vsel %vm6458, %v6304, %v6490
      %v6523 = vsel %vm6459, %v6309, %v6491
      %v6524 = vsel %vm6460, %v6314, %v6492
      %v6525 = vsel %vm6461, %v6319, %v6493
      %v6526 = vsel %vm6462, %v6324, %v6494
      %v6527 = vsel %vm6463, %v6329, %v6495
      %v6528 = vsel %vm6464, %v6334, %v6496
      %v6529 = vsel %vm6465, %v6339, %v6497
      %v6530 = vsel %vm6466, %v6344, %v6498
      %v6531 = vsel %vm6467, %v6349, %v6499
      %v6532 = vsel %vm6468, %v6354, %v6500
      %v6533 = vsel %vm6469, %v6359, %v6501
      %v6534 = vsel %vm6470, %v6364, %v6502
      %v6535 = vsel %vm6471, %v6369, %v6503
      %v6536 = vsel %vm6472, %v6374, %v6504
      %v6537 = vsel %vm6473, %v6379, %v6505
      %v6538 = vsel %vm6474, %v6384, %v6506
      %v6539 = vsel %vm6475, %v6389, %v6507
      %v6540 = vsel %vm6476, %v6394, %v6508
      %v6541 = vsel %vm6477, %v6399, %v6509
      %v6542 = vsel %vm6478, %v6404, %v6510
      %v6543 = vsel %vm6479, %v6409, %v6511
      %v6544 = vsel %vm6480, %v6414, %v6512
      %v6545 = vsel %vm6481, %v6419, %v6513
      %v6546 = vsel %vm6482, %v6424, %v6514
      %v6547 = vsel %vm6483, %v6429, %v6515
      %v6548 = vsel %vm6484, %v6434, %v6516
      %v6549 = vsel %vm6485, %v6439, %v6517
      %v6550 = vsel %vm6486, %v6444, %v6518
      %v6551 = vsel %vm6487, %v6449, %v6519
      %v6552 = vsel %vm6488, %v6454, %v6520
      %v6553 = vld [vmem:[%s9 + $0x4] sm:$0xf]
      %v6555 = vsel %vm1477, %v6521, 0
      %v6558 = vsel %vm1477, %v6522, 0
      %v6561 = vsel %vm1477, %v6523, 0
      %v6564 = vsel %vm1477, %v6524, 0
      %v6567 = vsel %vm1477, %v6525, 0
      %v6570 = vsel %vm1477, %v6526, 0
      %v6573 = vsel %vm1477, %v6527, 0
      %v6576 = vsel %vm1477, %v6528, 0
      %v6579 = vsel %vm1477, %v6529, 0
      %v6582 = vsel %vm1477, %v6530, 0
      %v6585 = vsel %vm1477, %v6531, 0
      %v6588 = vsel %vm1477, %v6532, 0
      %v6591 = vsel %vm1477, %v6533, 0
      %v6594 = vsel %vm1477, %v6534, 0
      %v6597 = vsel %vm1477, %v6535, 0
      %v6600 = vsel %vm1477, %v6536, 0
      %v6603 = vsel %vm1477, %v6537, 0
      %v6606 = vsel %vm1477, %v6538, 0
      %v6609 = vsel %vm1477, %v6539, 0
      %v6612 = vsel %vm1477, %v6540, 0
      %v6615 = vsel %vm1477, %v6541, 0
      %v6618 = vsel %vm1477, %v6542, 0
      %v6621 = vsel %vm1477, %v6543, 0
      %v6624 = vsel %vm1477, %v6544, 0
      %v6627 = vsel %vm1477, %v6545, 0
      %v6630 = vsel %vm1477, %v6546, 0
      %v6633 = vsel %vm1477, %v6547, 0
      %v6636 = vsel %vm1477, %v6548, 0
      %v6639 = vsel %vm1477, %v6549, 0
      %v6642 = vsel %vm1477, %v6550, 0
      %v6645 = vsel %vm1477, %v6551, 0
      %v6648 = vsel %vm1477, %v6552, 0
      %v6651 = vsel %vm1850, %v6553, 0
      %6653 = vmatprep.subr.mxu0 0.0
      %6654 = vmatpush1.msra.mxu0 %v6651
      %6655 = vmatprep.subr.mxu0 0.0
      %6656 = vmatpush1.msra.mxu0 0.0
      %6657 = vmatprep.subr.mxu0 0.0
      %6658 = vmatpush1.msra.mxu0 0.0
      %6659 = vmatprep.subr.mxu0 0.0
      %6660 = vmatpush1.msra.mxu0 0.0
      %6661 = vmatprep.subr.mxu0 0.0
      %6662 = vmatpush1.msra.mxu0 0.0
      %6663 = vmatprep.subr.mxu0 0.0
      %6664 = vmatpush1.msra.mxu0 0.0
      %6665 = vmatprep.subr.mxu0 0.0
      %6666 = vmatpush1.msra.mxu0 0.0
      %6667 = vmatprep.subr.mxu0 0.0
      %6668 = vmatpush1.msra.mxu0 0.0
      %6669 = vmatprep.subr.mxu0 0.0
      %6670 = vmatpush1.msra.mxu0 0.0
      %6671 = vmatprep.subr.mxu0 0.0
      %6672 = vmatpush1.msra.mxu0 0.0
      %6673 = vmatprep.subr.mxu0 0.0
      %6674 = vmatpush1.msra.mxu0 0.0
      %6675 = vmatprep.subr.mxu0 0.0
      %6676 = vmatpush1.msra.mxu0 0.0
      %6677 = vmatprep.subr.mxu0 0.0
      %6678 = vmatpush1.msra.mxu0 0.0
      %6679 = vmatprep.subr.mxu0 0.0
      %6680 = vmatpush1.msra.mxu0 0.0
      %6681 = vmatprep.subr.mxu0 0.0
      %6682 = vmatpush1.msra.mxu0 0.0
      %6683 = vmatprep.subr.mxu0 0.0
      %6684 = vmatpush1.msra.mxu0 0.0
      %6685 = vmatprep.subr.mxu0 0.0
      %6686 = vmatpush1.msra.mxu0 0.0
      %6687 = vmatprep.subr.mxu0 0.0
      %6688 = vmatpush1.msra.mxu0 0.0
      %6689 = vmatprep.subr.mxu0 0.0
      %6690 = vmatpush1.msra.mxu0 0.0
      %6691 = vmatprep.subr.mxu0 0.0
      %6692 = vmatpush1.msra.mxu0 0.0
      %6693 = vmatprep.subr.mxu0 0.0
      %6694 = vmatpush1.msra.mxu0 0.0
      %6695 = vmatprep.subr.mxu0 0.0
      %6696 = vmatpush1.msra.mxu0 0.0
      %6697 = vmatprep.subr.mxu0 0.0
      %6698 = vmatpush1.msra.mxu0 0.0
      %6699 = vmatprep.subr.mxu0 0.0
      %6700 = vmatpush1.msra.mxu0 0.0
      %6701 = vmatprep.subr.mxu0 0.0
      %6702 = vmatpush1.msra.mxu0 0.0
      %6703 = vmatprep.subr.mxu0 0.0
      %6704 = vmatpush1.msra.mxu0 0.0
      %6705 = vmatprep.subr.mxu0 0.0
      %6706 = vmatpush1.msra.mxu0 0.0
      %6707 = vmatprep.subr.mxu0 0.0
      %6708 = vmatpush1.msra.mxu0 0.0
      %6709 = vmatprep.subr.mxu0 0.0
      %6710 = vmatpush1.msra.mxu0 0.0
      %6711 = vmatprep.subr.mxu0 0.0
      %6712 = vmatpush1.msra.mxu0 0.0
      %6713 = vmatprep.subr.mxu0 0.0
      %6714 = vmatpush1.msra.mxu0 0.0
      %6715 = vmatprep.subr.mxu0 0.0
      %6716 = vmatpush1.msra.mxu0 0.0
      %6717 = vmatprep.mubr.f32.mxu0 0.0
      %6718 = vmatmul.mubr.f32.gmra.mrb[0].mxu0 %v6555
      %v6719 = vpop.f32.mrb[0].mxu0
      %v6720 = vadd.f32 0.0, %v6719
      %v6721 = vpop.f32.mrb[0].mxu0
      %6722 = vmatprep.mubr.f32.mxu0 0.0
      %6723 = vmatmul.mubr.f32.gmra.mrb[0].mxu0 %v6558
      %v6724 = vpop.f32.mrb[0].mxu0
      %v6725 = vadd.f32 0.0, %v6724
      %v6726 = vpop.f32.mrb[0].mxu0
      %6727 = vmatprep.mubr.f32.mxu0 0.0
      %6728 = vmatmul.mubr.f32.gmra.mrb[0].mxu0 %v6561
      %v6729 = vpop.f32.mrb[0].mxu0
      %v6730 = vadd.f32 0.0, %v6729
      %v6731 = vpop.f32.mrb[0].mxu0
      %6732 = vmatprep.mubr.f32.mxu0 0.0
      %6733 = vmatmul.mubr.f32.gmra.mrb[0].mxu0 %v6564
      %v6734 = vpop.f32.mrb[0].mxu0
      %v6735 = vadd.f32 0.0, %v6734
      %v6736 = vpop.f32.mrb[0].mxu0
      %6737 = vmatprep.mubr.f32.mxu0 0.0
      %6738 = vmatmul.mubr.f32.gmra.mrb[0].mxu0 %v6567
      %v6739 = vpop.f32.mrb[0].mxu0
      %v6740 = vadd.f32 0.0, %v6739
      %v6741 = vpop.f32.mrb[0].mxu0
      %6742 = vmatprep.mubr.f32.mxu0 0.0
      %6743 = vmatmul.mubr.f32.gmra.mrb[0].mxu0 %v6570
      %v6744 = vpop.f32.mrb[0].mxu0
      %v6745 = vadd.f32 0.0, %v6744
      %v6746 = vpop.f32.mrb[0].mxu0
      %6747 = vmatprep.mubr.f32.mxu0 0.0
      %6748 = vmatmul.mubr.f32.gmra.mrb[0].mxu0 %v6573
      %v6749 = vpop.f32.mrb[0].mxu0
      %v6750 = vadd.f32 0.0, %v6749
      %v6751 = vpop.f32.mrb[0].mxu0
      %6752 = vmatprep.mubr.f32.mxu0 0.0
      %6753 = vmatmul.mubr.f32.gmra.mrb[0].mxu0 %v6576
      %v6754 = vpop.f32.mrb[0].mxu0
      %v6755 = vadd.f32 0.0, %v6754
      %v6756 = vpop.f32.mrb[0].mxu0
      %6757 = vmatprep.mubr.f32.mxu0 0.0
      %6758 = vmatmul.mubr.f32.gmra.mrb[0].mxu0 %v6579
      %v6759 = vpop.f32.mrb[0].mxu0
      %v6760 = vadd.f32 0.0, %v6759
      %v6761 = vpop.f32.mrb[0].mxu0
      %6762 = vmatprep.mubr.f32.mxu0 0.0
      %6763 = vmatmul.mubr.f32.gmra.mrb[0].mxu0 %v6582
      %v6764 = vpop.f32.mrb[0].mxu0
      %v6765 = vadd.f32 0.0, %v6764
      %v6766 = vpop.f32.mrb[0].mxu0
      %6767 = vmatprep.mubr.f32.mxu0 0.0
      %6768 = vmatmul.mubr.f32.gmra.mrb[0].mxu0 %v6585
      %v6769 = vpop.f32.mrb[0].mxu0
      %v6770 = vadd.f32 0.0, %v6769
      %v6771 = vpop.f32.mrb[0].mxu0
      %6772 = vmatprep.mubr.f32.mxu0 0.0
      %6773 = vmatmul.mubr.f32.gmra.mrb[0].mxu0 %v6588
      %v6774 = vpop.f32.mrb[0].mxu0
      %v6775 = vadd.f32 0.0, %v6774
      %v6776 = vpop.f32.mrb[0].mxu0
      %6777 = vmatprep.mubr.f32.mxu0 0.0
      %6778 = vmatmul.mubr.f32.gmra.mrb[0].mxu0 %v6591
      %v6779 = vpop.f32.mrb[0].mxu0
      %v6780 = vadd.f32 0.0, %v6779
      %v6781 = vpop.f32.mrb[0].mxu0
      %6782 = vmatprep.mubr.f32.mxu0 0.0
      %6783 = vmatmul.mubr.f32.gmra.mrb[0].mxu0 %v6594
      %v6784 = vpop.f32.mrb[0].mxu0
      %v6785 = vadd.f32 0.0, %v6784
      %v6786 = vpop.f32.mrb[0].mxu0
      %6787 = vmatprep.mubr.f32.mxu0 0.0
      %6788 = vmatmul.mubr.f32.gmra.mrb[0].mxu0 %v6597
      %v6789 = vpop.f32.mrb[0].mxu0
      %v6790 = vadd.f32 0.0, %v6789
      %v6791 = vpop.f32.mrb[0].mxu0
      %6792 = vmatprep.mubr.f32.mxu0 0.0
      %6793 = vmatmul.mubr.f32.gmra.mrb[0].mxu0 %v6600
      %v6794 = vpop.f32.mrb[0].mxu0
      %v6795 = vadd.f32 0.0, %v6794
      %v6796 = vpop.f32.mrb[0].mxu0
      %6797 = vmatprep.mubr.f32.mxu0 0.0
      %6798 = vmatmul.mubr.f32.gmra.mrb[0].mxu0 %v6603
      %v6799 = vpop.f32.mrb[0].mxu0
      %v6800 = vadd.f32 0.0, %v6799
      %v6801 = vpop.f32.mrb[0].mxu0
      %6802 = vmatprep.mubr.f32.mxu0 0.0
      %6803 = vmatmul.mubr.f32.gmra.mrb[0].mxu0 %v6606
      %v6804 = vpop.f32.mrb[0].mxu0
      %v6805 = vadd.f32 0.0, %v6804
      %v6806 = vpop.f32.mrb[0].mxu0
      %6807 = vmatprep.mubr.f32.mxu0 0.0
      %6808 = vmatmul.mubr.f32.gmra.mrb[0].mxu0 %v6609
      %v6809 = vpop.f32.mrb[0].mxu0
      %v6810 = vadd.f32 0.0, %v6809
      %v6811 = vpop.f32.mrb[0].mxu0
      %6812 = vmatprep.mubr.f32.mxu0 0.0
      %6813 = vmatmul.mubr.f32.gmra.mrb[0].mxu0 %v6612
      %v6814 = vpop.f32.mrb[0].mxu0
      %v6815 = vadd.f32 0.0, %v6814
      %v6816 = vpop.f32.mrb[0].mxu0
      %6817 = vmatprep.mubr.f32.mxu0 0.0
      %6818 = vmatmul.mubr.f32.gmra.mrb[0].mxu0 %v6615
      %v6819 = vpop.f32.mrb[0].mxu0
      %v6820 = vadd.f32 0.0, %v6819
      %v6821 = vpop.f32.mrb[0].mxu0
      %6822 = vmatprep.mubr.f32.mxu0 0.0
      %6823 = vmatmul.mubr.f32.gmra.mrb[0].mxu0 %v6618
      %v6824 = vpop.f32.mrb[0].mxu0
      %v6825 = vadd.f32 0.0, %v6824
      %v6826 = vpop.f32.mrb[0].mxu0
      %6827 = vmatprep.mubr.f32.mxu0 0.0
      %6828 = vmatmul.mubr.f32.gmra.mrb[0].mxu0 %v6621
      %v6829 = vpop.f32.mrb[0].mxu0
      %v6830 = vadd.f32 0.0, %v6829
      %v6831 = vpop.f32.mrb[0].mxu0
      %6832 = vmatprep.mubr.f32.mxu0 0.0
      %6833 = vmatmul.mubr.f32.gmra.mrb[0].mxu0 %v6624
      %v6834 = vpop.f32.mrb[0].mxu0
      %v6835 = vadd.f32 0.0, %v6834
      %v6836 = vpop.f32.mrb[0].mxu0
      %6837 = vmatprep.mubr.f32.mxu0 0.0
      %6838 = vmatmul.mubr.f32.gmra.mrb[0].mxu0 %v6627
      %v6839 = vpop.f32.mrb[0].mxu0
      %v6840 = vadd.f32 0.0, %v6839
      %v6841 = vpop.f32.mrb[0].mxu0
      %6842 = vmatprep.mubr.f32.mxu0 0.0
      %6843 = vmatmul.mubr.f32.gmra.mrb[0].mxu0 %v6630
      %v6844 = vpop.f32.mrb[0].mxu0
      %v6845 = vadd.f32 0.0, %v6844
      %v6846 = vpop.f32.mrb[0].mxu0
      %6847 = vmatprep.mubr.f32.mxu0 0.0
      %6848 = vmatmul.mubr.f32.gmra.mrb[0].mxu0 %v6633
      %v6849 = vpop.f32.mrb[0].mxu0
      %v6850 = vadd.f32 0.0, %v6849
      %v6851 = vpop.f32.mrb[0].mxu0
      %6852 = vmatprep.mubr.f32.mxu0 0.0
      %6853 = vmatmul.mubr.f32.gmra.mrb[0].mxu0 %v6636
      %v6854 = vpop.f32.mrb[0].mxu0
      %v6855 = vadd.f32 0.0, %v6854
      %v6856 = vpop.f32.mrb[0].mxu0
      %6857 = vmatprep.mubr.f32.mxu0 0.0
      %6858 = vmatmul.mubr.f32.gmra.mrb[0].mxu0 %v6639
      %v6859 = vpop.f32.mrb[0].mxu0
      %v6860 = vadd.f32 0.0, %v6859
      %v6861 = vpop.f32.mrb[0].mxu0
      %6862 = vmatprep.mubr.f32.mxu0 0.0
      %6863 = vmatmul.mubr.f32.gmra.mrb[0].mxu0 %v6642
      %v6864 = vpop.f32.mrb[0].mxu0
      %v6865 = vadd.f32 0.0, %v6864
      %v6866 = vpop.f32.mrb[0].mxu0
      %6867 = vmatprep.mubr.f32.mxu0 0.0
      %6868 = vmatmul.mubr.f32.gmra.mrb[0].mxu0 %v6645
      %v6869 = vpop.f32.mrb[0].mxu0
      %v6870 = vadd.f32 0.0, %v6869
      %v6871 = vpop.f32.mrb[0].mxu0
      %6872 = vmatprep.mubr.f32.mxu0 0.0
      %6873 = vmatmul.mubr.f32.gmra.mrb[0].mxu0 %v6648
      %v6874 = vpop.f32.mrb[0].mxu0
      %v6875 = vadd.f32 0.0, %v6874
      %v6876 = vpop.f32.mrb[0].mxu0
      %6877 = vdwg.mxu0
      %v6878 = vadd.f32 %v4679, %v6720
      %v6879 = vadd.f32 %v4680, %v6725
      %v6880 = vadd.f32 %v4681, %v6730
      %v6881 = vadd.f32 %v4682, %v6735
      %v6882 = vadd.f32 %v4683, %v6740
      %v6883 = vadd.f32 %v4684, %v6745
      %v6884 = vadd.f32 %v4685, %v6750
      %v6885 = vadd.f32 %v4686, %v6755
      %v6886 = vadd.f32 %v4687, %v6760
      %v6887 = vadd.f32 %v4688, %v6765
      %v6888 = vadd.f32 %v4689, %v6770
      %v6889 = vadd.f32 %v4690, %v6775
      %v6890 = vadd.f32 %v4691, %v6780
      %v6891 = vadd.f32 %v4692, %v6785
      %v6892 = vadd.f32 %v4693, %v6790
      %v6893 = vadd.f32 %v4694, %v6795
      %v6894 = vadd.f32 %v4695, %v6800
      %v6895 = vadd.f32 %v4696, %v6805
      %v6896 = vadd.f32 %v4697, %v6810
      %v6897 = vadd.f32 %v4698, %v6815
      %v6898 = vadd.f32 %v4699, %v6820
      %v6899 = vadd.f32 %v4700, %v6825
      %v6900 = vadd.f32 %v4701, %v6830
      %v6901 = vadd.f32 %v4702, %v6835
      %v6902 = vadd.f32 %v4703, %v6840
      %v6903 = vadd.f32 %v4704, %v6845
      %v6904 = vadd.f32 %v4705, %v6850
      %v6905 = vadd.f32 %v4706, %v6855
      %v6906 = vadd.f32 %v4707, %v6860
      %v6907 = vadd.f32 %v4708, %v6865
      %v6908 = vadd.f32 %v4709, %v6870
      %v6909 = vadd.f32 %v4710, %v6875
      %v6910 = vld [vmem:[#allocation2] sm:$0xff]
      %v6911 = vld [vmem:[#allocation2 + $0x8] sm:$0xff]
      %v6912 = vld [vmem:[#allocation2 + $0x20] sm:$0xff]
      %v6913 = vld [vmem:[#allocation2 + $0x28] sm:$0xff]
      %v6914 = vld [vmem:[#allocation2 + $0x40] sm:$0xff]
      %v6915 = vld [vmem:[#allocation2 + $0x48] sm:$0xff]
      %v6916 = vld [vmem:[#allocation2 + $0x60] sm:$0xff]
      %v6917 = vld [vmem:[#allocation2 + $0x68] sm:$0xff]
      %v6918 = vld [vmem:[#allocation2 + $0x80] sm:$0xff]
      %v6919 = vld [vmem:[#allocation2 + $0x88] sm:$0xff]
      %v6920 = vld [vmem:[#allocation2 + $0xa0] sm:$0xff]
      %v6921 = vld [vmem:[#allocation2 + $0xa8] sm:$0xff]
      %v6922 = vld [vmem:[#allocation2 + $0xc0] sm:$0xff]
      %v6923 = vld [vmem:[#allocation2 + $0xc8] sm:$0xff]
      %v6924 = vld [vmem:[#allocation2 + $0xe0] sm:$0xff]
      %v6925 = vld [vmem:[#allocation2 + $0xe8] sm:$0xff]
      %v6926 = vld [vmem:[#allocation2 + $0x100] sm:$0xff]
      %v6927 = vld [vmem:[#allocation2 + $0x108] sm:$0xff]
      %v6928 = vld [vmem:[#allocation2 + $0x120] sm:$0xff]
      %v6929 = vld [vmem:[#allocation2 + $0x128] sm:$0xff]
      %v6930 = vld [vmem:[#allocation2 + $0x140] sm:$0xff]
      %v6931 = vld [vmem:[#allocation2 + $0x148] sm:$0xff]
      %v6932 = vld [vmem:[#allocation2 + $0x160] sm:$0xff]
      %v6933 = vld [vmem:[#allocation2 + $0x168] sm:$0xff]
      %v6934 = vld [vmem:[#allocation2 + $0x180] sm:$0xff]
      %v6935 = vld [vmem:[#allocation2 + $0x188] sm:$0xff]
      %v6936 = vld [vmem:[#allocation2 + $0x1a0] sm:$0xff]
      %v6937 = vld [vmem:[#allocation2 + $0x1a8] sm:$0xff]
      %v6938 = vld [vmem:[#allocation2 + $0x1c0] sm:$0xff]
      %v6939 = vld [vmem:[#allocation2 + $0x1c8] sm:$0xff]
      %v6940 = vld [vmem:[#allocation2 + $0x1e0] sm:$0xff]
      %v6941 = vld [vmem:[#allocation2 + $0x1e8] sm:$0xff]
      %v6942 = vld [vmem:[#allocation2 + $0x5] sm:$0xff]
      %v6943 = vld [vmem:[#allocation2 + $0xd] sm:$0xff]
      %v6944 = vld [vmem:[#allocation2 + $0x25] sm:$0xff]
      %v6945 = vld [vmem:[#allocation2 + $0x2d] sm:$0xff]
      %v6946 = vld [vmem:[#allocation2 + $0x45] sm:$0xff]
      %v6947 = vld [vmem:[#allocation2 + $0x4d] sm:$0xff]
      %v6948 = vld [vmem:[#allocation2 + $0x65] sm:$0xff]
      %v6949 = vld [vmem:[#allocation2 + $0x6d] sm:$0xff]
      %v6950 = vld [vmem:[#allocation2 + $0x85] sm:$0xff]
      %v6951 = vld [vmem:[#allocation2 + $0x8d] sm:$0xff]
      %v6952 = vld [vmem:[#allocation2 + $0xa5] sm:$0xff]
      %v6953 = vld [vmem:[#allocation2 + $0xad] sm:$0xff]
      %v6954 = vld [vmem:[#allocation2 + $0xc5] sm:$0xff]
      %v6955 = vld [vmem:[#allocation2 + $0xcd] sm:$0xff]
      %v6956 = vld [vmem:[#allocation2 + $0xe5] sm:$0xff]
      %v6957 = vld [vmem:[#allocation2 + $0xed] sm:$0xff]
      %v6958 = vld [vmem:[#allocation2 + $0x105] sm:$0xff]
      %v6959 = vld [vmem:[#allocation2 + $0x10d] sm:$0xff]
      %v6960 = vld [vmem:[#allocation2 + $0x125] sm:$0xff]
      %v6961 = vld [vmem:[#allocation2 + $0x12d] sm:$0xff]
      %v6962 = vld [vmem:[#allocation2 + $0x145] sm:$0xff]
      %v6963 = vld [vmem:[#allocation2 + $0x14d] sm:$0xff]
      %v6964 = vld [vmem:[#allocation2 + $0x165] sm:$0xff]
      %v6965 = vld [vmem:[#allocation2 + $0x16d] sm:$0xff]
      %v6966 = vld [vmem:[#allocation2 + $0x185] sm:$0xff]
      %v6967 = vld [vmem:[#allocation2 + $0x18d] sm:$0xff]
      %v6968 = vld [vmem:[#allocation2 + $0x1a5] sm:$0xff]
      %v6969 = vld [vmem:[#allocation2 + $0x1ad] sm:$0xff]
      %v6970 = vld [vmem:[#allocation2 + $0x1c5] sm:$0xff]
      %v6971 = vld [vmem:[#allocation2 + $0x1cd] sm:$0xff]
      %v6972 = vld [vmem:[#allocation2 + $0x1e5] sm:$0xff]
      %v6973 = vld [vmem:[#allocation2 + $0x1ed] sm:$0xff]
      %v6974 = vld [vmem:[#allocation2 + $0xa] sm:$0xff]
      %v6975 = vld [vmem:[#allocation2 + $0x12] sm:$0xff]
      %v6976 = vld [vmem:[#allocation2 + $0x2a] sm:$0xff]
      %v6977 = vld [vmem:[#allocation2 + $0x32] sm:$0xff]
      %v6978 = vld [vmem:[#allocation2 + $0x4a] sm:$0xff]
      %v6979 = vld [vmem:[#allocation2 + $0x52] sm:$0xff]
      %v6980 = vld [vmem:[#allocation2 + $0x6a] sm:$0xff]
      %v6981 = vld [vmem:[#allocation2 + $0x72] sm:$0xff]
      %v6982 = vld [vmem:[#allocation2 + $0x8a] sm:$0xff]
      %v6983 = vld [vmem:[#allocation2 + $0x92] sm:$0xff]
      %v6984 = vld [vmem:[#allocation2 + $0xaa] sm:$0xff]
      %v6985 = vld [vmem:[#allocation2 + $0xb2] sm:$0xff]
      %v6986 = vld [vmem:[#allocation2 + $0xca] sm:$0xff]
      %v6987 = vld [vmem:[#allocation2 + $0xd2] sm:$0xff]
      %v6988 = vld [vmem:[#allocation2 + $0xea] sm:$0xff]
      %v6989 = vld [vmem:[#allocation2 + $0xf2] sm:$0xff]
      %v6990 = vld [vmem:[#allocation2 + $0x10a] sm:$0xff]
      %v6991 = vld [vmem:[#allocation2 + $0x112] sm:$0xff]
      %v6992 = vld [vmem:[#allocation2 + $0x12a] sm:$0xff]
      %v6993 = vld [vmem:[#allocation2 + $0x132] sm:$0xff]
      %v6994 = vld [vmem:[#allocation2 + $0x14a] sm:$0xff]
      %v6995 = vld [vmem:[#allocation2 + $0x152] sm:$0xff]
      %v6996 = vld [vmem:[#allocation2 + $0x16a] sm:$0xff]
      %v6997 = vld [vmem:[#allocation2 + $0x172] sm:$0xff]
      %v6998 = vld [vmem:[#allocation2 + $0x18a] sm:$0xff]
      %v6999 = vld [vmem:[#allocation2 + $0x192] sm:$0xff]
      %v7000 = vld [vmem:[#allocation2 + $0x1aa] sm:$0xff]
      %v7001 = vld [vmem:[#allocation2 + $0x1b2] sm:$0xff]
      %v7002 = vld [vmem:[#allocation2 + $0x1ca] sm:$0xff]
      %v7003 = vld [vmem:[#allocation2 + $0x1d2] sm:$0xff]
      %v7004 = vld [vmem:[#allocation2 + $0x1ea] sm:$0xff]
      %v7005 = vld [vmem:[#allocation2 + $0x1f2] sm:$0xff]
      %v7006 = vld [vmem:[%s2280] sm:$0xff]
      %v7007 = vld [vmem:[%s2280 + $0x8] sm:$0xff]
      %v7008 = vld [vmem:[%s2280 + $0x20] sm:$0xff]
      %v7009 = vld [vmem:[%s2280 + $0x28] sm:$0xff]
      %v7010 = vld [vmem:[%s2280 + $0x40] sm:$0xff]
      %v7011 = vld [vmem:[%s2280 + $0x48] sm:$0xff]
      %v7012 = vld [vmem:[%s2280 + $0x60] sm:$0xff]
      %v7013 = vld [vmem:[%s2280 + $0x68] sm:$0xff]
      %v7014 = vld [vmem:[%s2280 + $0x80] sm:$0xff]
      %v7015 = vld [vmem:[%s2280 + $0x88] sm:$0xff]
      %v7016 = vld [vmem:[%s2280 + $0xa0] sm:$0xff]
      %v7017 = vld [vmem:[%s2280 + $0xa8] sm:$0xff]
      %v7018 = vld [vmem:[%s2280 + $0xc0] sm:$0xff]
      %v7019 = vld [vmem:[%s2280 + $0xc8] sm:$0xff]
      %v7020 = vld [vmem:[%s2280 + $0xe0] sm:$0xff]
      %v7021 = vld [vmem:[%s2280 + $0xe8] sm:$0xff]
      %v7022 = vld [vmem:[%s2280 + $0x100] sm:$0xff]
      %v7023 = vld [vmem:[%s2280 + $0x108] sm:$0xff]
      %v7024 = vld [vmem:[%s2280 + $0x120] sm:$0xff]
      %v7025 = vld [vmem:[%s2280 + $0x128] sm:$0xff]
      %v7026 = vld [vmem:[%s2280 + $0x140] sm:$0xff]
      %v7027 = vld [vmem:[%s2280 + $0x148] sm:$0xff]
      %v7028 = vld [vmem:[%s2280 + $0x160] sm:$0xff]
      %v7029 = vld [vmem:[%s2280 + $0x168] sm:$0xff]
      %v7030 = vld [vmem:[%s2280 + $0x180] sm:$0xff]
      %v7031 = vld [vmem:[%s2280 + $0x188] sm:$0xff]
      %v7032 = vld [vmem:[%s2280 + $0x1a0] sm:$0xff]
      %v7033 = vld [vmem:[%s2280 + $0x1a8] sm:$0xff]
      %v7034 = vld [vmem:[%s2280 + $0x1c0] sm:$0xff]
      %v7035 = vld [vmem:[%s2280 + $0x1c8] sm:$0xff]
      %v7036 = vld [vmem:[%s2280 + $0x1e0] sm:$0xff]
      %v7037 = vld [vmem:[%s2280 + $0x1e8] sm:$0xff]
      %v7038 = vld [vmem:[%s2280 + $0xa] sm:$0xff]
      %v7039 = vld [vmem:[%s2280 + $0x12] sm:$0xff]
      %v7040 = vld [vmem:[%s2280 + $0x2a] sm:$0xff]
      %v7041 = vld [vmem:[%s2280 + $0x32] sm:$0xff]
      %v7042 = vld [vmem:[%s2280 + $0x4a] sm:$0xff]
      %v7043 = vld [vmem:[%s2280 + $0x52] sm:$0xff]
      %v7044 = vld [vmem:[%s2280 + $0x6a] sm:$0xff]
      %v7045 = vld [vmem:[%s2280 + $0x72] sm:$0xff]
      %v7046 = vld [vmem:[%s2280 + $0x8a] sm:$0xff]
      %v7047 = vld [vmem:[%s2280 + $0x92] sm:$0xff]
      %v7048 = vld [vmem:[%s2280 + $0xaa] sm:$0xff]
      %v7049 = vld [vmem:[%s2280 + $0xb2] sm:$0xff]
      %v7050 = vld [vmem:[%s2280 + $0xca] sm:$0xff]
      %v7051 = vld [vmem:[%s2280 + $0xd2] sm:$0xff]
      %v7052 = vld [vmem:[%s2280 + $0xea] sm:$0xff]
      %v7053 = vld [vmem:[%s2280 + $0xf2] sm:$0xff]
      %v7054 = vld [vmem:[%s2280 + $0x10a] sm:$0xff]
      %v7055 = vld [vmem:[%s2280 + $0x112] sm:$0xff]
      %v7056 = vld [vmem:[%s2280 + $0x12a] sm:$0xff]
      %v7057 = vld [vmem:[%s2280 + $0x132] sm:$0xff]
      %v7058 = vld [vmem:[%s2280 + $0x14a] sm:$0xff]
      %v7059 = vld [vmem:[%s2280 + $0x152] sm:$0xff]
      %v7060 = vld [vmem:[%s2280 + $0x16a] sm:$0xff]
      %v7061 = vld [vmem:[%s2280 + $0x172] sm:$0xff]
      %v7062 = vld [vmem:[%s2280 + $0x18a] sm:$0xff]
      %v7063 = vld [vmem:[%s2280 + $0x192] sm:$0xff]
      %v7064 = vld [vmem:[%s2280 + $0x1aa] sm:$0xff]
      %v7065 = vld [vmem:[%s2280 + $0x1b2] sm:$0xff]
      %v7066 = vld [vmem:[%s2280 + $0x1ca] sm:$0xff]
      %v7067 = vld [vmem:[%s2280 + $0x1d2] sm:$0xff]
      %v7068 = vld [vmem:[%s2280 + $0x1ea] sm:$0xff]
      %v7069 = vld [vmem:[%s2280 + $0x1f2] sm:$0xff]
      %s7070 = scalar_lea.vmem [#allocation2], 320
      %v7071 = vld [vmem:[%s7070] sm:$0xff]
      %v7072 = vld [vmem:[%s7070 + $0x8] sm:$0xff]
      %v7073 = vld [vmem:[%s7070 + $0x20] sm:$0xff]
      %v7074 = vld [vmem:[%s7070 + $0x28] sm:$0xff]
      %v7075 = vld [vmem:[%s7070 + $0x40] sm:$0xff]
      %v7076 = vld [vmem:[%s7070 + $0x48] sm:$0xff]
      %v7077 = vld [vmem:[%s7070 + $0x60] sm:$0xff]
      %v7078 = vld [vmem:[%s7070 + $0x68] sm:$0xff]
      %v7079 = vld [vmem:[%s7070 + $0x80] sm:$0xff]
      %v7080 = vld [vmem:[%s7070 + $0x88] sm:$0xff]
      %v7081 = vld [vmem:[%s7070 + $0xa0] sm:$0xff]
      %v7082 = vld [vmem:[%s7070 + $0xa8] sm:$0xff]
      %v7083 = vld [vmem:[%s7070 + $0xc0] sm:$0xff]
      %v7084 = vld [vmem:[%s7070 + $0xc8] sm:$0xff]
      %v7085 = vld [vmem:[%s7070 + $0xe0] sm:$0xff]
      %v7086 = vld [vmem:[%s7070 + $0xe8] sm:$0xff]
      %v7087 = vld [vmem:[%s7070 + $0x100] sm:$0xff]
      %v7088 = vld [vmem:[%s7070 + $0x108] sm:$0xff]
      %v7089 = vld [vmem:[%s7070 + $0x120] sm:$0xff]
      %v7090 = vld [vmem:[%s7070 + $0x128] sm:$0xff]
      %v7091 = vld [vmem:[%s7070 + $0x140] sm:$0xff]
      %v7092 = vld [vmem:[%s7070 + $0x148] sm:$0xff]
      %v7093 = vld [vmem:[%s7070 + $0x160] sm:$0xff]
      %v7094 = vld [vmem:[%s7070 + $0x168] sm:$0xff]
      %v7095 = vld [vmem:[%s7070 + $0x180] sm:$0xff]
      %v7096 = vld [vmem:[%s7070 + $0x188] sm:$0xff]
      %v7097 = vld [vmem:[%s7070 + $0x1a0] sm:$0xff]
      %v7098 = vld [vmem:[%s7070 + $0x1a8] sm:$0xff]
      %v7099 = vld [vmem:[%s7070 + $0x1c0] sm:$0xff]
      %v7100 = vld [vmem:[%s7070 + $0x1c8] sm:$0xff]
      %v7101 = vld [vmem:[%s7070 + $0x1e0] sm:$0xff]
      %v7102 = vld [vmem:[%s7070 + $0x1e8] sm:$0xff]
      %v7103 = vld [vmem:[%s7070 + $0x5] sm:$0xff]
      %v7104 = vld [vmem:[%s7070 + $0xd] sm:$0xff]
      %v7105 = vld [vmem:[%s7070 + $0x25] sm:$0xff]
      %v7106 = vld [vmem:[%s7070 + $0x2d] sm:$0xff]
      %v7107 = vld [vmem:[%s7070 + $0x45] sm:$0xff]
      %v7108 = vld [vmem:[%s7070 + $0x4d] sm:$0xff]
      %v7109 = vld [vmem:[%s7070 + $0x65] sm:$0xff]
      %v7110 = vld [vmem:[%s7070 + $0x6d] sm:$0xff]
      %v7111 = vld [vmem:[%s7070 + $0x85] sm:$0xff]
      %v7112 = vld [vmem:[%s7070 + $0x8d] sm:$0xff]
      %v7113 = vld [vmem:[%s7070 + $0xa5] sm:$0xff]
      %v7114 = vld [vmem:[%s7070 + $0xad] sm:$0xff]
      %v7115 = vld [vmem:[%s7070 + $0xc5] sm:$0xff]
      %v7116 = vld [vmem:[%s7070 + $0xcd] sm:$0xff]
      %v7117 = vld [vmem:[%s7070 + $0xe5] sm:$0xff]
      %v7118 = vld [vmem:[%s7070 + $0xed] sm:$0xff]
      %v7119 = vld [vmem:[%s7070 + $0x105] sm:$0xff]
      %v7120 = vld [vmem:[%s7070 + $0x10d] sm:$0xff]
      %v7121 = vld [vmem:[%s7070 + $0x125] sm:$0xff]
      %v7122 = vld [vmem:[%s7070 + $0x12d] sm:$0xff]
      %v7123 = vld [vmem:[%s7070 + $0x145] sm:$0xff]
      %v7124 = vld [vmem:[%s7070 + $0x14d] sm:$0xff]
      %v7125 = vld [vmem:[%s7070 + $0x165] sm:$0xff]
      %v7126 = vld [vmem:[%s7070 + $0x16d] sm:$0xff]
      %v7127 = vld [vmem:[%s7070 + $0x185] sm:$0xff]
      %v7128 = vld [vmem:[%s7070 + $0x18d] sm:$0xff]
      %v7129 = vld [vmem:[%s7070 + $0x1a5] sm:$0xff]
      %v7130 = vld [vmem:[%s7070 + $0x1ad] sm:$0xff]
      %v7131 = vld [vmem:[%s7070 + $0x1c5] sm:$0xff]
      %v7132 = vld [vmem:[%s7070 + $0x1cd] sm:$0xff]
      %v7133 = vld [vmem:[%s7070 + $0x1e5] sm:$0xff]
      %v7134 = vld [vmem:[%s7070 + $0x1ed] sm:$0xff]
      %v7135 = vld [vmem:[%s7070 + $0xa] sm:$0xff]
      %v7136 = vld [vmem:[%s7070 + $0x12] sm:$0xff]
      %v7137 = vld [vmem:[%s7070 + $0x2a] sm:$0xff]
      %v7138 = vld [vmem:[%s7070 + $0x32] sm:$0xff]
      %v7139 = vld [vmem:[%s7070 + $0x4a] sm:$0xff]
      %v7140 = vld [vmem:[%s7070 + $0x52] sm:$0xff]
      %v7141 = vld [vmem:[%s7070 + $0x6a] sm:$0xff]
      %v7142 = vld [vmem:[%s7070 + $0x72] sm:$0xff]
      %v7143 = vld [vmem:[%s7070 + $0x8a] sm:$0xff]
      %v7144 = vld [vmem:[%s7070 + $0x92] sm:$0xff]
      %v7145 = vld [vmem:[%s7070 + $0xaa] sm:$0xff]
      %v7146 = vld [vmem:[%s7070 + $0xb2] sm:$0xff]
      %v7147 = vld [vmem:[%s7070 + $0xca] sm:$0xff]
      %v7148 = vld [vmem:[%s7070 + $0xd2] sm:$0xff]
      %v7149 = vld [vmem:[%s7070 + $0xea] sm:$0xff]
      %v7150 = vld [vmem:[%s7070 + $0xf2] sm:$0xff]
      %v7151 = vld [vmem:[%s7070 + $0x10a] sm:$0xff]
      %v7152 = vld [vmem:[%s7070 + $0x112] sm:$0xff]
      %v7153 = vld [vmem:[%s7070 + $0x12a] sm:$0xff]
      %v7154 = vld [vmem:[%s7070 + $0x132] sm:$0xff]
      %v7155 = vld [vmem:[%s7070 + $0x14a] sm:$0xff]
      %v7156 = vld [vmem:[%s7070 + $0x152] sm:$0xff]
      %v7157 = vld [vmem:[%s7070 + $0x16a] sm:$0xff]
      %v7158 = vld [vmem:[%s7070 + $0x172] sm:$0xff]
      %v7159 = vld [vmem:[%s7070 + $0x18a] sm:$0xff]
      %v7160 = vld [vmem:[%s7070 + $0x192] sm:$0xff]
      %v7161 = vld [vmem:[%s7070 + $0x1aa] sm:$0xff]
      %v7162 = vld [vmem:[%s7070 + $0x1b2] sm:$0xff]
      %v7163 = vld [vmem:[%s7070 + $0x1ca] sm:$0xff]
      %v7164 = vld [vmem:[%s7070 + $0x1d2] sm:$0xff]
      %v7165 = vld [vmem:[%s7070 + $0x1ea] sm:$0xff]
      %v7166 = vld [vmem:[%s7070 + $0x1f2] sm:$0xff]
      %7199 = vrot.lane.b32.xlu0 %v6942, 4
      %v7200 = vpop.permute.xlu0 %7199
      %7201 = vrot.lane.b32.xlu0 %v6943, 4
      %v7202 = vpop.permute.xlu0 %7201
      %7203 = vrot.lane.b32.xlu0 %v6944, 4
      %v7204 = vpop.permute.xlu0 %7203
      %7205 = vrot.lane.b32.xlu0 %v6945, 4
      %v7206 = vpop.permute.xlu0 %7205
      %7207 = vrot.lane.b32.xlu0 %v6946, 4
      %v7208 = vpop.permute.xlu0 %7207
      %7209 = vrot.lane.b32.xlu0 %v6947, 4
      %v7210 = vpop.permute.xlu0 %7209
      %7211 = vrot.lane.b32.xlu0 %v6948, 4
      %v7212 = vpop.permute.xlu0 %7211
      %7213 = vrot.lane.b32.xlu0 %v6949, 4
      %v7214 = vpop.permute.xlu0 %7213
      %7215 = vrot.lane.b32.xlu0 %v6950, 4
      %v7216 = vpop.permute.xlu0 %7215
      %7217 = vrot.lane.b32.xlu0 %v6951, 4
      %v7218 = vpop.permute.xlu0 %7217
      %7219 = vrot.lane.b32.xlu0 %v6952, 4
      %v7220 = vpop.permute.xlu0 %7219
      %7221 = vrot.lane.b32.xlu0 %v6953, 4
      %v7222 = vpop.permute.xlu0 %7221
      %7223 = vrot.lane.b32.xlu0 %v6954, 4
      %v7224 = vpop.permute.xlu0 %7223
      %7225 = vrot.lane.b32.xlu0 %v6955, 4
      %v7226 = vpop.permute.xlu0 %7225
      %7227 = vrot.lane.b32.xlu0 %v6956, 4
      %v7228 = vpop.permute.xlu0 %7227
      %7229 = vrot.lane.b32.xlu0 %v6957, 4
      %v7230 = vpop.permute.xlu0 %7229
      %7231 = vrot.lane.b32.xlu0 %v6958, 4
      %v7232 = vpop.permute.xlu0 %7231
      %7233 = vrot.lane.b32.xlu0 %v6959, 4
      %v7234 = vpop.permute.xlu0 %7233
      %7235 = vrot.lane.b32.xlu0 %v6960, 4
      %v7236 = vpop.permute.xlu0 %7235
      %7237 = vrot.lane.b32.xlu0 %v6961, 4
      %v7238 = vpop.permute.xlu0 %7237
      %7239 = vrot.lane.b32.xlu0 %v6962, 4
      %v7240 = vpop.permute.xlu0 %7239
      %7241 = vrot.lane.b32.xlu0 %v6963, 4
      %v7242 = vpop.permute.xlu0 %7241
      %7243 = vrot.lane.b32.xlu0 %v6964, 4
      %v7244 = vpop.permute.xlu0 %7243
      %7245 = vrot.lane.b32.xlu0 %v6965, 4
      %v7246 = vpop.permute.xlu0 %7245
      %7247 = vrot.lane.b32.xlu0 %v6966, 4
      %v7248 = vpop.permute.xlu0 %7247
      %7249 = vrot.lane.b32.xlu0 %v6967, 4
      %v7250 = vpop.permute.xlu0 %7249
      %7251 = vrot.lane.b32.xlu0 %v6968, 4
      %v7252 = vpop.permute.xlu0 %7251
      %7253 = vrot.lane.b32.xlu0 %v6969, 4
      %v7254 = vpop.permute.xlu0 %7253
      %7255 = vrot.lane.b32.xlu0 %v6970, 4
      %v7256 = vpop.permute.xlu0 %7255
      %7257 = vrot.lane.b32.xlu0 %v6971, 4
      %v7258 = vpop.permute.xlu0 %7257
      %7259 = vrot.lane.b32.xlu0 %v6972, 4
      %v7260 = vpop.permute.xlu0 %7259
      %7261 = vrot.lane.b32.xlu0 %v6973, 4
      %v7262 = vpop.permute.xlu0 %7261
      %7327 = vrot.lane.b32.xlu0 %v6974, 8
      %v7328 = vpop.permute.xlu0 %7327
      %7329 = vrot.lane.b32.xlu0 %v6975, 8
      %v7330 = vpop.permute.xlu0 %7329
      %7331 = vrot.lane.b32.xlu0 %v6976, 8
      %v7332 = vpop.permute.xlu0 %7331
      %7333 = vrot.lane.b32.xlu0 %v6977, 8
      %v7334 = vpop.permute.xlu0 %7333
      %7335 = vrot.lane.b32.xlu0 %v6978, 8
      %v7336 = vpop.permute.xlu0 %7335
      %7337 = vrot.lane.b32.xlu0 %v6979, 8
      %v7338 = vpop.permute.xlu0 %7337
      %7339 = vrot.lane.b32.xlu0 %v6980, 8
      %v7340 = vpop.permute.xlu0 %7339
      %7341 = vrot.lane.b32.xlu0 %v6981, 8
      %v7342 = vpop.permute.xlu0 %7341
      %7343 = vrot.lane.b32.xlu0 %v6982, 8
      %v7344 = vpop.permute.xlu0 %7343
      %7345 = vrot.lane.b32.xlu0 %v6983, 8
      %v7346 = vpop.permute.xlu0 %7345
      %7347 = vrot.lane.b32.xlu0 %v6984, 8
      %v7348 = vpop.permute.xlu0 %7347
      %7349 = vrot.lane.b32.xlu0 %v6985, 8
      %v7350 = vpop.permute.xlu0 %7349
      %7351 = vrot.lane.b32.xlu0 %v6986, 8
      %v7352 = vpop.permute.xlu0 %7351
      %7353 = vrot.lane.b32.xlu0 %v6987, 8
      %v7354 = vpop.permute.xlu0 %7353
      %7355 = vrot.lane.b32.xlu0 %v6988, 8
      %v7356 = vpop.permute.xlu0 %7355
      %7357 = vrot.lane.b32.xlu0 %v6989, 8
      %v7358 = vpop.permute.xlu0 %7357
      %7359 = vrot.lane.b32.xlu0 %v6990, 8
      %v7360 = vpop.permute.xlu0 %7359
      %7361 = vrot.lane.b32.xlu0 %v6991, 8
      %v7362 = vpop.permute.xlu0 %7361
      %7363 = vrot.lane.b32.xlu0 %v6992, 8
      %v7364 = vpop.permute.xlu0 %7363
      %7365 = vrot.lane.b32.xlu0 %v6993, 8
      %v7366 = vpop.permute.xlu0 %7365
      %7367 = vrot.lane.b32.xlu0 %v6994, 8
      %v7368 = vpop.permute.xlu0 %7367
      %7369 = vrot.lane.b32.xlu0 %v6995, 8
      %v7370 = vpop.permute.xlu0 %7369
      %7371 = vrot.lane.b32.xlu0 %v6996, 8
      %v7372 = vpop.permute.xlu0 %7371
      %7373 = vrot.lane.b32.xlu0 %v6997, 8
      %v7374 = vpop.permute.xlu0 %7373
      %7375 = vrot.lane.b32.xlu0 %v6998, 8
      %v7376 = vpop.permute.xlu0 %7375
      %7377 = vrot.lane.b32.xlu0 %v6999, 8
      %v7378 = vpop.permute.xlu0 %7377
      %7379 = vrot.lane.b32.xlu0 %v7000, 8
      %v7380 = vpop.permute.xlu0 %7379
      %7381 = vrot.lane.b32.xlu0 %v7001, 8
      %v7382 = vpop.permute.xlu0 %7381
      %7383 = vrot.lane.b32.xlu0 %v7002, 8
      %v7384 = vpop.permute.xlu0 %7383
      %7385 = vrot.lane.b32.xlu0 %v7003, 8
      %v7386 = vpop.permute.xlu0 %7385
      %7387 = vrot.lane.b32.xlu0 %v7004, 8
      %v7388 = vpop.permute.xlu0 %7387
      %7389 = vrot.lane.b32.xlu0 %v7005, 8
      %v7390 = vpop.permute.xlu0 %7389
      %7455 = vrot.lane.b32.xlu0 %v7006, 12
      %v7456 = vpop.permute.xlu0 %7455
      %7457 = vrot.lane.b32.xlu0 %v7007, 12
      %v7458 = vpop.permute.xlu0 %7457
      %7459 = vrot.lane.b32.xlu0 %v7008, 12
      %v7460 = vpop.permute.xlu0 %7459
      %7461 = vrot.lane.b32.xlu0 %v7009, 12
      %v7462 = vpop.permute.xlu0 %7461
      %7463 = vrot.lane.b32.xlu0 %v7010, 12
      %v7464 = vpop.permute.xlu0 %7463
      %7465 = vrot.lane.b32.xlu0 %v7011, 12
      %v7466 = vpop.permute.xlu0 %7465
      %7467 = vrot.lane.b32.xlu0 %v7012, 12
      %v7468 = vpop.permute.xlu0 %7467
      %7469 = vrot.lane.b32.xlu0 %v7013, 12
      %v7470 = vpop.permute.xlu0 %7469
      %7471 = vrot.lane.b32.xlu0 %v7014, 12
      %v7472 = vpop.permute.xlu0 %7471
      %7473 = vrot.lane.b32.xlu0 %v7015, 12
      %v7474 = vpop.permute.xlu0 %7473
      %7475 = vrot.lane.b32.xlu0 %v7016, 12
      %v7476 = vpop.permute.xlu0 %7475
      %7477 = vrot.lane.b32.xlu0 %v7017, 12
      %v7478 = vpop.permute.xlu0 %7477
      %7479 = vrot.lane.b32.xlu0 %v7018, 12
      %v7480 = vpop.permute.xlu0 %7479
      %7481 = vrot.lane.b32.xlu0 %v7019, 12
      %v7482 = vpop.permute.xlu0 %7481
      %7483 = vrot.lane.b32.xlu0 %v7020, 12
      %v7484 = vpop.permute.xlu0 %7483
      %7485 = vrot.lane.b32.xlu0 %v7021, 12
      %v7486 = vpop.permute.xlu0 %7485
      %7487 = vrot.lane.b32.xlu0 %v7022, 12
      %v7488 = vpop.permute.xlu0 %7487
      %7489 = vrot.lane.b32.xlu0 %v7023, 12
      %v7490 = vpop.permute.xlu0 %7489
      %7491 = vrot.lane.b32.xlu0 %v7024, 12
      %v7492 = vpop.permute.xlu0 %7491
      %7493 = vrot.lane.b32.xlu0 %v7025, 12
      %v7494 = vpop.permute.xlu0 %7493
      %7495 = vrot.lane.b32.xlu0 %v7026, 12
      %v7496 = vpop.permute.xlu0 %7495
      %7497 = vrot.lane.b32.xlu0 %v7027, 12
      %v7498 = vpop.permute.xlu0 %7497
      %7499 = vrot.lane.b32.xlu0 %v7028, 12
      %v7500 = vpop.permute.xlu0 %7499
      %7501 = vrot.lane.b32.xlu0 %v7029, 12
      %v7502 = vpop.permute.xlu0 %7501
      %7503 = vrot.lane.b32.xlu0 %v7030, 12
      %v7504 = vpop.permute.xlu0 %7503
      %7505 = vrot.lane.b32.xlu0 %v7031, 12
      %v7506 = vpop.permute.xlu0 %7505
      %7507 = vrot.lane.b32.xlu0 %v7032, 12
      %v7508 = vpop.permute.xlu0 %7507
      %7509 = vrot.lane.b32.xlu0 %v7033, 12
      %v7510 = vpop.permute.xlu0 %7509
      %7511 = vrot.lane.b32.xlu0 %v7034, 12
      %v7512 = vpop.permute.xlu0 %7511
      %7513 = vrot.lane.b32.xlu0 %v7035, 12
      %v7514 = vpop.permute.xlu0 %7513
      %7515 = vrot.lane.b32.xlu0 %v7036, 12
      %v7516 = vpop.permute.xlu0 %7515
      %7517 = vrot.lane.b32.xlu0 %v7037, 12
      %v7518 = vpop.permute.xlu0 %7517
      %7583 = vrot.lane.b32.xlu0 %v7038, 20
      %v7584 = vpop.permute.xlu0 %7583
      %7585 = vrot.lane.b32.xlu0 %v7039, 20
      %v7586 = vpop.permute.xlu0 %7585
      %7587 = vrot.lane.b32.xlu0 %v7040, 20
      %v7588 = vpop.permute.xlu0 %7587
      %7589 = vrot.lane.b32.xlu0 %v7041, 20
      %v7590 = vpop.permute.xlu0 %7589
      %7591 = vrot.lane.b32.xlu0 %v7042, 20
      %v7592 = vpop.permute.xlu0 %7591
      %7593 = vrot.lane.b32.xlu0 %v7043, 20
      %v7594 = vpop.permute.xlu0 %7593
      %7595 = vrot.lane.b32.xlu0 %v7044, 20
      %v7596 = vpop.permute.xlu0 %7595
      %7597 = vrot.lane.b32.xlu0 %v7045, 20
      %v7598 = vpop.permute.xlu0 %7597
      %7599 = vrot.lane.b32.xlu0 %v7046, 20
      %v7600 = vpop.permute.xlu0 %7599
      %7601 = vrot.lane.b32.xlu0 %v7047, 20
      %v7602 = vpop.permute.xlu0 %7601
      %7603 = vrot.lane.b32.xlu0 %v7048, 20
      %v7604 = vpop.permute.xlu0 %7603
      %7605 = vrot.lane.b32.xlu0 %v7049, 20
      %v7606 = vpop.permute.xlu0 %7605
      %7607 = vrot.lane.b32.xlu0 %v7050, 20
      %v7608 = vpop.permute.xlu0 %7607
      %7609 = vrot.lane.b32.xlu0 %v7051, 20
      %v7610 = vpop.permute.xlu0 %7609
      %7611 = vrot.lane.b32.xlu0 %v7052, 20
      %v7612 = vpop.permute.xlu0 %7611
      %7613 = vrot.lane.b32.xlu0 %v7053, 20
      %v7614 = vpop.permute.xlu0 %7613
      %7615 = vrot.lane.b32.xlu0 %v7054, 20
      %v7616 = vpop.permute.xlu0 %7615
      %7617 = vrot.lane.b32.xlu0 %v7055, 20
      %v7618 = vpop.permute.xlu0 %7617
      %7619 = vrot.lane.b32.xlu0 %v7056, 20
      %v7620 = vpop.permute.xlu0 %7619
      %7621 = vrot.lane.b32.xlu0 %v7057, 20
      %v7622 = vpop.permute.xlu0 %7621
      %7623 = vrot.lane.b32.xlu0 %v7058, 20
      %v7624 = vpop.permute.xlu0 %7623
      %7625 = vrot.lane.b32.xlu0 %v7059, 20
      %v7626 = vpop.permute.xlu0 %7625
      %7627 = vrot.lane.b32.xlu0 %v7060, 20
      %v7628 = vpop.permute.xlu0 %7627
      %7629 = vrot.lane.b32.xlu0 %v7061, 20
      %v7630 = vpop.permute.xlu0 %7629
      %7631 = vrot.lane.b32.xlu0 %v7062, 20
      %v7632 = vpop.permute.xlu0 %7631
      %7633 = vrot.lane.b32.xlu0 %v7063, 20
      %v7634 = vpop.permute.xlu0 %7633
      %7635 = vrot.lane.b32.xlu0 %v7064, 20
      %v7636 = vpop.permute.xlu0 %7635
      %7637 = vrot.lane.b32.xlu0 %v7065, 20
      %v7638 = vpop.permute.xlu0 %7637
      %7639 = vrot.lane.b32.xlu0 %v7066, 20
      %v7640 = vpop.permute.xlu0 %7639
      %7641 = vrot.lane.b32.xlu0 %v7067, 20
      %v7642 = vpop.permute.xlu0 %7641
      %7643 = vrot.lane.b32.xlu0 %v7068, 20
      %v7644 = vpop.permute.xlu0 %7643
      %7645 = vrot.lane.b32.xlu0 %v7069, 20
      %v7646 = vpop.permute.xlu0 %7645
      %7711 = vrot.lane.b32.xlu0 %v7071, 24
      %v7712 = vpop.permute.xlu0 %7711
      %7713 = vrot.lane.b32.xlu0 %v7072, 24
      %v7714 = vpop.permute.xlu0 %7713
      %7715 = vrot.lane.b32.xlu0 %v7073, 24
      %v7716 = vpop.permute.xlu0 %7715
      %7717 = vrot.lane.b32.xlu0 %v7074, 24
      %v7718 = vpop.permute.xlu0 %7717
      %7719 = vrot.lane.b32.xlu0 %v7075, 24
      %v7720 = vpop.permute.xlu0 %7719
      %7721 = vrot.lane.b32.xlu0 %v7076, 24
      %v7722 = vpop.permute.xlu0 %7721
      %7723 = vrot.lane.b32.xlu0 %v7077, 24
      %v7724 = vpop.permute.xlu0 %7723
      %7725 = vrot.lane.b32.xlu0 %v7078, 24
      %v7726 = vpop.permute.xlu0 %7725
      %7727 = vrot.lane.b32.xlu0 %v7079, 24
      %v7728 = vpop.permute.xlu0 %7727
      %7729 = vrot.lane.b32.xlu0 %v7080, 24
      %v7730 = vpop.permute.xlu0 %7729
      %7731 = vrot.lane.b32.xlu0 %v7081, 24
      %v7732 = vpop.permute.xlu0 %7731
      %7733 = vrot.lane.b32.xlu0 %v7082, 24
      %v7734 = vpop.permute.xlu0 %7733
      %7735 = vrot.lane.b32.xlu0 %v7083, 24
      %v7736 = vpop.permute.xlu0 %7735
      %7737 = vrot.lane.b32.xlu0 %v7084, 24
      %v7738 = vpop.permute.xlu0 %7737
      %7739 = vrot.lane.b32.xlu0 %v7085, 24
      %v7740 = vpop.permute.xlu0 %7739
      %7741 = vrot.lane.b32.xlu0 %v7086, 24
      %v7742 = vpop.permute.xlu0 %7741
      %7743 = vrot.lane.b32.xlu0 %v7087, 24
      %v7744 = vpop.permute.xlu0 %7743
      %7745 = vrot.lane.b32.xlu0 %v7088, 24
      %v7746 = vpop.permute.xlu0 %7745
      %7747 = vrot.lane.b32.xlu0 %v7089, 24
      %v7748 = vpop.permute.xlu0 %7747
      %7749 = vrot.lane.b32.xlu0 %v7090, 24
      %v7750 = vpop.permute.xlu0 %7749
      %7751 = vrot.lane.b32.xlu0 %v7091, 24
      %v7752 = vpop.permute.xlu0 %7751
      %7753 = vrot.lane.b32.xlu0 %v7092, 24
      %v7754 = vpop.permute.xlu0 %7753
      %7755 = vrot.lane.b32.xlu0 %v7093, 24
      %v7756 = vpop.permute.xlu0 %7755
      %7757 = vrot.lane.b32.xlu0 %v7094, 24
      %v7758 = vpop.permute.xlu0 %7757
      %7759 = vrot.lane.b32.xlu0 %v7095, 24
      %v7760 = vpop.permute.xlu0 %7759
      %7761 = vrot.lane.b32.xlu0 %v7096, 24
      %v7762 = vpop.permute.xlu0 %7761
      %7763 = vrot.lane.b32.xlu0 %v7097, 24
      %v7764 = vpop.permute.xlu0 %7763
      %7765 = vrot.lane.b32.xlu0 %v7098, 24
      %v7766 = vpop.permute.xlu0 %7765
      %7767 = vrot.lane.b32.xlu0 %v7099, 24
      %v7768 = vpop.permute.xlu0 %7767
      %7769 = vrot.lane.b32.xlu0 %v7100, 24
      %v7770 = vpop.permute.xlu0 %7769
      %7771 = vrot.lane.b32.xlu0 %v7101, 24
      %v7772 = vpop.permute.xlu0 %7771
      %7773 = vrot.lane.b32.xlu0 %v7102, 24
      %v7774 = vpop.permute.xlu0 %7773
      %7839 = vrot.lane.b32.xlu0 %v7103, 28
      %v7840 = vpop.permute.xlu0 %7839
      %7841 = vrot.lane.b32.xlu0 %v7104, 28
      %v7842 = vpop.permute.xlu0 %7841
      %7843 = vrot.lane.b32.xlu0 %v7105, 28
      %v7844 = vpop.permute.xlu0 %7843
      %7845 = vrot.lane.b32.xlu0 %v7106, 28
      %v7846 = vpop.permute.xlu0 %7845
      %7847 = vrot.lane.b32.xlu0 %v7107, 28
      %v7848 = vpop.permute.xlu0 %7847
      %7849 = vrot.lane.b32.xlu0 %v7108, 28
      %v7850 = vpop.permute.xlu0 %7849
      %7851 = vrot.lane.b32.xlu0 %v7109, 28
      %v7852 = vpop.permute.xlu0 %7851
      %7853 = vrot.lane.b32.xlu0 %v7110, 28
      %v7854 = vpop.permute.xlu0 %7853
      %7855 = vrot.lane.b32.xlu0 %v7111, 28
      %v7856 = vpop.permute.xlu0 %7855
      %7857 = vrot.lane.b32.xlu0 %v7112, 28
      %v7858 = vpop.permute.xlu0 %7857
      %7859 = vrot.lane.b32.xlu0 %v7113, 28
      %v7860 = vpop.permute.xlu0 %7859
      %7861 = vrot.lane.b32.xlu0 %v7114, 28
      %v7862 = vpop.permute.xlu0 %7861
      %7863 = vrot.lane.b32.xlu0 %v7115, 28
      %v7864 = vpop.permute.xlu0 %7863
      %7865 = vrot.lane.b32.xlu0 %v7116, 28
      %v7866 = vpop.permute.xlu0 %7865
      %7867 = vrot.lane.b32.xlu0 %v7117, 28
      %v7868 = vpop.permute.xlu0 %7867
      %7869 = vrot.lane.b32.xlu0 %v7118, 28
      %v7870 = vpop.permute.xlu0 %7869
      %7871 = vrot.lane.b32.xlu0 %v7119, 28
      %v7872 = vpop.permute.xlu0 %7871
      %7873 = vrot.lane.b32.xlu0 %v7120, 28
      %v7874 = vpop.permute.xlu0 %7873
      %7875 = vrot.lane.b32.xlu0 %v7121, 28
      %v7876 = vpop.permute.xlu0 %7875
      %7877 = vrot.lane.b32.xlu0 %v7122, 28
      %v7878 = vpop.permute.xlu0 %7877
      %7879 = vrot.lane.b32.xlu0 %v7123, 28
      %v7880 = vpop.permute.xlu0 %7879
      %7881 = vrot.lane.b32.xlu0 %v7124, 28
      %v7882 = vpop.permute.xlu0 %7881
      %7883 = vrot.lane.b32.xlu0 %v7125, 28
      %v7884 = vpop.permute.xlu0 %7883
      %7885 = vrot.lane.b32.xlu0 %v7126, 28
      %v7886 = vpop.permute.xlu0 %7885
      %7887 = vrot.lane.b32.xlu0 %v7127, 28
      %v7888 = vpop.permute.xlu0 %7887
      %7889 = vrot.lane.b32.xlu0 %v7128, 28
      %v7890 = vpop.permute.xlu0 %7889
      %7891 = vrot.lane.b32.xlu0 %v7129, 28
      %v7892 = vpop.permute.xlu0 %7891
      %7893 = vrot.lane.b32.xlu0 %v7130, 28
      %v7894 = vpop.permute.xlu0 %7893
      %7895 = vrot.lane.b32.xlu0 %v7131, 28
      %v7896 = vpop.permute.xlu0 %7895
      %7897 = vrot.lane.b32.xlu0 %v7132, 28
      %v7898 = vpop.permute.xlu0 %7897
      %7899 = vrot.lane.b32.xlu0 %v7133, 28
      %v7900 = vpop.permute.xlu0 %7899
      %7901 = vrot.lane.b32.xlu0 %v7134, 28
      %v7902 = vpop.permute.xlu0 %7901
      %7967 = vrot.lane.b32.xlu0 %v7135, 32
      %v7968 = vpop.permute.xlu0 %7967
      %7969 = vrot.lane.b32.xlu0 %v7136, 32
      %v7970 = vpop.permute.xlu0 %7969
      %7971 = vrot.lane.b32.xlu0 %v7137, 32
      %v7972 = vpop.permute.xlu0 %7971
      %7973 = vrot.lane.b32.xlu0 %v7138, 32
      %v7974 = vpop.permute.xlu0 %7973
      %7975 = vrot.lane.b32.xlu0 %v7139, 32
      %v7976 = vpop.permute.xlu0 %7975
      %7977 = vrot.lane.b32.xlu0 %v7140, 32
      %v7978 = vpop.permute.xlu0 %7977
      %7979 = vrot.lane.b32.xlu0 %v7141, 32
      %v7980 = vpop.permute.xlu0 %7979
      %7981 = vrot.lane.b32.xlu0 %v7142, 32
      %v7982 = vpop.permute.xlu0 %7981
      %7983 = vrot.lane.b32.xlu0 %v7143, 32
      %v7984 = vpop.permute.xlu0 %7983
      %7985 = vrot.lane.b32.xlu0 %v7144, 32
      %v7986 = vpop.permute.xlu0 %7985
      %7987 = vrot.lane.b32.xlu0 %v7145, 32
      %v7988 = vpop.permute.xlu0 %7987
      %7989 = vrot.lane.b32.xlu0 %v7146, 32
      %v7990 = vpop.permute.xlu0 %7989
      %7991 = vrot.lane.b32.xlu0 %v7147, 32
      %v7992 = vpop.permute.xlu0 %7991
      %7993 = vrot.lane.b32.xlu0 %v7148, 32
      %v7994 = vpop.permute.xlu0 %7993
      %7995 = vrot.lane.b32.xlu0 %v7149, 32
      %v7996 = vpop.permute.xlu0 %7995
      %7997 = vrot.lane.b32.xlu0 %v7150, 32
      %v7998 = vpop.permute.xlu0 %7997
      %7999 = vrot.lane.b32.xlu0 %v7151, 32
      %v8000 = vpop.permute.xlu0 %7999
      %8001 = vrot.lane.b32.xlu0 %v7152, 32
      %v8002 = vpop.permute.xlu0 %8001
      %8003 = vrot.lane.b32.xlu0 %v7153, 32
      %v8004 = vpop.permute.xlu0 %8003
      %8005 = vrot.lane.b32.xlu0 %v7154, 32
      %v8006 = vpop.permute.xlu0 %8005
      %8007 = vrot.lane.b32.xlu0 %v7155, 32
      %v8008 = vpop.permute.xlu0 %8007
      %8009 = vrot.lane.b32.xlu0 %v7156, 32
      %v8010 = vpop.permute.xlu0 %8009
      %8011 = vrot.lane.b32.xlu0 %v7157, 32
      %v8012 = vpop.permute.xlu0 %8011
      %8013 = vrot.lane.b32.xlu0 %v7158, 32
      %v8014 = vpop.permute.xlu0 %8013
      %8015 = vrot.lane.b32.xlu0 %v7159, 32
      %v8016 = vpop.permute.xlu0 %8015
      %8017 = vrot.lane.b32.xlu0 %v7160, 32
      %v8018 = vpop.permute.xlu0 %8017
      %8019 = vrot.lane.b32.xlu0 %v7161, 32
      %v8020 = vpop.permute.xlu0 %8019
      %8021 = vrot.lane.b32.xlu0 %v7162, 32
      %v8022 = vpop.permute.xlu0 %8021
      %8023 = vrot.lane.b32.xlu0 %v7163, 32
      %v8024 = vpop.permute.xlu0 %8023
      %8025 = vrot.lane.b32.xlu0 %v7164, 32
      %v8026 = vpop.permute.xlu0 %8025
      %8027 = vrot.lane.b32.xlu0 %v7165, 32
      %v8028 = vpop.permute.xlu0 %8027
      %8029 = vrot.lane.b32.xlu0 %v7166, 32
      %v8030 = vpop.permute.xlu0 %8029
      %v8063 = vsel %vm1477, %v6910, %v7200
      %v8064 = vsel %vm1477, %v6911, %v7202
      %v8065 = vsel %vm1477, %v6912, %v7204
      %v8066 = vsel %vm1477, %v6913, %v7206
      %v8067 = vsel %vm1477, %v6914, %v7208
      %v8068 = vsel %vm1477, %v6915, %v7210
      %v8069 = vsel %vm1477, %v6916, %v7212
      %v8070 = vsel %vm1477, %v6917, %v7214
      %v8071 = vsel %vm1477, %v6918, %v7216
      %v8072 = vsel %vm1477, %v6919, %v7218
      %v8073 = vsel %vm1477, %v6920, %v7220
      %v8074 = vsel %vm1477, %v6921, %v7222
      %v8075 = vsel %vm1477, %v6922, %v7224
      %v8076 = vsel %vm1477, %v6923, %v7226
      %v8077 = vsel %vm1477, %v6924, %v7228
      %v8078 = vsel %vm1477, %v6925, %v7230
      %v8079 = vsel %vm1477, %v6926, %v7232
      %v8080 = vsel %vm1477, %v6927, %v7234
      %v8081 = vsel %vm1477, %v6928, %v7236
      %v8082 = vsel %vm1477, %v6929, %v7238
      %v8083 = vsel %vm1477, %v6930, %v7240
      %v8084 = vsel %vm1477, %v6931, %v7242
      %v8085 = vsel %vm1477, %v6932, %v7244
      %v8086 = vsel %vm1477, %v6933, %v7246
      %v8087 = vsel %vm1477, %v6934, %v7248
      %v8088 = vsel %vm1477, %v6935, %v7250
      %v8089 = vsel %vm1477, %v6936, %v7252
      %v8090 = vsel %vm1477, %v6937, %v7254
      %v8091 = vsel %vm1477, %v6938, %v7256
      %v8092 = vsel %vm1477, %v6939, %v7258
      %v8093 = vsel %vm1477, %v6940, %v7260
      %v8094 = vsel %vm1477, %v6941, %v7262
      %v8095 = vsel %vm1510, %v8063, %v7328
      %v8096 = vsel %vm1510, %v8064, %v7330
      %v8097 = vsel %vm1510, %v8065, %v7332
      %v8098 = vsel %vm1510, %v8066, %v7334
      %v8099 = vsel %vm1510, %v8067, %v7336
      %v8100 = vsel %vm1510, %v8068, %v7338
      %v8101 = vsel %vm1510, %v8069, %v7340
      %v8102 = vsel %vm1510, %v8070, %v7342
      %v8103 = vsel %vm1510, %v8071, %v7344
      %v8104 = vsel %vm1510, %v8072, %v7346
      %v8105 = vsel %vm1510, %v8073, %v7348
      %v8106 = vsel %vm1510, %v8074, %v7350
      %v8107 = vsel %vm1510, %v8075, %v7352
      %v8108 = vsel %vm1510, %v8076, %v7354
      %v8109 = vsel %vm1510, %v8077, %v7356
      %v8110 = vsel %vm1510, %v8078, %v7358
      %v8111 = vsel %vm1510, %v8079, %v7360
      %v8112 = vsel %vm1510, %v8080, %v7362
      %v8113 = vsel %vm1510, %v8081, %v7364
      %v8114 = vsel %vm1510, %v8082, %v7366
      %v8115 = vsel %vm1510, %v8083, %v7368
      %v8116 = vsel %vm1510, %v8084, %v7370
      %v8117 = vsel %vm1510, %v8085, %v7372
      %v8118 = vsel %vm1510, %v8086, %v7374
      %v8119 = vsel %vm1510, %v8087, %v7376
      %v8120 = vsel %vm1510, %v8088, %v7378
      %v8121 = vsel %vm1510, %v8089, %v7380
      %v8122 = vsel %vm1510, %v8090, %v7382
      %v8123 = vsel %vm1510, %v8091, %v7384
      %v8124 = vsel %vm1510, %v8092, %v7386
      %v8125 = vsel %vm1510, %v8093, %v7388
      %v8126 = vsel %vm1510, %v8094, %v7390
      %v8127 = vsel %vm1543, %v8095, %v7456
      %v8128 = vsel %vm1543, %v8096, %v7458
      %v8129 = vsel %vm1543, %v8097, %v7460
      %v8130 = vsel %vm1543, %v8098, %v7462
      %v8131 = vsel %vm1543, %v8099, %v7464
      %v8132 = vsel %vm1543, %v8100, %v7466
      %v8133 = vsel %vm1543, %v8101, %v7468
      %v8134 = vsel %vm1543, %v8102, %v7470
      %v8135 = vsel %vm1543, %v8103, %v7472
      %v8136 = vsel %vm1543, %v8104, %v7474
      %v8137 = vsel %vm1543, %v8105, %v7476
      %v8138 = vsel %vm1543, %v8106, %v7478
      %v8139 = vsel %vm1543, %v8107, %v7480
      %v8140 = vsel %vm1543, %v8108, %v7482
      %v8141 = vsel %vm1543, %v8109, %v7484
      %v8142 = vsel %vm1543, %v8110, %v7486
      %v8143 = vsel %vm1543, %v8111, %v7488
      %v8144 = vsel %vm1543, %v8112, %v7490
      %v8145 = vsel %vm1543, %v8113, %v7492
      %v8146 = vsel %vm1543, %v8114, %v7494
      %v8147 = vsel %vm1543, %v8115, %v7496
      %v8148 = vsel %vm1543, %v8116, %v7498
      %v8149 = vsel %vm1543, %v8117, %v7500
      %v8150 = vsel %vm1543, %v8118, %v7502
      %v8151 = vsel %vm1543, %v8119, %v7504
      %v8152 = vsel %vm1543, %v8120, %v7506
      %v8153 = vsel %vm1543, %v8121, %v7508
      %v8154 = vsel %vm1543, %v8122, %v7510
      %v8155 = vsel %vm1543, %v8123, %v7512
      %v8156 = vsel %vm1543, %v8124, %v7514
      %v8157 = vsel %vm1543, %v8125, %v7516
      %v8158 = vsel %vm1543, %v8126, %v7518
      %v8159 = vsel %vm1576, %v8127, %v3059
      %v8160 = vsel %vm1576, %v8128, %v3061
      %v8161 = vsel %vm1576, %v8129, %v3063
      %v8162 = vsel %vm1576, %v8130, %v3065
      %v8163 = vsel %vm1576, %v8131, %v3067
      %v8164 = vsel %vm1576, %v8132, %v3069
      %v8165 = vsel %vm1576, %v8133, %v3071
      %v8166 = vsel %vm1576, %v8134, %v3073
      %v8167 = vsel %vm1576, %v8135, %v3075
      %v8168 = vsel %vm1576, %v8136, %v3077
      %v8169 = vsel %vm1576, %v8137, %v3079
      %v8170 = vsel %vm1576, %v8138, %v3081
      %v8171 = vsel %vm1576, %v8139, %v3083
      %v8172 = vsel %vm1576, %v8140, %v3085
      %v8173 = vsel %vm1576, %v8141, %v3087
      %v8174 = vsel %vm1576, %v8142, %v3089
      %v8175 = vsel %vm1576, %v8143, %v3091
      %v8176 = vsel %vm1576, %v8144, %v3093
      %v8177 = vsel %vm1576, %v8145, %v3095
      %v8178 = vsel %vm1576, %v8146, %v3097
      %v8179 = vsel %vm1576, %v8147, %v3099
      %v8180 = vsel %vm1576, %v8148, %v3101
      %v8181 = vsel %vm1576, %v8149, %v3103
      %v8182 = vsel %vm1576, %v8150, %v3105
      %v8183 = vsel %vm1576, %v8151, %v3107
      %v8184 = vsel %vm1576, %v8152, %v3109
      %v8185 = vsel %vm1576, %v8153, %v3111
      %v8186 = vsel %vm1576, %v8154, %v3113
      %v8187 = vsel %vm1576, %v8155, %v3115
      %v8188 = vsel %vm1576, %v8156, %v3117
      %v8189 = vsel %vm1576, %v8157, %v3119
      %v8190 = vsel %vm1576, %v8158, %v3121
      %v8191 = vsel %vm1609, %v8159, %v7584
      %v8192 = vsel %vm1609, %v8160, %v7586
      %v8193 = vsel %vm1609, %v8161, %v7588
      %v8194 = vsel %vm1609, %v8162, %v7590
      %v8195 = vsel %vm1609, %v8163, %v7592
      %v8196 = vsel %vm1609, %v8164, %v7594
      %v8197 = vsel %vm1609, %v8165, %v7596
      %v8198 = vsel %vm1609, %v8166, %v7598
      %v8199 = vsel %vm1609, %v8167, %v7600
      %v8200 = vsel %vm1609, %v8168, %v7602
      %v8201 = vsel %vm1609, %v8169, %v7604
      %v8202 = vsel %vm1609, %v8170, %v7606
      %v8203 = vsel %vm1609, %v8171, %v7608
      %v8204 = vsel %vm1609, %v8172, %v7610
      %v8205 = vsel %vm1609, %v8173, %v7612
      %v8206 = vsel %vm1609, %v8174, %v7614
      %v8207 = vsel %vm1609, %v8175, %v7616
      %v8208 = vsel %vm1609, %v8176, %v7618
      %v8209 = vsel %vm1609, %v8177, %v7620
      %v8210 = vsel %vm1609, %v8178, %v7622
      %v8211 = vsel %vm1609, %v8179, %v7624
      %v8212 = vsel %vm1609, %v8180, %v7626
      %v8213 = vsel %vm1609, %v8181, %v7628
      %v8214 = vsel %vm1609, %v8182, %v7630
      %v8215 = vsel %vm1609, %v8183, %v7632
      %v8216 = vsel %vm1609, %v8184, %v7634
      %v8217 = vsel %vm1609, %v8185, %v7636
      %v8218 = vsel %vm1609, %v8186, %v7638
      %v8219 = vsel %vm1609, %v8187, %v7640
      %v8220 = vsel %vm1609, %v8188, %v7642
      %v8221 = vsel %vm1609, %v8189, %v7644
      %v8222 = vsel %vm1609, %v8190, %v7646
      %v8223 = vsel %vm1642, %v8191, %v7712
      %v8224 = vsel %vm1642, %v8192, %v7714
      %v8225 = vsel %vm1642, %v8193, %v7716
      %v8226 = vsel %vm1642, %v8194, %v7718
      %v8227 = vsel %vm1642, %v8195, %v7720
      %v8228 = vsel %vm1642, %v8196, %v7722
      %v8229 = vsel %vm1642, %v8197, %v7724
      %v8230 = vsel %vm1642, %v8198, %v7726
      %v8231 = vsel %vm1642, %v8199, %v7728
      %v8232 = vsel %vm1642, %v8200, %v7730
      %v8233 = vsel %vm1642, %v8201, %v7732
      %v8234 = vsel %vm1642, %v8202, %v7734
      %v8235 = vsel %vm1642, %v8203, %v7736
      %v8236 = vsel %vm1642, %v8204, %v7738
      %v8237 = vsel %vm1642, %v8205, %v7740
      %v8238 = vsel %vm1642, %v8206, %v7742
      %v8239 = vsel %vm1642, %v8207, %v7744
      %v8240 = vsel %vm1642, %v8208, %v7746
      %v8241 = vsel %vm1642, %v8209, %v7748
      %v8242 = vsel %vm1642, %v8210, %v7750
      %v8243 = vsel %vm1642, %v8211, %v7752
      %v8244 = vsel %vm1642, %v8212, %v7754
      %v8245 = vsel %vm1642, %v8213, %v7756
      %v8246 = vsel %vm1642, %v8214, %v7758
      %v8247 = vsel %vm1642, %v8215, %v7760
      %v8248 = vsel %vm1642, %v8216, %v7762
      %v8249 = vsel %vm1642, %v8217, %v7764
      %v8250 = vsel %vm1642, %v8218, %v7766
      %v8251 = vsel %vm1642, %v8219, %v7768
      %v8252 = vsel %vm1642, %v8220, %v7770
      %v8253 = vsel %vm1642, %v8221, %v7772
      %v8254 = vsel %vm1642, %v8222, %v7774
      %v8255 = vsel %vm1675, %v8223, %v7840
      %v8256 = vsel %vm1675, %v8224, %v7842
      %v8257 = vsel %vm1675, %v8225, %v7844
      %v8258 = vsel %vm1675, %v8226, %v7846
      %v8259 = vsel %vm1675, %v8227, %v7848
      %v8260 = vsel %vm1675, %v8228, %v7850
      %v8261 = vsel %vm1675, %v8229, %v7852
      %v8262 = vsel %vm1675, %v8230, %v7854
      %v8263 = vsel %vm1675, %v8231, %v7856
      %v8264 = vsel %vm1675, %v8232, %v7858
      %v8265 = vsel %vm1675, %v8233, %v7860
      %v8266 = vsel %vm1675, %v8234, %v7862
      %v8267 = vsel %vm1675, %v8235, %v7864
      %v8268 = vsel %vm1675, %v8236, %v7866
      %v8269 = vsel %vm1675, %v8237, %v7868
      %v8270 = vsel %vm1675, %v8238, %v7870
      %v8271 = vsel %vm1675, %v8239, %v7872
      %v8272 = vsel %vm1675, %v8240, %v7874
      %v8273 = vsel %vm1675, %v8241, %v7876
      %v8274 = vsel %vm1675, %v8242, %v7878
      %v8275 = vsel %vm1675, %v8243, %v7880
      %v8276 = vsel %vm1675, %v8244, %v7882
      %v8277 = vsel %vm1675, %v8245, %v7884
      %v8278 = vsel %vm1675, %v8246, %v7886
      %v8279 = vsel %vm1675, %v8247, %v7888
      %v8280 = vsel %vm1675, %v8248, %v7890
      %v8281 = vsel %vm1675, %v8249, %v7892
      %v8282 = vsel %vm1675, %v8250, %v7894
      %v8283 = vsel %vm1675, %v8251, %v7896
      %v8284 = vsel %vm1675, %v8252, %v7898
      %v8285 = vsel %vm1675, %v8253, %v7900
      %v8286 = vsel %vm1675, %v8254, %v7902
      %v8287 = vsel %vm1708, %v8255, %v7968
      %v8288 = vsel %vm1708, %v8256, %v7970
      %v8289 = vsel %vm1708, %v8257, %v7972
      %v8290 = vsel %vm1708, %v8258, %v7974
      %v8291 = vsel %vm1708, %v8259, %v7976
      %v8292 = vsel %vm1708, %v8260, %v7978
      %v8293 = vsel %vm1708, %v8261, %v7980
      %v8294 = vsel %vm1708, %v8262, %v7982
      %v8295 = vsel %vm1708, %v8263, %v7984
      %v8296 = vsel %vm1708, %v8264, %v7986
      %v8297 = vsel %vm1708, %v8265, %v7988
      %v8298 = vsel %vm1708, %v8266, %v7990
      %v8299 = vsel %vm1708, %v8267, %v7992
      %v8300 = vsel %vm1708, %v8268, %v7994
      %v8301 = vsel %vm1708, %v8269, %v7996
      %v8302 = vsel %vm1708, %v8270, %v7998
      %v8303 = vsel %vm1708, %v8271, %v8000
      %v8304 = vsel %vm1708, %v8272, %v8002
      %v8305 = vsel %vm1708, %v8273, %v8004
      %v8306 = vsel %vm1708, %v8274, %v8006
      %v8307 = vsel %vm1708, %v8275, %v8008
      %v8308 = vsel %vm1708, %v8276, %v8010
      %v8309 = vsel %vm1708, %v8277, %v8012
      %v8310 = vsel %vm1708, %v8278, %v8014
      %v8311 = vsel %vm1708, %v8279, %v8016
      %v8312 = vsel %vm1708, %v8280, %v8018
      %v8313 = vsel %vm1708, %v8281, %v8020
      %v8314 = vsel %vm1708, %v8282, %v8022
      %v8315 = vsel %vm1708, %v8283, %v8024
      %v8316 = vsel %vm1708, %v8284, %v8026
      %v8317 = vsel %vm1708, %v8285, %v8028
      %v8318 = vsel %vm1708, %v8286, %v8030
      %v8319 = vld [vmem:[%s7] sm:$0xff]
      %v8320 = vld [vmem:[%s7 + $0x8] sm:$0xff]
      %v8321 = vld [vmem:[%s7 + $0x10] sm:$0xff]
      %v8322 = vld [vmem:[%s7 + $0x18] sm:$0xff]
      %v8323 = vld [vmem:[%s7 + $0x20] sm:$0xf]
      %v8324 = vld [vmem:[%s8] sm:$0x1]
      %v8326 = vlaneseq
      %v8327 = vshrl.u32 %v8326, 7
      %v8328 = vsub.s32 0, %v8327
      %v8329 = vrot.slane %v8324, %v8328
      %v8332 = vsel %vm1753, %v8287, 0
      %v8335 = vsel %vm1753, %v8288, 0
      %v8338 = vsel %vm1753, %v8289, 0
      %v8341 = vsel %vm1753, %v8290, 0
      %v8344 = vsel %vm1753, %v8291, 0
      %v8347 = vsel %vm1753, %v8292, 0
      %v8350 = vsel %vm1753, %v8293, 0
      %v8353 = vsel %vm1753, %v8294, 0
      %v8356 = vsel %vm1753, %v8295, 0
      %v8359 = vsel %vm1753, %v8296, 0
      %v8362 = vsel %vm1753, %v8297, 0
      %v8365 = vsel %vm1753, %v8298, 0
      %v8368 = vsel %vm1753, %v8299, 0
      %v8371 = vsel %vm1753, %v8300, 0
      %v8374 = vsel %vm1753, %v8301, 0
      %v8377 = vsel %vm1753, %v8302, 0
      %v8380 = vsel %vm1753, %v8303, 0
      %v8383 = vsel %vm1753, %v8304, 0
      %v8386 = vsel %vm1753, %v8305, 0
      %v8389 = vsel %vm1753, %v8306, 0
      %v8392 = vsel %vm1753, %v8307, 0
      %v8395 = vsel %vm1753, %v8308, 0
      %v8398 = vsel %vm1753, %v8309, 0
      %v8401 = vsel %vm1753, %v8310, 0
      %v8404 = vsel %vm1753, %v8311, 0
      %v8407 = vsel %vm1753, %v8312, 0
      %v8410 = vsel %vm1753, %v8313, 0
      %v8413 = vsel %vm1753, %v8314, 0
      %v8416 = vsel %vm1753, %v8315, 0
      %v8419 = vsel %vm1753, %v8316, 0
      %v8422 = vsel %vm1753, %v8317, 0
      %v8425 = vsel %vm1753, %v8318, 0
      %v8428 = vsel %vm1850, %v8323, 0
      %8430 = vmatprep.subr.mxu0 0.0
      %8431 = vmatpush1.msra.mxu0 %v8319
      %8432 = vmatprep.subr.mxu0 0.0
      %8433 = vmatpush1.msra.mxu0 %v8320
      %8434 = vmatprep.subr.mxu0 0.0
      %8435 = vmatpush1.msra.mxu0 %v8321
      %8436 = vmatprep.subr.mxu0 0.0
      %8437 = vmatpush1.msra.mxu0 %v8322
      %8438 = vmatprep.subr.mxu0 0.0
      %8439 = vmatpush1.msra.mxu0 %v8428
      %8440 = vmatprep.subr.mxu0 0.0
      %8441 = vmatpush1.msra.mxu0 0.0
      %8442 = vmatprep.subr.mxu0 0.0
      %8443 = vmatpush1.msra.mxu0 0.0
      %8444 = vmatprep.subr.mxu0 0.0
      %8445 = vmatpush1.msra.mxu0 0.0
      %8446 = vmatprep.subr.mxu0 0.0
      %8447 = vmatpush1.msra.mxu0 0.0
      %8448 = vmatprep.subr.mxu0 0.0
      %8449 = vmatpush1.msra.mxu0 0.0
      %8450 = vmatprep.subr.mxu0 0.0
      %8451 = vmatpush1.msra.mxu0 0.0
      %8452 = vmatprep.subr.mxu0 0.0
      %8453 = vmatpush1.msra.mxu0 0.0
      %8454 = vmatprep.subr.mxu0 0.0
      %8455 = vmatpush1.msra.mxu0 0.0
      %8456 = vmatprep.subr.mxu0 0.0
      %8457 = vmatpush1.msra.mxu0 0.0
      %8458 = vmatprep.subr.mxu0 0.0
      %8459 = vmatpush1.msra.mxu0 0.0
      %8460 = vmatprep.subr.mxu0 0.0
      %8461 = vmatpush1.msra.mxu0 0.0
      %8462 = vmatprep.subr.mxu0 0.0
      %8463 = vmatpush1.msra.mxu0 0.0
      %8464 = vmatprep.subr.mxu0 0.0
      %8465 = vmatpush1.msra.mxu0 0.0
      %8466 = vmatprep.subr.mxu0 0.0
      %8467 = vmatpush1.msra.mxu0 0.0
      %8468 = vmatprep.subr.mxu0 0.0
      %8469 = vmatpush1.msra.mxu0 0.0
      %8470 = vmatprep.subr.mxu0 0.0
      %8471 = vmatpush1.msra.mxu0 0.0
      %8472 = vmatprep.subr.mxu0 0.0
      %8473 = vmatpush1.msra.mxu0 0.0
      %8474 = vmatprep.subr.mxu0 0.0
      %8475 = vmatpush1.msra.mxu0 0.0
      %8476 = vmatprep.subr.mxu0 0.0
      %8477 = vmatpush1.msra.mxu0 0.0
      %8478 = vmatprep.subr.mxu0 0.0
      %8479 = vmatpush1.msra.mxu0 0.0
      %8480 = vmatprep.subr.mxu0 0.0
      %8481 = vmatpush1.msra.mxu0 0.0
      %8482 = vmatprep.subr.mxu0 0.0
      %8483 = vmatpush1.msra.mxu0 0.0
      %8484 = vmatprep.subr.mxu0 0.0
      %8485 = vmatpush1.msra.mxu0 0.0
      %8486 = vmatprep.subr.mxu0 0.0
      %8487 = vmatpush1.msra.mxu0 0.0
      %8488 = vmatprep.subr.mxu0 0.0
      %8489 = vmatpush1.msra.mxu0 0.0
      %8490 = vmatprep.subr.mxu0 0.0
      %8491 = vmatpush1.msra.mxu0 0.0
      %8492 = vmatprep.subr.mxu0 0.0
      %8493 = vmatpush1.msra.mxu0 0.0
      %8494 = vmatprep.mubr.f32.mxu0 0.0
      %8495 = vmatmul.mubr.f32.gmra.mrb[0].mxu0 %v8332
      %v8496 = vpop.f32.mrb[0].mxu0
      %v8497 = vadd.f32 %v8329, %v8496
      %v8498 = vpop.f32.mrb[0].mxu0
      %8499 = vmatprep.mubr.f32.mxu0 0.0
      %8500 = vmatmul.mubr.f32.gmra.mrb[0].mxu0 %v8335
      %v8501 = vpop.f32.mrb[0].mxu0
      %v8502 = vadd.f32 %v8329, %v8501
      %v8503 = vpop.f32.mrb[0].mxu0
      %8504 = vmatprep.mubr.f32.mxu0 0.0
      %8505 = vmatmul.mubr.f32.gmra.mrb[0].mxu0 %v8338
      %v8506 = vpop.f32.mrb[0].mxu0
      %v8507 = vadd.f32 %v8329, %v8506
      %v8508 = vpop.f32.mrb[0].mxu0
      %8509 = vmatprep.mubr.f32.mxu0 0.0
      %8510 = vmatmul.mubr.f32.gmra.mrb[0].mxu0 %v8341
      %v8511 = vpop.f32.mrb[0].mxu0
      %v8512 = vadd.f32 %v8329, %v8511
      %v8513 = vpop.f32.mrb[0].mxu0
      %8514 = vmatprep.mubr.f32.mxu0 0.0
      %8515 = vmatmul.mubr.f32.gmra.mrb[0].mxu0 %v8344
      %v8516 = vpop.f32.mrb[0].mxu0
      %v8517 = vadd.f32 %v8329, %v8516
      %v8518 = vpop.f32.mrb[0].mxu0
      %8519 = vmatprep.mubr.f32.mxu0 0.0
      %8520 = vmatmul.mubr.f32.gmra.mrb[0].mxu0 %v8347
      %v8521 = vpop.f32.mrb[0].mxu0
      %v8522 = vadd.f32 %v8329, %v8521
      %v8523 = vpop.f32.mrb[0].mxu0
      %8524 = vmatprep.mubr.f32.mxu0 0.0
      %8525 = vmatmul.mubr.f32.gmra.mrb[0].mxu0 %v8350
      %v8526 = vpop.f32.mrb[0].mxu0
      %v8527 = vadd.f32 %v8329, %v8526
      %v8528 = vpop.f32.mrb[0].mxu0
      %8529 = vmatprep.mubr.f32.mxu0 0.0
      %8530 = vmatmul.mubr.f32.gmra.mrb[0].mxu0 %v8353
      %v8531 = vpop.f32.mrb[0].mxu0
      %v8532 = vadd.f32 %v8329, %v8531
      %v8533 = vpop.f32.mrb[0].mxu0
      %8534 = vmatprep.mubr.f32.mxu0 0.0
      %8535 = vmatmul.mubr.f32.gmra.mrb[0].mxu0 %v8356
      %v8536 = vpop.f32.mrb[0].mxu0
      %v8537 = vadd.f32 %v8329, %v8536
      %v8538 = vpop.f32.mrb[0].mxu0
      %8539 = vmatprep.mubr.f32.mxu0 0.0
      %8540 = vmatmul.mubr.f32.gmra.mrb[0].mxu0 %v8359
      %v8541 = vpop.f32.mrb[0].mxu0
      %v8542 = vadd.f32 %v8329, %v8541
      %v8543 = vpop.f32.mrb[0].mxu0
      %8544 = vmatprep.mubr.f32.mxu0 0.0
      %8545 = vmatmul.mubr.f32.gmra.mrb[0].mxu0 %v8362
      %v8546 = vpop.f32.mrb[0].mxu0
      %v8547 = vadd.f32 %v8329, %v8546
      %v8548 = vpop.f32.mrb[0].mxu0
      %8549 = vmatprep.mubr.f32.mxu0 0.0
      %8550 = vmatmul.mubr.f32.gmra.mrb[0].mxu0 %v8365
      %v8551 = vpop.f32.mrb[0].mxu0
      %v8552 = vadd.f32 %v8329, %v8551
      %v8553 = vpop.f32.mrb[0].mxu0
      %8554 = vmatprep.mubr.f32.mxu0 0.0
      %8555 = vmatmul.mubr.f32.gmra.mrb[0].mxu0 %v8368
      %v8556 = vpop.f32.mrb[0].mxu0
      %v8557 = vadd.f32 %v8329, %v8556
      %v8558 = vpop.f32.mrb[0].mxu0
      %8559 = vmatprep.mubr.f32.mxu0 0.0
      %8560 = vmatmul.mubr.f32.gmra.mrb[0].mxu0 %v8371
      %v8561 = vpop.f32.mrb[0].mxu0
      %v8562 = vadd.f32 %v8329, %v8561
      %v8563 = vpop.f32.mrb[0].mxu0
      %8564 = vmatprep.mubr.f32.mxu0 0.0
      %8565 = vmatmul.mubr.f32.gmra.mrb[0].mxu0 %v8374
      %v8566 = vpop.f32.mrb[0].mxu0
      %v8567 = vadd.f32 %v8329, %v8566
      %v8568 = vpop.f32.mrb[0].mxu0
      %8569 = vmatprep.mubr.f32.mxu0 0.0
      %8570 = vmatmul.mubr.f32.gmra.mrb[0].mxu0 %v8377
      %v8571 = vpop.f32.mrb[0].mxu0
      %v8572 = vadd.f32 %v8329, %v8571
      %v8573 = vpop.f32.mrb[0].mxu0
      %8574 = vmatprep.mubr.f32.mxu0 0.0
      %8575 = vmatmul.mubr.f32.gmra.mrb[0].mxu0 %v8380
      %v8576 = vpop.f32.mrb[0].mxu0
      %v8577 = vadd.f32 %v8329, %v8576
      %v8578 = vpop.f32.mrb[0].mxu0
      %8579 = vmatprep.mubr.f32.mxu0 0.0
      %8580 = vmatmul.mubr.f32.gmra.mrb[0].mxu0 %v8383
      %v8581 = vpop.f32.mrb[0].mxu0
      %v8582 = vadd.f32 %v8329, %v8581
      %v8583 = vpop.f32.mrb[0].mxu0
      %8584 = vmatprep.mubr.f32.mxu0 0.0
      %8585 = vmatmul.mubr.f32.gmra.mrb[0].mxu0 %v8386
      %v8586 = vpop.f32.mrb[0].mxu0
      %v8587 = vadd.f32 %v8329, %v8586
      %v8588 = vpop.f32.mrb[0].mxu0
      %8589 = vmatprep.mubr.f32.mxu0 0.0
      %8590 = vmatmul.mubr.f32.gmra.mrb[0].mxu0 %v8389
      %v8591 = vpop.f32.mrb[0].mxu0
      %v8592 = vadd.f32 %v8329, %v8591
      %v8593 = vpop.f32.mrb[0].mxu0
      %8594 = vmatprep.mubr.f32.mxu0 0.0
      %8595 = vmatmul.mubr.f32.gmra.mrb[0].mxu0 %v8392
      %v8596 = vpop.f32.mrb[0].mxu0
      %v8597 = vadd.f32 %v8329, %v8596
      %v8598 = vpop.f32.mrb[0].mxu0
      %8599 = vmatprep.mubr.f32.mxu0 0.0
      %8600 = vmatmul.mubr.f32.gmra.mrb[0].mxu0 %v8395
      %v8601 = vpop.f32.mrb[0].mxu0
      %v8602 = vadd.f32 %v8329, %v8601
      %v8603 = vpop.f32.mrb[0].mxu0
      %8604 = vmatprep.mubr.f32.mxu0 0.0
      %8605 = vmatmul.mubr.f32.gmra.mrb[0].mxu0 %v8398
      %v8606 = vpop.f32.mrb[0].mxu0
      %v8607 = vadd.f32 %v8329, %v8606
      %v8608 = vpop.f32.mrb[0].mxu0
      %8609 = vmatprep.mubr.f32.mxu0 0.0
      %8610 = vmatmul.mubr.f32.gmra.mrb[0].mxu0 %v8401
      %v8611 = vpop.f32.mrb[0].mxu0
      %v8612 = vadd.f32 %v8329, %v8611
      %v8613 = vpop.f32.mrb[0].mxu0
      %8614 = vmatprep.mubr.f32.mxu0 0.0
      %8615 = vmatmul.mubr.f32.gmra.mrb[0].mxu0 %v8404
      %v8616 = vpop.f32.mrb[0].mxu0
      %v8617 = vadd.f32 %v8329, %v8616
      %v8618 = vpop.f32.mrb[0].mxu0
      %8619 = vmatprep.mubr.f32.mxu0 0.0
      %8620 = vmatmul.mubr.f32.gmra.mrb[0].mxu0 %v8407
      %v8621 = vpop.f32.mrb[0].mxu0
      %v8622 = vadd.f32 %v8329, %v8621
      %v8623 = vpop.f32.mrb[0].mxu0
      %8624 = vmatprep.mubr.f32.mxu0 0.0
      %8625 = vmatmul.mubr.f32.gmra.mrb[0].mxu0 %v8410
      %v8626 = vpop.f32.mrb[0].mxu0
      %v8627 = vadd.f32 %v8329, %v8626
      %v8628 = vpop.f32.mrb[0].mxu0
      %8629 = vmatprep.mubr.f32.mxu0 0.0
      %8630 = vmatmul.mubr.f32.gmra.mrb[0].mxu0 %v8413
      %v8631 = vpop.f32.mrb[0].mxu0
      %v8632 = vadd.f32 %v8329, %v8631
      %v8633 = vpop.f32.mrb[0].mxu0
      %8634 = vmatprep.mubr.f32.mxu0 0.0
      %8635 = vmatmul.mubr.f32.gmra.mrb[0].mxu0 %v8416
      %v8636 = vpop.f32.mrb[0].mxu0
      %v8637 = vadd.f32 %v8329, %v8636
      %v8638 = vpop.f32.mrb[0].mxu0
      %8639 = vmatprep.mubr.f32.mxu0 0.0
      %8640 = vmatmul.mubr.f32.gmra.mrb[0].mxu0 %v8419
      %v8641 = vpop.f32.mrb[0].mxu0
      %v8642 = vadd.f32 %v8329, %v8641
      %v8643 = vpop.f32.mrb[0].mxu0
      %8644 = vmatprep.mubr.f32.mxu0 0.0
      %8645 = vmatmul.mubr.f32.gmra.mrb[0].mxu0 %v8422
      %v8646 = vpop.f32.mrb[0].mxu0
      %v8647 = vadd.f32 %v8329, %v8646
      %v8648 = vpop.f32.mrb[0].mxu0
      %8649 = vmatprep.mubr.f32.mxu0 0.0
      %8650 = vmatmul.mubr.f32.gmra.mrb[0].mxu0 %v8425
      %v8651 = vpop.f32.mrb[0].mxu0
      %v8652 = vadd.f32 %v8329, %v8651
      %v8653 = vpop.f32.mrb[0].mxu0
      %8654 = vdwg.mxu0
      %vm8655 = vcmp.ge.f32.partialorder %v8497, 0.0
      %vm8656 = vcmp.ge.f32.partialorder %v8502, 0.0
      %vm8657 = vcmp.ge.f32.partialorder %v8507, 0.0
      %vm8658 = vcmp.ge.f32.partialorder %v8512, 0.0
      %vm8659 = vcmp.ge.f32.partialorder %v8517, 0.0
      %vm8660 = vcmp.ge.f32.partialorder %v8522, 0.0
      %vm8661 = vcmp.ge.f32.partialorder %v8527, 0.0
      %vm8662 = vcmp.ge.f32.partialorder %v8532, 0.0
      %vm8663 = vcmp.ge.f32.partialorder %v8537, 0.0
      %vm8664 = vcmp.ge.f32.partialorder %v8542, 0.0
      %vm8665 = vcmp.ge.f32.partialorder %v8547, 0.0
      %vm8666 = vcmp.ge.f32.partialorder %v8552, 0.0
      %vm8667 = vcmp.ge.f32.partialorder %v8557, 0.0
      %vm8668 = vcmp.ge.f32.partialorder %v8562, 0.0
      %vm8669 = vcmp.ge.f32.partialorder %v8567, 0.0
      %vm8670 = vcmp.ge.f32.partialorder %v8572, 0.0
      %vm8671 = vcmp.ge.f32.partialorder %v8577, 0.0
      %vm8672 = vcmp.ge.f32.partialorder %v8582, 0.0
      %vm8673 = vcmp.ge.f32.partialorder %v8587, 0.0
      %vm8674 = vcmp.ge.f32.partialorder %v8592, 0.0
      %vm8675 = vcmp.ge.f32.partialorder %v8597, 0.0
      %vm8676 = vcmp.ge.f32.partialorder %v8602, 0.0
      %vm8677 = vcmp.ge.f32.partialorder %v8607, 0.0
      %vm8678 = vcmp.ge.f32.partialorder %v8612, 0.0
      %vm8679 = vcmp.ge.f32.partialorder %v8617, 0.0
      %vm8680 = vcmp.ge.f32.partialorder %v8622, 0.0
      %vm8681 = vcmp.ge.f32.partialorder %v8627, 0.0
      %vm8682 = vcmp.ge.f32.partialorder %v8632, 0.0
      %vm8683 = vcmp.ge.f32.partialorder %v8637, 0.0
      %vm8684 = vcmp.ge.f32.partialorder %v8642, 0.0
      %vm8685 = vcmp.ge.f32.partialorder %v8647, 0.0
      %vm8686 = vcmp.ge.f32.partialorder %v8652, 0.0
      %v8687 = vmul.f32 %v8497, 0.2
      %v8688 = vmul.f32 %v8502, 0.2
      %v8689 = vmul.f32 %v8507, 0.2
      %v8690 = vmul.f32 %v8512, 0.2
      %v8691 = vmul.f32 %v8517, 0.2
      %v8692 = vmul.f32 %v8522, 0.2
      %v8693 = vmul.f32 %v8527, 0.2
      %v8694 = vmul.f32 %v8532, 0.2
      %v8695 = vmul.f32 %v8537, 0.2
      %v8696 = vmul.f32 %v8542, 0.2
      %v8697 = vmul.f32 %v8547, 0.2
      %v8698 = vmul.f32 %v8552, 0.2
      %v8699 = vmul.f32 %v8557, 0.2
      %v8700 = vmul.f32 %v8562, 0.2
      %v8701 = vmul.f32 %v8567, 0.2
      %v8702 = vmul.f32 %v8572, 0.2
      %v8703 = vmul.f32 %v8577, 0.2
      %v8704 = vmul.f32 %v8582, 0.2
      %v8705 = vmul.f32 %v8587, 0.2
      %v8706 = vmul.f32 %v8592, 0.2
      %v8707 = vmul.f32 %v8597, 0.2
      %v8708 = vmul.f32 %v8602, 0.2
      %v8709 = vmul.f32 %v8607, 0.2
      %v8710 = vmul.f32 %v8612, 0.2
      %v8711 = vmul.f32 %v8617, 0.2
      %v8712 = vmul.f32 %v8622, 0.2
      %v8713 = vmul.f32 %v8627, 0.2
      %v8714 = vmul.f32 %v8632, 0.2
      %v8715 = vmul.f32 %v8637, 0.2
      %v8716 = vmul.f32 %v8642, 0.2
      %v8717 = vmul.f32 %v8647, 0.2
      %v8718 = vmul.f32 %v8652, 0.2
      %v8719 = vsel %vm8655, %v8497, %v8687
      %v8720 = vsel %vm8656, %v8502, %v8688
      %v8721 = vsel %vm8657, %v8507, %v8689
      %v8722 = vsel %vm8658, %v8512, %v8690
      %v8723 = vsel %vm8659, %v8517, %v8691
      %v8724 = vsel %vm8660, %v8522, %v8692
      %v8725 = vsel %vm8661, %v8527, %v8693
      %v8726 = vsel %vm8662, %v8532, %v8694
      %v8727 = vsel %vm8663, %v8537, %v8695
      %v8728 = vsel %vm8664, %v8542, %v8696
      %v8729 = vsel %vm8665, %v8547, %v8697
      %v8730 = vsel %vm8666, %v8552, %v8698
      %v8731 = vsel %vm8667, %v8557, %v8699
      %v8732 = vsel %vm8668, %v8562, %v8700
      %v8733 = vsel %vm8669, %v8567, %v8701
      %v8734 = vsel %vm8670, %v8572, %v8702
      %v8735 = vsel %vm8671, %v8577, %v8703
      %v8736 = vsel %vm8672, %v8582, %v8704
      %v8737 = vsel %vm8673, %v8587, %v8705
      %v8738 = vsel %vm8674, %v8592, %v8706
      %v8739 = vsel %vm8675, %v8597, %v8707
      %v8740 = vsel %vm8676, %v8602, %v8708
      %v8741 = vsel %vm8677, %v8607, %v8709
      %v8742 = vsel %vm8678, %v8612, %v8710
      %v8743 = vsel %vm8679, %v8617, %v8711
      %v8744 = vsel %vm8680, %v8622, %v8712
      %v8745 = vsel %vm8681, %v8627, %v8713
      %v8746 = vsel %vm8682, %v8632, %v8714
      %v8747 = vsel %vm8683, %v8637, %v8715
      %v8748 = vsel %vm8684, %v8642, %v8716
      %v8749 = vsel %vm8685, %v8647, %v8717
      %v8750 = vsel %vm8686, %v8652, %v8718
      %v8751 = vld [vmem:[%s9 + $0x8] sm:$0xf]
      %v8753 = vsel %vm1477, %v8719, 0
      %v8756 = vsel %vm1477, %v8720, 0
      %v8759 = vsel %vm1477, %v8721, 0
      %v8762 = vsel %vm1477, %v8722, 0
      %v8765 = vsel %vm1477, %v8723, 0
      %v8768 = vsel %vm1477, %v8724, 0
      %v8771 = vsel %vm1477, %v8725, 0
      %v8774 = vsel %vm1477, %v8726, 0
      %v8777 = vsel %vm1477, %v8727, 0
      %v8780 = vsel %vm1477, %v8728, 0
      %v8783 = vsel %vm1477, %v8729, 0
      %v8786 = vsel %vm1477, %v8730, 0
      %v8789 = vsel %vm1477, %v8731, 0
      %v8792 = vsel %vm1477, %v8732, 0
      %v8795 = vsel %vm1477, %v8733, 0
      %v8798 = vsel %vm1477, %v8734, 0
      %v8801 = vsel %vm1477, %v8735, 0
      %v8804 = vsel %vm1477, %v8736, 0
      %v8807 = vsel %vm1477, %v8737, 0
      %v8810 = vsel %vm1477, %v8738, 0
      %v8813 = vsel %vm1477, %v8739, 0
      %v8816 = vsel %vm1477, %v8740, 0
      %v8819 = vsel %vm1477, %v8741, 0
      %v8822 = vsel %vm1477, %v8742, 0
      %v8825 = vsel %vm1477, %v8743, 0
      %v8828 = vsel %vm1477, %v8744, 0
      %v8831 = vsel %vm1477, %v8745, 0
      %v8834 = vsel %vm1477, %v8746, 0
      %v8837 = vsel %vm1477, %v8747, 0
      %v8840 = vsel %vm1477, %v8748, 0
      %v8843 = vsel %vm1477, %v8749, 0
      %v8846 = vsel %vm1477, %v8750, 0
      %v8849 = vsel %vm1850, %v8751, 0
      %8851 = vmatprep.subr.mxu0 0.0
      %8852 = vmatpush1.msra.mxu0 %v8849
      %8853 = vmatprep.subr.mxu0 0.0
      %8854 = vmatpush1.msra.mxu0 0.0
      %8855 = vmatprep.subr.mxu0 0.0
      %8856 = vmatpush1.msra.mxu0 0.0
      %8857 = vmatprep.subr.mxu0 0.0
      %8858 = vmatpush1.msra.mxu0 0.0
      %8859 = vmatprep.subr.mxu0 0.0
      %8860 = vmatpush1.msra.mxu0 0.0
      %8861 = vmatprep.subr.mxu0 0.0
      %8862 = vmatpush1.msra.mxu0 0.0
      %8863 = vmatprep.subr.mxu0 0.0
      %8864 = vmatpush1.msra.mxu0 0.0
      %8865 = vmatprep.subr.mxu0 0.0
      %8866 = vmatpush1.msra.mxu0 0.0
      %8867 = vmatprep.subr.mxu0 0.0
      %8868 = vmatpush1.msra.mxu0 0.0
      %8869 = vmatprep.subr.mxu0 0.0
      %8870 = vmatpush1.msra.mxu0 0.0
      %8871 = vmatprep.subr.mxu0 0.0
      %8872 = vmatpush1.msra.mxu0 0.0
      %8873 = vmatprep.subr.mxu0 0.0
      %8874 = vmatpush1.msra.mxu0 0.0
      %8875 = vmatprep.subr.mxu0 0.0
      %8876 = vmatpush1.msra.mxu0 0.0
      %8877 = vmatprep.subr.mxu0 0.0
      %8878 = vmatpush1.msra.mxu0 0.0
      %8879 = vmatprep.subr.mxu0 0.0
      %8880 = vmatpush1.msra.mxu0 0.0
      %8881 = vmatprep.subr.mxu0 0.0
      %8882 = vmatpush1.msra.mxu0 0.0
      %8883 = vmatprep.subr.mxu0 0.0
      %8884 = vmatpush1.msra.mxu0 0.0
      %8885 = vmatprep.subr.mxu0 0.0
      %8886 = vmatpush1.msra.mxu0 0.0
      %8887 = vmatprep.subr.mxu0 0.0
      %8888 = vmatpush1.msra.mxu0 0.0
      %8889 = vmatprep.subr.mxu0 0.0
      %8890 = vmatpush1.msra.mxu0 0.0
      %8891 = vmatprep.subr.mxu0 0.0
      %8892 = vmatpush1.msra.mxu0 0.0
      %8893 = vmatprep.subr.mxu0 0.0
      %8894 = vmatpush1.msra.mxu0 0.0
      %8895 = vmatprep.subr.mxu0 0.0
      %8896 = vmatpush1.msra.mxu0 0.0
      %8897 = vmatprep.subr.mxu0 0.0
      %8898 = vmatpush1.msra.mxu0 0.0
      %8899 = vmatprep.subr.mxu0 0.0
      %8900 = vmatpush1.msra.mxu0 0.0
      %8901 = vmatprep.subr.mxu0 0.0
      %8902 = vmatpush1.msra.mxu0 0.0
      %8903 = vmatprep.subr.mxu0 0.0
      %8904 = vmatpush1.msra.mxu0 0.0
      %8905 = vmatprep.subr.mxu0 0.0
      %8906 = vmatpush1.msra.mxu0 0.0
      %8907 = vmatprep.subr.mxu0 0.0
      %8908 = vmatpush1.msra.mxu0 0.0
      %8909 = vmatprep.subr.mxu0 0.0
      %8910 = vmatpush1.msra.mxu0 0.0
      %8911 = vmatprep.subr.mxu0 0.0
      %8912 = vmatpush1.msra.mxu0 0.0
      %8913 = vmatprep.subr.mxu0 0.0
      %8914 = vmatpush1.msra.mxu0 0.0
      %8915 = vmatprep.mubr.f32.mxu0 0.0
      %8916 = vmatmul.mubr.f32.gmra.mrb[0].mxu0 %v8753
      %v8917 = vpop.f32.mrb[0].mxu0
      %v8918 = vadd.f32 0.0, %v8917
      %v8919 = vpop.f32.mrb[0].mxu0
      %8920 = vmatprep.mubr.f32.mxu0 0.0
      %8921 = vmatmul.mubr.f32.gmra.mrb[0].mxu0 %v8756
      %v8922 = vpop.f32.mrb[0].mxu0
      %v8923 = vadd.f32 0.0, %v8922
      %v8924 = vpop.f32.mrb[0].mxu0
      %8925 = vmatprep.mubr.f32.mxu0 0.0
      %8926 = vmatmul.mubr.f32.gmra.mrb[0].mxu0 %v8759
      %v8927 = vpop.f32.mrb[0].mxu0
      %v8928 = vadd.f32 0.0, %v8927
      %v8929 = vpop.f32.mrb[0].mxu0
      %8930 = vmatprep.mubr.f32.mxu0 0.0
      %8931 = vmatmul.mubr.f32.gmra.mrb[0].mxu0 %v8762
      %v8932 = vpop.f32.mrb[0].mxu0
      %v8933 = vadd.f32 0.0, %v8932
      %v8934 = vpop.f32.mrb[0].mxu0
      %8935 = vmatprep.mubr.f32.mxu0 0.0
      %8936 = vmatmul.mubr.f32.gmra.mrb[0].mxu0 %v8765
      %v8937 = vpop.f32.mrb[0].mxu0
      %v8938 = vadd.f32 0.0, %v8937
      %v8939 = vpop.f32.mrb[0].mxu0
      %8940 = vmatprep.mubr.f32.mxu0 0.0
      %8941 = vmatmul.mubr.f32.gmra.mrb[0].mxu0 %v8768
      %v8942 = vpop.f32.mrb[0].mxu0
      %v8943 = vadd.f32 0.0, %v8942
      %v8944 = vpop.f32.mrb[0].mxu0
      %8945 = vmatprep.mubr.f32.mxu0 0.0
      %8946 = vmatmul.mubr.f32.gmra.mrb[0].mxu0 %v8771
      %v8947 = vpop.f32.mrb[0].mxu0
      %v8948 = vadd.f32 0.0, %v8947
      %v8949 = vpop.f32.mrb[0].mxu0
      %8950 = vmatprep.mubr.f32.mxu0 0.0
      %8951 = vmatmul.mubr.f32.gmra.mrb[0].mxu0 %v8774
      %v8952 = vpop.f32.mrb[0].mxu0
      %v8953 = vadd.f32 0.0, %v8952
      %v8954 = vpop.f32.mrb[0].mxu0
      %8955 = vmatprep.mubr.f32.mxu0 0.0
      %8956 = vmatmul.mubr.f32.gmra.mrb[0].mxu0 %v8777
      %v8957 = vpop.f32.mrb[0].mxu0
      %v8958 = vadd.f32 0.0, %v8957
      %v8959 = vpop.f32.mrb[0].mxu0
      %8960 = vmatprep.mubr.f32.mxu0 0.0
      %8961 = vmatmul.mubr.f32.gmra.mrb[0].mxu0 %v8780
      %v8962 = vpop.f32.mrb[0].mxu0
      %v8963 = vadd.f32 0.0, %v8962
      %v8964 = vpop.f32.mrb[0].mxu0
      %8965 = vmatprep.mubr.f32.mxu0 0.0
      %8966 = vmatmul.mubr.f32.gmra.mrb[0].mxu0 %v8783
      %v8967 = vpop.f32.mrb[0].mxu0
      %v8968 = vadd.f32 0.0, %v8967
      %v8969 = vpop.f32.mrb[0].mxu0
      %8970 = vmatprep.mubr.f32.mxu0 0.0
      %8971 = vmatmul.mubr.f32.gmra.mrb[0].mxu0 %v8786
      %v8972 = vpop.f32.mrb[0].mxu0
      %v8973 = vadd.f32 0.0, %v8972
      %v8974 = vpop.f32.mrb[0].mxu0
      %8975 = vmatprep.mubr.f32.mxu0 0.0
      %8976 = vmatmul.mubr.f32.gmra.mrb[0].mxu0 %v8789
      %v8977 = vpop.f32.mrb[0].mxu0
      %v8978 = vadd.f32 0.0, %v8977
      %v8979 = vpop.f32.mrb[0].mxu0
      %8980 = vmatprep.mubr.f32.mxu0 0.0
      %8981 = vmatmul.mubr.f32.gmra.mrb[0].mxu0 %v8792
      %v8982 = vpop.f32.mrb[0].mxu0
      %v8983 = vadd.f32 0.0, %v8982
      %v8984 = vpop.f32.mrb[0].mxu0
      %8985 = vmatprep.mubr.f32.mxu0 0.0
      %8986 = vmatmul.mubr.f32.gmra.mrb[0].mxu0 %v8795
      %v8987 = vpop.f32.mrb[0].mxu0
      %v8988 = vadd.f32 0.0, %v8987
      %v8989 = vpop.f32.mrb[0].mxu0
      %8990 = vmatprep.mubr.f32.mxu0 0.0
      %8991 = vmatmul.mubr.f32.gmra.mrb[0].mxu0 %v8798
      %v8992 = vpop.f32.mrb[0].mxu0
      %v8993 = vadd.f32 0.0, %v8992
      %v8994 = vpop.f32.mrb[0].mxu0
      %8995 = vmatprep.mubr.f32.mxu0 0.0
      %8996 = vmatmul.mubr.f32.gmra.mrb[0].mxu0 %v8801
      %v8997 = vpop.f32.mrb[0].mxu0
      %v8998 = vadd.f32 0.0, %v8997
      %v8999 = vpop.f32.mrb[0].mxu0
      %9000 = vmatprep.mubr.f32.mxu0 0.0
      %9001 = vmatmul.mubr.f32.gmra.mrb[0].mxu0 %v8804
      %v9002 = vpop.f32.mrb[0].mxu0
      %v9003 = vadd.f32 0.0, %v9002
      %v9004 = vpop.f32.mrb[0].mxu0
      %9005 = vmatprep.mubr.f32.mxu0 0.0
      %9006 = vmatmul.mubr.f32.gmra.mrb[0].mxu0 %v8807
      %v9007 = vpop.f32.mrb[0].mxu0
      %v9008 = vadd.f32 0.0, %v9007
      %v9009 = vpop.f32.mrb[0].mxu0
      %9010 = vmatprep.mubr.f32.mxu0 0.0
      %9011 = vmatmul.mubr.f32.gmra.mrb[0].mxu0 %v8810
      %v9012 = vpop.f32.mrb[0].mxu0
      %v9013 = vadd.f32 0.0, %v9012
      %v9014 = vpop.f32.mrb[0].mxu0
      %9015 = vmatprep.mubr.f32.mxu0 0.0
      %9016 = vmatmul.mubr.f32.gmra.mrb[0].mxu0 %v8813
      %v9017 = vpop.f32.mrb[0].mxu0
      %v9018 = vadd.f32 0.0, %v9017
      %v9019 = vpop.f32.mrb[0].mxu0
      %9020 = vmatprep.mubr.f32.mxu0 0.0
      %9021 = vmatmul.mubr.f32.gmra.mrb[0].mxu0 %v8816
      %v9022 = vpop.f32.mrb[0].mxu0
      %v9023 = vadd.f32 0.0, %v9022
      %v9024 = vpop.f32.mrb[0].mxu0
      %9025 = vmatprep.mubr.f32.mxu0 0.0
      %9026 = vmatmul.mubr.f32.gmra.mrb[0].mxu0 %v8819
      %v9027 = vpop.f32.mrb[0].mxu0
      %v9028 = vadd.f32 0.0, %v9027
      %v9029 = vpop.f32.mrb[0].mxu0
      %9030 = vmatprep.mubr.f32.mxu0 0.0
      %9031 = vmatmul.mubr.f32.gmra.mrb[0].mxu0 %v8822
      %v9032 = vpop.f32.mrb[0].mxu0
      %v9033 = vadd.f32 0.0, %v9032
      %v9034 = vpop.f32.mrb[0].mxu0
      %9035 = vmatprep.mubr.f32.mxu0 0.0
      %9036 = vmatmul.mubr.f32.gmra.mrb[0].mxu0 %v8825
      %v9037 = vpop.f32.mrb[0].mxu0
      %v9038 = vadd.f32 0.0, %v9037
      %v9039 = vpop.f32.mrb[0].mxu0
      %9040 = vmatprep.mubr.f32.mxu0 0.0
      %9041 = vmatmul.mubr.f32.gmra.mrb[0].mxu0 %v8828
      %v9042 = vpop.f32.mrb[0].mxu0
      %v9043 = vadd.f32 0.0, %v9042
      %v9044 = vpop.f32.mrb[0].mxu0
      %9045 = vmatprep.mubr.f32.mxu0 0.0
      %9046 = vmatmul.mubr.f32.gmra.mrb[0].mxu0 %v8831
      %v9047 = vpop.f32.mrb[0].mxu0
      %v9048 = vadd.f32 0.0, %v9047
      %v9049 = vpop.f32.mrb[0].mxu0
      %9050 = vmatprep.mubr.f32.mxu0 0.0
      %9051 = vmatmul.mubr.f32.gmra.mrb[0].mxu0 %v8834
      %v9052 = vpop.f32.mrb[0].mxu0
      %v9053 = vadd.f32 0.0, %v9052
      %v9054 = vpop.f32.mrb[0].mxu0
      %9055 = vmatprep.mubr.f32.mxu0 0.0
      %9056 = vmatmul.mubr.f32.gmra.mrb[0].mxu0 %v8837
      %v9057 = vpop.f32.mrb[0].mxu0
      %v9058 = vadd.f32 0.0, %v9057
      %v9059 = vpop.f32.mrb[0].mxu0
      %9060 = vmatprep.mubr.f32.mxu0 0.0
      %9061 = vmatmul.mubr.f32.gmra.mrb[0].mxu0 %v8840
      %v9062 = vpop.f32.mrb[0].mxu0
      %v9063 = vadd.f32 0.0, %v9062
      %v9064 = vpop.f32.mrb[0].mxu0
      %9065 = vmatprep.mubr.f32.mxu0 0.0
      %9066 = vmatmul.mubr.f32.gmra.mrb[0].mxu0 %v8843
      %v9067 = vpop.f32.mrb[0].mxu0
      %v9068 = vadd.f32 0.0, %v9067
      %v9069 = vpop.f32.mrb[0].mxu0
      %9070 = vmatprep.mubr.f32.mxu0 0.0
      %9071 = vmatmul.mubr.f32.gmra.mrb[0].mxu0 %v8846
      %v9072 = vpop.f32.mrb[0].mxu0
      %v9073 = vadd.f32 0.0, %v9072
      %v9074 = vpop.f32.mrb[0].mxu0
      %9075 = vdwg.mxu0
      %v9076 = vadd.f32 %v6878, %v8918
      %v9077 = vadd.f32 %v6879, %v8923
      %v9078 = vadd.f32 %v6880, %v8928
      %v9079 = vadd.f32 %v6881, %v8933
      %v9080 = vadd.f32 %v6882, %v8938
      %v9081 = vadd.f32 %v6883, %v8943
      %v9082 = vadd.f32 %v6884, %v8948
      %v9083 = vadd.f32 %v6885, %v8953
      %v9084 = vadd.f32 %v6886, %v8958
      %v9085 = vadd.f32 %v6887, %v8963
      %v9086 = vadd.f32 %v6888, %v8968
      %v9087 = vadd.f32 %v6889, %v8973
      %v9088 = vadd.f32 %v6890, %v8978
      %v9089 = vadd.f32 %v6891, %v8983
      %v9090 = vadd.f32 %v6892, %v8988
      %v9091 = vadd.f32 %v6893, %v8993
      %v9092 = vadd.f32 %v6894, %v8998
      %v9093 = vadd.f32 %v6895, %v9003
      %v9094 = vadd.f32 %v6896, %v9008
      %v9095 = vadd.f32 %v6897, %v9013
      %v9096 = vadd.f32 %v6898, %v9018
      %v9097 = vadd.f32 %v6899, %v9023
      %v9098 = vadd.f32 %v6900, %v9028
      %v9099 = vadd.f32 %v6901, %v9033
      %v9100 = vadd.f32 %v6902, %v9038
      %v9101 = vadd.f32 %v6903, %v9043
      %v9102 = vadd.f32 %v6904, %v9048
      %v9103 = vadd.f32 %v6905, %v9053
      %v9104 = vadd.f32 %v6906, %v9058
      %v9105 = vadd.f32 %v6907, %v9063
      %v9106 = vadd.f32 %v6908, %v9068
      %v9107 = vadd.f32 %v6909, %v9073
      %9108 = vst.msk [vmem:[%s386] sm:$0xff] %vm1477, %v9076
      %9109 = vst.msk [vmem:[%s386 + $0x8] sm:$0xff] %vm1477, %v9077
      %9110 = vst.msk [vmem:[%s386 + $0x10] sm:$0xff] %vm1477, %v9078
      %9111 = vst.msk [vmem:[%s386 + $0x18] sm:$0xff] %vm1477, %v9079
      %9112 = vst.msk [vmem:[%s386 + $0x20] sm:$0xff] %vm1477, %v9080
      %9113 = vst.msk [vmem:[%s386 + $0x28] sm:$0xff] %vm1477, %v9081
      %9114 = vst.msk [vmem:[%s386 + $0x30] sm:$0xff] %vm1477, %v9082
      %9115 = vst.msk [vmem:[%s386 + $0x38] sm:$0xff] %vm1477, %v9083
      %9116 = vst.msk [vmem:[%s386 + $0x40] sm:$0xff] %vm1477, %v9084
      %9117 = vst.msk [vmem:[%s386 + $0x48] sm:$0xff] %vm1477, %v9085
      %9118 = vst.msk [vmem:[%s386 + $0x50] sm:$0xff] %vm1477, %v9086
      %9119 = vst.msk [vmem:[%s386 + $0x58] sm:$0xff] %vm1477, %v9087
      %9120 = vst.msk [vmem:[%s386 + $0x60] sm:$0xff] %vm1477, %v9088
      %9121 = vst.msk [vmem:[%s386 + $0x68] sm:$0xff] %vm1477, %v9089
      %9122 = vst.msk [vmem:[%s386 + $0x70] sm:$0xff] %vm1477, %v9090
      %9123 = vst.msk [vmem:[%s386 + $0x78] sm:$0xff] %vm1477, %v9091
      %9124 = vst.msk [vmem:[%s386 + $0x80] sm:$0xff] %vm1477, %v9092
      %9125 = vst.msk [vmem:[%s386 + $0x88] sm:$0xff] %vm1477, %v9093
      %9126 = vst.msk [vmem:[%s386 + $0x90] sm:$0xff] %vm1477, %v9094
      %9127 = vst.msk [vmem:[%s386 + $0x98] sm:$0xff] %vm1477, %v9095
      %9128 = vst.msk [vmem:[%s386 + $0xa0] sm:$0xff] %vm1477, %v9096
      %9129 = vst.msk [vmem:[%s386 + $0xa8] sm:$0xff] %vm1477, %v9097
      %9130 = vst.msk [vmem:[%s386 + $0xb0] sm:$0xff] %vm1477, %v9098
      %9131 = vst.msk [vmem:[%s386 + $0xb8] sm:$0xff] %vm1477, %v9099
      %9132 = vst.msk [vmem:[%s386 + $0xc0] sm:$0xff] %vm1477, %v9100
      %9133 = vst.msk [vmem:[%s386 + $0xc8] sm:$0xff] %vm1477, %v9101
      %9134 = vst.msk [vmem:[%s386 + $0xd0] sm:$0xff] %vm1477, %v9102
      %9135 = vst.msk [vmem:[%s386 + $0xd8] sm:$0xff] %vm1477, %v9103
      %9136 = vst.msk [vmem:[%s386 + $0xe0] sm:$0xff] %vm1477, %v9104
      %9137 = vst.msk [vmem:[%s386 + $0xe8] sm:$0xff] %vm1477, %v9105
      %9138 = vst.msk [vmem:[%s386 + $0xf0] sm:$0xff] %vm1477, %v9106
      %9139 = vst.msk [vmem:[%s386 + $0xf8] sm:$0xff] %vm1477, %v9107
      %p9140 = scmp.lt.s32.totalorder %s22, 1
      %s9141 = scalar_select %p9140, %s22, 1
      %s9142 = smul.addr %s9141, 32
      %s9143 = smul.addr %s9142, 8
      %s9144 = scalar_lea.vmem %s11, %s9143
      // Predicated region
      $region65: #{dalations_resblock.1} parent=63 // pred_check
        %p9145 = pneg %p276
      $region66: #{dalations_resblock.1} parent=63 // pred_check_branch
        %9147 = sbr.rel (%p9145) target = $region68
      $region67: #{dalations_resblock.1} parent=63 // pred_region
        _
      $region68: #{dalations_resblock.1} parent=63 // pred_fallthru
        _
    $region64: #{dalations_resblock.1} parent=5 // pred_fallthru
      _
    %p9148 = scmp.le.s32.totalorder 2, %s17
    // Predicated region
    $region69: #{dalations_resblock.1} parent=5 // pred_check
      %p9149 = pneg %p9148
    $region70: #{dalations_resblock.1} parent=5 // pred_check_branch
      %9151 = sbr.rel (%p9149) target = $region72
    $region71: #{dalations_resblock.1} parent=5 // pred_region
      %s9152 = ssub.s32 %s17, 2
      // Predicated region
      $region73: #{dalations_resblock.1} parent=71 // pred_check
        %p9153 = pneg %p282
      $region74: #{dalations_resblock.1} parent=71 // pred_check_branch
        %9155 = sbr.rel (%p9153) target = $region76
      $region75: #{dalations_resblock.1} parent=71 // pred_region
        %p9156 = scmp.lt.s32.totalorder %s23, 1
        %s9157 = scalar_select %p9156, %s23, 1
        %s9158 = smul.addr %s9157, 32
        %s9159 = smul.addr %s9158, 8
        %s9160 = scalar_lea.vmem %s11, %s9159
      $region76: #{dalations_resblock.1} parent=71 // pred_fallthru
        _
    $region72: #{dalations_resblock.1} parent=5 // pred_fallthru
      _
  $region6: #{dalations_resblock.1} parent=0 // loop_footer
    %s21 = sadd.s32 1, %s17
  $region7: #{dalations_resblock.1} parent=0 // loop_footer_branch
    %16 = sbr.rel target = $region3
  $region8: #{dalations_resblock.1} parent=0 // loop_exit
    _

</llo_original>
